<compile_context>
chip_gen: v7x
topology: tpu7x:2x2x1
jax: 0.10.0
libtpu: 0.0.40
codegen_flags: <defaults>
</compile_context>

<pallas_src>
import functools

import numpy as np
import jax
import jax.numpy as jnp
from jax.experimental import pallas as pl
from jax.experimental.pallas import tpu as pltpu


H_PAD = 128          # per-gate padded width (lane aligned)
G = 4 * H_PAD        # packed gate width: i | f | g | o blocks of 128 lanes each
BWD_OFF = 64         # lane offset of the backward biLSTM direction inside each gate block
UNROLL_T = 32        # fully unroll time loops for T <= UNROLL_T, else lax.fori_loop


# ---------------------------------------------------------------------------
# Fused kernel: biLSTM -> LSTM128 -> LSTM50 -> fcn -> output_layer
# ---------------------------------------------------------------------------
def _fused_kernel(x_ref,
                  wih_fb_ref, whh_fb_ref, b_fb_ref,     # merged biLSTM (fwd lanes 0..49, bwd 64..113)
                  wih_2_ref, whh_2_ref, b_2_ref,        # LSTM 100 -> 128
                  wih_3_ref, whh_3_ref, b_3_ref,        # LSTM 128 -> 50
                  w1_ref, b1_ref, w2_ref, b2_ref,       # fcn + output_layer
                  out_ref,
                  proj_scr, bi_scr, s2_scr,
                  *, T, BP):
    f32 = jnp.float32
    cdt = x_ref.dtype            # MXU operand dtype: bf16 in production, f32 for validation

    def cell(gates, c_prev):
        # gates: (BP, 4*H_PAD) f32, PyTorch gate order i|f|g|o, one 128-lane block per gate.
        # Padded gate lanes are exactly 0 (zero weight/bias columns) so padded c/h stay 0.
        i = jax.nn.sigmoid(gates[:, 0:H_PAD])
        f = jax.nn.sigmoid(gates[:, H_PAD:2 * H_PAD])
        g = jnp.tanh(gates[:, 2 * H_PAD:3 * H_PAD])
        o = jax.nn.sigmoid(gates[:, 3 * H_PAD:4 * H_PAD])
        c = f * c_prev + i * g
        return o * jnp.tanh(c), c

    def aligned(r):
        return r if isinstance(r, int) else pl.multiple_of(r, BP)

    def time_loop(step, carry):
        if T <= UNROLL_T:
            for t in range(T):
                carry = step(t, carry)
            return carry
        return jax.lax.fori_loop(0, T, step, carry, unroll=4)

    zero = jnp.zeros((BP, H_PAD), f32)

    # -------- Phase 1: bidirectional LSTM, both directions in ONE matmul + ONE cell per step.
    proj_scr[...] = (jnp.dot(x_ref[...], wih_fb_ref[...], preferred_element_type=f32)
                     + b_fb_ref[...]).astype(cdt)
    lane = jax.lax.broadcasted_iota(jnp.int32, (BP, G), 1)
    fwd_lane = (lane & BWD_OFF) == 0          # per gate block: lanes 0..63 fwd, 64..127 bwd

    def phase1_step(t, carry):
        h, c = carry
        rf = aligned(t * BP)                  # forward direction processes time t
        rb = aligned((T - 1 - t) * BP)        # backward direction processes time T-1-t
        g_in = jnp.where(fwd_lane,
                         proj_scr[pl.ds(rf, BP), :],
                         proj_scr[pl.ds(rb, BP), :]).astype(f32)
        # TODO(synk): hold whh resident in the MXU across the loop (pltpu.matmul_push_rhs /
        # matmul_acc_lhs / matmul_pop) — with BP<=16 LHS rows the weight load dominates this dot.
        gates = g_in + jnp.dot(h.astype(cdt), whh_fb_ref[...], preferred_element_type=f32)
        h, c = cell(gates, c)
        h_cd = h.astype(cdt)
        bi_scr[pl.ds(rf, BP), 0:H_PAD] = h_cd              # fwd half of concat (lanes 0..49 real)
        bi_scr[pl.ds(rb, BP), H_PAD:2 * H_PAD] = h_cd      # bwd half (lanes 64..113 real)
        return h, c

    time_loop(phase1_step, (zero, zero))

    # -------- Phase 2: LSTM 100 -> 128 (proj_scr reused: phase-1 projections are dead now).
    proj_scr[...] = (jnp.dot(bi_scr[...], wih_2_ref[...], preferred_element_type=f32)
                     + b_2_ref[...]).astype(cdt)

    def phase2_step(t, carry):
        h, c = carry
        r = aligned(t * BP)
        gates = (proj_scr[pl.ds(r, BP), :].astype(f32)
                 + jnp.dot(h.astype(cdt), whh_2_ref[...], preferred_element_type=f32))
        h, c = cell(gates, c)
        s2_scr[pl.ds(r, BP), :] = h.astype(cdt)
        return h, c

    time_loop(phase2_step, (zero, zero))

    # -------- Phase 3: LSTM 128 -> 50 (only the final hidden state is needed).
    proj_scr[...] = (jnp.dot(s2_scr[...], wih_3_ref[...], preferred_element_type=f32)
                     + b_3_ref[...]).astype(cdt)

    def phase3_step(t, carry):
        h, c = carry
        r = aligned(t * BP)
        gates = (proj_scr[pl.ds(r, BP), :].astype(f32)
                 + jnp.dot(h.astype(cdt), whh_3_ref[...], preferred_element_type=f32))
        return cell(gates, c)

    h, _ = time_loop(phase3_step, (zero, zero))

    # -------- Phase 4: head (fcn + output_layer) fused on the final hidden state.
    z1 = jnp.dot(h.astype(cdt), w1_ref[...], preferred_element_type=f32) + b1_ref[...]
    out_ref[...] = jnp.dot(z1.astype(cdt), w2_ref[...], preferred_element_type=f32) + b2_ref[...]


# ---------------------------------------------------------------------------
# One-time weight packing (outside the forward pass).
# ---------------------------------------------------------------------------
def _scatter_lstm(wih_buf, whh_buf, b_buf, w_ih, w_hh, b_ih, b_hh, row_map, lane_off):
    """Scatter one LSTM's PyTorch weights into lane-aligned packed buffers."""
    w_ih = np.asarray(w_ih, np.float32)
    w_hh = np.asarray(w_hh, np.float32)
    b = np.asarray(b_ih, np.float32) + np.asarray(b_hh, np.float32)
    four_h, _ = w_ih.shape
    H = four_h // 4
    row_map = np.asarray(row_map)
    for k in range(4):                        # PyTorch gate order: i, f, g, o
        cols = slice(k * H_PAD + lane_off, k * H_PAD + lane_off + H)
        wih_buf[row_map, cols] = w_ih[k * H:(k + 1) * H, :].T
        whh_buf[lane_off:lane_off + H, cols] = w_hh[k * H:(k + 1) * H, :].T
        b_buf[0, cols] = b[k * H:(k + 1) * H]


def prepare_params(params, compute_dtype=jnp.bfloat16):
    """Pack PyTorch-layout params into lane-aligned, (optionally bf16) kernel weights."""
    # Phase 1: merge fwd/bwd into one set of packed weights.
    p = params["bilstm"]
    H_bi = p["w_hh"].shape[1]                                        # 50
    wih_fb = np.zeros((128, G), np.float32)
    whh_fb = np.zeros((H_PAD, G), np.float32)
    b_fb = np.zeros((1, G), np.float32)
    _scatter_lstm(wih_fb, whh_fb, b_fb, p["w_ih"], p["w_hh"], p["b_ih"], p["b_hh"],
                  np.arange(128), 0)
    _scatter_lstm(wih_fb, whh_fb, b_fb, p["w_ih_r"], p["w_hh_r"], p["b_ih_r"], p["b_hh_r"],
                  np.arange(128), BWD_OFF)

    # Phase 2: LSTM 100 -> 128.  Its inputs are [fwd 0..49 | bwd 0..49]; the kernel stores
    # them at lanes [0..49] and [128+64..128+113] of the 256-wide bi sequence.
    p = params["lstm128"]
    wih_2 = np.zeros((2 * H_PAD, G), np.float32)
    whh_2 = np.zeros((H_PAD, G), np.float32)
    b_2 = np.zeros((1, G), np.float32)
    row_map2 = np.concatenate([np.arange(H_bi), H_PAD + BWD_OFF + np.arange(H_bi)])
    _scatter_lstm(wih_2, whh_2, b_2, p["w_ih"], p["w_hh"], p["b_ih"], p["b_hh"], row_map2, 0)

    # Phase 3: LSTM 128 -> 50.
    p = params["lstm50"]
    wih_3 = np.zeros((H_PAD, G), np.float32)
    whh_3 = np.zeros((H_PAD, G), np.float32)
    b_3 = np.zeros((1, G), np.float32)
    _scatter_lstm(wih_3, whh_3, b_3, p["w_ih"], p["w_hh"], p["b_ih"], p["b_hh"],
                  np.arange(H_PAD), 0)

    # Head: fcn(50->128) input rows padded 50->128 (padded h lanes are zero).
    fcn_w = np.asarray(params["fcn_w"], np.float32)                  # (128, 50)
    w1_p = np.zeros((H_PAD, fcn_w.shape[0]), np.float32)
    w1_p[:fcn_w.shape[1], :] = fcn_w.T
    b1_p = np.asarray(params["fcn_b"], np.float32).reshape(1, -1)
    out_w = np.asarray(params["out_w"], np.float32)                  # (40, 128)
    w2_p = out_w.T                                                   # (128, 40)
    b2_p = np.asarray(params["out_b"], np.float32).reshape(1, -1)

    def w(a):  # matmul operands in compute dtype (bf16 by default), f32 accumulation in-kernel
        return jnp.asarray(a, compute_dtype)

    def bias(a):  # biases stay f32 (added to the f32 accumulator)
        return jnp.asarray(a, jnp.float32)

    return (w(wih_fb), w(whh_fb), bias(b_fb),
            w(wih_2), w(whh_2), bias(b_2),
            w(wih_3), w(whh_3), bias(b_3),
            w(w1_p), bias(b1_p), w(w2_p), bias(b2_p))


# ---------------------------------------------------------------------------
# Forward pass: one fused pallas_call.
# ---------------------------------------------------------------------------
def feature_extraction_forward(x, prep):
    B, T, F = x.shape
    cdt = prep[0].dtype
    itemsize = jnp.dtype(cdt).itemsize
    row_tile = 8 * (4 // itemsize)               # sublane tile: 8 (f32) / 16 (bf16)
    BP = max(row_tile, ((B + row_tile - 1) // row_tile) * row_tile)

    # Time-major, batch padded to BP, folded to a 2-D (T*BP, F) slab so every per-timestep
    # access in the kernel is a tile-aligned slice.
    x_tm = jnp.transpose(x, (1, 0, 2)).astype(cdt)                   # (T, B, F)
    x_pad = jnp.zeros((T, BP, F), cdt).at[:, :B, :].set(x_tm)
    x2d = x_pad.reshape(T * BP, F)

    out_dim = prep[-1].shape[-1]                                     # 40

    # Scoped-VMEM limit sized from the actual footprint (default 16/32 MiB would reject long T).
    scratch_bytes = T * BP * (G + 2 * H_PAD + H_PAD) * itemsize
    weight_bytes = sum(int(p.size) * p.dtype.itemsize for p in prep)
    total_bytes = scratch_bytes + weight_bytes + x2d.size * itemsize + BP * out_dim * 4
    vmem_limit = int(min(max(total_bytes * 3 // 2 + (2 << 20), 32 << 20), 100 << 20))

    vmem = pl.BlockSpec(memory_space=pltpu.MemorySpace.VMEM)
    out = pl.pallas_call(
        functools.partial(_fused_kernel, T=T, BP=BP),
        out_shape=jax.ShapeDtypeStruct((BP, out_dim), jnp.float32),
        in_specs=[vmem] * (1 + len(prep)),
        out_specs=vmem,
        scratch_shapes=[
            pltpu.VMEM((T * BP, G), cdt),           # projection slab, reused by phases 1/2/3
            pltpu.VMEM((T * BP, 2 * H_PAD), cdt),   # biLSTM output sequence
            pltpu.VMEM((T * BP, H_PAD), cdt),       # lstm128 output sequence
        ],
        compiler_params=pltpu.CompilerParams(vmem_limit_bytes=vmem_limit),
    )(x2d, *prep)
    # TODO(synk): on v7x split phase-1's two direction chains (or the phase-2/3 projections)
    # across the two TensorCores with pl.core_map(pltpu.create_tensorcore_mesh(...)).
    return out[:B]


# ---------------------------------------------------------------------------
# Pure-JAX reference (lax.scan, f32, HIGHEST matmul precision) for correctness checking.
# ---------------------------------------------------------------------------
def _lstm_ref(x_tm, w_ih, w_hh, b_ih, b_hh):
    H = w_ih.shape[0] // 4
    B = x_tm.shape[1]
    b = b_ih + b_hh
    hp = jax.lax.Precision.HIGHEST

    def step(carry, x_t):
        h, c = carry
        gates = (jnp.dot(x_t, w_ih.T, precision=hp)
                 + jnp.dot(h, w_hh.T, precision=hp) + b)
        i, f, g, o = jnp.split(gates, 4, axis=-1)
        c = jax.nn.sigmoid(f) * c + jax.nn.sigmoid(i) * jnp.tanh(g)
        h = jax.nn.sigmoid(o) * jnp.tanh(c)
        return (h, c), h

    init = (jnp.zeros((B, H), jnp.float32), jnp.zeros((B, H), jnp.float32))
    _, hs = jax.lax.scan(step, init, x_tm)
    return hs


def feature_extraction_ref(x, params):
    hp = jax.lax.Precision.HIGHEST
    x_tm = jnp.transpose(x, (1, 0, 2)).astype(jnp.float32)
    p = params["bilstm"]
    fwd = _lstm_ref(x_tm, p["w_ih"], p["w_hh"], p["b_ih"], p["b_hh"])
    bwd = _lstm_ref(x_tm[::-1], p["w_ih_r"], p["w_hh_r"], p["b_ih_r"], p["b_hh_r"])
    bi = jnp.concatenate([fwd, bwd[::-1]], axis=-1)
    p = params["lstm128"]
    h128 = _lstm_ref(bi, p["w_ih"], p["w_hh"], p["b_ih"], p["b_hh"])
    p = params["lstm50"]
    h50 = _lstm_ref(h128, p["w_ih"], p["w_hh"], p["b_ih"], p["b_hh"])
    h_last = h50[-1]
    z = jnp.dot(h_last, params["fcn_w"].T, precision=hp) + params["fcn_b"]
    return jnp.dot(z, params["out_w"].T, precision=hp) + params["out_b"]


# ---------------------------------------------------------------------------
# Deterministic parameter construction (shapes from the nn.Module __init__).
# ---------------------------------------------------------------------------
def make_params(key):
    def rand(key, shape, scale=0.1):
        return scale * jax.random.normal(key, shape, dtype=jnp.float32)

    keys = iter(jax.random.split(key, 32))

    def lstm_params(in_f, hid, reverse=False):
        d = {
            "w_ih": rand(next(keys), (4 * hid, in_f)),
            "w_hh": rand(next(keys), (4 * hid, hid)),
            "b_ih": rand(next(keys), (4 * hid,)),
            "b_hh": rand(next(keys), (4 * hid,)),
        }
        if reverse:
            d.update({
                "w_ih_r": rand(next(keys), (4 * hid, in_f)),
                "w_hh_r": rand(next(keys), (4 * hid, hid)),
                "b_ih_r": rand(next(keys), (4 * hid,)),
                "b_hh_r": rand(next(keys), (4 * hid,)),
            })
        return d

    return {
        "bilstm": lstm_params(128, 50, reverse=True),
        "lstm128": lstm_params(100, 128),
        "lstm50": lstm_params(128, 50),
        "fcn_w": rand(next(keys), (128, 50)),
        "fcn_b": rand(next(keys), (128,)),
        "out_w": rand(next(keys), (40, 128)),
        "out_b": rand(next(keys), (40,)),
    }


if __name__ == "__main__":
    key = jax.random.PRNGKey(0)
    pkey, xkey = jax.random.split(key)
    params = make_params(pkey)

    B, T, F = 2, 8, 128                       # small shapes consistent with input_size=128
    x = jax.random.normal(xkey, (B, T, F), dtype=jnp.float32)

    ref = jax.block_until_ready(feature_extraction_ref(x, params))
    fwd = jax.jit(feature_extraction_forward)

    # f32 compute path: validates the packed gate / row-map layout against the reference.
    out_f32 = jax.block_until_ready(fwd(x, prepare_params(params, jnp.float32)))
    assert out_f32.shape == (B, 40), out_f32.shape
    err_f32 = float(jnp.max(jnp.abs(out_f32 - ref)))
    assert err_f32 < 1.5e-2, f"f32 path mismatch: {err_f32}"

    # bf16-operand / f32-accumulation production path (per performance review).
    out_bf16 = jax.block_until_ready(fwd(x, prepare_params(params, jnp.bfloat16)))
    assert out_bf16.shape == (B, 40), out_bf16.shape
    err_bf16 = float(jnp.max(jnp.abs(out_bf16 - ref)))
    assert err_bf16 < 6e-2, f"bf16 path mismatch: {err_bf16}"

    print("KERNEL_OK")
</pallas_src>

<mosaic_0001>
module attributes {stable_mosaic.version = 11 : i64} {
  func.func @_fused_kernel(%arg0: memref<64x128xf32, #tpu.memory_space<vmem>>, %arg1: memref<128x512xf32, #tpu.memory_space<vmem>>, %arg2: memref<128x512xf32, #tpu.memory_space<vmem>>, %arg3: memref<1x512xf32, #tpu.memory_space<vmem>>, %arg4: memref<256x512xf32, #tpu.memory_space<vmem>>, %arg5: memref<128x512xf32, #tpu.memory_space<vmem>>, %arg6: memref<1x512xf32, #tpu.memory_space<vmem>>, %arg7: memref<128x512xf32, #tpu.memory_space<vmem>>, %arg8: memref<128x512xf32, #tpu.memory_space<vmem>>, %arg9: memref<1x512xf32, #tpu.memory_space<vmem>>, %arg10: memref<128x128xf32, #tpu.memory_space<vmem>>, %arg11: memref<1x128xf32, #tpu.memory_space<vmem>>, %arg12: memref<128x40xf32, #tpu.memory_space<vmem>>, %arg13: memref<1x40xf32, #tpu.memory_space<vmem>>, %arg14: memref<8x40xf32, #tpu.memory_space<vmem>>, %arg15: memref<64x512xf32, #tpu.memory_space<vmem>>, %arg16: memref<64x256xf32, #tpu.memory_space<vmem>>, %arg17: memref<64x128xf32, #tpu.memory_space<vmem>>) attributes {dimension_semantics = [], scalar_prefetch = 0 : i64, scratch_operands = 3 : i64, tpu.core_type = #tpu.core_type<tc>} {
    %cst = arith.constant 0.000000e+00 : f32
    %0 = vector.broadcast %cst : f32 to vector<8x128xf32>
    %c0 = arith.constant 0 : index
    %c0_0 = arith.constant 0 : index
    %1 = vector.load %arg0[%c0, %c0_0] : memref<64x128xf32, #tpu.memory_space<vmem>>, vector<64x128xf32>
    %c0_1 = arith.constant 0 : index
    %c0_2 = arith.constant 0 : index
    %2 = vector.load %arg1[%c0_1, %c0_2] : memref<128x512xf32, #tpu.memory_space<vmem>>, vector<128x512xf32>
    %cst_3 = arith.constant dense<0.000000e+00> : vector<64x512xf32>
    %3 = tpu.matmul %1, %2, %cst_3 {dimension_numbers = #tpu.dot_dimension_numbers<[1], [0], [0], [1], [0, 0, 1, 1], [], []>} : vector<64x128xf32>, vector<128x512xf32>, vector<64x512xf32> -> vector<64x512xf32>
    %c0_4 = arith.constant 0 : index
    %c0_5 = arith.constant 0 : index
    %4 = vector.load %arg3[%c0_4, %c0_5] : memref<1x512xf32, #tpu.memory_space<vmem>>, vector<1x512xf32>
    %5 = vector.broadcast %4 : vector<1x512xf32> to vector<64x512xf32>
    %6 = arith.addf %3, %5 : vector<64x512xf32>
    %c0_6 = arith.constant 0 : index
    %c0_7 = arith.constant 0 : index
    %7 = vector.load %arg15[%c0_6, %c0_7] : memref<64x512xf32, #tpu.memory_space<vmem>>, vector<64x512xf32>
    tpu.vector_store %arg15[%c0_6, %c0_7], %6 {strides = array<i32>} : memref<64x512xf32, #tpu.memory_space<vmem>>, vector<64x512xf32>,
    %8 = tpu.iota {dimensions = array<i32: 1>} : vector<8x512xi32>
    %c64_i32 = arith.constant 64 : i32
    %9 = vector.broadcast %c64_i32 : i32 to vector<8x512xi32>
    %10 = arith.andi %8, %9 : vector<8x512xi32>
    %c0_i32 = arith.constant 0 : i32
    %11 = vector.broadcast %c0_i32 : i32 to vector<8x512xi32>
    %12 = arith.cmpi eq, %10, %11 : vector<8x512xi32>
    %c0_8 = arith.constant 0 : index
    %c0_9 = arith.constant 0 : index
    %13 = vector.load %arg15[%c0_8, %c0_9] : memref<64x512xf32, #tpu.memory_space<vmem>>, vector<8x512xf32>
    %c56 = arith.constant 56 : index
    %c0_10 = arith.constant 0 : index
    %14 = vector.load %arg15[%c56, %c0_10] : memref<64x512xf32, #tpu.memory_space<vmem>>, vector<8x512xf32>
    %15 = arith.select %12, %13, %14 : vector<8x512xi1>, vector<8x512xf32>
    %c0_11 = arith.constant 0 : index
    %c0_12 = arith.constant 0 : index
    %16 = vector.load %arg2[%c0_11, %c0_12] : memref<128x512xf32, #tpu.memory_space<vmem>>, vector<128x512xf32>
    %cst_13 = arith.constant dense<0.000000e+00> : vector<8x512xf32>
    %17 = tpu.matmul %0, %16, %cst_13 {dimension_numbers = #tpu.dot_dimension_numbers<[1], [0], [0], [1], [0, 0, 1, 1], [], []>} : vector<8x128xf32>, vector<128x512xf32>, vector<8x512xf32> -> vector<8x512xf32>
    %18 = arith.addf %15, %17 : vector<8x512xf32>
    %19 = vector.extract_strided_slice %18 {offsets = [0, 0], sizes = [8, 128], strides = [1, 1]} : vector<8x512xf32> to vector<8x128xf32>
    %20 = arith.negf %19 : vector<8x128xf32>
    %21 = math.exp %20 : vector<8x128xf32>
    %cst_14 = arith.constant 1.000000e+00 : f32
    %22 = vector.broadcast %cst_14 : f32 to vector<8x128xf32>
    %23 = arith.addf %22, %21 : vector<8x128xf32>
    %24 = arith.divf %22, %23 : vector<8x128xf32>
    %25 = vector.extract_strided_slice %18 {offsets = [0, 128], sizes = [8, 128], strides = [1, 1]} : vector<8x512xf32> to vector<8x128xf32>
    %26 = arith.negf %25 : vector<8x128xf32>
    %27 = math.exp %26 : vector<8x128xf32>
    %cst_15 = arith.constant 1.000000e+00 : f32
    %28 = vector.broadcast %cst_15 : f32 to vector<8x128xf32>
    %29 = arith.addf %28, %27 : vector<8x128xf32>
    %30 = arith.divf %28, %29 : vector<8x128xf32>
    %31 = vector.extract_strided_slice %18 {offsets = [0, 256], sizes = [8, 128], strides = [1, 1]} : vector<8x512xf32> to vector<8x128xf32>
    %32 = math.tanh %31 : vector<8x128xf32>
    %33 = vector.extract_strided_slice %18 {offsets = [0, 384], sizes = [8, 128], strides = [1, 1]} : vector<8x512xf32> to vector<8x128xf32>
    %34 = arith.negf %33 : vector<8x128xf32>
    %35 = math.exp %34 : vector<8x128xf32>
    %cst_16 = arith.constant 1.000000e+00 : f32
    %36 = vector.broadcast %cst_16 : f32 to vector<8x128xf32>
    %37 = arith.addf %36, %35 : vector<8x128xf32>
    %38 = arith.divf %36, %37 : vector<8x128xf32>
    %39 = arith.mulf %30, %0 : vector<8x128xf32>
    %40 = arith.mulf %24, %32 : vector<8x128xf32>
    %41 = arith.addf %39, %40 : vector<8x128xf32>
    %42 = math.tanh %41 : vector<8x128xf32>
    %43 = arith.mulf %38, %42 : vector<8x128xf32>
    %c0_17 = arith.constant 0 : index
    %c0_18 = arith.constant 0 : index
    %44 = vector.load %arg16[%c0_17, %c0_18] : memref<64x256xf32, #tpu.memory_space<vmem>>, vector<8x128xf32>
    tpu.vector_store %arg16[%c0_17, %c0_18], %43 {strides = array<i32>} : memref<64x256xf32, #tpu.memory_space<vmem>>, vector<8x128xf32>,
    %c56_19 = arith.constant 56 : index
    %c128 = arith.constant 128 : index
    %45 = vector.load %arg16[%c56_19, %c128] : memref<64x256xf32, #tpu.memory_space<vmem>>, vector<8x128xf32>
    tpu.vector_store %arg16[%c56_19, %c128], %43 {strides = array<i32>} : memref<64x256xf32, #tpu.memory_space<vmem>>, vector<8x128xf32>,
    %c8 = arith.constant 8 : index
    %c0_20 = arith.constant 0 : index
    %46 = vector.load %arg15[%c8, %c0_20] : memref<64x512xf32, #tpu.memory_space<vmem>>, vector<8x512xf32>
    %c48 = arith.constant 48 : index
    %c0_21 = arith.constant 0 : index
    %47 = vector.load %arg15[%c48, %c0_21] : memref<64x512xf32, #tpu.memory_space<vmem>>, vector<8x512xf32>
    %48 = arith.select %12, %46, %47 : vector<8x512xi1>, vector<8x512xf32>
    %c0_22 = arith.constant 0 : index
    %c0_23 = arith.constant 0 : index
    %49 = vector.load %arg2[%c0_22, %c0_23] : memref<128x512xf32, #tpu.memory_space<vmem>>, vector<128x512xf32>
    %cst_24 = arith.constant dense<0.000000e+00> : vector<8x512xf32>
    %50 = tpu.matmul %43, %49, %cst_24 {dimension_numbers = #tpu.dot_dimension_numbers<[1], [0], [0], [1], [0, 0, 1, 1], [], []>} : vector<8x128xf32>, vector<128x512xf32>, vector<8x512xf32> -> vector<8x512xf32>
    %51 = arith.addf %48, %50 : vector<8x512xf32>
    %52 = vector.extract_strided_slice %51 {offsets = [0, 0], sizes = [8, 128], strides = [1, 1]} : vector<8x512xf32> to vector<8x128xf32>
    %53 = arith.negf %52 : vector<8x128xf32>
    %54 = math.exp %53 : vector<8x128xf32>
    %cst_25 = arith.constant 1.000000e+00 : f32
    %55 = vector.broadcast %cst_25 : f32 to vector<8x128xf32>
    %56 = arith.addf %55, %54 : vector<8x128xf32>
    %57 = arith.divf %55, %56 : vector<8x128xf32>
    %58 = vector.extract_strided_slice %51 {offsets = [0, 128], sizes = [8, 128], strides = [1, 1]} : vector<8x512xf32> to vector<8x128xf32>
    %59 = arith.negf %58 : vector<8x128xf32>
    %60 = math.exp %59 : vector<8x128xf32>
    %cst_26 = arith.constant 1.000000e+00 : f32
    %61 = vector.broadcast %cst_26 : f32 to vector<8x128xf32>
    %62 = arith.addf %61, %60 : vector<8x128xf32>
    %63 = arith.divf %61, %62 : vector<8x128xf32>
    %64 = vector.extract_strided_slice %51 {offsets = [0, 256], sizes = [8, 128], strides = [1, 1]} : vector<8x512xf32> to vector<8x128xf32>
    %65 = math.tanh %64 : vector<8x128xf32>
    %66 = vector.extract_strided_slice %51 {offsets = [0, 384], sizes = [8, 128], strides = [1, 1]} : vector<8x512xf32> to vector<8x128xf32>
    %67 = arith.negf %66 : vector<8x128xf32>
    %68 = math.exp %67 : vector<8x128xf32>
    %cst_27 = arith.constant 1.000000e+00 : f32
    %69 = vector.broadcast %cst_27 : f32 to vector<8x128xf32>
    %70 = arith.addf %69, %68 : vector<8x128xf32>
    %71 = arith.divf %69, %70 : vector<8x128xf32>
    %72 = arith.mulf %63, %41 : vector<8x128xf32>
    %73 = arith.mulf %57, %65 : vector<8x128xf32>
    %74 = arith.addf %72, %73 : vector<8x128xf32>
    %75 = math.tanh %74 : vector<8x128xf32>
    %76 = arith.mulf %71, %75 : vector<8x128xf32>
    %c8_28 = arith.constant 8 : index
    %c0_29 = arith.constant 0 : index
    %77 = vector.load %arg16[%c8_28, %c0_29] : memref<64x256xf32, #tpu.memory_space<vmem>>, vector<8x128xf32>
    tpu.vector_store %arg16[%c8_28, %c0_29], %76 {strides = array<i32>} : memref<64x256xf32, #tpu.memory_space<vmem>>, vector<8x128xf32>,
    %c48_30 = arith.constant 48 : index
    %c128_31 = arith.constant 128 : index
    %78 = vector.load %arg16[%c48_30, %c128_31] : memref<64x256xf32, #tpu.memory_space<vmem>>, vector<8x128xf32>
    tpu.vector_store %arg16[%c48_30, %c128_31], %76 {strides = array<i32>} : memref<64x256xf32, #tpu.memory_space<vmem>>, vector<8x128xf32>,
    %c16 = arith.constant 16 : index
    %c0_32 = arith.constant 0 : index
    %79 = vector.load %arg15[%c16, %c0_32] : memref<64x512xf32, #tpu.memory_space<vmem>>, vector<8x512xf32>
    %c40 = arith.constant 40 : index
    %c0_33 = arith.constant 0 : index
    %80 = vector.load %arg15[%c40, %c0_33] : memref<64x512xf32, #tpu.memory_space<vmem>>, vector<8x512xf32>
    %81 = arith.select %12, %79, %80 : vector<8x512xi1>, vector<8x512xf32>
    %c0_34 = arith.constant 0 : index
    %c0_35 = arith.constant 0 : index
    %82 = vector.load %arg2[%c0_34, %c0_35] : memref<128x512xf32, #tpu.memory_space<vmem>>, vector<128x512xf32>
    %cst_36 = arith.constant dense<0.000000e+00> : vector<8x512xf32>
    %83 = tpu.matmul %76, %82, %cst_36 {dimension_numbers = #tpu.dot_dimension_numbers<[1], [0], [0], [1], [0, 0, 1, 1], [], []>} : vector<8x128xf32>, vector<128x512xf32>, vector<8x512xf32> -> vector<8x512xf32>
    %84 = arith.addf %81, %83 : vector<8x512xf32>
    %85 = vector.extract_strided_slice %84 {offsets = [0, 0], sizes = [8, 128], strides = [1, 1]} : vector<8x512xf32> to vector<8x128xf32>
    %86 = arith.negf %85 : vector<8x128xf32>
    %87 = math.exp %86 : vector<8x128xf32>
    %cst_37 = arith.constant 1.000000e+00 : f32
    %88 = vector.broadcast %cst_37 : f32 to vector<8x128xf32>
    %89 = arith.addf %88, %87 : vector<8x128xf32>
    %90 = arith.divf %88, %89 : vector<8x128xf32>
    %91 = vector.extract_strided_slice %84 {offsets = [0, 128], sizes = [8, 128], strides = [1, 1]} : vector<8x512xf32> to vector<8x128xf32>
    %92 = arith.negf %91 : vector<8x128xf32>
    %93 = math.exp %92 : vector<8x128xf32>
    %cst_38 = arith.constant 1.000000e+00 : f32
    %94 = vector.broadcast %cst_38 : f32 to vector<8x128xf32>
    %95 = arith.addf %94, %93 : vector<8x128xf32>
    %96 = arith.divf %94, %95 : vector<8x128xf32>
    %97 = vector.extract_strided_slice %84 {offsets = [0, 256], sizes = [8, 128], strides = [1, 1]} : vector<8x512xf32> to vector<8x128xf32>
    %98 = math.tanh %97 : vector<8x128xf32>
    %99 = vector.extract_strided_slice %84 {offsets = [0, 384], sizes = [8, 128], strides = [1, 1]} : vector<8x512xf32> to vector<8x128xf32>
    %100 = arith.negf %99 : vector<8x128xf32>
    %101 = math.exp %100 : vector<8x128xf32>
    %cst_39 = arith.constant 1.000000e+00 : f32
    %102 = vector.broadcast %cst_39 : f32 to vector<8x128xf32>
    %103 = arith.addf %102, %101 : vector<8x128xf32>
    %104 = arith.divf %102, %103 : vector<8x128xf32>
    %105 = arith.mulf %96, %74 : vector<8x128xf32>
    %106 = arith.mulf %90, %98 : vector<8x128xf32>
    %107 = arith.addf %105, %106 : vector<8x128xf32>
    %108 = math.tanh %107 : vector<8x128xf32>
    %109 = arith.mulf %104, %108 : vector<8x128xf32>
    %c16_40 = arith.constant 16 : index
    %c0_41 = arith.constant 0 : index
    %110 = vector.load %arg16[%c16_40, %c0_41] : memref<64x256xf32, #tpu.memory_space<vmem>>, vector<8x128xf32>
    tpu.vector_store %arg16[%c16_40, %c0_41], %109 {strides = array<i32>} : memref<64x256xf32, #tpu.memory_space<vmem>>, vector<8x128xf32>,
    %c40_42 = arith.constant 40 : index
    %c128_43 = arith.constant 128 : index
    %111 = vector.load %arg16[%c40_42, %c128_43] : memref<64x256xf32, #tpu.memory_space<vmem>>, vector<8x128xf32>
    tpu.vector_store %arg16[%c40_42, %c128_43], %109 {strides = array<i32>} : memref<64x256xf32, #tpu.memory_space<vmem>>, vector<8x128xf32>,
    %c24 = arith.constant 24 : index
    %c0_44 = arith.constant 0 : index
    %112 = vector.load %arg15[%c24, %c0_44] : memref<64x512xf32, #tpu.memory_space<vmem>>, vector<8x512xf32>
    %c32 = arith.constant 32 : index
    %c0_45 = arith.constant 0 : index
    %113 = vector.load %arg15[%c32, %c0_45] : memref<64x512xf32, #tpu.memory_space<vmem>>, vector<8x512xf32>
    %114 = arith.select %12, %112, %113 : vector<8x512xi1>, vector<8x512xf32>
    %c0_46 = arith.constant 0 : index
    %c0_47 = arith.constant 0 : index
    %115 = vector.load %arg2[%c0_46, %c0_47] : memref<128x512xf32, #tpu.memory_space<vmem>>, vector<128x512xf32>
    %cst_48 = arith.constant dense<0.000000e+00> : vector<8x512xf32>
    %116 = tpu.matmul %109, %115, %cst_48 {dimension_numbers = #tpu.dot_dimension_numbers<[1], [0], [0], [1], [0, 0, 1, 1], [], []>} : vector<8x128xf32>, vector<128x512xf32>, vector<8x512xf32> -> vector<8x512xf32>
    %117 = arith.addf %114, %116 : vector<8x512xf32>
    %118 = vector.extract_strided_slice %117 {offsets = [0, 0], sizes = [8, 128], strides = [1, 1]} : vector<8x512xf32> to vector<8x128xf32>
    %119 = arith.negf %118 : vector<8x128xf32>
    %120 = math.exp %119 : vector<8x128xf32>
    %cst_49 = arith.constant 1.000000e+00 : f32
    %121 = vector.broadcast %cst_49 : f32 to vector<8x128xf32>
    %122 = arith.addf %121, %120 : vector<8x128xf32>
    %123 = arith.divf %121, %122 : vector<8x128xf32>
    %124 = vector.extract_strided_slice %117 {offsets = [0, 128], sizes = [8, 128], strides = [1, 1]} : vector<8x512xf32> to vector<8x128xf32>
    %125 = arith.negf %124 : vector<8x128xf32>
    %126 = math.exp %125 : vector<8x128xf32>
    %cst_50 = arith.constant 1.000000e+00 : f32
    %127 = vector.broadcast %cst_50 : f32 to vector<8x128xf32>
    %128 = arith.addf %127, %126 : vector<8x128xf32>
    %129 = arith.divf %127, %128 : vector<8x128xf32>
    %130 = vector.extract_strided_slice %117 {offsets = [0, 256], sizes = [8, 128], strides = [1, 1]} : vector<8x512xf32> to vector<8x128xf32>
    %131 = math.tanh %130 : vector<8x128xf32>
    %132 = vector.extract_strided_slice %117 {offsets = [0, 384], sizes = [8, 128], strides = [1, 1]} : vector<8x512xf32> to vector<8x128xf32>
    %133 = arith.negf %132 : vector<8x128xf32>
    %134 = math.exp %133 : vector<8x128xf32>
    %cst_51 = arith.constant 1.000000e+00 : f32
    %135 = vector.broadcast %cst_51 : f32 to vector<8x128xf32>
    %136 = arith.addf %135, %134 : vector<8x128xf32>
    %137 = arith.divf %135, %136 : vector<8x128xf32>
    %138 = arith.mulf %129, %107 : vector<8x128xf32>
    %139 = arith.mulf %123, %131 : vector<8x128xf32>
    %140 = arith.addf %138, %139 : vector<8x128xf32>
    %141 = math.tanh %140 : vector<8x128xf32>
    %142 = arith.mulf %137, %141 : vector<8x128xf32>
    %c24_52 = arith.constant 24 : index
    %c0_53 = arith.constant 0 : index
    %143 = vector.load %arg16[%c24_52, %c0_53] : memref<64x256xf32, #tpu.memory_space<vmem>>, vector<8x128xf32>
    tpu.vector_store %arg16[%c24_52, %c0_53], %142 {strides = array<i32>} : memref<64x256xf32, #tpu.memory_space<vmem>>, vector<8x128xf32>,
    %c32_54 = arith.constant 32 : index
    %c128_55 = arith.constant 128 : index
    %144 = vector.load %arg16[%c32_54, %c128_55] : memref<64x256xf32, #tpu.memory_space<vmem>>, vector<8x128xf32>
    tpu.vector_store %arg16[%c32_54, %c128_55], %142 {strides = array<i32>} : memref<64x256xf32, #tpu.memory_space<vmem>>, vector<8x128xf32>,
    %c32_56 = arith.constant 32 : index
    %c0_57 = arith.constant 0 : index
    %145 = vector.load %arg15[%c32_56, %c0_57] : memref<64x512xf32, #tpu.memory_space<vmem>>, vector<8x512xf32>
    %c24_58 = arith.constant 24 : index
    %c0_59 = arith.constant 0 : index
    %146 = vector.load %arg15[%c24_58, %c0_59] : memref<64x512xf32, #tpu.memory_space<vmem>>, vector<8x512xf32>
    %147 = arith.select %12, %145, %146 : vector<8x512xi1>, vector<8x512xf32>
    %c0_60 = arith.constant 0 : index
    %c0_61 = arith.constant 0 : index
    %148 = vector.load %arg2[%c0_60, %c0_61] : memref<128x512xf32, #tpu.memory_space<vmem>>, vector<128x512xf32>
    %cst_62 = arith.constant dense<0.000000e+00> : vector<8x512xf32>
    %149 = tpu.matmul %142, %148, %cst_62 {dimension_numbers = #tpu.dot_dimension_numbers<[1], [0], [0], [1], [0, 0, 1, 1], [], []>} : vector<8x128xf32>, vector<128x512xf32>, vector<8x512xf32> -> vector<8x512xf32>
    %150 = arith.addf %147, %149 : vector<8x512xf32>
    %151 = vector.extract_strided_slice %150 {offsets = [0, 0], sizes = [8, 128], strides = [1, 1]} : vector<8x512xf32> to vector<8x128xf32>
    %152 = arith.negf %151 : vector<8x128xf32>
    %153 = math.exp %152 : vector<8x128xf32>
    %cst_63 = arith.constant 1.000000e+00 : f32
    %154 = vector.broadcast %cst_63 : f32 to vector<8x128xf32>
    %155 = arith.addf %154, %153 : vector<8x128xf32>
    %156 = arith.divf %154, %155 : vector<8x128xf32>
    %157 = vector.extract_strided_slice %150 {offsets = [0, 128], sizes = [8, 128], strides = [1, 1]} : vector<8x512xf32> to vector<8x128xf32>
    %158 = arith.negf %157 : vector<8x128xf32>
    %159 = math.exp %158 : vector<8x128xf32>
    %cst_64 = arith.constant 1.000000e+00 : f32
    %160 = vector.broadcast %cst_64 : f32 to vector<8x128xf32>
    %161 = arith.addf %160, %159 : vector<8x128xf32>
    %162 = arith.divf %160, %161 : vector<8x128xf32>
    %163 = vector.extract_strided_slice %150 {offsets = [0, 256], sizes = [8, 128], strides = [1, 1]} : vector<8x512xf32> to vector<8x128xf32>
    %164 = math.tanh %163 : vector<8x128xf32>
    %165 = vector.extract_strided_slice %150 {offsets = [0, 384], sizes = [8, 128], strides = [1, 1]} : vector<8x512xf32> to vector<8x128xf32>
    %166 = arith.negf %165 : vector<8x128xf32>
    %167 = math.exp %166 : vector<8x128xf32>
    %cst_65 = arith.constant 1.000000e+00 : f32
    %168 = vector.broadcast %cst_65 : f32 to vector<8x128xf32>
    %169 = arith.addf %168, %167 : vector<8x128xf32>
    %170 = arith.divf %168, %169 : vector<8x128xf32>
    %171 = arith.mulf %162, %140 : vector<8x128xf32>
    %172 = arith.mulf %156, %164 : vector<8x128xf32>
    %173 = arith.addf %171, %172 : vector<8x128xf32>
    %174 = math.tanh %173 : vector<8x128xf32>
    %175 = arith.mulf %170, %174 : vector<8x128xf32>
    %c32_66 = arith.constant 32 : index
    %c0_67 = arith.constant 0 : index
    %176 = vector.load %arg16[%c32_66, %c0_67] : memref<64x256xf32, #tpu.memory_space<vmem>>, vector<8x128xf32>
    tpu.vector_store %arg16[%c32_66, %c0_67], %175 {strides = array<i32>} : memref<64x256xf32, #tpu.memory_space<vmem>>, vector<8x128xf32>,
    %c24_68 = arith.constant 24 : index
    %c128_69 = arith.constant 128 : index
    %177 = vector.load %arg16[%c24_68, %c128_69] : memref<64x256xf32, #tpu.memory_space<vmem>>, vector<8x128xf32>
    tpu.vector_store %arg16[%c24_68, %c128_69], %175 {strides = array<i32>} : memref<64x256xf32, #tpu.memory_space<vmem>>, vector<8x128xf32>,
    %c40_70 = arith.constant 40 : index
    %c0_71 = arith.constant 0 : index
    %178 = vector.load %arg15[%c40_70, %c0_71] : memref<64x512xf32, #tpu.memory_space<vmem>>, vector<8x512xf32>
    %c16_72 = arith.constant 16 : index
    %c0_73 = arith.constant 0 : index
    %179 = vector.load %arg15[%c16_72, %c0_73] : memref<64x512xf32, #tpu.memory_space<vmem>>, vector<8x512xf32>
    %180 = arith.select %12, %178, %179 : vector<8x512xi1>, vector<8x512xf32>
    %c0_74 = arith.constant 0 : index
    %c0_75 = arith.constant 0 : index
    %181 = vector.load %arg2[%c0_74, %c0_75] : memref<128x512xf32, #tpu.memory_space<vmem>>, vector<128x512xf32>
    %cst_76 = arith.constant dense<0.000000e+00> : vector<8x512xf32>
    %182 = tpu.matmul %175, %181, %cst_76 {dimension_numbers = #tpu.dot_dimension_numbers<[1], [0], [0], [1], [0, 0, 1, 1], [], []>} : vector<8x128xf32>, vector<128x512xf32>, vector<8x512xf32> -> vector<8x512xf32>
    %183 = arith.addf %180, %182 : vector<8x512xf32>
    %184 = vector.extract_strided_slice %183 {offsets = [0, 0], sizes = [8, 128], strides = [1, 1]} : vector<8x512xf32> to vector<8x128xf32>
    %185 = arith.negf %184 : vector<8x128xf32>
    %186 = math.exp %185 : vector<8x128xf32>
    %cst_77 = arith.constant 1.000000e+00 : f32
    %187 = vector.broadcast %cst_77 : f32 to vector<8x128xf32>
    %188 = arith.addf %187, %186 : vector<8x128xf32>
    %189 = arith.divf %187, %188 : vector<8x128xf32>
    %190 = vector.extract_strided_slice %183 {offsets = [0, 128], sizes = [8, 128], strides = [1, 1]} : vector<8x512xf32> to vector<8x128xf32>
    %191 = arith.negf %190 : vector<8x128xf32>
    %192 = math.exp %191 : vector<8x128xf32>
    %cst_78 = arith.constant 1.000000e+00 : f32
    %193 = vector.broadcast %cst_78 : f32 to vector<8x128xf32>
    %194 = arith.addf %193, %192 : vector<8x128xf32>
    %195 = arith.divf %193, %194 : vector<8x128xf32>
    %196 = vector.extract_strided_slice %183 {offsets = [0, 256], sizes = [8, 128], strides = [1, 1]} : vector<8x512xf32> to vector<8x128xf32>
    %197 = math.tanh %196 : vector<8x128xf32>
    %198 = vector.extract_strided_slice %183 {offsets = [0, 384], sizes = [8, 128], strides = [1, 1]} : vector<8x512xf32> to vector<8x128xf32>
    %199 = arith.negf %198 : vector<8x128xf32>
    %200 = math.exp %199 : vector<8x128xf32>
    %cst_79 = arith.constant 1.000000e+00 : f32
    %201 = vector.broadcast %cst_79 : f32 to vector<8x128xf32>
    %202 = arith.addf %201, %200 : vector<8x128xf32>
    %203 = arith.divf %201, %202 : vector<8x128xf32>
    %204 = arith.mulf %195, %173 : vector<8x128xf32>
    %205 = arith.mulf %189, %197 : vector<8x128xf32>
    %206 = arith.addf %204, %205 : vector<8x128xf32>
    %207 = math.tanh %206 : vector<8x128xf32>
    %208 = arith.mulf %203, %207 : vector<8x128xf32>
    %c40_80 = arith.constant 40 : index
    %c0_81 = arith.constant 0 : index
    %209 = vector.load %arg16[%c40_80, %c0_81] : memref<64x256xf32, #tpu.memory_space<vmem>>, vector<8x128xf32>
    tpu.vector_store %arg16[%c40_80, %c0_81], %208 {strides = array<i32>} : memref<64x256xf32, #tpu.memory_space<vmem>>, vector<8x128xf32>,
    %c16_82 = arith.constant 16 : index
    %c128_83 = arith.constant 128 : index
    %210 = vector.load %arg16[%c16_82, %c128_83] : memref<64x256xf32, #tpu.memory_space<vmem>>, vector<8x128xf32>
    tpu.vector_store %arg16[%c16_82, %c128_83], %208 {strides = array<i32>} : memref<64x256xf32, #tpu.memory_space<vmem>>, vector<8x128xf32>,
    %c48_84 = arith.constant 48 : index
    %c0_85 = arith.constant 0 : index
    %211 = vector.load %arg15[%c48_84, %c0_85] : memref<64x512xf32, #tpu.memory_space<vmem>>, vector<8x512xf32>
    %c8_86 = arith.constant 8 : index
    %c0_87 = arith.constant 0 : index
    %212 = vector.load %arg15[%c8_86, %c0_87] : memref<64x512xf32, #tpu.memory_space<vmem>>, vector<8x512xf32>
    %213 = arith.select %12, %211, %212 : vector<8x512xi1>, vector<8x512xf32>
    %c0_88 = arith.constant 0 : index
    %c0_89 = arith.constant 0 : index
    %214 = vector.load %arg2[%c0_88, %c0_89] : memref<128x512xf32, #tpu.memory_space<vmem>>, vector<128x512xf32>
    %cst_90 = arith.constant dense<0.000000e+00> : vector<8x512xf32>
    %215 = tpu.matmul %208, %214, %cst_90 {dimension_numbers = #tpu.dot_dimension_numbers<[1], [0], [0], [1], [0, 0, 1, 1], [], []>} : vector<8x128xf32>, vector<128x512xf32>, vector<8x512xf32> -> vector<8x512xf32>
    %216 = arith.addf %213, %215 : vector<8x512xf32>
    %217 = vector.extract_strided_slice %216 {offsets = [0, 0], sizes = [8, 128], strides = [1, 1]} : vector<8x512xf32> to vector<8x128xf32>
    %218 = arith.negf %217 : vector<8x128xf32>
    %219 = math.exp %218 : vector<8x128xf32>
    %cst_91 = arith.constant 1.000000e+00 : f32
    %220 = vector.broadcast %cst_91 : f32 to vector<8x128xf32>
    %221 = arith.addf %220, %219 : vector<8x128xf32>
    %222 = arith.divf %220, %221 : vector<8x128xf32>
    %223 = vector.extract_strided_slice %216 {offsets = [0, 128], sizes = [8, 128], strides = [1, 1]} : vector<8x512xf32> to vector<8x128xf32>
    %224 = arith.negf %223 : vector<8x128xf32>
    %225 = math.exp %224 : vector<8x128xf32>
    %cst_92 = arith.constant 1.000000e+00 : f32
    %226 = vector.broadcast %cst_92 : f32 to vector<8x128xf32>
    %227 = arith.addf %226, %225 : vector<8x128xf32>
    %228 = arith.divf %226, %227 : vector<8x128xf32>
    %229 = vector.extract_strided_slice %216 {offsets = [0, 256], sizes = [8, 128], strides = [1, 1]} : vector<8x512xf32> to vector<8x128xf32>
    %230 = math.tanh %229 : vector<8x128xf32>
    %231 = vector.extract_strided_slice %216 {offsets = [0, 384], sizes = [8, 128], strides = [1, 1]} : vector<8x512xf32> to vector<8x128xf32>
    %232 = arith.negf %231 : vector<8x128xf32>
    %233 = math.exp %232 : vector<8x128xf32>
    %cst_93 = arith.constant 1.000000e+00 : f32
    %234 = vector.broadcast %cst_93 : f32 to vector<8x128xf32>
    %235 = arith.addf %234, %233 : vector<8x128xf32>
    %236 = arith.divf %234, %235 : vector<8x128xf32>
    %237 = arith.mulf %228, %206 : vector<8x128xf32>
    %238 = arith.mulf %222, %230 : vector<8x128xf32>
    %239 = arith.addf %237, %238 : vector<8x128xf32>
    %240 = math.tanh %239 : vector<8x128xf32>
    %241 = arith.mulf %236, %240 : vector<8x128xf32>
    %c48_94 = arith.constant 48 : index
    %c0_95 = arith.constant 0 : index
    %242 = vector.load %arg16[%c48_94, %c0_95] : memref<64x256xf32, #tpu.memory_space<vmem>>, vector<8x128xf32>
    tpu.vector_store %arg16[%c48_94, %c0_95], %241 {strides = array<i32>} : memref<64x256xf32, #tpu.memory_space<vmem>>, vector<8x128xf32>,
    %c8_96 = arith.constant 8 : index
    %c128_97 = arith.constant 128 : index
    %243 = vector.load %arg16[%c8_96, %c128_97] : memref<64x256xf32, #tpu.memory_space<vmem>>, vector<8x128xf32>
    tpu.vector_store %arg16[%c8_96, %c128_97], %241 {strides = array<i32>} : memref<64x256xf32, #tpu.memory_space<vmem>>, vector<8x128xf32>,
    %c56_98 = arith.constant 56 : index
    %c0_99 = arith.constant 0 : index
    %244 = vector.load %arg15[%c56_98, %c0_99] : memref<64x512xf32, #tpu.memory_space<vmem>>, vector<8x512xf32>
    %c0_100 = arith.constant 0 : index
    %c0_101 = arith.constant 0 : index
    %245 = vector.load %arg15[%c0_100, %c0_101] : memref<64x512xf32, #tpu.memory_space<vmem>>, vector<8x512xf32>
    %246 = arith.select %12, %244, %245 : vector<8x512xi1>, vector<8x512xf32>
    %c0_102 = arith.constant 0 : index
    %c0_103 = arith.constant 0 : index
    %247 = vector.load %arg2[%c0_102, %c0_103] : memref<128x512xf32, #tpu.memory_space<vmem>>, vector<128x512xf32>
    %cst_104 = arith.constant dense<0.000000e+00> : vector<8x512xf32>
    %248 = tpu.matmul %241, %247, %cst_104 {dimension_numbers = #tpu.dot_dimension_numbers<[1], [0], [0], [1], [0, 0, 1, 1], [], []>} : vector<8x128xf32>, vector<128x512xf32>, vector<8x512xf32> -> vector<8x512xf32>
    %249 = arith.addf %246, %248 : vector<8x512xf32>
    %250 = vector.extract_strided_slice %249 {offsets = [0, 0], sizes = [8, 128], strides = [1, 1]} : vector<8x512xf32> to vector<8x128xf32>
    %251 = arith.negf %250 : vector<8x128xf32>
    %252 = math.exp %251 : vector<8x128xf32>
    %cst_105 = arith.constant 1.000000e+00 : f32
    %253 = vector.broadcast %cst_105 : f32 to vector<8x128xf32>
    %254 = arith.addf %253, %252 : vector<8x128xf32>
    %255 = arith.divf %253, %254 : vector<8x128xf32>
    %256 = vector.extract_strided_slice %249 {offsets = [0, 128], sizes = [8, 128], strides = [1, 1]} : vector<8x512xf32> to vector<8x128xf32>
    %257 = arith.negf %256 : vector<8x128xf32>
    %258 = math.exp %257 : vector<8x128xf32>
    %cst_106 = arith.constant 1.000000e+00 : f32
    %259 = vector.broadcast %cst_106 : f32 to vector<8x128xf32>
    %260 = arith.addf %259, %258 : vector<8x128xf32>
    %261 = arith.divf %259, %260 : vector<8x128xf32>
    %262 = vector.extract_strided_slice %249 {offsets = [0, 256], sizes = [8, 128], strides = [1, 1]} : vector<8x512xf32> to vector<8x128xf32>
    %263 = math.tanh %262 : vector<8x128xf32>
    %264 = vector.extract_strided_slice %249 {offsets = [0, 384], sizes = [8, 128], strides = [1, 1]} : vector<8x512xf32> to vector<8x128xf32>
    %265 = arith.negf %264 : vector<8x128xf32>
    %266 = math.exp %265 : vector<8x128xf32>
    %cst_107 = arith.constant 1.000000e+00 : f32
    %267 = vector.broadcast %cst_107 : f32 to vector<8x128xf32>
    %268 = arith.addf %267, %266 : vector<8x128xf32>
    %269 = arith.divf %267, %268 : vector<8x128xf32>
    %270 = arith.mulf %261, %239 : vector<8x128xf32>
    %271 = arith.mulf %255, %263 : vector<8x128xf32>
    %272 = arith.addf %270, %271 : vector<8x128xf32>
    %273 = math.tanh %272 : vector<8x128xf32>
    %274 = arith.mulf %269, %273 : vector<8x128xf32>
    %c56_108 = arith.constant 56 : index
    %c0_109 = arith.constant 0 : index
    %275 = vector.load %arg16[%c56_108, %c0_109] : memref<64x256xf32, #tpu.memory_space<vmem>>, vector<8x128xf32>
    tpu.vector_store %arg16[%c56_108, %c0_109], %274 {strides = array<i32>} : memref<64x256xf32, #tpu.memory_space<vmem>>, vector<8x128xf32>,
    %c0_110 = arith.constant 0 : index
    %c128_111 = arith.constant 128 : index
    %276 = vector.load %arg16[%c0_110, %c128_111] : memref<64x256xf32, #tpu.memory_space<vmem>>, vector<8x128xf32>
    tpu.vector_store %arg16[%c0_110, %c128_111], %274 {strides = array<i32>} : memref<64x256xf32, #tpu.memory_space<vmem>>, vector<8x128xf32>,
    %c0_112 = arith.constant 0 : index
    %c0_113 = arith.constant 0 : index
    %277 = vector.load %arg16[%c0_112, %c0_113] : memref<64x256xf32, #tpu.memory_space<vmem>>, vector<64x256xf32>
    %c0_114 = arith.constant 0 : index
    %c0_115 = arith.constant 0 : index
    %278 = vector.load %arg4[%c0_114, %c0_115] : memref<256x512xf32, #tpu.memory_space<vmem>>, vector<256x512xf32>
    %cst_116 = arith.constant dense<0.000000e+00> : vector<64x512xf32>
    %279 = tpu.matmul %277, %278, %cst_116 {dimension_numbers = #tpu.dot_dimension_numbers<[1], [0], [0], [1], [0, 0, 1, 1], [], []>} : vector<64x256xf32>, vector<256x512xf32>, vector<64x512xf32> -> vector<64x512xf32>
    %c0_117 = arith.constant 0 : index
    %c0_118 = arith.constant 0 : index
    %280 = vector.load %arg6[%c0_117, %c0_118] : memref<1x512xf32, #tpu.memory_space<vmem>>, vector<1x512xf32>
    %281 = vector.broadcast %280 : vector<1x512xf32> to vector<64x512xf32>
    %282 = arith.addf %279, %281 : vector<64x512xf32>
    %c0_119 = arith.constant 0 : index
    %c0_120 = arith.constant 0 : index
    %283 = vector.load %arg15[%c0_119, %c0_120] : memref<64x512xf32, #tpu.memory_space<vmem>>, vector<64x512xf32>
    tpu.vector_store %arg15[%c0_119, %c0_120], %282 {strides = array<i32>} : memref<64x512xf32, #tpu.memory_space<vmem>>, vector<64x512xf32>,
    %c0_121 = arith.constant 0 : index
    %c0_122 = arith.constant 0 : index
    %284 = vector.load %arg15[%c0_121, %c0_122] : memref<64x512xf32, #tpu.memory_space<vmem>>, vector<8x512xf32>
    %c0_123 = arith.constant 0 : index
    %c0_124 = arith.constant 0 : index
    %285 = vector.load %arg5[%c0_123, %c0_124] : memref<128x512xf32, #tpu.memory_space<vmem>>, vector<128x512xf32>
    %cst_125 = arith.constant dense<0.000000e+00> : vector<8x512xf32>
    %286 = tpu.matmul %0, %285, %cst_125 {dimension_numbers = #tpu.dot_dimension_numbers<[1], [0], [0], [1], [0, 0, 1, 1], [], []>} : vector<8x128xf32>, vector<128x512xf32>, vector<8x512xf32> -> vector<8x512xf32>
    %287 = arith.addf %284, %286 : vector<8x512xf32>
    %288 = vector.extract_strided_slice %287 {offsets = [0, 0], sizes = [8, 128], strides = [1, 1]} : vector<8x512xf32> to vector<8x128xf32>
    %289 = arith.negf %288 : vector<8x128xf32>
    %290 = math.exp %289 : vector<8x128xf32>
    %cst_126 = arith.constant 1.000000e+00 : f32
    %291 = vector.broadcast %cst_126 : f32 to vector<8x128xf32>
    %292 = arith.addf %291, %290 : vector<8x128xf32>
    %293 = arith.divf %291, %292 : vector<8x128xf32>
    %294 = vector.extract_strided_slice %287 {offsets = [0, 128], sizes = [8, 128], strides = [1, 1]} : vector<8x512xf32> to vector<8x128xf32>
    %295 = arith.negf %294 : vector<8x128xf32>
    %296 = math.exp %295 : vector<8x128xf32>
    %cst_127 = arith.constant 1.000000e+00 : f32
    %297 = vector.broadcast %cst_127 : f32 to vector<8x128xf32>
    %298 = arith.addf %297, %296 : vector<8x128xf32>
    %299 = arith.divf %297, %298 : vector<8x128xf32>
    %300 = vector.extract_strided_slice %287 {offsets = [0, 256], sizes = [8, 128], strides = [1, 1]} : vector<8x512xf32> to vector<8x128xf32>
    %301 = math.tanh %300 : vector<8x128xf32>
    %302 = vector.extract_strided_slice %287 {offsets = [0, 384], sizes = [8, 128], strides = [1, 1]} : vector<8x512xf32> to vector<8x128xf32>
    %303 = arith.negf %302 : vector<8x128xf32>
    %304 = math.exp %303 : vector<8x128xf32>
    %cst_128 = arith.constant 1.000000e+00 : f32
    %305 = vector.broadcast %cst_128 : f32 to vector<8x128xf32>
    %306 = arith.addf %305, %304 : vector<8x128xf32>
    %307 = arith.divf %305, %306 : vector<8x128xf32>
    %308 = arith.mulf %299, %0 : vector<8x128xf32>
    %309 = arith.mulf %293, %301 : vector<8x128xf32>
    %310 = arith.addf %308, %309 : vector<8x128xf32>
    %311 = math.tanh %310 : vector<8x128xf32>
    %312 = arith.mulf %307, %311 : vector<8x128xf32>
    %c0_129 = arith.constant 0 : index
    %c0_130 = arith.constant 0 : index
    %313 = vector.load %arg17[%c0_129, %c0_130] : memref<64x128xf32, #tpu.memory_space<vmem>>, vector<8x128xf32>
    tpu.vector_store %arg17[%c0_129, %c0_130], %312 {strides = array<i32>} : memref<64x128xf32, #tpu.memory_space<vmem>>, vector<8x128xf32>,
    %c8_131 = arith.constant 8 : index
    %c0_132 = arith.constant 0 : index
    %314 = vector.load %arg15[%c8_131, %c0_132] : memref<64x512xf32, #tpu.memory_space<vmem>>, vector<8x512xf32>
    %c0_133 = arith.constant 0 : index
    %c0_134 = arith.constant 0 : index
    %315 = vector.load %arg5[%c0_133, %c0_134] : memref<128x512xf32, #tpu.memory_space<vmem>>, vector<128x512xf32>
    %cst_135 = arith.constant dense<0.000000e+00> : vector<8x512xf32>
    %316 = tpu.matmul %312, %315, %cst_135 {dimension_numbers = #tpu.dot_dimension_numbers<[1], [0], [0], [1], [0, 0, 1, 1], [], []>} : vector<8x128xf32>, vector<128x512xf32>, vector<8x512xf32> -> vector<8x512xf32>
    %317 = arith.addf %314, %316 : vector<8x512xf32>
    %318 = vector.extract_strided_slice %317 {offsets = [0, 0], sizes = [8, 128], strides = [1, 1]} : vector<8x512xf32> to vector<8x128xf32>
    %319 = arith.negf %318 : vector<8x128xf32>
    %320 = math.exp %319 : vector<8x128xf32>
    %cst_136 = arith.constant 1.000000e+00 : f32
    %321 = vector.broadcast %cst_136 : f32 to vector<8x128xf32>
    %322 = arith.addf %321, %320 : vector<8x128xf32>
    %323 = arith.divf %321, %322 : vector<8x128xf32>
    %324 = vector.extract_strided_slice %317 {offsets = [0, 128], sizes = [8, 128], strides = [1, 1]} : vector<8x512xf32> to vector<8x128xf32>
    %325 = arith.negf %324 : vector<8x128xf32>
    %326 = math.exp %325 : vector<8x128xf32>
    %cst_137 = arith.constant 1.000000e+00 : f32
    %327 = vector.broadcast %cst_137 : f32 to vector<8x128xf32>
    %328 = arith.addf %327, %326 : vector<8x128xf32>
    %329 = arith.divf %327, %328 : vector<8x128xf32>
    %330 = vector.extract_strided_slice %317 {offsets = [0, 256], sizes = [8, 128], strides = [1, 1]} : vector<8x512xf32> to vector<8x128xf32>
    %331 = math.tanh %330 : vector<8x128xf32>
    %332 = vector.extract_strided_slice %317 {offsets = [0, 384], sizes = [8, 128], strides = [1, 1]} : vector<8x512xf32> to vector<8x128xf32>
    %333 = arith.negf %332 : vector<8x128xf32>
    %334 = math.exp %333 : vector<8x128xf32>
    %cst_138 = arith.constant 1.000000e+00 : f32
    %335 = vector.broadcast %cst_138 : f32 to vector<8x128xf32>
    %336 = arith.addf %335, %334 : vector<8x128xf32>
    %337 = arith.divf %335, %336 : vector<8x128xf32>
    %338 = arith.mulf %329, %310 : vector<8x128xf32>
    %339 = arith.mulf %323, %331 : vector<8x128xf32>
    %340 = arith.addf %338, %339 : vector<8x128xf32>
    %341 = math.tanh %340 : vector<8x128xf32>
    %342 = arith.mulf %337, %341 : vector<8x128xf32>
    %c8_139 = arith.constant 8 : index
    %c0_140 = arith.constant 0 : index
    %343 = vector.load %arg17[%c8_139, %c0_140] : memref<64x128xf32, #tpu.memory_space<vmem>>, vector<8x128xf32>
    tpu.vector_store %arg17[%c8_139, %c0_140], %342 {strides = array<i32>} : memref<64x128xf32, #tpu.memory_space<vmem>>, vector<8x128xf32>,
    %c16_141 = arith.constant 16 : index
    %c0_142 = arith.constant 0 : index
    %344 = vector.load %arg15[%c16_141, %c0_142] : memref<64x512xf32, #tpu.memory_space<vmem>>, vector<8x512xf32>
    %c0_143 = arith.constant 0 : index
    %c0_144 = arith.constant 0 : index
    %345 = vector.load %arg5[%c0_143, %c0_144] : memref<128x512xf32, #tpu.memory_space<vmem>>, vector<128x512xf32>
    %cst_145 = arith.constant dense<0.000000e+00> : vector<8x512xf32>
    %346 = tpu.matmul %342, %345, %cst_145 {dimension_numbers = #tpu.dot_dimension_numbers<[1], [0], [0], [1], [0, 0, 1, 1], [], []>} : vector<8x128xf32>, vector<128x512xf32>, vector<8x512xf32> -> vector<8x512xf32>
    %347 = arith.addf %344, %346 : vector<8x512xf32>
    %348 = vector.extract_strided_slice %347 {offsets = [0, 0], sizes = [8, 128], strides = [1, 1]} : vector<8x512xf32> to vector<8x128xf32>
    %349 = arith.negf %348 : vector<8x128xf32>
    %350 = math.exp %349 : vector<8x128xf32>
    %cst_146 = arith.constant 1.000000e+00 : f32
    %351 = vector.broadcast %cst_146 : f32 to vector<8x128xf32>
    %352 = arith.addf %351, %350 : vector<8x128xf32>
    %353 = arith.divf %351, %352 : vector<8x128xf32>
    %354 = vector.extract_strided_slice %347 {offsets = [0, 128], sizes = [8, 128], strides = [1, 1]} : vector<8x512xf32> to vector<8x128xf32>
    %355 = arith.negf %354 : vector<8x128xf32>
    %356 = math.exp %355 : vector<8x128xf32>
    %cst_147 = arith.constant 1.000000e+00 : f32
    %357 = vector.broadcast %cst_147 : f32 to vector<8x128xf32>
    %358 = arith.addf %357, %356 : vector<8x128xf32>
    %359 = arith.divf %357, %358 : vector<8x128xf32>
    %360 = vector.extract_strided_slice %347 {offsets = [0, 256], sizes = [8, 128], strides = [1, 1]} : vector<8x512xf32> to vector<8x128xf32>
    %361 = math.tanh %360 : vector<8x128xf32>
    %362 = vector.extract_strided_slice %347 {offsets = [0, 384], sizes = [8, 128], strides = [1, 1]} : vector<8x512xf32> to vector<8x128xf32>
    %363 = arith.negf %362 : vector<8x128xf32>
    %364 = math.exp %363 : vector<8x128xf32>
    %cst_148 = arith.constant 1.000000e+00 : f32
    %365 = vector.broadcast %cst_148 : f32 to vector<8x128xf32>
    %366 = arith.addf %365, %364 : vector<8x128xf32>
    %367 = arith.divf %365, %366 : vector<8x128xf32>
    %368 = arith.mulf %359, %340 : vector<8x128xf32>
    %369 = arith.mulf %353, %361 : vector<8x128xf32>
    %370 = arith.addf %368, %369 : vector<8x128xf32>
    %371 = math.tanh %370 : vector<8x128xf32>
    %372 = arith.mulf %367, %371 : vector<8x128xf32>
    %c16_149 = arith.constant 16 : index
    %c0_150 = arith.constant 0 : index
    %373 = vector.load %arg17[%c16_149, %c0_150] : memref<64x128xf32, #tpu.memory_space<vmem>>, vector<8x128xf32>
    tpu.vector_store %arg17[%c16_149, %c0_150], %372 {strides = array<i32>} : memref<64x128xf32, #tpu.memory_space<vmem>>, vector<8x128xf32>,
    %c24_151 = arith.constant 24 : index
    %c0_152 = arith.constant 0 : index
    %374 = vector.load %arg15[%c24_151, %c0_152] : memref<64x512xf32, #tpu.memory_space<vmem>>, vector<8x512xf32>
    %c0_153 = arith.constant 0 : index
    %c0_154 = arith.constant 0 : index
    %375 = vector.load %arg5[%c0_153, %c0_154] : memref<128x512xf32, #tpu.memory_space<vmem>>, vector<128x512xf32>
    %cst_155 = arith.constant dense<0.000000e+00> : vector<8x512xf32>
    %376 = tpu.matmul %372, %375, %cst_155 {dimension_numbers = #tpu.dot_dimension_numbers<[1], [0], [0], [1], [0, 0, 1, 1], [], []>} : vector<8x128xf32>, vector<128x512xf32>, vector<8x512xf32> -> vector<8x512xf32>
    %377 = arith.addf %374, %376 : vector<8x512xf32>
    %378 = vector.extract_strided_slice %377 {offsets = [0, 0], sizes = [8, 128], strides = [1, 1]} : vector<8x512xf32> to vector<8x128xf32>
    %379 = arith.negf %378 : vector<8x128xf32>
    %380 = math.exp %379 : vector<8x128xf32>
    %cst_156 = arith.constant 1.000000e+00 : f32
    %381 = vector.broadcast %cst_156 : f32 to vector<8x128xf32>
    %382 = arith.addf %381, %380 : vector<8x128xf32>
    %383 = arith.divf %381, %382 : vector<8x128xf32>
    %384 = vector.extract_strided_slice %377 {offsets = [0, 128], sizes = [8, 128], strides = [1, 1]} : vector<8x512xf32> to vector<8x128xf32>
    %385 = arith.negf %384 : vector<8x128xf32>
    %386 = math.exp %385 : vector<8x128xf32>
    %cst_157 = arith.constant 1.000000e+00 : f32
    %387 = vector.broadcast %cst_157 : f32 to vector<8x128xf32>
    %388 = arith.addf %387, %386 : vector<8x128xf32>
    %389 = arith.divf %387, %388 : vector<8x128xf32>
    %390 = vector.extract_strided_slice %377 {offsets = [0, 256], sizes = [8, 128], strides = [1, 1]} : vector<8x512xf32> to vector<8x128xf32>
    %391 = math.tanh %390 : vector<8x128xf32>
    %392 = vector.extract_strided_slice %377 {offsets = [0, 384], sizes = [8, 128], strides = [1, 1]} : vector<8x512xf32> to vector<8x128xf32>
    %393 = arith.negf %392 : vector<8x128xf32>
    %394 = math.exp %393 : vector<8x128xf32>
    %cst_158 = arith.constant 1.000000e+00 : f32
    %395 = vector.broadcast %cst_158 : f32 to vector<8x128xf32>
    %396 = arith.addf %395, %394 : vector<8x128xf32>
    %397 = arith.divf %395, %396 : vector<8x128xf32>
    %398 = arith.mulf %389, %370 : vector<8x128xf32>
    %399 = arith.mulf %383, %391 : vector<8x128xf32>
    %400 = arith.addf %398, %399 : vector<8x128xf32>
    %401 = math.tanh %400 : vector<8x128xf32>
    %402 = arith.mulf %397, %401 : vector<8x128xf32>
    %c24_159 = arith.constant 24 : index
    %c0_160 = arith.constant 0 : index
    %403 = vector.load %arg17[%c24_159, %c0_160] : memref<64x128xf32, #tpu.memory_space<vmem>>, vector<8x128xf32>
    tpu.vector_store %arg17[%c24_159, %c0_160], %402 {strides = array<i32>} : memref<64x128xf32, #tpu.memory_space<vmem>>, vector<8x128xf32>,
    %c32_161 = arith.constant 32 : index
    %c0_162 = arith.constant 0 : index
    %404 = vector.load %arg15[%c32_161, %c0_162] : memref<64x512xf32, #tpu.memory_space<vmem>>, vector<8x512xf32>
    %c0_163 = arith.constant 0 : index
    %c0_164 = arith.constant 0 : index
    %405 = vector.load %arg5[%c0_163, %c0_164] : memref<128x512xf32, #tpu.memory_space<vmem>>, vector<128x512xf32>
    %cst_165 = arith.constant dense<0.000000e+00> : vector<8x512xf32>
    %406 = tpu.matmul %402, %405, %cst_165 {dimension_numbers = #tpu.dot_dimension_numbers<[1], [0], [0], [1], [0, 0, 1, 1], [], []>} : vector<8x128xf32>, vector<128x512xf32>, vector<8x512xf32> -> vector<8x512xf32>
    %407 = arith.addf %404, %406 : vector<8x512xf32>
    %408 = vector.extract_strided_slice %407 {offsets = [0, 0], sizes = [8, 128], strides = [1, 1]} : vector<8x512xf32> to vector<8x128xf32>
    %409 = arith.negf %408 : vector<8x128xf32>
    %410 = math.exp %409 : vector<8x128xf32>
    %cst_166 = arith.constant 1.000000e+00 : f32
    %411 = vector.broadcast %cst_166 : f32 to vector<8x128xf32>
    %412 = arith.addf %411, %410 : vector<8x128xf32>
    %413 = arith.divf %411, %412 : vector<8x128xf32>
    %414 = vector.extract_strided_slice %407 {offsets = [0, 128], sizes = [8, 128], strides = [1, 1]} : vector<8x512xf32> to vector<8x128xf32>
    %415 = arith.negf %414 : vector<8x128xf32>
    %416 = math.exp %415 : vector<8x128xf32>
    %cst_167 = arith.constant 1.000000e+00 : f32
    %417 = vector.broadcast %cst_167 : f32 to vector<8x128xf32>
    %418 = arith.addf %417, %416 : vector<8x128xf32>
    %419 = arith.divf %417, %418 : vector<8x128xf32>
    %420 = vector.extract_strided_slice %407 {offsets = [0, 256], sizes = [8, 128], strides = [1, 1]} : vector<8x512xf32> to vector<8x128xf32>
    %421 = math.tanh %420 : vector<8x128xf32>
    %422 = vector.extract_strided_slice %407 {offsets = [0, 384], sizes = [8, 128], strides = [1, 1]} : vector<8x512xf32> to vector<8x128xf32>
    %423 = arith.negf %422 : vector<8x128xf32>
    %424 = math.exp %423 : vector<8x128xf32>
    %cst_168 = arith.constant 1.000000e+00 : f32
    %425 = vector.broadcast %cst_168 : f32 to vector<8x128xf32>
    %426 = arith.addf %425, %424 : vector<8x128xf32>
    %427 = arith.divf %425, %426 : vector<8x128xf32>
    %428 = arith.mulf %419, %400 : vector<8x128xf32>
    %429 = arith.mulf %413, %421 : vector<8x128xf32>
    %430 = arith.addf %428, %429 : vector<8x128xf32>
    %431 = math.tanh %430 : vector<8x128xf32>
    %432 = arith.mulf %427, %431 : vector<8x128xf32>
    %c32_169 = arith.constant 32 : index
    %c0_170 = arith.constant 0 : index
    %433 = vector.load %arg17[%c32_169, %c0_170] : memref<64x128xf32, #tpu.memory_space<vmem>>, vector<8x128xf32>
    tpu.vector_store %arg17[%c32_169, %c0_170], %432 {strides = array<i32>} : memref<64x128xf32, #tpu.memory_space<vmem>>, vector<8x128xf32>,
    %c40_171 = arith.constant 40 : index
    %c0_172 = arith.constant 0 : index
    %434 = vector.load %arg15[%c40_171, %c0_172] : memref<64x512xf32, #tpu.memory_space<vmem>>, vector<8x512xf32>
    %c0_173 = arith.constant 0 : index
    %c0_174 = arith.constant 0 : index
    %435 = vector.load %arg5[%c0_173, %c0_174] : memref<128x512xf32, #tpu.memory_space<vmem>>, vector<128x512xf32>
    %cst_175 = arith.constant dense<0.000000e+00> : vector<8x512xf32>
    %436 = tpu.matmul %432, %435, %cst_175 {dimension_numbers = #tpu.dot_dimension_numbers<[1], [0], [0], [1], [0, 0, 1, 1], [], []>} : vector<8x128xf32>, vector<128x512xf32>, vector<8x512xf32> -> vector<8x512xf32>
    %437 = arith.addf %434, %436 : vector<8x512xf32>
    %438 = vector.extract_strided_slice %437 {offsets = [0, 0], sizes = [8, 128], strides = [1, 1]} : vector<8x512xf32> to vector<8x128xf32>
    %439 = arith.negf %438 : vector<8x128xf32>
    %440 = math.exp %439 : vector<8x128xf32>
    %cst_176 = arith.constant 1.000000e+00 : f32
    %441 = vector.broadcast %cst_176 : f32 to vector<8x128xf32>
    %442 = arith.addf %441, %440 : vector<8x128xf32>
    %443 = arith.divf %441, %442 : vector<8x128xf32>
    %444 = vector.extract_strided_slice %437 {offsets = [0, 128], sizes = [8, 128], strides = [1, 1]} : vector<8x512xf32> to vector<8x128xf32>
    %445 = arith.negf %444 : vector<8x128xf32>
    %446 = math.exp %445 : vector<8x128xf32>
    %cst_177 = arith.constant 1.000000e+00 : f32
    %447 = vector.broadcast %cst_177 : f32 to vector<8x128xf32>
    %448 = arith.addf %447, %446 : vector<8x128xf32>
    %449 = arith.divf %447, %448 : vector<8x128xf32>
    %450 = vector.extract_strided_slice %437 {offsets = [0, 256], sizes = [8, 128], strides = [1, 1]} : vector<8x512xf32> to vector<8x128xf32>
    %451 = math.tanh %450 : vector<8x128xf32>
    %452 = vector.extract_strided_slice %437 {offsets = [0, 384], sizes = [8, 128], strides = [1, 1]} : vector<8x512xf32> to vector<8x128xf32>
    %453 = arith.negf %452 : vector<8x128xf32>
    %454 = math.exp %453 : vector<8x128xf32>
    %cst_178 = arith.constant 1.000000e+00 : f32
    %455 = vector.broadcast %cst_178 : f32 to vector<8x128xf32>
    %456 = arith.addf %455, %454 : vector<8x128xf32>
    %457 = arith.divf %455, %456 : vector<8x128xf32>
    %458 = arith.mulf %449, %430 : vector<8x128xf32>
    %459 = arith.mulf %443, %451 : vector<8x128xf32>
    %460 = arith.addf %458, %459 : vector<8x128xf32>
    %461 = math.tanh %460 : vector<8x128xf32>
    %462 = arith.mulf %457, %461 : vector<8x128xf32>
    %c40_179 = arith.constant 40 : index
    %c0_180 = arith.constant 0 : index
    %463 = vector.load %arg17[%c40_179, %c0_180] : memref<64x128xf32, #tpu.memory_space<vmem>>, vector<8x128xf32>
    tpu.vector_store %arg17[%c40_179, %c0_180], %462 {strides = array<i32>} : memref<64x128xf32, #tpu.memory_space<vmem>>, vector<8x128xf32>,
    %c48_181 = arith.constant 48 : index
    %c0_182 = arith.constant 0 : index
    %464 = vector.load %arg15[%c48_181, %c0_182] : memref<64x512xf32, #tpu.memory_space<vmem>>, vector<8x512xf32>
    %c0_183 = arith.constant 0 : index
    %c0_184 = arith.constant 0 : index
    %465 = vector.load %arg5[%c0_183, %c0_184] : memref<128x512xf32, #tpu.memory_space<vmem>>, vector<128x512xf32>
    %cst_185 = arith.constant dense<0.000000e+00> : vector<8x512xf32>
    %466 = tpu.matmul %462, %465, %cst_185 {dimension_numbers = #tpu.dot_dimension_numbers<[1], [0], [0], [1], [0, 0, 1, 1], [], []>} : vector<8x128xf32>, vector<128x512xf32>, vector<8x512xf32> -> vector<8x512xf32>
    %467 = arith.addf %464, %466 : vector<8x512xf32>
    %468 = vector.extract_strided_slice %467 {offsets = [0, 0], sizes = [8, 128], strides = [1, 1]} : vector<8x512xf32> to vector<8x128xf32>
    %469 = arith.negf %468 : vector<8x128xf32>
    %470 = math.exp %469 : vector<8x128xf32>
    %cst_186 = arith.constant 1.000000e+00 : f32
    %471 = vector.broadcast %cst_186 : f32 to vector<8x128xf32>
    %472 = arith.addf %471, %470 : vector<8x128xf32>
    %473 = arith.divf %471, %472 : vector<8x128xf32>
    %474 = vector.extract_strided_slice %467 {offsets = [0, 128], sizes = [8, 128], strides = [1, 1]} : vector<8x512xf32> to vector<8x128xf32>
    %475 = arith.negf %474 : vector<8x128xf32>
    %476 = math.exp %475 : vector<8x128xf32>
    %cst_187 = arith.constant 1.000000e+00 : f32
    %477 = vector.broadcast %cst_187 : f32 to vector<8x128xf32>
    %478 = arith.addf %477, %476 : vector<8x128xf32>
    %479 = arith.divf %477, %478 : vector<8x128xf32>
    %480 = vector.extract_strided_slice %467 {offsets = [0, 256], sizes = [8, 128], strides = [1, 1]} : vector<8x512xf32> to vector<8x128xf32>
    %481 = math.tanh %480 : vector<8x128xf32>
    %482 = vector.extract_strided_slice %467 {offsets = [0, 384], sizes = [8, 128], strides = [1, 1]} : vector<8x512xf32> to vector<8x128xf32>
    %483 = arith.negf %482 : vector<8x128xf32>
    %484 = math.exp %483 : vector<8x128xf32>
    %cst_188 = arith.constant 1.000000e+00 : f32
    %485 = vector.broadcast %cst_188 : f32 to vector<8x128xf32>
    %486 = arith.addf %485, %484 : vector<8x128xf32>
    %487 = arith.divf %485, %486 : vector<8x128xf32>
    %488 = arith.mulf %479, %460 : vector<8x128xf32>
    %489 = arith.mulf %473, %481 : vector<8x128xf32>
    %490 = arith.addf %488, %489 : vector<8x128xf32>
    %491 = math.tanh %490 : vector<8x128xf32>
    %492 = arith.mulf %487, %491 : vector<8x128xf32>
    %c48_189 = arith.constant 48 : index
    %c0_190 = arith.constant 0 : index
    %493 = vector.load %arg17[%c48_189, %c0_190] : memref<64x128xf32, #tpu.memory_space<vmem>>, vector<8x128xf32>
    tpu.vector_store %arg17[%c48_189, %c0_190], %492 {strides = array<i32>} : memref<64x128xf32, #tpu.memory_space<vmem>>, vector<8x128xf32>,
    %c56_191 = arith.constant 56 : index
    %c0_192 = arith.constant 0 : index
    %494 = vector.load %arg15[%c56_191, %c0_192] : memref<64x512xf32, #tpu.memory_space<vmem>>, vector<8x512xf32>
    %c0_193 = arith.constant 0 : index
    %c0_194 = arith.constant 0 : index
    %495 = vector.load %arg5[%c0_193, %c0_194] : memref<128x512xf32, #tpu.memory_space<vmem>>, vector<128x512xf32>
    %cst_195 = arith.constant dense<0.000000e+00> : vector<8x512xf32>
    %496 = tpu.matmul %492, %495, %cst_195 {dimension_numbers = #tpu.dot_dimension_numbers<[1], [0], [0], [1], [0, 0, 1, 1], [], []>} : vector<8x128xf32>, vector<128x512xf32>, vector<8x512xf32> -> vector<8x512xf32>
    %497 = arith.addf %494, %496 : vector<8x512xf32>
    %498 = vector.extract_strided_slice %497 {offsets = [0, 0], sizes = [8, 128], strides = [1, 1]} : vector<8x512xf32> to vector<8x128xf32>
    %499 = arith.negf %498 : vector<8x128xf32>
    %500 = math.exp %499 : vector<8x128xf32>
    %cst_196 = arith.constant 1.000000e+00 : f32
    %501 = vector.broadcast %cst_196 : f32 to vector<8x128xf32>
    %502 = arith.addf %501, %500 : vector<8x128xf32>
    %503 = arith.divf %501, %502 : vector<8x128xf32>
    %504 = vector.extract_strided_slice %497 {offsets = [0, 128], sizes = [8, 128], strides = [1, 1]} : vector<8x512xf32> to vector<8x128xf32>
    %505 = arith.negf %504 : vector<8x128xf32>
    %506 = math.exp %505 : vector<8x128xf32>
    %cst_197 = arith.constant 1.000000e+00 : f32
    %507 = vector.broadcast %cst_197 : f32 to vector<8x128xf32>
    %508 = arith.addf %507, %506 : vector<8x128xf32>
    %509 = arith.divf %507, %508 : vector<8x128xf32>
    %510 = vector.extract_strided_slice %497 {offsets = [0, 256], sizes = [8, 128], strides = [1, 1]} : vector<8x512xf32> to vector<8x128xf32>
    %511 = math.tanh %510 : vector<8x128xf32>
    %512 = vector.extract_strided_slice %497 {offsets = [0, 384], sizes = [8, 128], strides = [1, 1]} : vector<8x512xf32> to vector<8x128xf32>
    %513 = arith.negf %512 : vector<8x128xf32>
    %514 = math.exp %513 : vector<8x128xf32>
    %cst_198 = arith.constant 1.000000e+00 : f32
    %515 = vector.broadcast %cst_198 : f32 to vector<8x128xf32>
    %516 = arith.addf %515, %514 : vector<8x128xf32>
    %517 = arith.divf %515, %516 : vector<8x128xf32>
    %518 = arith.mulf %509, %490 : vector<8x128xf32>
    %519 = arith.mulf %503, %511 : vector<8x128xf32>
    %520 = arith.addf %518, %519 : vector<8x128xf32>
    %521 = math.tanh %520 : vector<8x128xf32>
    %522 = arith.mulf %517, %521 : vector<8x128xf32>
    %c56_199 = arith.constant 56 : index
    %c0_200 = arith.constant 0 : index
    %523 = vector.load %arg17[%c56_199, %c0_200] : memref<64x128xf32, #tpu.memory_space<vmem>>, vector<8x128xf32>
    tpu.vector_store %arg17[%c56_199, %c0_200], %522 {strides = array<i32>} : memref<64x128xf32, #tpu.memory_space<vmem>>, vector<8x128xf32>,
    %c0_201 = arith.constant 0 : index
    %c0_202 = arith.constant 0 : index
    %524 = vector.load %arg17[%c0_201, %c0_202] : memref<64x128xf32, #tpu.memory_space<vmem>>, vector<64x128xf32>
    %c0_203 = arith.constant 0 : index
    %c0_204 = arith.constant 0 : index
    %525 = vector.load %arg7[%c0_203, %c0_204] : memref<128x512xf32, #tpu.memory_space<vmem>>, vector<128x512xf32>
    %cst_205 = arith.constant dense<0.000000e+00> : vector<64x512xf32>
    %526 = tpu.matmul %524, %525, %cst_205 {dimension_numbers = #tpu.dot_dimension_numbers<[1], [0], [0], [1], [0, 0, 1, 1], [], []>} : vector<64x128xf32>, vector<128x512xf32>, vector<64x512xf32> -> vector<64x512xf32>
    %c0_206 = arith.constant 0 : index
    %c0_207 = arith.constant 0 : index
    %527 = vector.load %arg9[%c0_206, %c0_207] : memref<1x512xf32, #tpu.memory_space<vmem>>, vector<1x512xf32>
    %528 = vector.broadcast %527 : vector<1x512xf32> to vector<64x512xf32>
    %529 = arith.addf %526, %528 : vector<64x512xf32>
    %c0_208 = arith.constant 0 : index
    %c0_209 = arith.constant 0 : index
    %530 = vector.load %arg15[%c0_208, %c0_209] : memref<64x512xf32, #tpu.memory_space<vmem>>, vector<64x512xf32>
    tpu.vector_store %arg15[%c0_208, %c0_209], %529 {strides = array<i32>} : memref<64x512xf32, #tpu.memory_space<vmem>>, vector<64x512xf32>,
    %c0_210 = arith.constant 0 : index
    %c0_211 = arith.constant 0 : index
    %531 = vector.load %arg15[%c0_210, %c0_211] : memref<64x512xf32, #tpu.memory_space<vmem>>, vector<8x512xf32>
    %c0_212 = arith.constant 0 : index
    %c0_213 = arith.constant 0 : index
    %532 = vector.load %arg8[%c0_212, %c0_213] : memref<128x512xf32, #tpu.memory_space<vmem>>, vector<128x512xf32>
    %cst_214 = arith.constant dense<0.000000e+00> : vector<8x512xf32>
    %533 = tpu.matmul %0, %532, %cst_214 {dimension_numbers = #tpu.dot_dimension_numbers<[1], [0], [0], [1], [0, 0, 1, 1], [], []>} : vector<8x128xf32>, vector<128x512xf32>, vector<8x512xf32> -> vector<8x512xf32>
    %534 = arith.addf %531, %533 : vector<8x512xf32>
    %535 = vector.extract_strided_slice %534 {offsets = [0, 0], sizes = [8, 128], strides = [1, 1]} : vector<8x512xf32> to vector<8x128xf32>
    %536 = arith.negf %535 : vector<8x128xf32>
    %537 = math.exp %536 : vector<8x128xf32>
    %cst_215 = arith.constant 1.000000e+00 : f32
    %538 = vector.broadcast %cst_215 : f32 to vector<8x128xf32>
    %539 = arith.addf %538, %537 : vector<8x128xf32>
    %540 = arith.divf %538, %539 : vector<8x128xf32>
    %541 = vector.extract_strided_slice %534 {offsets = [0, 128], sizes = [8, 128], strides = [1, 1]} : vector<8x512xf32> to vector<8x128xf32>
    %542 = arith.negf %541 : vector<8x128xf32>
    %543 = math.exp %542 : vector<8x128xf32>
    %cst_216 = arith.constant 1.000000e+00 : f32
    %544 = vector.broadcast %cst_216 : f32 to vector<8x128xf32>
    %545 = arith.addf %544, %543 : vector<8x128xf32>
    %546 = arith.divf %544, %545 : vector<8x128xf32>
    %547 = vector.extract_strided_slice %534 {offsets = [0, 256], sizes = [8, 128], strides = [1, 1]} : vector<8x512xf32> to vector<8x128xf32>
    %548 = math.tanh %547 : vector<8x128xf32>
    %549 = vector.extract_strided_slice %534 {offsets = [0, 384], sizes = [8, 128], strides = [1, 1]} : vector<8x512xf32> to vector<8x128xf32>
    %550 = arith.negf %549 : vector<8x128xf32>
    %551 = math.exp %550 : vector<8x128xf32>
    %cst_217 = arith.constant 1.000000e+00 : f32
    %552 = vector.broadcast %cst_217 : f32 to vector<8x128xf32>
    %553 = arith.addf %552, %551 : vector<8x128xf32>
    %554 = arith.divf %552, %553 : vector<8x128xf32>
    %555 = arith.mulf %546, %0 : vector<8x128xf32>
    %556 = arith.mulf %540, %548 : vector<8x128xf32>
    %557 = arith.addf %555, %556 : vector<8x128xf32>
    %558 = math.tanh %557 : vector<8x128xf32>
    %559 = arith.mulf %554, %558 : vector<8x128xf32>
    %c8_218 = arith.constant 8 : index
    %c0_219 = arith.constant 0 : index
    %560 = vector.load %arg15[%c8_218, %c0_219] : memref<64x512xf32, #tpu.memory_space<vmem>>, vector<8x512xf32>
    %c0_220 = arith.constant 0 : index
    %c0_221 = arith.constant 0 : index
    %561 = vector.load %arg8[%c0_220, %c0_221] : memref<128x512xf32, #tpu.memory_space<vmem>>, vector<128x512xf32>
    %cst_222 = arith.constant dense<0.000000e+00> : vector<8x512xf32>
    %562 = tpu.matmul %559, %561, %cst_222 {dimension_numbers = #tpu.dot_dimension_numbers<[1], [0], [0], [1], [0, 0, 1, 1], [], []>} : vector<8x128xf32>, vector<128x512xf32>, vector<8x512xf32> -> vector<8x512xf32>
    %563 = arith.addf %560, %562 : vector<8x512xf32>
    %564 = vector.extract_strided_slice %563 {offsets = [0, 0], sizes = [8, 128], strides = [1, 1]} : vector<8x512xf32> to vector<8x128xf32>
    %565 = arith.negf %564 : vector<8x128xf32>
    %566 = math.exp %565 : vector<8x128xf32>
    %cst_223 = arith.constant 1.000000e+00 : f32
    %567 = vector.broadcast %cst_223 : f32 to vector<8x128xf32>
    %568 = arith.addf %567, %566 : vector<8x128xf32>
    %569 = arith.divf %567, %568 : vector<8x128xf32>
    %570 = vector.extract_strided_slice %563 {offsets = [0, 128], sizes = [8, 128], strides = [1, 1]} : vector<8x512xf32> to vector<8x128xf32>
    %571 = arith.negf %570 : vector<8x128xf32>
    %572 = math.exp %571 : vector<8x128xf32>
    %cst_224 = arith.constant 1.000000e+00 : f32
    %573 = vector.broadcast %cst_224 : f32 to vector<8x128xf32>
    %574 = arith.addf %573, %572 : vector<8x128xf32>
    %575 = arith.divf %573, %574 : vector<8x128xf32>
    %576 = vector.extract_strided_slice %563 {offsets = [0, 256], sizes = [8, 128], strides = [1, 1]} : vector<8x512xf32> to vector<8x128xf32>
    %577 = math.tanh %576 : vector<8x128xf32>
    %578 = vector.extract_strided_slice %563 {offsets = [0, 384], sizes = [8, 128], strides = [1, 1]} : vector<8x512xf32> to vector<8x128xf32>
    %579 = arith.negf %578 : vector<8x128xf32>
    %580 = math.exp %579 : vector<8x128xf32>
    %cst_225 = arith.constant 1.000000e+00 : f32
    %581 = vector.broadcast %cst_225 : f32 to vector<8x128xf32>
    %582 = arith.addf %581, %580 : vector<8x128xf32>
    %583 = arith.divf %581, %582 : vector<8x128xf32>
    %584 = arith.mulf %575, %557 : vector<8x128xf32>
    %585 = arith.mulf %569, %577 : vector<8x128xf32>
    %586 = arith.addf %584, %585 : vector<8x128xf32>
    %587 = math.tanh %586 : vector<8x128xf32>
    %588 = arith.mulf %583, %587 : vector<8x128xf32>
    %c16_226 = arith.constant 16 : index
    %c0_227 = arith.constant 0 : index
    %589 = vector.load %arg15[%c16_226, %c0_227] : memref<64x512xf32, #tpu.memory_space<vmem>>, vector<8x512xf32>
    %c0_228 = arith.constant 0 : index
    %c0_229 = arith.constant 0 : index
    %590 = vector.load %arg8[%c0_228, %c0_229] : memref<128x512xf32, #tpu.memory_space<vmem>>, vector<128x512xf32>
    %cst_230 = arith.constant dense<0.000000e+00> : vector<8x512xf32>
    %591 = tpu.matmul %588, %590, %cst_230 {dimension_numbers = #tpu.dot_dimension_numbers<[1], [0], [0], [1], [0, 0, 1, 1], [], []>} : vector<8x128xf32>, vector<128x512xf32>, vector<8x512xf32> -> vector<8x512xf32>
    %592 = arith.addf %589, %591 : vector<8x512xf32>
    %593 = vector.extract_strided_slice %592 {offsets = [0, 0], sizes = [8, 128], strides = [1, 1]} : vector<8x512xf32> to vector<8x128xf32>
    %594 = arith.negf %593 : vector<8x128xf32>
    %595 = math.exp %594 : vector<8x128xf32>
    %cst_231 = arith.constant 1.000000e+00 : f32
    %596 = vector.broadcast %cst_231 : f32 to vector<8x128xf32>
    %597 = arith.addf %596, %595 : vector<8x128xf32>
    %598 = arith.divf %596, %597 : vector<8x128xf32>
    %599 = vector.extract_strided_slice %592 {offsets = [0, 128], sizes = [8, 128], strides = [1, 1]} : vector<8x512xf32> to vector<8x128xf32>
    %600 = arith.negf %599 : vector<8x128xf32>
    %601 = math.exp %600 : vector<8x128xf32>
    %cst_232 = arith.constant 1.000000e+00 : f32
    %602 = vector.broadcast %cst_232 : f32 to vector<8x128xf32>
    %603 = arith.addf %602, %601 : vector<8x128xf32>
    %604 = arith.divf %602, %603 : vector<8x128xf32>
    %605 = vector.extract_strided_slice %592 {offsets = [0, 256], sizes = [8, 128], strides = [1, 1]} : vector<8x512xf32> to vector<8x128xf32>
    %606 = math.tanh %605 : vector<8x128xf32>
    %607 = vector.extract_strided_slice %592 {offsets = [0, 384], sizes = [8, 128], strides = [1, 1]} : vector<8x512xf32> to vector<8x128xf32>
    %608 = arith.negf %607 : vector<8x128xf32>
    %609 = math.exp %608 : vector<8x128xf32>
    %cst_233 = arith.constant 1.000000e+00 : f32
    %610 = vector.broadcast %cst_233 : f32 to vector<8x128xf32>
    %611 = arith.addf %610, %609 : vector<8x128xf32>
    %612 = arith.divf %610, %611 : vector<8x128xf32>
    %613 = arith.mulf %604, %586 : vector<8x128xf32>
    %614 = arith.mulf %598, %606 : vector<8x128xf32>
    %615 = arith.addf %613, %614 : vector<8x128xf32>
    %616 = math.tanh %615 : vector<8x128xf32>
    %617 = arith.mulf %612, %616 : vector<8x128xf32>
    %c24_234 = arith.constant 24 : index
    %c0_235 = arith.constant 0 : index
    %618 = vector.load %arg15[%c24_234, %c0_235] : memref<64x512xf32, #tpu.memory_space<vmem>>, vector<8x512xf32>
    %c0_236 = arith.constant 0 : index
    %c0_237 = arith.constant 0 : index
    %619 = vector.load %arg8[%c0_236, %c0_237] : memref<128x512xf32, #tpu.memory_space<vmem>>, vector<128x512xf32>
    %cst_238 = arith.constant dense<0.000000e+00> : vector<8x512xf32>
    %620 = tpu.matmul %617, %619, %cst_238 {dimension_numbers = #tpu.dot_dimension_numbers<[1], [0], [0], [1], [0, 0, 1, 1], [], []>} : vector<8x128xf32>, vector<128x512xf32>, vector<8x512xf32> -> vector<8x512xf32>
    %621 = arith.addf %618, %620 : vector<8x512xf32>
    %622 = vector.extract_strided_slice %621 {offsets = [0, 0], sizes = [8, 128], strides = [1, 1]} : vector<8x512xf32> to vector<8x128xf32>
    %623 = arith.negf %622 : vector<8x128xf32>
    %624 = math.exp %623 : vector<8x128xf32>
    %cst_239 = arith.constant 1.000000e+00 : f32
    %625 = vector.broadcast %cst_239 : f32 to vector<8x128xf32>
    %626 = arith.addf %625, %624 : vector<8x128xf32>
    %627 = arith.divf %625, %626 : vector<8x128xf32>
    %628 = vector.extract_strided_slice %621 {offsets = [0, 128], sizes = [8, 128], strides = [1, 1]} : vector<8x512xf32> to vector<8x128xf32>
    %629 = arith.negf %628 : vector<8x128xf32>
    %630 = math.exp %629 : vector<8x128xf32>
    %cst_240 = arith.constant 1.000000e+00 : f32
    %631 = vector.broadcast %cst_240 : f32 to vector<8x128xf32>
    %632 = arith.addf %631, %630 : vector<8x128xf32>
    %633 = arith.divf %631, %632 : vector<8x128xf32>
    %634 = vector.extract_strided_slice %621 {offsets = [0, 256], sizes = [8, 128], strides = [1, 1]} : vector<8x512xf32> to vector<8x128xf32>
    %635 = math.tanh %634 : vector<8x128xf32>
    %636 = vector.extract_strided_slice %621 {offsets = [0, 384], sizes = [8, 128], strides = [1, 1]} : vector<8x512xf32> to vector<8x128xf32>
    %637 = arith.negf %636 : vector<8x128xf32>
    %638 = math.exp %637 : vector<8x128xf32>
    %cst_241 = arith.constant 1.000000e+00 : f32
    %639 = vector.broadcast %cst_241 : f32 to vector<8x128xf32>
    %640 = arith.addf %639, %638 : vector<8x128xf32>
    %641 = arith.divf %639, %640 : vector<8x128xf32>
    %642 = arith.mulf %633, %615 : vector<8x128xf32>
    %643 = arith.mulf %627, %635 : vector<8x128xf32>
    %644 = arith.addf %642, %643 : vector<8x128xf32>
    %645 = math.tanh %644 : vector<8x128xf32>
    %646 = arith.mulf %641, %645 : vector<8x128xf32>
    %c32_242 = arith.constant 32 : index
    %c0_243 = arith.constant 0 : index
    %647 = vector.load %arg15[%c32_242, %c0_243] : memref<64x512xf32, #tpu.memory_space<vmem>>, vector<8x512xf32>
    %c0_244 = arith.constant 0 : index
    %c0_245 = arith.constant 0 : index
    %648 = vector.load %arg8[%c0_244, %c0_245] : memref<128x512xf32, #tpu.memory_space<vmem>>, vector<128x512xf32>
    %cst_246 = arith.constant dense<0.000000e+00> : vector<8x512xf32>
    %649 = tpu.matmul %646, %648, %cst_246 {dimension_numbers = #tpu.dot_dimension_numbers<[1], [0], [0], [1], [0, 0, 1, 1], [], []>} : vector<8x128xf32>, vector<128x512xf32>, vector<8x512xf32> -> vector<8x512xf32>
    %650 = arith.addf %647, %649 : vector<8x512xf32>
    %651 = vector.extract_strided_slice %650 {offsets = [0, 0], sizes = [8, 128], strides = [1, 1]} : vector<8x512xf32> to vector<8x128xf32>
    %652 = arith.negf %651 : vector<8x128xf32>
    %653 = math.exp %652 : vector<8x128xf32>
    %cst_247 = arith.constant 1.000000e+00 : f32
    %654 = vector.broadcast %cst_247 : f32 to vector<8x128xf32>
    %655 = arith.addf %654, %653 : vector<8x128xf32>
    %656 = arith.divf %654, %655 : vector<8x128xf32>
    %657 = vector.extract_strided_slice %650 {offsets = [0, 128], sizes = [8, 128], strides = [1, 1]} : vector<8x512xf32> to vector<8x128xf32>
    %658 = arith.negf %657 : vector<8x128xf32>
    %659 = math.exp %658 : vector<8x128xf32>
    %cst_248 = arith.constant 1.000000e+00 : f32
    %660 = vector.broadcast %cst_248 : f32 to vector<8x128xf32>
    %661 = arith.addf %660, %659 : vector<8x128xf32>
    %662 = arith.divf %660, %661 : vector<8x128xf32>
    %663 = vector.extract_strided_slice %650 {offsets = [0, 256], sizes = [8, 128], strides = [1, 1]} : vector<8x512xf32> to vector<8x128xf32>
    %664 = math.tanh %663 : vector<8x128xf32>
    %665 = vector.extract_strided_slice %650 {offsets = [0, 384], sizes = [8, 128], strides = [1, 1]} : vector<8x512xf32> to vector<8x128xf32>
    %666 = arith.negf %665 : vector<8x128xf32>
    %667 = math.exp %666 : vector<8x128xf32>
    %cst_249 = arith.constant 1.000000e+00 : f32
    %668 = vector.broadcast %cst_249 : f32 to vector<8x128xf32>
    %669 = arith.addf %668, %667 : vector<8x128xf32>
    %670 = arith.divf %668, %669 : vector<8x128xf32>
    %671 = arith.mulf %662, %644 : vector<8x128xf32>
    %672 = arith.mulf %656, %664 : vector<8x128xf32>
    %673 = arith.addf %671, %672 : vector<8x128xf32>
    %674 = math.tanh %673 : vector<8x128xf32>
    %675 = arith.mulf %670, %674 : vector<8x128xf32>
    %c40_250 = arith.constant 40 : index
    %c0_251 = arith.constant 0 : index
    %676 = vector.load %arg15[%c40_250, %c0_251] : memref<64x512xf32, #tpu.memory_space<vmem>>, vector<8x512xf32>
    %c0_252 = arith.constant 0 : index
    %c0_253 = arith.constant 0 : index
    %677 = vector.load %arg8[%c0_252, %c0_253] : memref<128x512xf32, #tpu.memory_space<vmem>>, vector<128x512xf32>
    %cst_254 = arith.constant dense<0.000000e+00> : vector<8x512xf32>
    %678 = tpu.matmul %675, %677, %cst_254 {dimension_numbers = #tpu.dot_dimension_numbers<[1], [0], [0], [1], [0, 0, 1, 1], [], []>} : vector<8x128xf32>, vector<128x512xf32>, vector<8x512xf32> -> vector<8x512xf32>
    %679 = arith.addf %676, %678 : vector<8x512xf32>
    %680 = vector.extract_strided_slice %679 {offsets = [0, 0], sizes = [8, 128], strides = [1, 1]} : vector<8x512xf32> to vector<8x128xf32>
    %681 = arith.negf %680 : vector<8x128xf32>
    %682 = math.exp %681 : vector<8x128xf32>
    %cst_255 = arith.constant 1.000000e+00 : f32
    %683 = vector.broadcast %cst_255 : f32 to vector<8x128xf32>
    %684 = arith.addf %683, %682 : vector<8x128xf32>
    %685 = arith.divf %683, %684 : vector<8x128xf32>
    %686 = vector.extract_strided_slice %679 {offsets = [0, 128], sizes = [8, 128], strides = [1, 1]} : vector<8x512xf32> to vector<8x128xf32>
    %687 = arith.negf %686 : vector<8x128xf32>
    %688 = math.exp %687 : vector<8x128xf32>
    %cst_256 = arith.constant 1.000000e+00 : f32
    %689 = vector.broadcast %cst_256 : f32 to vector<8x128xf32>
    %690 = arith.addf %689, %688 : vector<8x128xf32>
    %691 = arith.divf %689, %690 : vector<8x128xf32>
    %692 = vector.extract_strided_slice %679 {offsets = [0, 256], sizes = [8, 128], strides = [1, 1]} : vector<8x512xf32> to vector<8x128xf32>
    %693 = math.tanh %692 : vector<8x128xf32>
    %694 = vector.extract_strided_slice %679 {offsets = [0, 384], sizes = [8, 128], strides = [1, 1]} : vector<8x512xf32> to vector<8x128xf32>
    %695 = arith.negf %694 : vector<8x128xf32>
    %696 = math.exp %695 : vector<8x128xf32>
    %cst_257 = arith.constant 1.000000e+00 : f32
    %697 = vector.broadcast %cst_257 : f32 to vector<8x128xf32>
    %698 = arith.addf %697, %696 : vector<8x128xf32>
    %699 = arith.divf %697, %698 : vector<8x128xf32>
    %700 = arith.mulf %691, %673 : vector<8x128xf32>
    %701 = arith.mulf %685, %693 : vector<8x128xf32>
    %702 = arith.addf %700, %701 : vector<8x128xf32>
    %703 = math.tanh %702 : vector<8x128xf32>
    %704 = arith.mulf %699, %703 : vector<8x128xf32>
    %c48_258 = arith.constant 48 : index
    %c0_259 = arith.constant 0 : index
    %705 = vector.load %arg15[%c48_258, %c0_259] : memref<64x512xf32, #tpu.memory_space<vmem>>, vector<8x512xf32>
    %c0_260 = arith.constant 0 : index
    %c0_261 = arith.constant 0 : index
    %706 = vector.load %arg8[%c0_260, %c0_261] : memref<128x512xf32, #tpu.memory_space<vmem>>, vector<128x512xf32>
    %cst_262 = arith.constant dense<0.000000e+00> : vector<8x512xf32>
    %707 = tpu.matmul %704, %706, %cst_262 {dimension_numbers = #tpu.dot_dimension_numbers<[1], [0], [0], [1], [0, 0, 1, 1], [], []>} : vector<8x128xf32>, vector<128x512xf32>, vector<8x512xf32> -> vector<8x512xf32>
    %708 = arith.addf %705, %707 : vector<8x512xf32>
    %709 = vector.extract_strided_slice %708 {offsets = [0, 0], sizes = [8, 128], strides = [1, 1]} : vector<8x512xf32> to vector<8x128xf32>
    %710 = arith.negf %709 : vector<8x128xf32>
    %711 = math.exp %710 : vector<8x128xf32>
    %cst_263 = arith.constant 1.000000e+00 : f32
    %712 = vector.broadcast %cst_263 : f32 to vector<8x128xf32>
    %713 = arith.addf %712, %711 : vector<8x128xf32>
    %714 = arith.divf %712, %713 : vector<8x128xf32>
    %715 = vector.extract_strided_slice %708 {offsets = [0, 128], sizes = [8, 128], strides = [1, 1]} : vector<8x512xf32> to vector<8x128xf32>
    %716 = arith.negf %715 : vector<8x128xf32>
    %717 = math.exp %716 : vector<8x128xf32>
    %cst_264 = arith.constant 1.000000e+00 : f32
    %718 = vector.broadcast %cst_264 : f32 to vector<8x128xf32>
    %719 = arith.addf %718, %717 : vector<8x128xf32>
    %720 = arith.divf %718, %719 : vector<8x128xf32>
    %721 = vector.extract_strided_slice %708 {offsets = [0, 256], sizes = [8, 128], strides = [1, 1]} : vector<8x512xf32> to vector<8x128xf32>
    %722 = math.tanh %721 : vector<8x128xf32>
    %723 = vector.extract_strided_slice %708 {offsets = [0, 384], sizes = [8, 128], strides = [1, 1]} : vector<8x512xf32> to vector<8x128xf32>
    %724 = arith.negf %723 : vector<8x128xf32>
    %725 = math.exp %724 : vector<8x128xf32>
    %cst_265 = arith.constant 1.000000e+00 : f32
    %726 = vector.broadcast %cst_265 : f32 to vector<8x128xf32>
    %727 = arith.addf %726, %725 : vector<8x128xf32>
    %728 = arith.divf %726, %727 : vector<8x128xf32>
    %729 = arith.mulf %720, %702 : vector<8x128xf32>
    %730 = arith.mulf %714, %722 : vector<8x128xf32>
    %731 = arith.addf %729, %730 : vector<8x128xf32>
    %732 = math.tanh %731 : vector<8x128xf32>
    %733 = arith.mulf %728, %732 : vector<8x128xf32>
    %c56_266 = arith.constant 56 : index
    %c0_267 = arith.constant 0 : index
    %734 = vector.load %arg15[%c56_266, %c0_267] : memref<64x512xf32, #tpu.memory_space<vmem>>, vector<8x512xf32>
    %c0_268 = arith.constant 0 : index
    %c0_269 = arith.constant 0 : index
    %735 = vector.load %arg8[%c0_268, %c0_269] : memref<128x512xf32, #tpu.memory_space<vmem>>, vector<128x512xf32>
    %cst_270 = arith.constant dense<0.000000e+00> : vector<8x512xf32>
    %736 = tpu.matmul %733, %735, %cst_270 {dimension_numbers = #tpu.dot_dimension_numbers<[1], [0], [0], [1], [0, 0, 1, 1], [], []>} : vector<8x128xf32>, vector<128x512xf32>, vector<8x512xf32> -> vector<8x512xf32>
    %737 = arith.addf %734, %736 : vector<8x512xf32>
    %738 = vector.extract_strided_slice %737 {offsets = [0, 0], sizes = [8, 128], strides = [1, 1]} : vector<8x512xf32> to vector<8x128xf32>
    %739 = arith.negf %738 : vector<8x128xf32>
    %740 = math.exp %739 : vector<8x128xf32>
    %cst_271 = arith.constant 1.000000e+00 : f32
    %741 = vector.broadcast %cst_271 : f32 to vector<8x128xf32>
    %742 = arith.addf %741, %740 : vector<8x128xf32>
    %743 = arith.divf %741, %742 : vector<8x128xf32>
    %744 = vector.extract_strided_slice %737 {offsets = [0, 128], sizes = [8, 128], strides = [1, 1]} : vector<8x512xf32> to vector<8x128xf32>
    %745 = arith.negf %744 : vector<8x128xf32>
    %746 = math.exp %745 : vector<8x128xf32>
    %cst_272 = arith.constant 1.000000e+00 : f32
    %747 = vector.broadcast %cst_272 : f32 to vector<8x128xf32>
    %748 = arith.addf %747, %746 : vector<8x128xf32>
    %749 = arith.divf %747, %748 : vector<8x128xf32>
    %750 = vector.extract_strided_slice %737 {offsets = [0, 256], sizes = [8, 128], strides = [1, 1]} : vector<8x512xf32> to vector<8x128xf32>
    %751 = math.tanh %750 : vector<8x128xf32>
    %752 = vector.extract_strided_slice %737 {offsets = [0, 384], sizes = [8, 128], strides = [1, 1]} : vector<8x512xf32> to vector<8x128xf32>
    %753 = arith.negf %752 : vector<8x128xf32>
    %754 = math.exp %753 : vector<8x128xf32>
    %cst_273 = arith.constant 1.000000e+00 : f32
    %755 = vector.broadcast %cst_273 : f32 to vector<8x128xf32>
    %756 = arith.addf %755, %754 : vector<8x128xf32>
    %757 = arith.divf %755, %756 : vector<8x128xf32>
    %758 = arith.mulf %749, %731 : vector<8x128xf32>
    %759 = arith.mulf %743, %751 : vector<8x128xf32>
    %760 = arith.addf %758, %759 : vector<8x128xf32>
    %761 = math.tanh %760 : vector<8x128xf32>
    %762 = arith.mulf %757, %761 : vector<8x128xf32>
    %c0_274 = arith.constant 0 : index
    %c0_275 = arith.constant 0 : index
    %763 = vector.load %arg10[%c0_274, %c0_275] : memref<128x128xf32, #tpu.memory_space<vmem>>, vector<128x128xf32>
    %cst_276 = arith.constant dense<0.000000e+00> : vector<8x128xf32>
    %764 = tpu.matmul %762, %763, %cst_276 {dimension_numbers = #tpu.dot_dimension_numbers<[1], [0], [0], [1], [0, 0, 1, 1], [], []>} : vector<8x128xf32>, vector<128x128xf32>, vector<8x128xf32> -> vector<8x128xf32>
    %c0_277 = arith.constant 0 : index
    %c0_278 = arith.constant 0 : index
    %765 = vector.load %arg11[%c0_277, %c0_278] : memref<1x128xf32, #tpu.memory_space<vmem>>, vector<1x128xf32>
    %766 = vector.broadcast %765 : vector<1x128xf32> to vector<8x128xf32>
    %767 = arith.addf %764, %766 : vector<8x128xf32>
    %c0_279 = arith.constant 0 : index
    %c0_280 = arith.constant 0 : index
    %768 = vector.load %arg12[%c0_279, %c0_280] : memref<128x40xf32, #tpu.memory_space<vmem>>, vector<128x40xf32>
    %cst_281 = arith.constant dense<0.000000e+00> : vector<8x40xf32>
    %769 = tpu.matmul %767, %768, %cst_281 {dimension_numbers = #tpu.dot_dimension_numbers<[1], [0], [0], [1], [0, 0, 1, 1], [], []>} : vector<8x128xf32>, vector<128x40xf32>, vector<8x40xf32> -> vector<8x40xf32>
    %c0_282 = arith.constant 0 : index
    %c0_283 = arith.constant 0 : index
    %770 = vector.load %arg13[%c0_282, %c0_283] : memref<1x40xf32, #tpu.memory_space<vmem>>, vector<1x40xf32>
    %771 = vector.broadcast %770 : vector<1x40xf32> to vector<8x40xf32>
    %772 = arith.addf %769, %771 : vector<8x40xf32>
    %c0_284 = arith.constant 0 : index
    %c0_285 = arith.constant 0 : index
    %773 = vector.load %arg14[%c0_284, %c0_285] : memref<8x40xf32, #tpu.memory_space<vmem>>, vector<8x40xf32>
    tpu.vector_store %arg14[%c0_284, %c0_285], %772 {strides = array<i32>} : memref<8x40xf32, #tpu.memory_space<vmem>>, vector<8x40xf32>,
    return
  }
}

</mosaic_0001>

<llo_original>
// kernel: feature_extraction_forward.1
$region0: #{feature_extraction_forward.1}
  #allocation0 [shape = 'u32[]', space=smem, size = 0x4, offset = 0x4, fixed_abs, tag = 'smem constant byte address 0x4 - core index']
  #allocation1 [shape = 'u32[144,128]{1,0:T(1,128)}', space=vmem, size = 0x12000, scoped, tag = 'internal scratch']
  #allocation2 [shape = 'f32[64,512]{1,0:T(8,128)}', space=vmem, size = 0x20000, scoped, tag = 'scratch operand']
  #allocation3 [shape = 'f32[64,256]{1,0:T(8,128)}', space=vmem, size = 0x10000, scoped, tag = 'scratch operand']
  #allocation4 [shape = 'f32[64,128]{1,0:T(8,128)}', space=vmem, size = 0x8000, scoped, tag = 'scratch operand']
  %s0 = inlined_call_operand.vmem [shape: f32[64,128], index: 0, kind: input, shape index: {}]
  %s1 = inlined_call_operand.hbm [shape: f32[128,512], index: 1, kind: input, shape index: {}]
  %s2 = inlined_call_operand.hbm [shape: f32[128,512], index: 2, kind: input, shape index: {}]
  %s3 = inlined_call_operand.vmem [shape: f32[1,512], index: 3, kind: input, shape index: {}]
  %s4 = inlined_call_operand.hbm [shape: f32[256,512], index: 4, kind: input, shape index: {}]
  %s5 = inlined_call_operand.hbm [shape: f32[128,512], index: 5, kind: input, shape index: {}]
  %s6 = inlined_call_operand.vmem [shape: f32[1,512], index: 6, kind: input, shape index: {}]
  %s7 = inlined_call_operand.hbm [shape: f32[128,512], index: 7, kind: input, shape index: {}]
  %s8 = inlined_call_operand.hbm [shape: f32[128,512], index: 8, kind: input, shape index: {}]
  %s9 = inlined_call_operand.vmem [shape: f32[1,512], index: 9, kind: input, shape index: {}]
  %s10 = inlined_call_operand.vmem [shape: f32[128,128], index: 10, kind: input, shape index: {}]
  %s11 = inlined_call_operand.vmem [shape: f32[1,128], index: 11, kind: input, shape index: {}]
  %s12 = inlined_call_operand.vmem [shape: f32[128,40], index: 12, kind: input, shape index: {}]
  %s13 = inlined_call_operand.vmem [shape: f32[1,40], index: 13, kind: input, shape index: {}]
  %s14 = inlined_call_operand.vmem [shape: f32[8,40], index: 14, kind: output, shape index: {}]
  %s15 = sld [smem:[#allocation0]]
  $region90: #{feature_extraction_forward.1} parent=0
    _
  %s17 = ssub.s32 1, %s15
  %s18 = scalar_select 0, %s17, %s15
  $region1: #{feature_extraction_forward.1} parent=0
    #allocation5 [shape = 'u8[262144]{0}', space=vmem, size = 0x40000, scoped, tag = 'input window, operand 1, single buffered']
    #allocation6 [shape = 's32[1]{0}', space=sflag, size = 0x4, scoped, tag = 'scoped memory for feature_extraction_forward.1']
    #allocation7 [shape = 'u8[262144]{0}', space=vmem, size = 0x40000, scoped, tag = 'input window, operand 2, single buffered']
    #allocation8 [shape = 's32[1]{0}', space=sflag, size = 0x4, scoped, tag = 'scoped memory for feature_extraction_forward.1']
    #allocation9 [shape = 'u8[524288]{0}', space=vmem, size = 0x80000, scoped, tag = 'input window, operand 4, single buffered']
    #allocation10 [shape = 'u8[262144]{0}', space=vmem, size = 0x40000, scoped, tag = 'input window, operand 5, single buffered']
    #allocation11 [shape = 's32[1]{0}', space=sflag, size = 0x4, scoped, tag = 'scoped memory for feature_extraction_forward.1']
    #allocation12 [shape = 'u8[262144]{0}', space=vmem, size = 0x40000, scoped, tag = 'input window, operand 7, single buffered']
    #allocation13 [shape = 'u8[262144]{0}', space=vmem, size = 0x40000, scoped, tag = 'input window, operand 8, single buffered']
    #allocation14 [shape = 's32[1]{0}', space=sflag, size = 0x4, scoped, tag = 'scoped memory for feature_extraction_forward.1']
    %19 = vsyncpa [#allocation6], 0
    %20 = vsyncpa [#allocation8], 0
    %21 = vsyncpa [#allocation11], 0
    %22 = vsyncpa [#allocation14], 0
    // Predicated region
    $region2: #{feature_extraction_forward.1} parent=1 // pred_check
      _
    $region3: #{feature_extraction_forward.1} parent=1 // pred_check_branch
      %24 = sbr.rel (0) target = $region5
    $region4: #{feature_extraction_forward.1} parent=1 // pred_region
      _
    $region5: #{feature_extraction_forward.1} parent=1 // pred_fallthru
      _
    // Predicated region
    $region6: #{feature_extraction_forward.1} parent=1 // pred_check
      _
    $region7: #{feature_extraction_forward.1} parent=1 // pred_check_branch
      %26 = sbr.rel (0) target = $region9
    $region8: #{feature_extraction_forward.1} parent=1 // pred_region
      %s28 = ssub.s32 8192, 8192
      %29 = vsyncadd [#allocation6], %s28
      %s30 = sshll.u32 [#allocation5], 4
      %s31 = int_to_ptr.vmem [resolvable:$true] %s30
      %36 = dma.hbm_to_vmem [thread:$0]  %s1, 8192, %s31, [#allocation6], 512, 512, 32
    $region9: #{feature_extraction_forward.1} parent=1 // pred_fallthru
      _
    // Predicated region
    $region10: #{feature_extraction_forward.1} parent=1 // pred_check
      _
    $region11: #{feature_extraction_forward.1} parent=1 // pred_check_branch
      %38 = sbr.rel (0) target = $region13
    $region12: #{feature_extraction_forward.1} parent=1 // pred_region
      %s40 = ssub.s32 8192, 8192
      %41 = vsyncadd [#allocation8], %s40
      %s42 = sshll.u32 [#allocation7], 4
      %s43 = int_to_ptr.vmem [resolvable:$true] %s42
      %48 = dma.hbm_to_vmem [thread:$0]  %s2, 8192, %s43, [#allocation8], 512, 512, 32
    $region13: #{feature_extraction_forward.1} parent=1 // pred_fallthru
      _
    // Predicated region
    $region14: #{feature_extraction_forward.1} parent=1 // pred_check
      _
    $region15: #{feature_extraction_forward.1} parent=1 // pred_check_branch
      %50 = sbr.rel (0) target = $region17
    $region16: #{feature_extraction_forward.1} parent=1 // pred_region
      _
    $region17: #{feature_extraction_forward.1} parent=1 // pred_fallthru
      _
    // Predicated region
    $region18: #{feature_extraction_forward.1} parent=1 // pred_check
      _
    $region19: #{feature_extraction_forward.1} parent=1 // pred_check_branch
      %52 = sbr.rel (0) target = $region21
    $region20: #{feature_extraction_forward.1} parent=1 // pred_region
      %s54 = ssub.s32 16384, 16384
      %55 = vsyncadd [#allocation8], %s54
      %s56 = sshll.u32 [#allocation9], 4
      %s57 = int_to_ptr.vmem [resolvable:$true] %s56
      %62 = dma.hbm_to_vmem [thread:$0]  %s4, 16384, %s57, [#allocation8], 512, 512, 32
    $region21: #{feature_extraction_forward.1} parent=1 // pred_fallthru
      _
    // Predicated region
    $region22: #{feature_extraction_forward.1} parent=1 // pred_check
      _
    $region23: #{feature_extraction_forward.1} parent=1 // pred_check_branch
      %64 = sbr.rel (0) target = $region25
    $region24: #{feature_extraction_forward.1} parent=1 // pred_region
      %s66 = ssub.s32 8192, 8192
      %67 = vsyncadd [#allocation11], %s66
      %s68 = sshll.u32 [#allocation10], 4
      %s69 = int_to_ptr.vmem [resolvable:$true] %s68
      %74 = dma.hbm_to_vmem [thread:$0]  %s5, 8192, %s69, [#allocation11], 512, 512, 32
    $region25: #{feature_extraction_forward.1} parent=1 // pred_fallthru
      _
    // Predicated region
    $region26: #{feature_extraction_forward.1} parent=1 // pred_check
      _
    $region27: #{feature_extraction_forward.1} parent=1 // pred_check_branch
      %76 = sbr.rel (0) target = $region29
    $region28: #{feature_extraction_forward.1} parent=1 // pred_region
      _
    $region29: #{feature_extraction_forward.1} parent=1 // pred_fallthru
      _
    // Predicated region
    $region30: #{feature_extraction_forward.1} parent=1 // pred_check
      _
    $region31: #{feature_extraction_forward.1} parent=1 // pred_check_branch
      %78 = sbr.rel (0) target = $region33
    $region32: #{feature_extraction_forward.1} parent=1 // pred_region
      %s80 = ssub.s32 8192, 8192
      %81 = vsyncadd [#allocation11], %s80
      %s82 = sshll.u32 [#allocation12], 4
      %s83 = int_to_ptr.vmem [resolvable:$true] %s82
      %88 = dma.hbm_to_vmem [thread:$0]  %s7, 8192, %s83, [#allocation11], 512, 512, 32
    $region33: #{feature_extraction_forward.1} parent=1 // pred_fallthru
      _
    // Predicated region
    $region34: #{feature_extraction_forward.1} parent=1 // pred_check
      _
    $region35: #{feature_extraction_forward.1} parent=1 // pred_check_branch
      %90 = sbr.rel (0) target = $region37
    $region36: #{feature_extraction_forward.1} parent=1 // pred_region
      %s92 = ssub.s32 8192, 8192
      %93 = vsyncadd [#allocation14], %s92
      %s94 = sshll.u32 [#allocation13], 4
      %s95 = int_to_ptr.vmem [resolvable:$true] %s94
      %100 = dma.hbm_to_vmem [thread:$0]  %s8, 8192, %s95, [#allocation14], 512, 512, 32
    $region37: #{feature_extraction_forward.1} parent=1 // pred_fallthru
      _
    // Predicated region
    $region38: #{feature_extraction_forward.1} parent=1 // pred_check
      _
    $region39: #{feature_extraction_forward.1} parent=1 // pred_check_branch
      %102 = sbr.rel (0) target = $region41
    $region40: #{feature_extraction_forward.1} parent=1 // pred_region
      _
    $region41: #{feature_extraction_forward.1} parent=1 // pred_fallthru
      _
    // Predicated region
    $region42: #{feature_extraction_forward.1} parent=1 // pred_check
      _
    $region43: #{feature_extraction_forward.1} parent=1 // pred_check_branch
      %104 = sbr.rel (0) target = $region45
    $region44: #{feature_extraction_forward.1} parent=1 // pred_region
      _
    $region45: #{feature_extraction_forward.1} parent=1 // pred_fallthru
      _
    // Predicated region
    $region46: #{feature_extraction_forward.1} parent=1 // pred_check
      _
    $region47: #{feature_extraction_forward.1} parent=1 // pred_check_branch
      %106 = sbr.rel (0) target = $region49
    $region48: #{feature_extraction_forward.1} parent=1 // pred_region
      _
    $region49: #{feature_extraction_forward.1} parent=1 // pred_fallthru
      _
    // Predicated region
    $region50: #{feature_extraction_forward.1} parent=1 // pred_check
      _
    $region51: #{feature_extraction_forward.1} parent=1 // pred_check_branch
      %108 = sbr.rel (0) target = $region53
    $region52: #{feature_extraction_forward.1} parent=1 // pred_region
      _
    $region53: #{feature_extraction_forward.1} parent=1 // pred_fallthru
      _
    // Predicated region
    $region54: #{feature_extraction_forward.1} parent=1 // pred_check
      _
    $region55: #{feature_extraction_forward.1} parent=1 // pred_check_branch
      %110 = sbr.rel (0) target = $region57
    $region56: #{feature_extraction_forward.1} parent=1 // pred_region
      _
    $region57: #{feature_extraction_forward.1} parent=1 // pred_fallthru
      _
    // Predicated region
    $region58: #{feature_extraction_forward.1} parent=1 // pred_check
      _
    $region59: #{feature_extraction_forward.1} parent=1 // pred_check_branch
      %112 = sbr.rel (0) target = $region61
    $region60: #{feature_extraction_forward.1} parent=1 // pred_region
      %113 = dma.done [#allocation6], 8192
    $region61: #{feature_extraction_forward.1} parent=1 // pred_fallthru
      _
    // Predicated region
    $region62: #{feature_extraction_forward.1} parent=1 // pred_check
      _
    $region63: #{feature_extraction_forward.1} parent=1 // pred_check_branch
      %115 = sbr.rel (0) target = $region65
    $region64: #{feature_extraction_forward.1} parent=1 // pred_region
      %116 = dma.done [#allocation8], 8192
    $region65: #{feature_extraction_forward.1} parent=1 // pred_fallthru
      _
    // Predicated region
    $region66: #{feature_extraction_forward.1} parent=1 // pred_check
      _
    $region67: #{feature_extraction_forward.1} parent=1 // pred_check_branch
      %118 = sbr.rel (0) target = $region69
    $region68: #{feature_extraction_forward.1} parent=1 // pred_region
      %119 = dma.done [#allocation8], 16384
    $region69: #{feature_extraction_forward.1} parent=1 // pred_fallthru
      _
    // Predicated region
    $region70: #{feature_extraction_forward.1} parent=1 // pred_check
      _
    $region71: #{feature_extraction_forward.1} parent=1 // pred_check_branch
      %121 = sbr.rel (0) target = $region73
    $region72: #{feature_extraction_forward.1} parent=1 // pred_region
      %122 = dma.done [#allocation11], 8192
    $region73: #{feature_extraction_forward.1} parent=1 // pred_fallthru
      _
    // Predicated region
    $region74: #{feature_extraction_forward.1} parent=1 // pred_check
      _
    $region75: #{feature_extraction_forward.1} parent=1 // pred_check_branch
      %124 = sbr.rel (0) target = $region77
    $region76: #{feature_extraction_forward.1} parent=1 // pred_region
      %125 = dma.done [#allocation11], 8192
    $region77: #{feature_extraction_forward.1} parent=1 // pred_fallthru
      _
    // Predicated region
    $region78: #{feature_extraction_forward.1} parent=1 // pred_check
      _
    $region79: #{feature_extraction_forward.1} parent=1 // pred_check_branch
      %127 = sbr.rel (0) target = $region81
    $region80: #{feature_extraction_forward.1} parent=1 // pred_region
      %128 = dma.done [#allocation14], 8192
    $region81: #{feature_extraction_forward.1} parent=1 // pred_fallthru
      _
    %v129 = vld [vmem:[%s0] sm:$0xff]
    %v130 = vld [vmem:[%s0 + $0x8] sm:$0xff]
    %v131 = vld [vmem:[%s0 + $0x10] sm:$0xff]
    %v132 = vld [vmem:[%s0 + $0x18] sm:$0xff]
    %v133 = vld [vmem:[%s0 + $0x20] sm:$0xff]
    %v134 = vld [vmem:[%s0 + $0x28] sm:$0xff]
    %v135 = vld [vmem:[%s0 + $0x30] sm:$0xff]
    %v136 = vld [vmem:[%s0 + $0x38] sm:$0xff]
    %v137 = vld [vmem:[#allocation5] sm:$0xff]
    %v138 = vld [vmem:[#allocation5 + $0x8] sm:$0xff]
    %v139 = vld [vmem:[#allocation5 + $0x10] sm:$0xff]
    %v140 = vld [vmem:[#allocation5 + $0x18] sm:$0xff]
    %v141 = vld [vmem:[#allocation5 + $0x20] sm:$0xff]
    %v142 = vld [vmem:[#allocation5 + $0x28] sm:$0xff]
    %v143 = vld [vmem:[#allocation5 + $0x30] sm:$0xff]
    %v144 = vld [vmem:[#allocation5 + $0x38] sm:$0xff]
    %v145 = vld [vmem:[#allocation5 + $0x40] sm:$0xff]
    %v146 = vld [vmem:[#allocation5 + $0x48] sm:$0xff]
    %v147 = vld [vmem:[#allocation5 + $0x50] sm:$0xff]
    %v148 = vld [vmem:[#allocation5 + $0x58] sm:$0xff]
    %v149 = vld [vmem:[#allocation5 + $0x60] sm:$0xff]
    %v150 = vld [vmem:[#allocation5 + $0x68] sm:$0xff]
    %v151 = vld [vmem:[#allocation5 + $0x70] sm:$0xff]
    %v152 = vld [vmem:[#allocation5 + $0x78] sm:$0xff]
    %v153 = vld [vmem:[#allocation5 + $0x80] sm:$0xff]
    %v154 = vld [vmem:[#allocation5 + $0x88] sm:$0xff]
    %v155 = vld [vmem:[#allocation5 + $0x90] sm:$0xff]
    %v156 = vld [vmem:[#allocation5 + $0x98] sm:$0xff]
    %v157 = vld [vmem:[#allocation5 + $0xa0] sm:$0xff]
    %v158 = vld [vmem:[#allocation5 + $0xa8] sm:$0xff]
    %v159 = vld [vmem:[#allocation5 + $0xb0] sm:$0xff]
    %v160 = vld [vmem:[#allocation5 + $0xb8] sm:$0xff]
    %v161 = vld [vmem:[#allocation5 + $0xc0] sm:$0xff]
    %v162 = vld [vmem:[#allocation5 + $0xc8] sm:$0xff]
    %v163 = vld [vmem:[#allocation5 + $0xd0] sm:$0xff]
    %v164 = vld [vmem:[#allocation5 + $0xd8] sm:$0xff]
    %v165 = vld [vmem:[#allocation5 + $0xe0] sm:$0xff]
    %v166 = vld [vmem:[#allocation5 + $0xe8] sm:$0xff]
    %v167 = vld [vmem:[#allocation5 + $0xf0] sm:$0xff]
    %v168 = vld [vmem:[#allocation5 + $0xf8] sm:$0xff]
    %v169 = vld [vmem:[#allocation5 + $0x100] sm:$0xff]
    %v170 = vld [vmem:[#allocation5 + $0x108] sm:$0xff]
    %v171 = vld [vmem:[#allocation5 + $0x110] sm:$0xff]
    %v172 = vld [vmem:[#allocation5 + $0x118] sm:$0xff]
    %v173 = vld [vmem:[#allocation5 + $0x120] sm:$0xff]
    %v174 = vld [vmem:[#allocation5 + $0x128] sm:$0xff]
    %v175 = vld [vmem:[#allocation5 + $0x130] sm:$0xff]
    %v176 = vld [vmem:[#allocation5 + $0x138] sm:$0xff]
    %v177 = vld [vmem:[#allocation5 + $0x140] sm:$0xff]
    %v178 = vld [vmem:[#allocation5 + $0x148] sm:$0xff]
    %v179 = vld [vmem:[#allocation5 + $0x150] sm:$0xff]
    %v180 = vld [vmem:[#allocation5 + $0x158] sm:$0xff]
    %v181 = vld [vmem:[#allocation5 + $0x160] sm:$0xff]
    %v182 = vld [vmem:[#allocation5 + $0x168] sm:$0xff]
    %v183 = vld [vmem:[#allocation5 + $0x170] sm:$0xff]
    %v184 = vld [vmem:[#allocation5 + $0x178] sm:$0xff]
    %v185 = vld [vmem:[#allocation5 + $0x180] sm:$0xff]
    %v186 = vld [vmem:[#allocation5 + $0x188] sm:$0xff]
    %v187 = vld [vmem:[#allocation5 + $0x190] sm:$0xff]
    %v188 = vld [vmem:[#allocation5 + $0x198] sm:$0xff]
    %v189 = vld [vmem:[#allocation5 + $0x1a0] sm:$0xff]
    %v190 = vld [vmem:[#allocation5 + $0x1a8] sm:$0xff]
    %v191 = vld [vmem:[#allocation5 + $0x1b0] sm:$0xff]
    %v192 = vld [vmem:[#allocation5 + $0x1b8] sm:$0xff]
    %v193 = vld [vmem:[#allocation5 + $0x1c0] sm:$0xff]
    %v194 = vld [vmem:[#allocation5 + $0x1c8] sm:$0xff]
    %v195 = vld [vmem:[#allocation5 + $0x1d0] sm:$0xff]
    %v196 = vld [vmem:[#allocation5 + $0x1d8] sm:$0xff]
    %v197 = vld [vmem:[#allocation5 + $0x1e0] sm:$0xff]
    %v198 = vld [vmem:[#allocation5 + $0x1e8] sm:$0xff]
    %v199 = vld [vmem:[#allocation5 + $0x1f0] sm:$0xff]
    %v200 = vld [vmem:[#allocation5 + $0x1f8] sm:$0xff]
    %v201 = vld [vmem:[%s3] sm:$0xf]
    %v203 = vlaneseq
    %v204 = vshrl.u32 %v203, 7
    %v205 = vsub.s32 0, %v204
    %v206 = vrot.slane %v201, %v205
    %v207 = vlaneseq
    %v208 = vshrl.u32 %v207, 7
    %v209 = vsub.s32 1, %v208
    %v210 = vrot.slane %v201, %v209
    %v211 = vlaneseq
    %v212 = vshrl.u32 %v211, 7
    %v213 = vsub.s32 2, %v212
    %v214 = vrot.slane %v201, %v213
    %v215 = vlaneseq
    %v216 = vshrl.u32 %v215, 7
    %v217 = vsub.s32 3, %v216
    %v218 = vrot.slane %v201, %v217
    %223 = vmatprep.subr.mxu0 %v138
    %224 = vmatpush1.msra.mxu0 %v137
    %225 = vmatprep.subr.mxu0 %v142
    %226 = vmatpush1.msra.mxu0 %v141
    %227 = vmatprep.subr.mxu0 %v146
    %228 = vmatpush1.msra.mxu0 %v145
    %229 = vmatprep.subr.mxu0 %v150
    %230 = vmatpush1.msra.mxu0 %v149
    %231 = vmatprep.subr.mxu0 %v154
    %232 = vmatpush1.msra.mxu0 %v153
    %233 = vmatprep.subr.mxu0 %v158
    %234 = vmatpush1.msra.mxu0 %v157
    %235 = vmatprep.subr.mxu0 %v162
    %236 = vmatpush1.msra.mxu0 %v161
    %237 = vmatprep.subr.mxu0 %v166
    %238 = vmatpush1.msra.mxu0 %v165
    %239 = vmatprep.subr.mxu0 %v170
    %240 = vmatpush1.msra.mxu0 %v169
    %241 = vmatprep.subr.mxu0 %v174
    %242 = vmatpush1.msra.mxu0 %v173
    %243 = vmatprep.subr.mxu0 %v178
    %244 = vmatpush1.msra.mxu0 %v177
    %245 = vmatprep.subr.mxu0 %v182
    %246 = vmatpush1.msra.mxu0 %v181
    %247 = vmatprep.subr.mxu0 %v186
    %248 = vmatpush1.msra.mxu0 %v185
    %249 = vmatprep.subr.mxu0 %v190
    %250 = vmatpush1.msra.mxu0 %v189
    %251 = vmatprep.subr.mxu0 %v194
    %252 = vmatpush1.msra.mxu0 %v193
    %253 = vmatprep.subr.mxu0 %v198
    %254 = vmatpush1.msra.mxu0 %v197
    %255 = vmatprep.subr.mxu0 0.0
    %256 = vmatpush1.msra.mxu0 0.0
    %257 = vmatprep.subr.mxu0 0.0
    %258 = vmatpush1.msra.mxu0 0.0
    %259 = vmatprep.subr.mxu0 0.0
    %260 = vmatpush1.msra.mxu0 0.0
    %261 = vmatprep.subr.mxu0 0.0
    %262 = vmatpush1.msra.mxu0 0.0
    %263 = vmatprep.subr.mxu0 0.0
    %264 = vmatpush1.msra.mxu0 0.0
    %265 = vmatprep.subr.mxu0 0.0
    %266 = vmatpush1.msra.mxu0 0.0
    %267 = vmatprep.subr.mxu0 0.0
    %268 = vmatpush1.msra.mxu0 0.0
    %269 = vmatprep.subr.mxu0 0.0
    %270 = vmatpush1.msra.mxu0 0.0
    %271 = vmatprep.subr.mxu0 0.0
    %272 = vmatpush1.msra.mxu0 0.0
    %273 = vmatprep.subr.mxu0 0.0
    %274 = vmatpush1.msra.mxu0 0.0
    %275 = vmatprep.subr.mxu0 0.0
    %276 = vmatpush1.msra.mxu0 0.0
    %277 = vmatprep.subr.mxu0 0.0
    %278 = vmatpush1.msra.mxu0 0.0
    %279 = vmatprep.subr.mxu0 0.0
    %280 = vmatpush1.msra.mxu0 0.0
    %281 = vmatprep.subr.mxu0 0.0
    %282 = vmatpush1.msra.mxu0 0.0
    %283 = vmatprep.subr.mxu0 0.0
    %284 = vmatpush1.msra.mxu0 0.0
    %285 = vmatprep.subr.mxu0 0.0
    %286 = vmatpush1.msra.mxu0 0.0
    %287 = vmatprep.mubr.f32.mxu0 0.0
    %288 = vmatmul.mubr.f32.gmra.mrb[0].mxu0 %v129
    %v289 = vpop.f32.mrb[0].mxu0
    %v290 = vadd.f32 %v206, %v289
    %v291 = vpop.f32.mrb[0].mxu0
    %v292 = vadd.f32 %v210, %v291
    %293 = vmatprep.mubr.f32.mxu0 0.0
    %294 = vmatmul.mubr.f32.gmra.mrb[0].mxu0 %v130
    %v295 = vpop.f32.mrb[0].mxu0
    %v296 = vadd.f32 %v206, %v295
    %v297 = vpop.f32.mrb[0].mxu0
    %v298 = vadd.f32 %v210, %v297
    %299 = vmatprep.mubr.f32.mxu0 0.0
    %300 = vmatmul.mubr.f32.gmra.mrb[0].mxu0 %v131
    %v301 = vpop.f32.mrb[0].mxu0
    %v302 = vadd.f32 %v206, %v301
    %v303 = vpop.f32.mrb[0].mxu0
    %v304 = vadd.f32 %v210, %v303
    %305 = vmatprep.mubr.f32.mxu0 0.0
    %306 = vmatmul.mubr.f32.gmra.mrb[0].mxu0 %v132
    %v307 = vpop.f32.mrb[0].mxu0
    %v308 = vadd.f32 %v206, %v307
    %v309 = vpop.f32.mrb[0].mxu0
    %v310 = vadd.f32 %v210, %v309
    %311 = vmatprep.mubr.f32.mxu0 0.0
    %312 = vmatmul.mubr.f32.gmra.mrb[0].mxu0 %v133
    %v313 = vpop.f32.mrb[0].mxu0
    %v314 = vadd.f32 %v206, %v313
    %v315 = vpop.f32.mrb[0].mxu0
    %v316 = vadd.f32 %v210, %v315
    %317 = vmatprep.mubr.f32.mxu0 0.0
    %318 = vmatmul.mubr.f32.gmra.mrb[0].mxu0 %v134
    %v319 = vpop.f32.mrb[0].mxu0
    %v320 = vadd.f32 %v206, %v319
    %v321 = vpop.f32.mrb[0].mxu0
    %v322 = vadd.f32 %v210, %v321
    %323 = vmatprep.mubr.f32.mxu0 0.0
    %324 = vmatmul.mubr.f32.gmra.mrb[0].mxu0 %v135
    %v325 = vpop.f32.mrb[0].mxu0
    %v326 = vadd.f32 %v206, %v325
    %v327 = vpop.f32.mrb[0].mxu0
    %v328 = vadd.f32 %v210, %v327
    %329 = vmatprep.mubr.f32.mxu0 0.0
    %330 = vmatmul.mubr.f32.gmra.mrb[0].mxu0 %v136
    %v331 = vpop.f32.mrb[0].mxu0
    %v332 = vadd.f32 %v206, %v331
    %v333 = vpop.f32.mrb[0].mxu0
    %v334 = vadd.f32 %v210, %v333
    %335 = vdwg.mxu0
    %336 = vmatprep.subr.mxu0 %v140
    %337 = vmatpush1.msra.mxu0 %v139
    %338 = vmatprep.subr.mxu0 %v144
    %339 = vmatpush1.msra.mxu0 %v143
    %340 = vmatprep.subr.mxu0 %v148
    %341 = vmatpush1.msra.mxu0 %v147
    %342 = vmatprep.subr.mxu0 %v152
    %343 = vmatpush1.msra.mxu0 %v151
    %344 = vmatprep.subr.mxu0 %v156
    %345 = vmatpush1.msra.mxu0 %v155
    %346 = vmatprep.subr.mxu0 %v160
    %347 = vmatpush1.msra.mxu0 %v159
    %348 = vmatprep.subr.mxu0 %v164
    %349 = vmatpush1.msra.mxu0 %v163
    %350 = vmatprep.subr.mxu0 %v168
    %351 = vmatpush1.msra.mxu0 %v167
    %352 = vmatprep.subr.mxu0 %v172
    %353 = vmatpush1.msra.mxu0 %v171
    %354 = vmatprep.subr.mxu0 %v176
    %355 = vmatpush1.msra.mxu0 %v175
    %356 = vmatprep.subr.mxu0 %v180
    %357 = vmatpush1.msra.mxu0 %v179
    %358 = vmatprep.subr.mxu0 %v184
    %359 = vmatpush1.msra.mxu0 %v183
    %360 = vmatprep.subr.mxu0 %v188
    %361 = vmatpush1.msra.mxu0 %v187
    %362 = vmatprep.subr.mxu0 %v192
    %363 = vmatpush1.msra.mxu0 %v191
    %364 = vmatprep.subr.mxu0 %v196
    %365 = vmatpush1.msra.mxu0 %v195
    %366 = vmatprep.subr.mxu0 %v200
    %367 = vmatpush1.msra.mxu0 %v199
    %368 = vmatprep.subr.mxu0 0.0
    %369 = vmatpush1.msra.mxu0 0.0
    %370 = vmatprep.subr.mxu0 0.0
    %371 = vmatpush1.msra.mxu0 0.0
    %372 = vmatprep.subr.mxu0 0.0
    %373 = vmatpush1.msra.mxu0 0.0
    %374 = vmatprep.subr.mxu0 0.0
    %375 = vmatpush1.msra.mxu0 0.0
    %376 = vmatprep.subr.mxu0 0.0
    %377 = vmatpush1.msra.mxu0 0.0
    %378 = vmatprep.subr.mxu0 0.0
    %379 = vmatpush1.msra.mxu0 0.0
    %380 = vmatprep.subr.mxu0 0.0
    %381 = vmatpush1.msra.mxu0 0.0
    %382 = vmatprep.subr.mxu0 0.0
    %383 = vmatpush1.msra.mxu0 0.0
    %384 = vmatprep.subr.mxu0 0.0
    %385 = vmatpush1.msra.mxu0 0.0
    %386 = vmatprep.subr.mxu0 0.0
    %387 = vmatpush1.msra.mxu0 0.0
    %388 = vmatprep.subr.mxu0 0.0
    %389 = vmatpush1.msra.mxu0 0.0
    %390 = vmatprep.subr.mxu0 0.0
    %391 = vmatpush1.msra.mxu0 0.0
    %392 = vmatprep.subr.mxu0 0.0
    %393 = vmatpush1.msra.mxu0 0.0
    %394 = vmatprep.subr.mxu0 0.0
    %395 = vmatpush1.msra.mxu0 0.0
    %396 = vmatprep.subr.mxu0 0.0
    %397 = vmatpush1.msra.mxu0 0.0
    %398 = vmatprep.subr.mxu0 0.0
    %399 = vmatpush1.msra.mxu0 0.0
    %400 = vmatprep.mubr.f32.mxu0 0.0
    %401 = vmatmul.mubr.f32.gmra.mrb[0].mxu0 %v129
    %v402 = vpop.f32.mrb[0].mxu0
    %v403 = vadd.f32 %v214, %v402
    %v404 = vpop.f32.mrb[0].mxu0
    %v405 = vadd.f32 %v218, %v404
    %406 = vmatprep.mubr.f32.mxu0 0.0
    %407 = vmatmul.mubr.f32.gmra.mrb[0].mxu0 %v130
    %v408 = vpop.f32.mrb[0].mxu0
    %v409 = vadd.f32 %v214, %v408
    %v410 = vpop.f32.mrb[0].mxu0
    %v411 = vadd.f32 %v218, %v410
    %412 = vmatprep.mubr.f32.mxu0 0.0
    %413 = vmatmul.mubr.f32.gmra.mrb[0].mxu0 %v131
    %v414 = vpop.f32.mrb[0].mxu0
    %v415 = vadd.f32 %v214, %v414
    %v416 = vpop.f32.mrb[0].mxu0
    %v417 = vadd.f32 %v218, %v416
    %418 = vmatprep.mubr.f32.mxu0 0.0
    %419 = vmatmul.mubr.f32.gmra.mrb[0].mxu0 %v132
    %v420 = vpop.f32.mrb[0].mxu0
    %v421 = vadd.f32 %v214, %v420
    %v422 = vpop.f32.mrb[0].mxu0
    %v423 = vadd.f32 %v218, %v422
    %424 = vmatprep.mubr.f32.mxu0 0.0
    %425 = vmatmul.mubr.f32.gmra.mrb[0].mxu0 %v133
    %v426 = vpop.f32.mrb[0].mxu0
    %v427 = vadd.f32 %v214, %v426
    %v428 = vpop.f32.mrb[0].mxu0
    %v429 = vadd.f32 %v218, %v428
    %430 = vmatprep.mubr.f32.mxu0 0.0
    %431 = vmatmul.mubr.f32.gmra.mrb[0].mxu0 %v134
    %v432 = vpop.f32.mrb[0].mxu0
    %v433 = vadd.f32 %v214, %v432
    %v434 = vpop.f32.mrb[0].mxu0
    %v435 = vadd.f32 %v218, %v434
    %436 = vmatprep.mubr.f32.mxu0 0.0
    %437 = vmatmul.mubr.f32.gmra.mrb[0].mxu0 %v135
    %v438 = vpop.f32.mrb[0].mxu0
    %v439 = vadd.f32 %v214, %v438
    %v440 = vpop.f32.mrb[0].mxu0
    %v441 = vadd.f32 %v218, %v440
    %442 = vmatprep.mubr.f32.mxu0 0.0
    %443 = vmatmul.mubr.f32.gmra.mrb[0].mxu0 %v136
    %v444 = vpop.f32.mrb[0].mxu0
    %v445 = vadd.f32 %v214, %v444
    %v446 = vpop.f32.mrb[0].mxu0
    %v447 = vadd.f32 %v218, %v446
    %448 = vdwg.mxu0
    %449 = vst [vmem:[#allocation2] sm:$0xff] %v290
    %450 = vst [vmem:[#allocation2 + $0x8] sm:$0xff] %v292
    %451 = vst [vmem:[#allocation2 + $0x10] sm:$0xff] %v403
    %452 = vst [vmem:[#allocation2 + $0x18] sm:$0xff] %v405
    %453 = vst [vmem:[#allocation2 + $0x20] sm:$0xff] %v296
    %454 = vst [vmem:[#allocation2 + $0x28] sm:$0xff] %v298
    %455 = vst [vmem:[#allocation2 + $0x30] sm:$0xff] %v409
    %456 = vst [vmem:[#allocation2 + $0x38] sm:$0xff] %v411
    %457 = vst [vmem:[#allocation2 + $0x40] sm:$0xff] %v302
    %458 = vst [vmem:[#allocation2 + $0x48] sm:$0xff] %v304
    %459 = vst [vmem:[#allocation2 + $0x50] sm:$0xff] %v415
    %460 = vst [vmem:[#allocation2 + $0x58] sm:$0xff] %v417
    %461 = vst [vmem:[#allocation2 + $0x60] sm:$0xff] %v308
    %462 = vst [vmem:[#allocation2 + $0x68] sm:$0xff] %v310
    %463 = vst [vmem:[#allocation2 + $0x70] sm:$0xff] %v421
    %464 = vst [vmem:[#allocation2 + $0x78] sm:$0xff] %v423
    %465 = vst [vmem:[#allocation2 + $0x80] sm:$0xff] %v314
    %466 = vst [vmem:[#allocation2 + $0x88] sm:$0xff] %v316
    %467 = vst [vmem:[#allocation2 + $0x90] sm:$0xff] %v427
    %468 = vst [vmem:[#allocation2 + $0x98] sm:$0xff] %v429
    %469 = vst [vmem:[#allocation2 + $0xa0] sm:$0xff] %v320
    %470 = vst [vmem:[#allocation2 + $0xa8] sm:$0xff] %v322
    %471 = vst [vmem:[#allocation2 + $0xb0] sm:$0xff] %v433
    %472 = vst [vmem:[#allocation2 + $0xb8] sm:$0xff] %v435
    %473 = vst [vmem:[#allocation2 + $0xc0] sm:$0xff] %v326
    %474 = vst [vmem:[#allocation2 + $0xc8] sm:$0xff] %v328
    %475 = vst [vmem:[#allocation2 + $0xd0] sm:$0xff] %v439
    %476 = vst [vmem:[#allocation2 + $0xd8] sm:$0xff] %v441
    %477 = vst [vmem:[#allocation2 + $0xe0] sm:$0xff] %v332
    %478 = vst [vmem:[#allocation2 + $0xe8] sm:$0xff] %v334
    %479 = vst [vmem:[#allocation2 + $0xf0] sm:$0xff] %v445
    %480 = vst [vmem:[#allocation2 + $0xf8] sm:$0xff] %v447
    %v481 = vlaneseq
    %v482 = vand.u32 %v481, 127
    %v483 = vadd.s32 %v482, 128
    %v484 = vadd.s32 %v482, 256
    %v485 = vadd.s32 %v482, 384
    %v486 = vand.u32 %v482, 64
    %v487 = vand.u32 %v483, 64
    %v488 = vand.u32 %v484, 64
    %v489 = vand.u32 %v485, 64
    %vm490 = vcmp.eq.s32.totalorder %v486, 0
    %vm491 = vcmp.eq.s32.totalorder %v487, 0
    %vm492 = vcmp.eq.s32.totalorder %v488, 0
    %vm493 = vcmp.eq.s32.totalorder %v489, 0
    %v494 = vld [vmem:[#allocation2] sm:$0xff]
    %v495 = vld [vmem:[#allocation2 + $0x8] sm:$0xff]
    %v496 = vld [vmem:[#allocation2 + $0x10] sm:$0xff]
    %v497 = vld [vmem:[#allocation2 + $0x18] sm:$0xff]
    %v498 = vld [vmem:[#allocation2 + $0xe0] sm:$0xff]
    %v499 = vld [vmem:[#allocation2 + $0xe8] sm:$0xff]
    %v500 = vld [vmem:[#allocation2 + $0xf0] sm:$0xff]
    %v501 = vld [vmem:[#allocation2 + $0xf8] sm:$0xff]
    %v502 = vsel %vm490, %v494, %v498
    %v503 = vsel %vm491, %v495, %v499
    %v504 = vsel %vm492, %v496, %v500
    %v505 = vsel %vm493, %v497, %v501
    %v506 = vld [vmem:[#allocation7] sm:$0xff]
    %v507 = vld [vmem:[#allocation7 + $0x8] sm:$0xff]
    %v508 = vld [vmem:[#allocation7 + $0x10] sm:$0xff]
    %v509 = vld [vmem:[#allocation7 + $0x18] sm:$0xff]
    %v510 = vld [vmem:[#allocation7 + $0x20] sm:$0xff]
    %v511 = vld [vmem:[#allocation7 + $0x28] sm:$0xff]
    %v512 = vld [vmem:[#allocation7 + $0x30] sm:$0xff]
    %v513 = vld [vmem:[#allocation7 + $0x38] sm:$0xff]
    %v514 = vld [vmem:[#allocation7 + $0x40] sm:$0xff]
    %v515 = vld [vmem:[#allocation7 + $0x48] sm:$0xff]
    %v516 = vld [vmem:[#allocation7 + $0x50] sm:$0xff]
    %v517 = vld [vmem:[#allocation7 + $0x58] sm:$0xff]
    %v518 = vld [vmem:[#allocation7 + $0x60] sm:$0xff]
    %v519 = vld [vmem:[#allocation7 + $0x68] sm:$0xff]
    %v520 = vld [vmem:[#allocation7 + $0x70] sm:$0xff]
    %v521 = vld [vmem:[#allocation7 + $0x78] sm:$0xff]
    %v522 = vld [vmem:[#allocation7 + $0x80] sm:$0xff]
    %v523 = vld [vmem:[#allocation7 + $0x88] sm:$0xff]
    %v524 = vld [vmem:[#allocation7 + $0x90] sm:$0xff]
    %v525 = vld [vmem:[#allocation7 + $0x98] sm:$0xff]
    %v526 = vld [vmem:[#allocation7 + $0xa0] sm:$0xff]
    %v527 = vld [vmem:[#allocation7 + $0xa8] sm:$0xff]
    %v528 = vld [vmem:[#allocation7 + $0xb0] sm:$0xff]
    %v529 = vld [vmem:[#allocation7 + $0xb8] sm:$0xff]
    %v530 = vld [vmem:[#allocation7 + $0xc0] sm:$0xff]
    %v531 = vld [vmem:[#allocation7 + $0xc8] sm:$0xff]
    %v532 = vld [vmem:[#allocation7 + $0xd0] sm:$0xff]
    %v533 = vld [vmem:[#allocation7 + $0xd8] sm:$0xff]
    %v534 = vld [vmem:[#allocation7 + $0xe0] sm:$0xff]
    %v535 = vld [vmem:[#allocation7 + $0xe8] sm:$0xff]
    %v536 = vld [vmem:[#allocation7 + $0xf0] sm:$0xff]
    %v537 = vld [vmem:[#allocation7 + $0xf8] sm:$0xff]
    %v538 = vld [vmem:[#allocation7 + $0x100] sm:$0xff]
    %v539 = vld [vmem:[#allocation7 + $0x108] sm:$0xff]
    %v540 = vld [vmem:[#allocation7 + $0x110] sm:$0xff]
    %v541 = vld [vmem:[#allocation7 + $0x118] sm:$0xff]
    %v542 = vld [vmem:[#allocation7 + $0x120] sm:$0xff]
    %v543 = vld [vmem:[#allocation7 + $0x128] sm:$0xff]
    %v544 = vld [vmem:[#allocation7 + $0x130] sm:$0xff]
    %v545 = vld [vmem:[#allocation7 + $0x138] sm:$0xff]
    %v546 = vld [vmem:[#allocation7 + $0x140] sm:$0xff]
    %v547 = vld [vmem:[#allocation7 + $0x148] sm:$0xff]
    %v548 = vld [vmem:[#allocation7 + $0x150] sm:$0xff]
    %v549 = vld [vmem:[#allocation7 + $0x158] sm:$0xff]
    %v550 = vld [vmem:[#allocation7 + $0x160] sm:$0xff]
    %v551 = vld [vmem:[#allocation7 + $0x168] sm:$0xff]
    %v552 = vld [vmem:[#allocation7 + $0x170] sm:$0xff]
    %v553 = vld [vmem:[#allocation7 + $0x178] sm:$0xff]
    %v554 = vld [vmem:[#allocation7 + $0x180] sm:$0xff]
    %v555 = vld [vmem:[#allocation7 + $0x188] sm:$0xff]
    %v556 = vld [vmem:[#allocation7 + $0x190] sm:$0xff]
    %v557 = vld [vmem:[#allocation7 + $0x198] sm:$0xff]
    %v558 = vld [vmem:[#allocation7 + $0x1a0] sm:$0xff]
    %v559 = vld [vmem:[#allocation7 + $0x1a8] sm:$0xff]
    %v560 = vld [vmem:[#allocation7 + $0x1b0] sm:$0xff]
    %v561 = vld [vmem:[#allocation7 + $0x1b8] sm:$0xff]
    %v562 = vld [vmem:[#allocation7 + $0x1c0] sm:$0xff]
    %v563 = vld [vmem:[#allocation7 + $0x1c8] sm:$0xff]
    %v564 = vld [vmem:[#allocation7 + $0x1d0] sm:$0xff]
    %v565 = vld [vmem:[#allocation7 + $0x1d8] sm:$0xff]
    %v566 = vld [vmem:[#allocation7 + $0x1e0] sm:$0xff]
    %v567 = vld [vmem:[#allocation7 + $0x1e8] sm:$0xff]
    %v568 = vld [vmem:[#allocation7 + $0x1f0] sm:$0xff]
    %v569 = vld [vmem:[#allocation7 + $0x1f8] sm:$0xff]
    %570 = vmatprep.subr.mxu0 %v507
    %571 = vmatpush1.msra.mxu0 %v506
    %572 = vmatprep.subr.mxu0 %v511
    %573 = vmatpush1.msra.mxu0 %v510
    %574 = vmatprep.subr.mxu0 %v515
    %575 = vmatpush1.msra.mxu0 %v514
    %576 = vmatprep.subr.mxu0 %v519
    %577 = vmatpush1.msra.mxu0 %v518
    %578 = vmatprep.subr.mxu0 %v523
    %579 = vmatpush1.msra.mxu0 %v522
    %580 = vmatprep.subr.mxu0 %v527
    %581 = vmatpush1.msra.mxu0 %v526
    %582 = vmatprep.subr.mxu0 %v531
    %583 = vmatpush1.msra.mxu0 %v530
    %584 = vmatprep.subr.mxu0 %v535
    %585 = vmatpush1.msra.mxu0 %v534
    %586 = vmatprep.subr.mxu0 %v539
    %587 = vmatpush1.msra.mxu0 %v538
    %588 = vmatprep.subr.mxu0 %v543
    %589 = vmatpush1.msra.mxu0 %v542
    %590 = vmatprep.subr.mxu0 %v547
    %591 = vmatpush1.msra.mxu0 %v546
    %592 = vmatprep.subr.mxu0 %v551
    %593 = vmatpush1.msra.mxu0 %v550
    %594 = vmatprep.subr.mxu0 %v555
    %595 = vmatpush1.msra.mxu0 %v554
    %596 = vmatprep.subr.mxu0 %v559
    %597 = vmatpush1.msra.mxu0 %v558
    %598 = vmatprep.subr.mxu0 %v563
    %599 = vmatpush1.msra.mxu0 %v562
    %600 = vmatprep.subr.mxu0 %v567
    %601 = vmatpush1.msra.mxu0 %v566
    %602 = vmatprep.subr.mxu0 0.0
    %603 = vmatpush1.msra.mxu0 0.0
    %604 = vmatprep.subr.mxu0 0.0
    %605 = vmatpush1.msra.mxu0 0.0
    %606 = vmatprep.subr.mxu0 0.0
    %607 = vmatpush1.msra.mxu0 0.0
    %608 = vmatprep.subr.mxu0 0.0
    %609 = vmatpush1.msra.mxu0 0.0
    %610 = vmatprep.subr.mxu0 0.0
    %611 = vmatpush1.msra.mxu0 0.0
    %612 = vmatprep.subr.mxu0 0.0
    %613 = vmatpush1.msra.mxu0 0.0
    %614 = vmatprep.subr.mxu0 0.0
    %615 = vmatpush1.msra.mxu0 0.0
    %616 = vmatprep.subr.mxu0 0.0
    %617 = vmatpush1.msra.mxu0 0.0
    %618 = vmatprep.subr.mxu0 0.0
    %619 = vmatpush1.msra.mxu0 0.0
    %620 = vmatprep.subr.mxu0 0.0
    %621 = vmatpush1.msra.mxu0 0.0
    %622 = vmatprep.subr.mxu0 0.0
    %623 = vmatpush1.msra.mxu0 0.0
    %624 = vmatprep.subr.mxu0 0.0
    %625 = vmatpush1.msra.mxu0 0.0
    %626 = vmatprep.subr.mxu0 0.0
    %627 = vmatpush1.msra.mxu0 0.0
    %628 = vmatprep.subr.mxu0 0.0
    %629 = vmatpush1.msra.mxu0 0.0
    %630 = vmatprep.subr.mxu0 0.0
    %631 = vmatpush1.msra.mxu0 0.0
    %632 = vmatprep.subr.mxu0 0.0
    %633 = vmatpush1.msra.mxu0 0.0
    %634 = vmatprep.mubr.f32.mxu0 0.0
    %635 = vmatmul.mubr.f32.gmra.mrb[0].mxu0 0.0
    %v636 = vpop.f32.mrb[0].mxu0
    %v637 = vadd.f32 0.0, %v636
    %v638 = vpop.f32.mrb[0].mxu0
    %v639 = vadd.f32 0.0, %v638
    %640 = vdwg.mxu0
    %641 = vmatprep.subr.mxu0 %v509
    %642 = vmatpush1.msra.mxu0 %v508
    %643 = vmatprep.subr.mxu0 %v513
    %644 = vmatpush1.msra.mxu0 %v512
    %645 = vmatprep.subr.mxu0 %v517
    %646 = vmatpush1.msra.mxu0 %v516
    %647 = vmatprep.subr.mxu0 %v521
    %648 = vmatpush1.msra.mxu0 %v520
    %649 = vmatprep.subr.mxu0 %v525
    %650 = vmatpush1.msra.mxu0 %v524
    %651 = vmatprep.subr.mxu0 %v529
    %652 = vmatpush1.msra.mxu0 %v528
    %653 = vmatprep.subr.mxu0 %v533
    %654 = vmatpush1.msra.mxu0 %v532
    %655 = vmatprep.subr.mxu0 %v537
    %656 = vmatpush1.msra.mxu0 %v536
    %657 = vmatprep.subr.mxu0 %v541
    %658 = vmatpush1.msra.mxu0 %v540
    %659 = vmatprep.subr.mxu0 %v545
    %660 = vmatpush1.msra.mxu0 %v544
    %661 = vmatprep.subr.mxu0 %v549
    %662 = vmatpush1.msra.mxu0 %v548
    %663 = vmatprep.subr.mxu0 %v553
    %664 = vmatpush1.msra.mxu0 %v552
    %665 = vmatprep.subr.mxu0 %v557
    %666 = vmatpush1.msra.mxu0 %v556
    %667 = vmatprep.subr.mxu0 %v561
    %668 = vmatpush1.msra.mxu0 %v560
    %669 = vmatprep.subr.mxu0 %v565
    %670 = vmatpush1.msra.mxu0 %v564
    %671 = vmatprep.subr.mxu0 %v569
    %672 = vmatpush1.msra.mxu0 %v568
    %673 = vmatprep.subr.mxu0 0.0
    %674 = vmatpush1.msra.mxu0 0.0
    %675 = vmatprep.subr.mxu0 0.0
    %676 = vmatpush1.msra.mxu0 0.0
    %677 = vmatprep.subr.mxu0 0.0
    %678 = vmatpush1.msra.mxu0 0.0
    %679 = vmatprep.subr.mxu0 0.0
    %680 = vmatpush1.msra.mxu0 0.0
    %681 = vmatprep.subr.mxu0 0.0
    %682 = vmatpush1.msra.mxu0 0.0
    %683 = vmatprep.subr.mxu0 0.0
    %684 = vmatpush1.msra.mxu0 0.0
    %685 = vmatprep.subr.mxu0 0.0
    %686 = vmatpush1.msra.mxu0 0.0
    %687 = vmatprep.subr.mxu0 0.0
    %688 = vmatpush1.msra.mxu0 0.0
    %689 = vmatprep.subr.mxu0 0.0
    %690 = vmatpush1.msra.mxu0 0.0
    %691 = vmatprep.subr.mxu0 0.0
    %692 = vmatpush1.msra.mxu0 0.0
    %693 = vmatprep.subr.mxu0 0.0
    %694 = vmatpush1.msra.mxu0 0.0
    %695 = vmatprep.subr.mxu0 0.0
    %696 = vmatpush1.msra.mxu0 0.0
    %697 = vmatprep.subr.mxu0 0.0
    %698 = vmatpush1.msra.mxu0 0.0
    %699 = vmatprep.subr.mxu0 0.0
    %700 = vmatpush1.msra.mxu0 0.0
    %701 = vmatprep.subr.mxu0 0.0
    %702 = vmatpush1.msra.mxu0 0.0
    %703 = vmatprep.subr.mxu0 0.0
    %704 = vmatpush1.msra.mxu0 0.0
    %705 = vmatprep.mubr.f32.mxu0 0.0
    %706 = vmatmul.mubr.f32.gmra.mrb[0].mxu0 0.0
    %v707 = vpop.f32.mrb[0].mxu0
    %v708 = vadd.f32 0.0, %v707
    %v709 = vpop.f32.mrb[0].mxu0
    %v710 = vadd.f32 0.0, %v709
    %711 = vdwg.mxu0
    %v712 = vadd.f32 %v502, %v637
    %v713 = vadd.f32 %v503, %v639
    %v714 = vadd.f32 %v504, %v708
    %v715 = vadd.f32 %v505, %v710
    %v716 = vxor.u32 %v712, 2147483648
    %v717 = vmul.f32 %v716, 1.442695
    %v718 = vpow.pop %v717
    %v719 = vadd.f32 %v718, 1.0
    %v720 = vrcp.pop %v719
    %v721 = vmul.f32 1.0, %v720
    %v722 = vxor.u32 %v713, 2147483648
    %v723 = vmul.f32 %v722, 1.442695
    %v724 = vpow.pop %v723
    %v725 = vadd.f32 %v724, 1.0
    %v726 = vrcp.pop %v725
    %v727 = vmul.f32 1.0, %v726
    %v728 = vtanh.pop %v714
    %v729 = vxor.u32 %v715, 2147483648
    %v730 = vmul.f32 %v729, 1.442695
    %v731 = vpow.pop %v730
    %v732 = vadd.f32 %v731, 1.0
    %v733 = vrcp.pop %v732
    %v734 = vmul.f32 1.0, %v733
    %v735 = vmul.f32 %v727, 0.0
    %v736 = vmul.f32 %v721, %v728
    %v737 = vadd.f32 %v735, %v736
    %v738 = vtanh.pop %v737
    %v739 = vmul.f32 %v734, %v738
    %740 = vst [vmem:[#allocation3] sm:$0xff] %v739
    %741 = vst [vmem:[#allocation3 + $0x78] sm:$0xff] %v739
    %v742 = vld [vmem:[#allocation2 + $0x20] sm:$0xff]
    %v743 = vld [vmem:[#allocation2 + $0x28] sm:$0xff]
    %v744 = vld [vmem:[#allocation2 + $0x30] sm:$0xff]
    %v745 = vld [vmem:[#allocation2 + $0x38] sm:$0xff]
    %v746 = vld [vmem:[#allocation2 + $0xc0] sm:$0xff]
    %v747 = vld [vmem:[#allocation2 + $0xc8] sm:$0xff]
    %v748 = vld [vmem:[#allocation2 + $0xd0] sm:$0xff]
    %v749 = vld [vmem:[#allocation2 + $0xd8] sm:$0xff]
    %v750 = vsel %vm490, %v742, %v746
    %v751 = vsel %vm491, %v743, %v747
    %v752 = vsel %vm492, %v744, %v748
    %v753 = vsel %vm493, %v745, %v749
    %v754 = vld [vmem:[#allocation7] sm:$0xff]
    %v755 = vld [vmem:[#allocation7 + $0x8] sm:$0xff]
    %v756 = vld [vmem:[#allocation7 + $0x10] sm:$0xff]
    %v757 = vld [vmem:[#allocation7 + $0x18] sm:$0xff]
    %v758 = vld [vmem:[#allocation7 + $0x20] sm:$0xff]
    %v759 = vld [vmem:[#allocation7 + $0x28] sm:$0xff]
    %v760 = vld [vmem:[#allocation7 + $0x30] sm:$0xff]
    %v761 = vld [vmem:[#allocation7 + $0x38] sm:$0xff]
    %v762 = vld [vmem:[#allocation7 + $0x40] sm:$0xff]
    %v763 = vld [vmem:[#allocation7 + $0x48] sm:$0xff]
    %v764 = vld [vmem:[#allocation7 + $0x50] sm:$0xff]
    %v765 = vld [vmem:[#allocation7 + $0x58] sm:$0xff]
    %v766 = vld [vmem:[#allocation7 + $0x60] sm:$0xff]
    %v767 = vld [vmem:[#allocation7 + $0x68] sm:$0xff]
    %v768 = vld [vmem:[#allocation7 + $0x70] sm:$0xff]
    %v769 = vld [vmem:[#allocation7 + $0x78] sm:$0xff]
    %v770 = vld [vmem:[#allocation7 + $0x80] sm:$0xff]
    %v771 = vld [vmem:[#allocation7 + $0x88] sm:$0xff]
    %v772 = vld [vmem:[#allocation7 + $0x90] sm:$0xff]
    %v773 = vld [vmem:[#allocation7 + $0x98] sm:$0xff]
    %v774 = vld [vmem:[#allocation7 + $0xa0] sm:$0xff]
    %v775 = vld [vmem:[#allocation7 + $0xa8] sm:$0xff]
    %v776 = vld [vmem:[#allocation7 + $0xb0] sm:$0xff]
    %v777 = vld [vmem:[#allocation7 + $0xb8] sm:$0xff]
    %v778 = vld [vmem:[#allocation7 + $0xc0] sm:$0xff]
    %v779 = vld [vmem:[#allocation7 + $0xc8] sm:$0xff]
    %v780 = vld [vmem:[#allocation7 + $0xd0] sm:$0xff]
    %v781 = vld [vmem:[#allocation7 + $0xd8] sm:$0xff]
    %v782 = vld [vmem:[#allocation7 + $0xe0] sm:$0xff]
    %v783 = vld [vmem:[#allocation7 + $0xe8] sm:$0xff]
    %v784 = vld [vmem:[#allocation7 + $0xf0] sm:$0xff]
    %v785 = vld [vmem:[#allocation7 + $0xf8] sm:$0xff]
    %v786 = vld [vmem:[#allocation7 + $0x100] sm:$0xff]
    %v787 = vld [vmem:[#allocation7 + $0x108] sm:$0xff]
    %v788 = vld [vmem:[#allocation7 + $0x110] sm:$0xff]
    %v789 = vld [vmem:[#allocation7 + $0x118] sm:$0xff]
    %v790 = vld [vmem:[#allocation7 + $0x120] sm:$0xff]
    %v791 = vld [vmem:[#allocation7 + $0x128] sm:$0xff]
    %v792 = vld [vmem:[#allocation7 + $0x130] sm:$0xff]
    %v793 = vld [vmem:[#allocation7 + $0x138] sm:$0xff]
    %v794 = vld [vmem:[#allocation7 + $0x140] sm:$0xff]
    %v795 = vld [vmem:[#allocation7 + $0x148] sm:$0xff]
    %v796 = vld [vmem:[#allocation7 + $0x150] sm:$0xff]
    %v797 = vld [vmem:[#allocation7 + $0x158] sm:$0xff]
    %v798 = vld [vmem:[#allocation7 + $0x160] sm:$0xff]
    %v799 = vld [vmem:[#allocation7 + $0x168] sm:$0xff]
    %v800 = vld [vmem:[#allocation7 + $0x170] sm:$0xff]
    %v801 = vld [vmem:[#allocation7 + $0x178] sm:$0xff]
    %v802 = vld [vmem:[#allocation7 + $0x180] sm:$0xff]
    %v803 = vld [vmem:[#allocation7 + $0x188] sm:$0xff]
    %v804 = vld [vmem:[#allocation7 + $0x190] sm:$0xff]
    %v805 = vld [vmem:[#allocation7 + $0x198] sm:$0xff]
    %v806 = vld [vmem:[#allocation7 + $0x1a0] sm:$0xff]
    %v807 = vld [vmem:[#allocation7 + $0x1a8] sm:$0xff]
    %v808 = vld [vmem:[#allocation7 + $0x1b0] sm:$0xff]
    %v809 = vld [vmem:[#allocation7 + $0x1b8] sm:$0xff]
    %v810 = vld [vmem:[#allocation7 + $0x1c0] sm:$0xff]
    %v811 = vld [vmem:[#allocation7 + $0x1c8] sm:$0xff]
    %v812 = vld [vmem:[#allocation7 + $0x1d0] sm:$0xff]
    %v813 = vld [vmem:[#allocation7 + $0x1d8] sm:$0xff]
    %v814 = vld [vmem:[#allocation7 + $0x1e0] sm:$0xff]
    %v815 = vld [vmem:[#allocation7 + $0x1e8] sm:$0xff]
    %v816 = vld [vmem:[#allocation7 + $0x1f0] sm:$0xff]
    %v817 = vld [vmem:[#allocation7 + $0x1f8] sm:$0xff]
    %818 = vmatprep.subr.mxu0 %v755
    %819 = vmatpush1.msra.mxu0 %v754
    %820 = vmatprep.subr.mxu0 %v759
    %821 = vmatpush1.msra.mxu0 %v758
    %822 = vmatprep.subr.mxu0 %v763
    %823 = vmatpush1.msra.mxu0 %v762
    %824 = vmatprep.subr.mxu0 %v767
    %825 = vmatpush1.msra.mxu0 %v766
    %826 = vmatprep.subr.mxu0 %v771
    %827 = vmatpush1.msra.mxu0 %v770
    %828 = vmatprep.subr.mxu0 %v775
    %829 = vmatpush1.msra.mxu0 %v774
    %830 = vmatprep.subr.mxu0 %v779
    %831 = vmatpush1.msra.mxu0 %v778
    %832 = vmatprep.subr.mxu0 %v783
    %833 = vmatpush1.msra.mxu0 %v782
    %834 = vmatprep.subr.mxu0 %v787
    %835 = vmatpush1.msra.mxu0 %v786
    %836 = vmatprep.subr.mxu0 %v791
    %837 = vmatpush1.msra.mxu0 %v790
    %838 = vmatprep.subr.mxu0 %v795
    %839 = vmatpush1.msra.mxu0 %v794
    %840 = vmatprep.subr.mxu0 %v799
    %841 = vmatpush1.msra.mxu0 %v798
    %842 = vmatprep.subr.mxu0 %v803
    %843 = vmatpush1.msra.mxu0 %v802
    %844 = vmatprep.subr.mxu0 %v807
    %845 = vmatpush1.msra.mxu0 %v806
    %846 = vmatprep.subr.mxu0 %v811
    %847 = vmatpush1.msra.mxu0 %v810
    %848 = vmatprep.subr.mxu0 %v815
    %849 = vmatpush1.msra.mxu0 %v814
    %850 = vmatprep.subr.mxu0 0.0
    %851 = vmatpush1.msra.mxu0 0.0
    %852 = vmatprep.subr.mxu0 0.0
    %853 = vmatpush1.msra.mxu0 0.0
    %854 = vmatprep.subr.mxu0 0.0
    %855 = vmatpush1.msra.mxu0 0.0
    %856 = vmatprep.subr.mxu0 0.0
    %857 = vmatpush1.msra.mxu0 0.0
    %858 = vmatprep.subr.mxu0 0.0
    %859 = vmatpush1.msra.mxu0 0.0
    %860 = vmatprep.subr.mxu0 0.0
    %861 = vmatpush1.msra.mxu0 0.0
    %862 = vmatprep.subr.mxu0 0.0
    %863 = vmatpush1.msra.mxu0 0.0
    %864 = vmatprep.subr.mxu0 0.0
    %865 = vmatpush1.msra.mxu0 0.0
    %866 = vmatprep.subr.mxu0 0.0
    %867 = vmatpush1.msra.mxu0 0.0
    %868 = vmatprep.subr.mxu0 0.0
    %869 = vmatpush1.msra.mxu0 0.0
    %870 = vmatprep.subr.mxu0 0.0
    %871 = vmatpush1.msra.mxu0 0.0
    %872 = vmatprep.subr.mxu0 0.0
    %873 = vmatpush1.msra.mxu0 0.0
    %874 = vmatprep.subr.mxu0 0.0
    %875 = vmatpush1.msra.mxu0 0.0
    %876 = vmatprep.subr.mxu0 0.0
    %877 = vmatpush1.msra.mxu0 0.0
    %878 = vmatprep.subr.mxu0 0.0
    %879 = vmatpush1.msra.mxu0 0.0
    %880 = vmatprep.subr.mxu0 0.0
    %881 = vmatpush1.msra.mxu0 0.0
    %882 = vmatprep.mubr.f32.mxu0 0.0
    %883 = vmatmul.mubr.f32.gmra.mrb[0].mxu0 %v739
    %v884 = vpop.f32.mrb[0].mxu0
    %v885 = vadd.f32 0.0, %v884
    %v886 = vpop.f32.mrb[0].mxu0
    %v887 = vadd.f32 0.0, %v886
    %888 = vdwg.mxu0
    %889 = vmatprep.subr.mxu0 %v757
    %890 = vmatpush1.msra.mxu0 %v756
    %891 = vmatprep.subr.mxu0 %v761
    %892 = vmatpush1.msra.mxu0 %v760
    %893 = vmatprep.subr.mxu0 %v765
    %894 = vmatpush1.msra.mxu0 %v764
    %895 = vmatprep.subr.mxu0 %v769
    %896 = vmatpush1.msra.mxu0 %v768
    %897 = vmatprep.subr.mxu0 %v773
    %898 = vmatpush1.msra.mxu0 %v772
    %899 = vmatprep.subr.mxu0 %v777
    %900 = vmatpush1.msra.mxu0 %v776
    %901 = vmatprep.subr.mxu0 %v781
    %902 = vmatpush1.msra.mxu0 %v780
    %903 = vmatprep.subr.mxu0 %v785
    %904 = vmatpush1.msra.mxu0 %v784
    %905 = vmatprep.subr.mxu0 %v789
    %906 = vmatpush1.msra.mxu0 %v788
    %907 = vmatprep.subr.mxu0 %v793
    %908 = vmatpush1.msra.mxu0 %v792
    %909 = vmatprep.subr.mxu0 %v797
    %910 = vmatpush1.msra.mxu0 %v796
    %911 = vmatprep.subr.mxu0 %v801
    %912 = vmatpush1.msra.mxu0 %v800
    %913 = vmatprep.subr.mxu0 %v805
    %914 = vmatpush1.msra.mxu0 %v804
    %915 = vmatprep.subr.mxu0 %v809
    %916 = vmatpush1.msra.mxu0 %v808
    %917 = vmatprep.subr.mxu0 %v813
    %918 = vmatpush1.msra.mxu0 %v812
    %919 = vmatprep.subr.mxu0 %v817
    %920 = vmatpush1.msra.mxu0 %v816
    %921 = vmatprep.subr.mxu0 0.0
    %922 = vmatpush1.msra.mxu0 0.0
    %923 = vmatprep.subr.mxu0 0.0
    %924 = vmatpush1.msra.mxu0 0.0
    %925 = vmatprep.subr.mxu0 0.0
    %926 = vmatpush1.msra.mxu0 0.0
    %927 = vmatprep.subr.mxu0 0.0
    %928 = vmatpush1.msra.mxu0 0.0
    %929 = vmatprep.subr.mxu0 0.0
    %930 = vmatpush1.msra.mxu0 0.0
    %931 = vmatprep.subr.mxu0 0.0
    %932 = vmatpush1.msra.mxu0 0.0
    %933 = vmatprep.subr.mxu0 0.0
    %934 = vmatpush1.msra.mxu0 0.0
    %935 = vmatprep.subr.mxu0 0.0
    %936 = vmatpush1.msra.mxu0 0.0
    %937 = vmatprep.subr.mxu0 0.0
    %938 = vmatpush1.msra.mxu0 0.0
    %939 = vmatprep.subr.mxu0 0.0
    %940 = vmatpush1.msra.mxu0 0.0
    %941 = vmatprep.subr.mxu0 0.0
    %942 = vmatpush1.msra.mxu0 0.0
    %943 = vmatprep.subr.mxu0 0.0
    %944 = vmatpush1.msra.mxu0 0.0
    %945 = vmatprep.subr.mxu0 0.0
    %946 = vmatpush1.msra.mxu0 0.0
    %947 = vmatprep.subr.mxu0 0.0
    %948 = vmatpush1.msra.mxu0 0.0
    %949 = vmatprep.subr.mxu0 0.0
    %950 = vmatpush1.msra.mxu0 0.0
    %951 = vmatprep.subr.mxu0 0.0
    %952 = vmatpush1.msra.mxu0 0.0
    %953 = vmatprep.mubr.f32.mxu0 0.0
    %954 = vmatmul.mubr.f32.gmra.mrb[0].mxu0 %v739
    %v955 = vpop.f32.mrb[0].mxu0
    %v956 = vadd.f32 0.0, %v955
    %v957 = vpop.f32.mrb[0].mxu0
    %v958 = vadd.f32 0.0, %v957
    %959 = vdwg.mxu0
    %v960 = vadd.f32 %v750, %v885
    %v961 = vadd.f32 %v751, %v887
    %v962 = vadd.f32 %v752, %v956
    %v963 = vadd.f32 %v753, %v958
    %v964 = vxor.u32 %v960, 2147483648
    %v965 = vmul.f32 %v964, 1.442695
    %v966 = vpow.pop %v965
    %v967 = vadd.f32 %v966, 1.0
    %v968 = vrcp.pop %v967
    %v969 = vmul.f32 1.0, %v968
    %v970 = vxor.u32 %v961, 2147483648
    %v971 = vmul.f32 %v970, 1.442695
    %v972 = vpow.pop %v971
    %v973 = vadd.f32 %v972, 1.0
    %v974 = vrcp.pop %v973
    %v975 = vmul.f32 1.0, %v974
    %v976 = vtanh.pop %v962
    %v977 = vxor.u32 %v963, 2147483648
    %v978 = vmul.f32 %v977, 1.442695
    %v979 = vpow.pop %v978
    %v980 = vadd.f32 %v979, 1.0
    %v981 = vrcp.pop %v980
    %v982 = vmul.f32 1.0, %v981
    %v983 = vmul.f32 %v975, %v737
    %v984 = vmul.f32 %v969, %v976
    %v985 = vadd.f32 %v983, %v984
    %v986 = vtanh.pop %v985
    %v987 = vmul.f32 %v982, %v986
    %988 = vst [vmem:[#allocation3 + $0x10] sm:$0xff] %v987
    %989 = vst [vmem:[#allocation3 + $0x68] sm:$0xff] %v987
    %v990 = vld [vmem:[#allocation2 + $0x40] sm:$0xff]
    %v991 = vld [vmem:[#allocation2 + $0x48] sm:$0xff]
    %v992 = vld [vmem:[#allocation2 + $0x50] sm:$0xff]
    %v993 = vld [vmem:[#allocation2 + $0x58] sm:$0xff]
    %v994 = vld [vmem:[#allocation2 + $0xa0] sm:$0xff]
    %v995 = vld [vmem:[#allocation2 + $0xa8] sm:$0xff]
    %v996 = vld [vmem:[#allocation2 + $0xb0] sm:$0xff]
    %v997 = vld [vmem:[#allocation2 + $0xb8] sm:$0xff]
    %v998 = vsel %vm490, %v990, %v994
    %v999 = vsel %vm491, %v991, %v995
    %v1000 = vsel %vm492, %v992, %v996
    %v1001 = vsel %vm493, %v993, %v997
    %v1002 = vld [vmem:[#allocation7] sm:$0xff]
    %v1003 = vld [vmem:[#allocation7 + $0x8] sm:$0xff]
    %v1004 = vld [vmem:[#allocation7 + $0x10] sm:$0xff]
    %v1005 = vld [vmem:[#allocation7 + $0x18] sm:$0xff]
    %v1006 = vld [vmem:[#allocation7 + $0x20] sm:$0xff]
    %v1007 = vld [vmem:[#allocation7 + $0x28] sm:$0xff]
    %v1008 = vld [vmem:[#allocation7 + $0x30] sm:$0xff]
    %v1009 = vld [vmem:[#allocation7 + $0x38] sm:$0xff]
    %v1010 = vld [vmem:[#allocation7 + $0x40] sm:$0xff]
    %v1011 = vld [vmem:[#allocation7 + $0x48] sm:$0xff]
    %v1012 = vld [vmem:[#allocation7 + $0x50] sm:$0xff]
    %v1013 = vld [vmem:[#allocation7 + $0x58] sm:$0xff]
    %v1014 = vld [vmem:[#allocation7 + $0x60] sm:$0xff]
    %v1015 = vld [vmem:[#allocation7 + $0x68] sm:$0xff]
    %v1016 = vld [vmem:[#allocation7 + $0x70] sm:$0xff]
    %v1017 = vld [vmem:[#allocation7 + $0x78] sm:$0xff]
    %v1018 = vld [vmem:[#allocation7 + $0x80] sm:$0xff]
    %v1019 = vld [vmem:[#allocation7 + $0x88] sm:$0xff]
    %v1020 = vld [vmem:[#allocation7 + $0x90] sm:$0xff]
    %v1021 = vld [vmem:[#allocation7 + $0x98] sm:$0xff]
    %v1022 = vld [vmem:[#allocation7 + $0xa0] sm:$0xff]
    %v1023 = vld [vmem:[#allocation7 + $0xa8] sm:$0xff]
    %v1024 = vld [vmem:[#allocation7 + $0xb0] sm:$0xff]
    %v1025 = vld [vmem:[#allocation7 + $0xb8] sm:$0xff]
    %v1026 = vld [vmem:[#allocation7 + $0xc0] sm:$0xff]
    %v1027 = vld [vmem:[#allocation7 + $0xc8] sm:$0xff]
    %v1028 = vld [vmem:[#allocation7 + $0xd0] sm:$0xff]
    %v1029 = vld [vmem:[#allocation7 + $0xd8] sm:$0xff]
    %v1030 = vld [vmem:[#allocation7 + $0xe0] sm:$0xff]
    %v1031 = vld [vmem:[#allocation7 + $0xe8] sm:$0xff]
    %v1032 = vld [vmem:[#allocation7 + $0xf0] sm:$0xff]
    %v1033 = vld [vmem:[#allocation7 + $0xf8] sm:$0xff]
    %v1034 = vld [vmem:[#allocation7 + $0x100] sm:$0xff]
    %v1035 = vld [vmem:[#allocation7 + $0x108] sm:$0xff]
    %v1036 = vld [vmem:[#allocation7 + $0x110] sm:$0xff]
    %v1037 = vld [vmem:[#allocation7 + $0x118] sm:$0xff]
    %v1038 = vld [vmem:[#allocation7 + $0x120] sm:$0xff]
    %v1039 = vld [vmem:[#allocation7 + $0x128] sm:$0xff]
    %v1040 = vld [vmem:[#allocation7 + $0x130] sm:$0xff]
    %v1041 = vld [vmem:[#allocation7 + $0x138] sm:$0xff]
    %v1042 = vld [vmem:[#allocation7 + $0x140] sm:$0xff]
    %v1043 = vld [vmem:[#allocation7 + $0x148] sm:$0xff]
    %v1044 = vld [vmem:[#allocation7 + $0x150] sm:$0xff]
    %v1045 = vld [vmem:[#allocation7 + $0x158] sm:$0xff]
    %v1046 = vld [vmem:[#allocation7 + $0x160] sm:$0xff]
    %v1047 = vld [vmem:[#allocation7 + $0x168] sm:$0xff]
    %v1048 = vld [vmem:[#allocation7 + $0x170] sm:$0xff]
    %v1049 = vld [vmem:[#allocation7 + $0x178] sm:$0xff]
    %v1050 = vld [vmem:[#allocation7 + $0x180] sm:$0xff]
    %v1051 = vld [vmem:[#allocation7 + $0x188] sm:$0xff]
    %v1052 = vld [vmem:[#allocation7 + $0x190] sm:$0xff]
    %v1053 = vld [vmem:[#allocation7 + $0x198] sm:$0xff]
    %v1054 = vld [vmem:[#allocation7 + $0x1a0] sm:$0xff]
    %v1055 = vld [vmem:[#allocation7 + $0x1a8] sm:$0xff]
    %v1056 = vld [vmem:[#allocation7 + $0x1b0] sm:$0xff]
    %v1057 = vld [vmem:[#allocation7 + $0x1b8] sm:$0xff]
    %v1058 = vld [vmem:[#allocation7 + $0x1c0] sm:$0xff]
    %v1059 = vld [vmem:[#allocation7 + $0x1c8] sm:$0xff]
    %v1060 = vld [vmem:[#allocation7 + $0x1d0] sm:$0xff]
    %v1061 = vld [vmem:[#allocation7 + $0x1d8] sm:$0xff]
    %v1062 = vld [vmem:[#allocation7 + $0x1e0] sm:$0xff]
    %v1063 = vld [vmem:[#allocation7 + $0x1e8] sm:$0xff]
    %v1064 = vld [vmem:[#allocation7 + $0x1f0] sm:$0xff]
    %v1065 = vld [vmem:[#allocation7 + $0x1f8] sm:$0xff]
    %1066 = vmatprep.subr.mxu0 %v1003
    %1067 = vmatpush1.msra.mxu0 %v1002
    %1068 = vmatprep.subr.mxu0 %v1007
    %1069 = vmatpush1.msra.mxu0 %v1006
    %1070 = vmatprep.subr.mxu0 %v1011
    %1071 = vmatpush1.msra.mxu0 %v1010
    %1072 = vmatprep.subr.mxu0 %v1015
    %1073 = vmatpush1.msra.mxu0 %v1014
    %1074 = vmatprep.subr.mxu0 %v1019
    %1075 = vmatpush1.msra.mxu0 %v1018
    %1076 = vmatprep.subr.mxu0 %v1023
    %1077 = vmatpush1.msra.mxu0 %v1022
    %1078 = vmatprep.subr.mxu0 %v1027
    %1079 = vmatpush1.msra.mxu0 %v1026
    %1080 = vmatprep.subr.mxu0 %v1031
    %1081 = vmatpush1.msra.mxu0 %v1030
    %1082 = vmatprep.subr.mxu0 %v1035
    %1083 = vmatpush1.msra.mxu0 %v1034
    %1084 = vmatprep.subr.mxu0 %v1039
    %1085 = vmatpush1.msra.mxu0 %v1038
    %1086 = vmatprep.subr.mxu0 %v1043
    %1087 = vmatpush1.msra.mxu0 %v1042
    %1088 = vmatprep.subr.mxu0 %v1047
    %1089 = vmatpush1.msra.mxu0 %v1046
    %1090 = vmatprep.subr.mxu0 %v1051
    %1091 = vmatpush1.msra.mxu0 %v1050
    %1092 = vmatprep.subr.mxu0 %v1055
    %1093 = vmatpush1.msra.mxu0 %v1054
    %1094 = vmatprep.subr.mxu0 %v1059
    %1095 = vmatpush1.msra.mxu0 %v1058
    %1096 = vmatprep.subr.mxu0 %v1063
    %1097 = vmatpush1.msra.mxu0 %v1062
    %1098 = vmatprep.subr.mxu0 0.0
    %1099 = vmatpush1.msra.mxu0 0.0
    %1100 = vmatprep.subr.mxu0 0.0
    %1101 = vmatpush1.msra.mxu0 0.0
    %1102 = vmatprep.subr.mxu0 0.0
    %1103 = vmatpush1.msra.mxu0 0.0
    %1104 = vmatprep.subr.mxu0 0.0
    %1105 = vmatpush1.msra.mxu0 0.0
    %1106 = vmatprep.subr.mxu0 0.0
    %1107 = vmatpush1.msra.mxu0 0.0
    %1108 = vmatprep.subr.mxu0 0.0
    %1109 = vmatpush1.msra.mxu0 0.0
    %1110 = vmatprep.subr.mxu0 0.0
    %1111 = vmatpush1.msra.mxu0 0.0
    %1112 = vmatprep.subr.mxu0 0.0
    %1113 = vmatpush1.msra.mxu0 0.0
    %1114 = vmatprep.subr.mxu0 0.0
    %1115 = vmatpush1.msra.mxu0 0.0
    %1116 = vmatprep.subr.mxu0 0.0
    %1117 = vmatpush1.msra.mxu0 0.0
    %1118 = vmatprep.subr.mxu0 0.0
    %1119 = vmatpush1.msra.mxu0 0.0
    %1120 = vmatprep.subr.mxu0 0.0
    %1121 = vmatpush1.msra.mxu0 0.0
    %1122 = vmatprep.subr.mxu0 0.0
    %1123 = vmatpush1.msra.mxu0 0.0
    %1124 = vmatprep.subr.mxu0 0.0
    %1125 = vmatpush1.msra.mxu0 0.0
    %1126 = vmatprep.subr.mxu0 0.0
    %1127 = vmatpush1.msra.mxu0 0.0
    %1128 = vmatprep.subr.mxu0 0.0
    %1129 = vmatpush1.msra.mxu0 0.0
    %1130 = vmatprep.mubr.f32.mxu0 0.0
    %1131 = vmatmul.mubr.f32.gmra.mrb[0].mxu0 %v987
    %v1132 = vpop.f32.mrb[0].mxu0
    %v1133 = vadd.f32 0.0, %v1132
    %v1134 = vpop.f32.mrb[0].mxu0
    %v1135 = vadd.f32 0.0, %v1134
    %1136 = vdwg.mxu0
    %1137 = vmatprep.subr.mxu0 %v1005
    %1138 = vmatpush1.msra.mxu0 %v1004
    %1139 = vmatprep.subr.mxu0 %v1009
    %1140 = vmatpush1.msra.mxu0 %v1008
    %1141 = vmatprep.subr.mxu0 %v1013
    %1142 = vmatpush1.msra.mxu0 %v1012
    %1143 = vmatprep.subr.mxu0 %v1017
    %1144 = vmatpush1.msra.mxu0 %v1016
    %1145 = vmatprep.subr.mxu0 %v1021
    %1146 = vmatpush1.msra.mxu0 %v1020
    %1147 = vmatprep.subr.mxu0 %v1025
    %1148 = vmatpush1.msra.mxu0 %v1024
    %1149 = vmatprep.subr.mxu0 %v1029
    %1150 = vmatpush1.msra.mxu0 %v1028
    %1151 = vmatprep.subr.mxu0 %v1033
    %1152 = vmatpush1.msra.mxu0 %v1032
    %1153 = vmatprep.subr.mxu0 %v1037
    %1154 = vmatpush1.msra.mxu0 %v1036
    %1155 = vmatprep.subr.mxu0 %v1041
    %1156 = vmatpush1.msra.mxu0 %v1040
    %1157 = vmatprep.subr.mxu0 %v1045
    %1158 = vmatpush1.msra.mxu0 %v1044
    %1159 = vmatprep.subr.mxu0 %v1049
    %1160 = vmatpush1.msra.mxu0 %v1048
    %1161 = vmatprep.subr.mxu0 %v1053
    %1162 = vmatpush1.msra.mxu0 %v1052
    %1163 = vmatprep.subr.mxu0 %v1057
    %1164 = vmatpush1.msra.mxu0 %v1056
    %1165 = vmatprep.subr.mxu0 %v1061
    %1166 = vmatpush1.msra.mxu0 %v1060
    %1167 = vmatprep.subr.mxu0 %v1065
    %1168 = vmatpush1.msra.mxu0 %v1064
    %1169 = vmatprep.subr.mxu0 0.0
    %1170 = vmatpush1.msra.mxu0 0.0
    %1171 = vmatprep.subr.mxu0 0.0
    %1172 = vmatpush1.msra.mxu0 0.0
    %1173 = vmatprep.subr.mxu0 0.0
    %1174 = vmatpush1.msra.mxu0 0.0
    %1175 = vmatprep.subr.mxu0 0.0
    %1176 = vmatpush1.msra.mxu0 0.0
    %1177 = vmatprep.subr.mxu0 0.0
    %1178 = vmatpush1.msra.mxu0 0.0
    %1179 = vmatprep.subr.mxu0 0.0
    %1180 = vmatpush1.msra.mxu0 0.0
    %1181 = vmatprep.subr.mxu0 0.0
    %1182 = vmatpush1.msra.mxu0 0.0
    %1183 = vmatprep.subr.mxu0 0.0
    %1184 = vmatpush1.msra.mxu0 0.0
    %1185 = vmatprep.subr.mxu0 0.0
    %1186 = vmatpush1.msra.mxu0 0.0
    %1187 = vmatprep.subr.mxu0 0.0
    %1188 = vmatpush1.msra.mxu0 0.0
    %1189 = vmatprep.subr.mxu0 0.0
    %1190 = vmatpush1.msra.mxu0 0.0
    %1191 = vmatprep.subr.mxu0 0.0
    %1192 = vmatpush1.msra.mxu0 0.0
    %1193 = vmatprep.subr.mxu0 0.0
    %1194 = vmatpush1.msra.mxu0 0.0
    %1195 = vmatprep.subr.mxu0 0.0
    %1196 = vmatpush1.msra.mxu0 0.0
    %1197 = vmatprep.subr.mxu0 0.0
    %1198 = vmatpush1.msra.mxu0 0.0
    %1199 = vmatprep.subr.mxu0 0.0
    %1200 = vmatpush1.msra.mxu0 0.0
    %1201 = vmatprep.mubr.f32.mxu0 0.0
    %1202 = vmatmul.mubr.f32.gmra.mrb[0].mxu0 %v987
    %v1203 = vpop.f32.mrb[0].mxu0
    %v1204 = vadd.f32 0.0, %v1203
    %v1205 = vpop.f32.mrb[0].mxu0
    %v1206 = vadd.f32 0.0, %v1205
    %1207 = vdwg.mxu0
    %v1208 = vadd.f32 %v998, %v1133
    %v1209 = vadd.f32 %v999, %v1135
    %v1210 = vadd.f32 %v1000, %v1204
    %v1211 = vadd.f32 %v1001, %v1206
    %v1212 = vxor.u32 %v1208, 2147483648
    %v1213 = vmul.f32 %v1212, 1.442695
    %v1214 = vpow.pop %v1213
    %v1215 = vadd.f32 %v1214, 1.0
    %v1216 = vrcp.pop %v1215
    %v1217 = vmul.f32 1.0, %v1216
    %v1218 = vxor.u32 %v1209, 2147483648
    %v1219 = vmul.f32 %v1218, 1.442695
    %v1220 = vpow.pop %v1219
    %v1221 = vadd.f32 %v1220, 1.0
    %v1222 = vrcp.pop %v1221
    %v1223 = vmul.f32 1.0, %v1222
    %v1224 = vtanh.pop %v1210
    %v1225 = vxor.u32 %v1211, 2147483648
    %v1226 = vmul.f32 %v1225, 1.442695
    %v1227 = vpow.pop %v1226
    %v1228 = vadd.f32 %v1227, 1.0
    %v1229 = vrcp.pop %v1228
    %v1230 = vmul.f32 1.0, %v1229
    %v1231 = vmul.f32 %v1223, %v985
    %v1232 = vmul.f32 %v1217, %v1224
    %v1233 = vadd.f32 %v1231, %v1232
    %v1234 = vtanh.pop %v1233
    %v1235 = vmul.f32 %v1230, %v1234
    %1236 = vst [vmem:[#allocation3 + $0x20] sm:$0xff] %v1235
    %1237 = vst [vmem:[#allocation3 + $0x58] sm:$0xff] %v1235
    %v1238 = vld [vmem:[#allocation2 + $0x60] sm:$0xff]
    %v1239 = vld [vmem:[#allocation2 + $0x68] sm:$0xff]
    %v1240 = vld [vmem:[#allocation2 + $0x70] sm:$0xff]
    %v1241 = vld [vmem:[#allocation2 + $0x78] sm:$0xff]
    %v1242 = vld [vmem:[#allocation2 + $0x80] sm:$0xff]
    %v1243 = vld [vmem:[#allocation2 + $0x88] sm:$0xff]
    %v1244 = vld [vmem:[#allocation2 + $0x90] sm:$0xff]
    %v1245 = vld [vmem:[#allocation2 + $0x98] sm:$0xff]
    %v1246 = vsel %vm490, %v1238, %v1242
    %v1247 = vsel %vm491, %v1239, %v1243
    %v1248 = vsel %vm492, %v1240, %v1244
    %v1249 = vsel %vm493, %v1241, %v1245
    %v1250 = vld [vmem:[#allocation7] sm:$0xff]
    %v1251 = vld [vmem:[#allocation7 + $0x8] sm:$0xff]
    %v1252 = vld [vmem:[#allocation7 + $0x10] sm:$0xff]
    %v1253 = vld [vmem:[#allocation7 + $0x18] sm:$0xff]
    %v1254 = vld [vmem:[#allocation7 + $0x20] sm:$0xff]
    %v1255 = vld [vmem:[#allocation7 + $0x28] sm:$0xff]
    %v1256 = vld [vmem:[#allocation7 + $0x30] sm:$0xff]
    %v1257 = vld [vmem:[#allocation7 + $0x38] sm:$0xff]
    %v1258 = vld [vmem:[#allocation7 + $0x40] sm:$0xff]
    %v1259 = vld [vmem:[#allocation7 + $0x48] sm:$0xff]
    %v1260 = vld [vmem:[#allocation7 + $0x50] sm:$0xff]
    %v1261 = vld [vmem:[#allocation7 + $0x58] sm:$0xff]
    %v1262 = vld [vmem:[#allocation7 + $0x60] sm:$0xff]
    %v1263 = vld [vmem:[#allocation7 + $0x68] sm:$0xff]
    %v1264 = vld [vmem:[#allocation7 + $0x70] sm:$0xff]
    %v1265 = vld [vmem:[#allocation7 + $0x78] sm:$0xff]
    %v1266 = vld [vmem:[#allocation7 + $0x80] sm:$0xff]
    %v1267 = vld [vmem:[#allocation7 + $0x88] sm:$0xff]
    %v1268 = vld [vmem:[#allocation7 + $0x90] sm:$0xff]
    %v1269 = vld [vmem:[#allocation7 + $0x98] sm:$0xff]
    %v1270 = vld [vmem:[#allocation7 + $0xa0] sm:$0xff]
    %v1271 = vld [vmem:[#allocation7 + $0xa8] sm:$0xff]
    %v1272 = vld [vmem:[#allocation7 + $0xb0] sm:$0xff]
    %v1273 = vld [vmem:[#allocation7 + $0xb8] sm:$0xff]
    %v1274 = vld [vmem:[#allocation7 + $0xc0] sm:$0xff]
    %v1275 = vld [vmem:[#allocation7 + $0xc8] sm:$0xff]
    %v1276 = vld [vmem:[#allocation7 + $0xd0] sm:$0xff]
    %v1277 = vld [vmem:[#allocation7 + $0xd8] sm:$0xff]
    %v1278 = vld [vmem:[#allocation7 + $0xe0] sm:$0xff]
    %v1279 = vld [vmem:[#allocation7 + $0xe8] sm:$0xff]
    %v1280 = vld [vmem:[#allocation7 + $0xf0] sm:$0xff]
    %v1281 = vld [vmem:[#allocation7 + $0xf8] sm:$0xff]
    %v1282 = vld [vmem:[#allocation7 + $0x100] sm:$0xff]
    %v1283 = vld [vmem:[#allocation7 + $0x108] sm:$0xff]
    %v1284 = vld [vmem:[#allocation7 + $0x110] sm:$0xff]
    %v1285 = vld [vmem:[#allocation7 + $0x118] sm:$0xff]
    %v1286 = vld [vmem:[#allocation7 + $0x120] sm:$0xff]
    %v1287 = vld [vmem:[#allocation7 + $0x128] sm:$0xff]
    %v1288 = vld [vmem:[#allocation7 + $0x130] sm:$0xff]
    %v1289 = vld [vmem:[#allocation7 + $0x138] sm:$0xff]
    %v1290 = vld [vmem:[#allocation7 + $0x140] sm:$0xff]
    %v1291 = vld [vmem:[#allocation7 + $0x148] sm:$0xff]
    %v1292 = vld [vmem:[#allocation7 + $0x150] sm:$0xff]
    %v1293 = vld [vmem:[#allocation7 + $0x158] sm:$0xff]
    %v1294 = vld [vmem:[#allocation7 + $0x160] sm:$0xff]
    %v1295 = vld [vmem:[#allocation7 + $0x168] sm:$0xff]
    %v1296 = vld [vmem:[#allocation7 + $0x170] sm:$0xff]
    %v1297 = vld [vmem:[#allocation7 + $0x178] sm:$0xff]
    %v1298 = vld [vmem:[#allocation7 + $0x180] sm:$0xff]
    %v1299 = vld [vmem:[#allocation7 + $0x188] sm:$0xff]
    %v1300 = vld [vmem:[#allocation7 + $0x190] sm:$0xff]
    %v1301 = vld [vmem:[#allocation7 + $0x198] sm:$0xff]
    %v1302 = vld [vmem:[#allocation7 + $0x1a0] sm:$0xff]
    %v1303 = vld [vmem:[#allocation7 + $0x1a8] sm:$0xff]
    %v1304 = vld [vmem:[#allocation7 + $0x1b0] sm:$0xff]
    %v1305 = vld [vmem:[#allocation7 + $0x1b8] sm:$0xff]
    %v1306 = vld [vmem:[#allocation7 + $0x1c0] sm:$0xff]
    %v1307 = vld [vmem:[#allocation7 + $0x1c8] sm:$0xff]
    %v1308 = vld [vmem:[#allocation7 + $0x1d0] sm:$0xff]
    %v1309 = vld [vmem:[#allocation7 + $0x1d8] sm:$0xff]
    %v1310 = vld [vmem:[#allocation7 + $0x1e0] sm:$0xff]
    %v1311 = vld [vmem:[#allocation7 + $0x1e8] sm:$0xff]
    %v1312 = vld [vmem:[#allocation7 + $0x1f0] sm:$0xff]
    %v1313 = vld [vmem:[#allocation7 + $0x1f8] sm:$0xff]
    %1314 = vmatprep.subr.mxu0 %v1251
    %1315 = vmatpush1.msra.mxu0 %v1250
    %1316 = vmatprep.subr.mxu0 %v1255
    %1317 = vmatpush1.msra.mxu0 %v1254
    %1318 = vmatprep.subr.mxu0 %v1259
    %1319 = vmatpush1.msra.mxu0 %v1258
    %1320 = vmatprep.subr.mxu0 %v1263
    %1321 = vmatpush1.msra.mxu0 %v1262
    %1322 = vmatprep.subr.mxu0 %v1267
    %1323 = vmatpush1.msra.mxu0 %v1266
    %1324 = vmatprep.subr.mxu0 %v1271
    %1325 = vmatpush1.msra.mxu0 %v1270
    %1326 = vmatprep.subr.mxu0 %v1275
    %1327 = vmatpush1.msra.mxu0 %v1274
    %1328 = vmatprep.subr.mxu0 %v1279
    %1329 = vmatpush1.msra.mxu0 %v1278
    %1330 = vmatprep.subr.mxu0 %v1283
    %1331 = vmatpush1.msra.mxu0 %v1282
    %1332 = vmatprep.subr.mxu0 %v1287
    %1333 = vmatpush1.msra.mxu0 %v1286
    %1334 = vmatprep.subr.mxu0 %v1291
    %1335 = vmatpush1.msra.mxu0 %v1290
    %1336 = vmatprep.subr.mxu0 %v1295
    %1337 = vmatpush1.msra.mxu0 %v1294
    %1338 = vmatprep.subr.mxu0 %v1299
    %1339 = vmatpush1.msra.mxu0 %v1298
    %1340 = vmatprep.subr.mxu0 %v1303
    %1341 = vmatpush1.msra.mxu0 %v1302
    %1342 = vmatprep.subr.mxu0 %v1307
    %1343 = vmatpush1.msra.mxu0 %v1306
    %1344 = vmatprep.subr.mxu0 %v1311
    %1345 = vmatpush1.msra.mxu0 %v1310
    %1346 = vmatprep.subr.mxu0 0.0
    %1347 = vmatpush1.msra.mxu0 0.0
    %1348 = vmatprep.subr.mxu0 0.0
    %1349 = vmatpush1.msra.mxu0 0.0
    %1350 = vmatprep.subr.mxu0 0.0
    %1351 = vmatpush1.msra.mxu0 0.0
    %1352 = vmatprep.subr.mxu0 0.0
    %1353 = vmatpush1.msra.mxu0 0.0
    %1354 = vmatprep.subr.mxu0 0.0
    %1355 = vmatpush1.msra.mxu0 0.0
    %1356 = vmatprep.subr.mxu0 0.0
    %1357 = vmatpush1.msra.mxu0 0.0
    %1358 = vmatprep.subr.mxu0 0.0
    %1359 = vmatpush1.msra.mxu0 0.0
    %1360 = vmatprep.subr.mxu0 0.0
    %1361 = vmatpush1.msra.mxu0 0.0
    %1362 = vmatprep.subr.mxu0 0.0
    %1363 = vmatpush1.msra.mxu0 0.0
    %1364 = vmatprep.subr.mxu0 0.0
    %1365 = vmatpush1.msra.mxu0 0.0
    %1366 = vmatprep.subr.mxu0 0.0
    %1367 = vmatpush1.msra.mxu0 0.0
    %1368 = vmatprep.subr.mxu0 0.0
    %1369 = vmatpush1.msra.mxu0 0.0
    %1370 = vmatprep.subr.mxu0 0.0
    %1371 = vmatpush1.msra.mxu0 0.0
    %1372 = vmatprep.subr.mxu0 0.0
    %1373 = vmatpush1.msra.mxu0 0.0
    %1374 = vmatprep.subr.mxu0 0.0
    %1375 = vmatpush1.msra.mxu0 0.0
    %1376 = vmatprep.subr.mxu0 0.0
    %1377 = vmatpush1.msra.mxu0 0.0
    %1378 = vmatprep.mubr.f32.mxu0 0.0
    %1379 = vmatmul.mubr.f32.gmra.mrb[0].mxu0 %v1235
    %v1380 = vpop.f32.mrb[0].mxu0
    %v1381 = vadd.f32 0.0, %v1380
    %v1382 = vpop.f32.mrb[0].mxu0
    %v1383 = vadd.f32 0.0, %v1382
    %1384 = vdwg.mxu0
    %1385 = vmatprep.subr.mxu0 %v1253
    %1386 = vmatpush1.msra.mxu0 %v1252
    %1387 = vmatprep.subr.mxu0 %v1257
    %1388 = vmatpush1.msra.mxu0 %v1256
    %1389 = vmatprep.subr.mxu0 %v1261
    %1390 = vmatpush1.msra.mxu0 %v1260
    %1391 = vmatprep.subr.mxu0 %v1265
    %1392 = vmatpush1.msra.mxu0 %v1264
    %1393 = vmatprep.subr.mxu0 %v1269
    %1394 = vmatpush1.msra.mxu0 %v1268
    %1395 = vmatprep.subr.mxu0 %v1273
    %1396 = vmatpush1.msra.mxu0 %v1272
    %1397 = vmatprep.subr.mxu0 %v1277
    %1398 = vmatpush1.msra.mxu0 %v1276
    %1399 = vmatprep.subr.mxu0 %v1281
    %1400 = vmatpush1.msra.mxu0 %v1280
    %1401 = vmatprep.subr.mxu0 %v1285
    %1402 = vmatpush1.msra.mxu0 %v1284
    %1403 = vmatprep.subr.mxu0 %v1289
    %1404 = vmatpush1.msra.mxu0 %v1288
    %1405 = vmatprep.subr.mxu0 %v1293
    %1406 = vmatpush1.msra.mxu0 %v1292
    %1407 = vmatprep.subr.mxu0 %v1297
    %1408 = vmatpush1.msra.mxu0 %v1296
    %1409 = vmatprep.subr.mxu0 %v1301
    %1410 = vmatpush1.msra.mxu0 %v1300
    %1411 = vmatprep.subr.mxu0 %v1305
    %1412 = vmatpush1.msra.mxu0 %v1304
    %1413 = vmatprep.subr.mxu0 %v1309
    %1414 = vmatpush1.msra.mxu0 %v1308
    %1415 = vmatprep.subr.mxu0 %v1313
    %1416 = vmatpush1.msra.mxu0 %v1312
    %1417 = vmatprep.subr.mxu0 0.0
    %1418 = vmatpush1.msra.mxu0 0.0
    %1419 = vmatprep.subr.mxu0 0.0
    %1420 = vmatpush1.msra.mxu0 0.0
    %1421 = vmatprep.subr.mxu0 0.0
    %1422 = vmatpush1.msra.mxu0 0.0
    %1423 = vmatprep.subr.mxu0 0.0
    %1424 = vmatpush1.msra.mxu0 0.0
    %1425 = vmatprep.subr.mxu0 0.0
    %1426 = vmatpush1.msra.mxu0 0.0
    %1427 = vmatprep.subr.mxu0 0.0
    %1428 = vmatpush1.msra.mxu0 0.0
    %1429 = vmatprep.subr.mxu0 0.0
    %1430 = vmatpush1.msra.mxu0 0.0
    %1431 = vmatprep.subr.mxu0 0.0
    %1432 = vmatpush1.msra.mxu0 0.0
    %1433 = vmatprep.subr.mxu0 0.0
    %1434 = vmatpush1.msra.mxu0 0.0
    %1435 = vmatprep.subr.mxu0 0.0
    %1436 = vmatpush1.msra.mxu0 0.0
    %1437 = vmatprep.subr.mxu0 0.0
    %1438 = vmatpush1.msra.mxu0 0.0
    %1439 = vmatprep.subr.mxu0 0.0
    %1440 = vmatpush1.msra.mxu0 0.0
    %1441 = vmatprep.subr.mxu0 0.0
    %1442 = vmatpush1.msra.mxu0 0.0
    %1443 = vmatprep.subr.mxu0 0.0
    %1444 = vmatpush1.msra.mxu0 0.0
    %1445 = vmatprep.subr.mxu0 0.0
    %1446 = vmatpush1.msra.mxu0 0.0
    %1447 = vmatprep.subr.mxu0 0.0
    %1448 = vmatpush1.msra.mxu0 0.0
    %1449 = vmatprep.mubr.f32.mxu0 0.0
    %1450 = vmatmul.mubr.f32.gmra.mrb[0].mxu0 %v1235
    %v1451 = vpop.f32.mrb[0].mxu0
    %v1452 = vadd.f32 0.0, %v1451
    %v1453 = vpop.f32.mrb[0].mxu0
    %v1454 = vadd.f32 0.0, %v1453
    %1455 = vdwg.mxu0
    %v1456 = vadd.f32 %v1246, %v1381
    %v1457 = vadd.f32 %v1247, %v1383
    %v1458 = vadd.f32 %v1248, %v1452
    %v1459 = vadd.f32 %v1249, %v1454
    %v1460 = vxor.u32 %v1456, 2147483648
    %v1461 = vmul.f32 %v1460, 1.442695
    %v1462 = vpow.pop %v1461
    %v1463 = vadd.f32 %v1462, 1.0
    %v1464 = vrcp.pop %v1463
    %v1465 = vmul.f32 1.0, %v1464
    %v1466 = vxor.u32 %v1457, 2147483648
    %v1467 = vmul.f32 %v1466, 1.442695
    %v1468 = vpow.pop %v1467
    %v1469 = vadd.f32 %v1468, 1.0
    %v1470 = vrcp.pop %v1469
    %v1471 = vmul.f32 1.0, %v1470
    %v1472 = vtanh.pop %v1458
    %v1473 = vxor.u32 %v1459, 2147483648
    %v1474 = vmul.f32 %v1473, 1.442695
    %v1475 = vpow.pop %v1474
    %v1476 = vadd.f32 %v1475, 1.0
    %v1477 = vrcp.pop %v1476
    %v1478 = vmul.f32 1.0, %v1477
    %v1479 = vmul.f32 %v1471, %v1233
    %v1480 = vmul.f32 %v1465, %v1472
    %v1481 = vadd.f32 %v1479, %v1480
    %v1482 = vtanh.pop %v1481
    %v1483 = vmul.f32 %v1478, %v1482
    %1484 = vst [vmem:[#allocation3 + $0x30] sm:$0xff] %v1483
    %1485 = vst [vmem:[#allocation3 + $0x48] sm:$0xff] %v1483
    %v1486 = vld [vmem:[#allocation2 + $0x80] sm:$0xff]
    %v1487 = vld [vmem:[#allocation2 + $0x88] sm:$0xff]
    %v1488 = vld [vmem:[#allocation2 + $0x90] sm:$0xff]
    %v1489 = vld [vmem:[#allocation2 + $0x98] sm:$0xff]
    %v1490 = vld [vmem:[#allocation2 + $0x60] sm:$0xff]
    %v1491 = vld [vmem:[#allocation2 + $0x68] sm:$0xff]
    %v1492 = vld [vmem:[#allocation2 + $0x70] sm:$0xff]
    %v1493 = vld [vmem:[#allocation2 + $0x78] sm:$0xff]
    %v1494 = vsel %vm490, %v1486, %v1490
    %v1495 = vsel %vm491, %v1487, %v1491
    %v1496 = vsel %vm492, %v1488, %v1492
    %v1497 = vsel %vm493, %v1489, %v1493
    %v1498 = vld [vmem:[#allocation7] sm:$0xff]
    %v1499 = vld [vmem:[#allocation7 + $0x8] sm:$0xff]
    %v1500 = vld [vmem:[#allocation7 + $0x10] sm:$0xff]
    %v1501 = vld [vmem:[#allocation7 + $0x18] sm:$0xff]
    %v1502 = vld [vmem:[#allocation7 + $0x20] sm:$0xff]
    %v1503 = vld [vmem:[#allocation7 + $0x28] sm:$0xff]
    %v1504 = vld [vmem:[#allocation7 + $0x30] sm:$0xff]
    %v1505 = vld [vmem:[#allocation7 + $0x38] sm:$0xff]
    %v1506 = vld [vmem:[#allocation7 + $0x40] sm:$0xff]
    %v1507 = vld [vmem:[#allocation7 + $0x48] sm:$0xff]
    %v1508 = vld [vmem:[#allocation7 + $0x50] sm:$0xff]
    %v1509 = vld [vmem:[#allocation7 + $0x58] sm:$0xff]
    %v1510 = vld [vmem:[#allocation7 + $0x60] sm:$0xff]
    %v1511 = vld [vmem:[#allocation7 + $0x68] sm:$0xff]
    %v1512 = vld [vmem:[#allocation7 + $0x70] sm:$0xff]
    %v1513 = vld [vmem:[#allocation7 + $0x78] sm:$0xff]
    %v1514 = vld [vmem:[#allocation7 + $0x80] sm:$0xff]
    %v1515 = vld [vmem:[#allocation7 + $0x88] sm:$0xff]
    %v1516 = vld [vmem:[#allocation7 + $0x90] sm:$0xff]
    %v1517 = vld [vmem:[#allocation7 + $0x98] sm:$0xff]
    %v1518 = vld [vmem:[#allocation7 + $0xa0] sm:$0xff]
    %v1519 = vld [vmem:[#allocation7 + $0xa8] sm:$0xff]
    %v1520 = vld [vmem:[#allocation7 + $0xb0] sm:$0xff]
    %v1521 = vld [vmem:[#allocation7 + $0xb8] sm:$0xff]
    %v1522 = vld [vmem:[#allocation7 + $0xc0] sm:$0xff]
    %v1523 = vld [vmem:[#allocation7 + $0xc8] sm:$0xff]
    %v1524 = vld [vmem:[#allocation7 + $0xd0] sm:$0xff]
    %v1525 = vld [vmem:[#allocation7 + $0xd8] sm:$0xff]
    %v1526 = vld [vmem:[#allocation7 + $0xe0] sm:$0xff]
    %v1527 = vld [vmem:[#allocation7 + $0xe8] sm:$0xff]
    %v1528 = vld [vmem:[#allocation7 + $0xf0] sm:$0xff]
    %v1529 = vld [vmem:[#allocation7 + $0xf8] sm:$0xff]
    %v1530 = vld [vmem:[#allocation7 + $0x100] sm:$0xff]
    %v1531 = vld [vmem:[#allocation7 + $0x108] sm:$0xff]
    %v1532 = vld [vmem:[#allocation7 + $0x110] sm:$0xff]
    %v1533 = vld [vmem:[#allocation7 + $0x118] sm:$0xff]
    %v1534 = vld [vmem:[#allocation7 + $0x120] sm:$0xff]
    %v1535 = vld [vmem:[#allocation7 + $0x128] sm:$0xff]
    %v1536 = vld [vmem:[#allocation7 + $0x130] sm:$0xff]
    %v1537 = vld [vmem:[#allocation7 + $0x138] sm:$0xff]
    %v1538 = vld [vmem:[#allocation7 + $0x140] sm:$0xff]
    %v1539 = vld [vmem:[#allocation7 + $0x148] sm:$0xff]
    %v1540 = vld [vmem:[#allocation7 + $0x150] sm:$0xff]
    %v1541 = vld [vmem:[#allocation7 + $0x158] sm:$0xff]
    %v1542 = vld [vmem:[#allocation7 + $0x160] sm:$0xff]
    %v1543 = vld [vmem:[#allocation7 + $0x168] sm:$0xff]
    %v1544 = vld [vmem:[#allocation7 + $0x170] sm:$0xff]
    %v1545 = vld [vmem:[#allocation7 + $0x178] sm:$0xff]
    %v1546 = vld [vmem:[#allocation7 + $0x180] sm:$0xff]
    %v1547 = vld [vmem:[#allocation7 + $0x188] sm:$0xff]
    %v1548 = vld [vmem:[#allocation7 + $0x190] sm:$0xff]
    %v1549 = vld [vmem:[#allocation7 + $0x198] sm:$0xff]
    %v1550 = vld [vmem:[#allocation7 + $0x1a0] sm:$0xff]
    %v1551 = vld [vmem:[#allocation7 + $0x1a8] sm:$0xff]
    %v1552 = vld [vmem:[#allocation7 + $0x1b0] sm:$0xff]
    %v1553 = vld [vmem:[#allocation7 + $0x1b8] sm:$0xff]
    %v1554 = vld [vmem:[#allocation7 + $0x1c0] sm:$0xff]
    %v1555 = vld [vmem:[#allocation7 + $0x1c8] sm:$0xff]
    %v1556 = vld [vmem:[#allocation7 + $0x1d0] sm:$0xff]
    %v1557 = vld [vmem:[#allocation7 + $0x1d8] sm:$0xff]
    %v1558 = vld [vmem:[#allocation7 + $0x1e0] sm:$0xff]
    %v1559 = vld [vmem:[#allocation7 + $0x1e8] sm:$0xff]
    %v1560 = vld [vmem:[#allocation7 + $0x1f0] sm:$0xff]
    %v1561 = vld [vmem:[#allocation7 + $0x1f8] sm:$0xff]
    %1562 = vmatprep.subr.mxu0 %v1499
    %1563 = vmatpush1.msra.mxu0 %v1498
    %1564 = vmatprep.subr.mxu0 %v1503
    %1565 = vmatpush1.msra.mxu0 %v1502
    %1566 = vmatprep.subr.mxu0 %v1507
    %1567 = vmatpush1.msra.mxu0 %v1506
    %1568 = vmatprep.subr.mxu0 %v1511
    %1569 = vmatpush1.msra.mxu0 %v1510
    %1570 = vmatprep.subr.mxu0 %v1515
    %1571 = vmatpush1.msra.mxu0 %v1514
    %1572 = vmatprep.subr.mxu0 %v1519
    %1573 = vmatpush1.msra.mxu0 %v1518
    %1574 = vmatprep.subr.mxu0 %v1523
    %1575 = vmatpush1.msra.mxu0 %v1522
    %1576 = vmatprep.subr.mxu0 %v1527
    %1577 = vmatpush1.msra.mxu0 %v1526
    %1578 = vmatprep.subr.mxu0 %v1531
    %1579 = vmatpush1.msra.mxu0 %v1530
    %1580 = vmatprep.subr.mxu0 %v1535
    %1581 = vmatpush1.msra.mxu0 %v1534
    %1582 = vmatprep.subr.mxu0 %v1539
    %1583 = vmatpush1.msra.mxu0 %v1538
    %1584 = vmatprep.subr.mxu0 %v1543
    %1585 = vmatpush1.msra.mxu0 %v1542
    %1586 = vmatprep.subr.mxu0 %v1547
    %1587 = vmatpush1.msra.mxu0 %v1546
    %1588 = vmatprep.subr.mxu0 %v1551
    %1589 = vmatpush1.msra.mxu0 %v1550
    %1590 = vmatprep.subr.mxu0 %v1555
    %1591 = vmatpush1.msra.mxu0 %v1554
    %1592 = vmatprep.subr.mxu0 %v1559
    %1593 = vmatpush1.msra.mxu0 %v1558
    %1594 = vmatprep.subr.mxu0 0.0
    %1595 = vmatpush1.msra.mxu0 0.0
    %1596 = vmatprep.subr.mxu0 0.0
    %1597 = vmatpush1.msra.mxu0 0.0
    %1598 = vmatprep.subr.mxu0 0.0
    %1599 = vmatpush1.msra.mxu0 0.0
    %1600 = vmatprep.subr.mxu0 0.0
    %1601 = vmatpush1.msra.mxu0 0.0
    %1602 = vmatprep.subr.mxu0 0.0
    %1603 = vmatpush1.msra.mxu0 0.0
    %1604 = vmatprep.subr.mxu0 0.0
    %1605 = vmatpush1.msra.mxu0 0.0
    %1606 = vmatprep.subr.mxu0 0.0
    %1607 = vmatpush1.msra.mxu0 0.0
    %1608 = vmatprep.subr.mxu0 0.0
    %1609 = vmatpush1.msra.mxu0 0.0
    %1610 = vmatprep.subr.mxu0 0.0
    %1611 = vmatpush1.msra.mxu0 0.0
    %1612 = vmatprep.subr.mxu0 0.0
    %1613 = vmatpush1.msra.mxu0 0.0
    %1614 = vmatprep.subr.mxu0 0.0
    %1615 = vmatpush1.msra.mxu0 0.0
    %1616 = vmatprep.subr.mxu0 0.0
    %1617 = vmatpush1.msra.mxu0 0.0
    %1618 = vmatprep.subr.mxu0 0.0
    %1619 = vmatpush1.msra.mxu0 0.0
    %1620 = vmatprep.subr.mxu0 0.0
    %1621 = vmatpush1.msra.mxu0 0.0
    %1622 = vmatprep.subr.mxu0 0.0
    %1623 = vmatpush1.msra.mxu0 0.0
    %1624 = vmatprep.subr.mxu0 0.0
    %1625 = vmatpush1.msra.mxu0 0.0
    %1626 = vmatprep.mubr.f32.mxu0 0.0
    %1627 = vmatmul.mubr.f32.gmra.mrb[0].mxu0 %v1483
    %v1628 = vpop.f32.mrb[0].mxu0
    %v1629 = vadd.f32 0.0, %v1628
    %v1630 = vpop.f32.mrb[0].mxu0
    %v1631 = vadd.f32 0.0, %v1630
    %1632 = vdwg.mxu0
    %1633 = vmatprep.subr.mxu0 %v1501
    %1634 = vmatpush1.msra.mxu0 %v1500
    %1635 = vmatprep.subr.mxu0 %v1505
    %1636 = vmatpush1.msra.mxu0 %v1504
    %1637 = vmatprep.subr.mxu0 %v1509
    %1638 = vmatpush1.msra.mxu0 %v1508
    %1639 = vmatprep.subr.mxu0 %v1513
    %1640 = vmatpush1.msra.mxu0 %v1512
    %1641 = vmatprep.subr.mxu0 %v1517
    %1642 = vmatpush1.msra.mxu0 %v1516
    %1643 = vmatprep.subr.mxu0 %v1521
    %1644 = vmatpush1.msra.mxu0 %v1520
    %1645 = vmatprep.subr.mxu0 %v1525
    %1646 = vmatpush1.msra.mxu0 %v1524
    %1647 = vmatprep.subr.mxu0 %v1529
    %1648 = vmatpush1.msra.mxu0 %v1528
    %1649 = vmatprep.subr.mxu0 %v1533
    %1650 = vmatpush1.msra.mxu0 %v1532
    %1651 = vmatprep.subr.mxu0 %v1537
    %1652 = vmatpush1.msra.mxu0 %v1536
    %1653 = vmatprep.subr.mxu0 %v1541
    %1654 = vmatpush1.msra.mxu0 %v1540
    %1655 = vmatprep.subr.mxu0 %v1545
    %1656 = vmatpush1.msra.mxu0 %v1544
    %1657 = vmatprep.subr.mxu0 %v1549
    %1658 = vmatpush1.msra.mxu0 %v1548
    %1659 = vmatprep.subr.mxu0 %v1553
    %1660 = vmatpush1.msra.mxu0 %v1552
    %1661 = vmatprep.subr.mxu0 %v1557
    %1662 = vmatpush1.msra.mxu0 %v1556
    %1663 = vmatprep.subr.mxu0 %v1561
    %1664 = vmatpush1.msra.mxu0 %v1560
    %1665 = vmatprep.subr.mxu0 0.0
    %1666 = vmatpush1.msra.mxu0 0.0
    %1667 = vmatprep.subr.mxu0 0.0
    %1668 = vmatpush1.msra.mxu0 0.0
    %1669 = vmatprep.subr.mxu0 0.0
    %1670 = vmatpush1.msra.mxu0 0.0
    %1671 = vmatprep.subr.mxu0 0.0
    %1672 = vmatpush1.msra.mxu0 0.0
    %1673 = vmatprep.subr.mxu0 0.0
    %1674 = vmatpush1.msra.mxu0 0.0
    %1675 = vmatprep.subr.mxu0 0.0
    %1676 = vmatpush1.msra.mxu0 0.0
    %1677 = vmatprep.subr.mxu0 0.0
    %1678 = vmatpush1.msra.mxu0 0.0
    %1679 = vmatprep.subr.mxu0 0.0
    %1680 = vmatpush1.msra.mxu0 0.0
    %1681 = vmatprep.subr.mxu0 0.0
    %1682 = vmatpush1.msra.mxu0 0.0
    %1683 = vmatprep.subr.mxu0 0.0
    %1684 = vmatpush1.msra.mxu0 0.0
    %1685 = vmatprep.subr.mxu0 0.0
    %1686 = vmatpush1.msra.mxu0 0.0
    %1687 = vmatprep.subr.mxu0 0.0
    %1688 = vmatpush1.msra.mxu0 0.0
    %1689 = vmatprep.subr.mxu0 0.0
    %1690 = vmatpush1.msra.mxu0 0.0
    %1691 = vmatprep.subr.mxu0 0.0
    %1692 = vmatpush1.msra.mxu0 0.0
    %1693 = vmatprep.subr.mxu0 0.0
    %1694 = vmatpush1.msra.mxu0 0.0
    %1695 = vmatprep.subr.mxu0 0.0
    %1696 = vmatpush1.msra.mxu0 0.0
    %1697 = vmatprep.mubr.f32.mxu0 0.0
    %1698 = vmatmul.mubr.f32.gmra.mrb[0].mxu0 %v1483
    %v1699 = vpop.f32.mrb[0].mxu0
    %v1700 = vadd.f32 0.0, %v1699
    %v1701 = vpop.f32.mrb[0].mxu0
    %v1702 = vadd.f32 0.0, %v1701
    %1703 = vdwg.mxu0
    %v1704 = vadd.f32 %v1494, %v1629
    %v1705 = vadd.f32 %v1495, %v1631
    %v1706 = vadd.f32 %v1496, %v1700
    %v1707 = vadd.f32 %v1497, %v1702
    %v1708 = vxor.u32 %v1704, 2147483648
    %v1709 = vmul.f32 %v1708, 1.442695
    %v1710 = vpow.pop %v1709
    %v1711 = vadd.f32 %v1710, 1.0
    %v1712 = vrcp.pop %v1711
    %v1713 = vmul.f32 1.0, %v1712
    %v1714 = vxor.u32 %v1705, 2147483648
    %v1715 = vmul.f32 %v1714, 1.442695
    %v1716 = vpow.pop %v1715
    %v1717 = vadd.f32 %v1716, 1.0
    %v1718 = vrcp.pop %v1717
    %v1719 = vmul.f32 1.0, %v1718
    %v1720 = vtanh.pop %v1706
    %v1721 = vxor.u32 %v1707, 2147483648
    %v1722 = vmul.f32 %v1721, 1.442695
    %v1723 = vpow.pop %v1722
    %v1724 = vadd.f32 %v1723, 1.0
    %v1725 = vrcp.pop %v1724
    %v1726 = vmul.f32 1.0, %v1725
    %v1727 = vmul.f32 %v1719, %v1481
    %v1728 = vmul.f32 %v1713, %v1720
    %v1729 = vadd.f32 %v1727, %v1728
    %v1730 = vtanh.pop %v1729
    %v1731 = vmul.f32 %v1726, %v1730
    %1732 = vst [vmem:[#allocation3 + $0x40] sm:$0xff] %v1731
    %1733 = vst [vmem:[#allocation3 + $0x38] sm:$0xff] %v1731
    %v1734 = vld [vmem:[#allocation2 + $0xa0] sm:$0xff]
    %v1735 = vld [vmem:[#allocation2 + $0xa8] sm:$0xff]
    %v1736 = vld [vmem:[#allocation2 + $0xb0] sm:$0xff]
    %v1737 = vld [vmem:[#allocation2 + $0xb8] sm:$0xff]
    %v1738 = vld [vmem:[#allocation2 + $0x40] sm:$0xff]
    %v1739 = vld [vmem:[#allocation2 + $0x48] sm:$0xff]
    %v1740 = vld [vmem:[#allocation2 + $0x50] sm:$0xff]
    %v1741 = vld [vmem:[#allocation2 + $0x58] sm:$0xff]
    %v1742 = vsel %vm490, %v1734, %v1738
    %v1743 = vsel %vm491, %v1735, %v1739
    %v1744 = vsel %vm492, %v1736, %v1740
    %v1745 = vsel %vm493, %v1737, %v1741
    %v1746 = vld [vmem:[#allocation7] sm:$0xff]
    %v1747 = vld [vmem:[#allocation7 + $0x8] sm:$0xff]
    %v1748 = vld [vmem:[#allocation7 + $0x10] sm:$0xff]
    %v1749 = vld [vmem:[#allocation7 + $0x18] sm:$0xff]
    %v1750 = vld [vmem:[#allocation7 + $0x20] sm:$0xff]
    %v1751 = vld [vmem:[#allocation7 + $0x28] sm:$0xff]
    %v1752 = vld [vmem:[#allocation7 + $0x30] sm:$0xff]
    %v1753 = vld [vmem:[#allocation7 + $0x38] sm:$0xff]
    %v1754 = vld [vmem:[#allocation7 + $0x40] sm:$0xff]
    %v1755 = vld [vmem:[#allocation7 + $0x48] sm:$0xff]
    %v1756 = vld [vmem:[#allocation7 + $0x50] sm:$0xff]
    %v1757 = vld [vmem:[#allocation7 + $0x58] sm:$0xff]
    %v1758 = vld [vmem:[#allocation7 + $0x60] sm:$0xff]
    %v1759 = vld [vmem:[#allocation7 + $0x68] sm:$0xff]
    %v1760 = vld [vmem:[#allocation7 + $0x70] sm:$0xff]
    %v1761 = vld [vmem:[#allocation7 + $0x78] sm:$0xff]
    %v1762 = vld [vmem:[#allocation7 + $0x80] sm:$0xff]
    %v1763 = vld [vmem:[#allocation7 + $0x88] sm:$0xff]
    %v1764 = vld [vmem:[#allocation7 + $0x90] sm:$0xff]
    %v1765 = vld [vmem:[#allocation7 + $0x98] sm:$0xff]
    %v1766 = vld [vmem:[#allocation7 + $0xa0] sm:$0xff]
    %v1767 = vld [vmem:[#allocation7 + $0xa8] sm:$0xff]
    %v1768 = vld [vmem:[#allocation7 + $0xb0] sm:$0xff]
    %v1769 = vld [vmem:[#allocation7 + $0xb8] sm:$0xff]
    %v1770 = vld [vmem:[#allocation7 + $0xc0] sm:$0xff]
    %v1771 = vld [vmem:[#allocation7 + $0xc8] sm:$0xff]
    %v1772 = vld [vmem:[#allocation7 + $0xd0] sm:$0xff]
    %v1773 = vld [vmem:[#allocation7 + $0xd8] sm:$0xff]
    %v1774 = vld [vmem:[#allocation7 + $0xe0] sm:$0xff]
    %v1775 = vld [vmem:[#allocation7 + $0xe8] sm:$0xff]
    %v1776 = vld [vmem:[#allocation7 + $0xf0] sm:$0xff]
    %v1777 = vld [vmem:[#allocation7 + $0xf8] sm:$0xff]
    %v1778 = vld [vmem:[#allocation7 + $0x100] sm:$0xff]
    %v1779 = vld [vmem:[#allocation7 + $0x108] sm:$0xff]
    %v1780 = vld [vmem:[#allocation7 + $0x110] sm:$0xff]
    %v1781 = vld [vmem:[#allocation7 + $0x118] sm:$0xff]
    %v1782 = vld [vmem:[#allocation7 + $0x120] sm:$0xff]
    %v1783 = vld [vmem:[#allocation7 + $0x128] sm:$0xff]
    %v1784 = vld [vmem:[#allocation7 + $0x130] sm:$0xff]
    %v1785 = vld [vmem:[#allocation7 + $0x138] sm:$0xff]
    %v1786 = vld [vmem:[#allocation7 + $0x140] sm:$0xff]
    %v1787 = vld [vmem:[#allocation7 + $0x148] sm:$0xff]
    %v1788 = vld [vmem:[#allocation7 + $0x150] sm:$0xff]
    %v1789 = vld [vmem:[#allocation7 + $0x158] sm:$0xff]
    %v1790 = vld [vmem:[#allocation7 + $0x160] sm:$0xff]
    %v1791 = vld [vmem:[#allocation7 + $0x168] sm:$0xff]
    %v1792 = vld [vmem:[#allocation7 + $0x170] sm:$0xff]
    %v1793 = vld [vmem:[#allocation7 + $0x178] sm:$0xff]
    %v1794 = vld [vmem:[#allocation7 + $0x180] sm:$0xff]
    %v1795 = vld [vmem:[#allocation7 + $0x188] sm:$0xff]
    %v1796 = vld [vmem:[#allocation7 + $0x190] sm:$0xff]
    %v1797 = vld [vmem:[#allocation7 + $0x198] sm:$0xff]
    %v1798 = vld [vmem:[#allocation7 + $0x1a0] sm:$0xff]
    %v1799 = vld [vmem:[#allocation7 + $0x1a8] sm:$0xff]
    %v1800 = vld [vmem:[#allocation7 + $0x1b0] sm:$0xff]
    %v1801 = vld [vmem:[#allocation7 + $0x1b8] sm:$0xff]
    %v1802 = vld [vmem:[#allocation7 + $0x1c0] sm:$0xff]
    %v1803 = vld [vmem:[#allocation7 + $0x1c8] sm:$0xff]
    %v1804 = vld [vmem:[#allocation7 + $0x1d0] sm:$0xff]
    %v1805 = vld [vmem:[#allocation7 + $0x1d8] sm:$0xff]
    %v1806 = vld [vmem:[#allocation7 + $0x1e0] sm:$0xff]
    %v1807 = vld [vmem:[#allocation7 + $0x1e8] sm:$0xff]
    %v1808 = vld [vmem:[#allocation7 + $0x1f0] sm:$0xff]
    %v1809 = vld [vmem:[#allocation7 + $0x1f8] sm:$0xff]
    %1810 = vmatprep.subr.mxu0 %v1747
    %1811 = vmatpush1.msra.mxu0 %v1746
    %1812 = vmatprep.subr.mxu0 %v1751
    %1813 = vmatpush1.msra.mxu0 %v1750
    %1814 = vmatprep.subr.mxu0 %v1755
    %1815 = vmatpush1.msra.mxu0 %v1754
    %1816 = vmatprep.subr.mxu0 %v1759
    %1817 = vmatpush1.msra.mxu0 %v1758
    %1818 = vmatprep.subr.mxu0 %v1763
    %1819 = vmatpush1.msra.mxu0 %v1762
    %1820 = vmatprep.subr.mxu0 %v1767
    %1821 = vmatpush1.msra.mxu0 %v1766
    %1822 = vmatprep.subr.mxu0 %v1771
    %1823 = vmatpush1.msra.mxu0 %v1770
    %1824 = vmatprep.subr.mxu0 %v1775
    %1825 = vmatpush1.msra.mxu0 %v1774
    %1826 = vmatprep.subr.mxu0 %v1779
    %1827 = vmatpush1.msra.mxu0 %v1778
    %1828 = vmatprep.subr.mxu0 %v1783
    %1829 = vmatpush1.msra.mxu0 %v1782
    %1830 = vmatprep.subr.mxu0 %v1787
    %1831 = vmatpush1.msra.mxu0 %v1786
    %1832 = vmatprep.subr.mxu0 %v1791
    %1833 = vmatpush1.msra.mxu0 %v1790
    %1834 = vmatprep.subr.mxu0 %v1795
    %1835 = vmatpush1.msra.mxu0 %v1794
    %1836 = vmatprep.subr.mxu0 %v1799
    %1837 = vmatpush1.msra.mxu0 %v1798
    %1838 = vmatprep.subr.mxu0 %v1803
    %1839 = vmatpush1.msra.mxu0 %v1802
    %1840 = vmatprep.subr.mxu0 %v1807
    %1841 = vmatpush1.msra.mxu0 %v1806
    %1842 = vmatprep.subr.mxu0 0.0
    %1843 = vmatpush1.msra.mxu0 0.0
    %1844 = vmatprep.subr.mxu0 0.0
    %1845 = vmatpush1.msra.mxu0 0.0
    %1846 = vmatprep.subr.mxu0 0.0
    %1847 = vmatpush1.msra.mxu0 0.0
    %1848 = vmatprep.subr.mxu0 0.0
    %1849 = vmatpush1.msra.mxu0 0.0
    %1850 = vmatprep.subr.mxu0 0.0
    %1851 = vmatpush1.msra.mxu0 0.0
    %1852 = vmatprep.subr.mxu0 0.0
    %1853 = vmatpush1.msra.mxu0 0.0
    %1854 = vmatprep.subr.mxu0 0.0
    %1855 = vmatpush1.msra.mxu0 0.0
    %1856 = vmatprep.subr.mxu0 0.0
    %1857 = vmatpush1.msra.mxu0 0.0
    %1858 = vmatprep.subr.mxu0 0.0
    %1859 = vmatpush1.msra.mxu0 0.0
    %1860 = vmatprep.subr.mxu0 0.0
    %1861 = vmatpush1.msra.mxu0 0.0
    %1862 = vmatprep.subr.mxu0 0.0
    %1863 = vmatpush1.msra.mxu0 0.0
    %1864 = vmatprep.subr.mxu0 0.0
    %1865 = vmatpush1.msra.mxu0 0.0
    %1866 = vmatprep.subr.mxu0 0.0
    %1867 = vmatpush1.msra.mxu0 0.0
    %1868 = vmatprep.subr.mxu0 0.0
    %1869 = vmatpush1.msra.mxu0 0.0
    %1870 = vmatprep.subr.mxu0 0.0
    %1871 = vmatpush1.msra.mxu0 0.0
    %1872 = vmatprep.subr.mxu0 0.0
    %1873 = vmatpush1.msra.mxu0 0.0
    %1874 = vmatprep.mubr.f32.mxu0 0.0
    %1875 = vmatmul.mubr.f32.gmra.mrb[0].mxu0 %v1731
    %v1876 = vpop.f32.mrb[0].mxu0
    %v1877 = vadd.f32 0.0, %v1876
    %v1878 = vpop.f32.mrb[0].mxu0
    %v1879 = vadd.f32 0.0, %v1878
    %1880 = vdwg.mxu0
    %1881 = vmatprep.subr.mxu0 %v1749
    %1882 = vmatpush1.msra.mxu0 %v1748
    %1883 = vmatprep.subr.mxu0 %v1753
    %1884 = vmatpush1.msra.mxu0 %v1752
    %1885 = vmatprep.subr.mxu0 %v1757
    %1886 = vmatpush1.msra.mxu0 %v1756
    %1887 = vmatprep.subr.mxu0 %v1761
    %1888 = vmatpush1.msra.mxu0 %v1760
    %1889 = vmatprep.subr.mxu0 %v1765
    %1890 = vmatpush1.msra.mxu0 %v1764
    %1891 = vmatprep.subr.mxu0 %v1769
    %1892 = vmatpush1.msra.mxu0 %v1768
    %1893 = vmatprep.subr.mxu0 %v1773
    %1894 = vmatpush1.msra.mxu0 %v1772
    %1895 = vmatprep.subr.mxu0 %v1777
    %1896 = vmatpush1.msra.mxu0 %v1776
    %1897 = vmatprep.subr.mxu0 %v1781
    %1898 = vmatpush1.msra.mxu0 %v1780
    %1899 = vmatprep.subr.mxu0 %v1785
    %1900 = vmatpush1.msra.mxu0 %v1784
    %1901 = vmatprep.subr.mxu0 %v1789
    %1902 = vmatpush1.msra.mxu0 %v1788
    %1903 = vmatprep.subr.mxu0 %v1793
    %1904 = vmatpush1.msra.mxu0 %v1792
    %1905 = vmatprep.subr.mxu0 %v1797
    %1906 = vmatpush1.msra.mxu0 %v1796
    %1907 = vmatprep.subr.mxu0 %v1801
    %1908 = vmatpush1.msra.mxu0 %v1800
    %1909 = vmatprep.subr.mxu0 %v1805
    %1910 = vmatpush1.msra.mxu0 %v1804
    %1911 = vmatprep.subr.mxu0 %v1809
    %1912 = vmatpush1.msra.mxu0 %v1808
    %1913 = vmatprep.subr.mxu0 0.0
    %1914 = vmatpush1.msra.mxu0 0.0
    %1915 = vmatprep.subr.mxu0 0.0
    %1916 = vmatpush1.msra.mxu0 0.0
    %1917 = vmatprep.subr.mxu0 0.0
    %1918 = vmatpush1.msra.mxu0 0.0
    %1919 = vmatprep.subr.mxu0 0.0
    %1920 = vmatpush1.msra.mxu0 0.0
    %1921 = vmatprep.subr.mxu0 0.0
    %1922 = vmatpush1.msra.mxu0 0.0
    %1923 = vmatprep.subr.mxu0 0.0
    %1924 = vmatpush1.msra.mxu0 0.0
    %1925 = vmatprep.subr.mxu0 0.0
    %1926 = vmatpush1.msra.mxu0 0.0
    %1927 = vmatprep.subr.mxu0 0.0
    %1928 = vmatpush1.msra.mxu0 0.0
    %1929 = vmatprep.subr.mxu0 0.0
    %1930 = vmatpush1.msra.mxu0 0.0
    %1931 = vmatprep.subr.mxu0 0.0
    %1932 = vmatpush1.msra.mxu0 0.0
    %1933 = vmatprep.subr.mxu0 0.0
    %1934 = vmatpush1.msra.mxu0 0.0
    %1935 = vmatprep.subr.mxu0 0.0
    %1936 = vmatpush1.msra.mxu0 0.0
    %1937 = vmatprep.subr.mxu0 0.0
    %1938 = vmatpush1.msra.mxu0 0.0
    %1939 = vmatprep.subr.mxu0 0.0
    %1940 = vmatpush1.msra.mxu0 0.0
    %1941 = vmatprep.subr.mxu0 0.0
    %1942 = vmatpush1.msra.mxu0 0.0
    %1943 = vmatprep.subr.mxu0 0.0
    %1944 = vmatpush1.msra.mxu0 0.0
    %1945 = vmatprep.mubr.f32.mxu0 0.0
    %1946 = vmatmul.mubr.f32.gmra.mrb[0].mxu0 %v1731
    %v1947 = vpop.f32.mrb[0].mxu0
    %v1948 = vadd.f32 0.0, %v1947
    %v1949 = vpop.f32.mrb[0].mxu0
    %v1950 = vadd.f32 0.0, %v1949
    %1951 = vdwg.mxu0
    %v1952 = vadd.f32 %v1742, %v1877
    %v1953 = vadd.f32 %v1743, %v1879
    %v1954 = vadd.f32 %v1744, %v1948
    %v1955 = vadd.f32 %v1745, %v1950
    %v1956 = vxor.u32 %v1952, 2147483648
    %v1957 = vmul.f32 %v1956, 1.442695
    %v1958 = vpow.pop %v1957
    %v1959 = vadd.f32 %v1958, 1.0
    %v1960 = vrcp.pop %v1959
    %v1961 = vmul.f32 1.0, %v1960
    %v1962 = vxor.u32 %v1953, 2147483648
    %v1963 = vmul.f32 %v1962, 1.442695
    %v1964 = vpow.pop %v1963
    %v1965 = vadd.f32 %v1964, 1.0
    %v1966 = vrcp.pop %v1965
    %v1967 = vmul.f32 1.0, %v1966
    %v1968 = vtanh.pop %v1954
    %v1969 = vxor.u32 %v1955, 2147483648
    %v1970 = vmul.f32 %v1969, 1.442695
    %v1971 = vpow.pop %v1970
    %v1972 = vadd.f32 %v1971, 1.0
    %v1973 = vrcp.pop %v1972
    %v1974 = vmul.f32 1.0, %v1973
    %v1975 = vmul.f32 %v1967, %v1729
    %v1976 = vmul.f32 %v1961, %v1968
    %v1977 = vadd.f32 %v1975, %v1976
    %v1978 = vtanh.pop %v1977
    %v1979 = vmul.f32 %v1974, %v1978
    %1980 = vst [vmem:[#allocation3 + $0x50] sm:$0xff] %v1979
    %1981 = vst [vmem:[#allocation3 + $0x28] sm:$0xff] %v1979
    %v1982 = vld [vmem:[#allocation2 + $0xc0] sm:$0xff]
    %v1983 = vld [vmem:[#allocation2 + $0xc8] sm:$0xff]
    %v1984 = vld [vmem:[#allocation2 + $0xd0] sm:$0xff]
    %v1985 = vld [vmem:[#allocation2 + $0xd8] sm:$0xff]
    %v1986 = vld [vmem:[#allocation2 + $0x20] sm:$0xff]
    %v1987 = vld [vmem:[#allocation2 + $0x28] sm:$0xff]
    %v1988 = vld [vmem:[#allocation2 + $0x30] sm:$0xff]
    %v1989 = vld [vmem:[#allocation2 + $0x38] sm:$0xff]
    %v1990 = vsel %vm490, %v1982, %v1986
    %v1991 = vsel %vm491, %v1983, %v1987
    %v1992 = vsel %vm492, %v1984, %v1988
    %v1993 = vsel %vm493, %v1985, %v1989
    %v1994 = vld [vmem:[#allocation7] sm:$0xff]
    %v1995 = vld [vmem:[#allocation7 + $0x8] sm:$0xff]
    %v1996 = vld [vmem:[#allocation7 + $0x10] sm:$0xff]
    %v1997 = vld [vmem:[#allocation7 + $0x18] sm:$0xff]
    %v1998 = vld [vmem:[#allocation7 + $0x20] sm:$0xff]
    %v1999 = vld [vmem:[#allocation7 + $0x28] sm:$0xff]
    %v2000 = vld [vmem:[#allocation7 + $0x30] sm:$0xff]
    %v2001 = vld [vmem:[#allocation7 + $0x38] sm:$0xff]
    %v2002 = vld [vmem:[#allocation7 + $0x40] sm:$0xff]
    %v2003 = vld [vmem:[#allocation7 + $0x48] sm:$0xff]
    %v2004 = vld [vmem:[#allocation7 + $0x50] sm:$0xff]
    %v2005 = vld [vmem:[#allocation7 + $0x58] sm:$0xff]
    %v2006 = vld [vmem:[#allocation7 + $0x60] sm:$0xff]
    %v2007 = vld [vmem:[#allocation7 + $0x68] sm:$0xff]
    %v2008 = vld [vmem:[#allocation7 + $0x70] sm:$0xff]
    %v2009 = vld [vmem:[#allocation7 + $0x78] sm:$0xff]
    %v2010 = vld [vmem:[#allocation7 + $0x80] sm:$0xff]
    %v2011 = vld [vmem:[#allocation7 + $0x88] sm:$0xff]
    %v2012 = vld [vmem:[#allocation7 + $0x90] sm:$0xff]
    %v2013 = vld [vmem:[#allocation7 + $0x98] sm:$0xff]
    %v2014 = vld [vmem:[#allocation7 + $0xa0] sm:$0xff]
    %v2015 = vld [vmem:[#allocation7 + $0xa8] sm:$0xff]
    %v2016 = vld [vmem:[#allocation7 + $0xb0] sm:$0xff]
    %v2017 = vld [vmem:[#allocation7 + $0xb8] sm:$0xff]
    %v2018 = vld [vmem:[#allocation7 + $0xc0] sm:$0xff]
    %v2019 = vld [vmem:[#allocation7 + $0xc8] sm:$0xff]
    %v2020 = vld [vmem:[#allocation7 + $0xd0] sm:$0xff]
    %v2021 = vld [vmem:[#allocation7 + $0xd8] sm:$0xff]
    %v2022 = vld [vmem:[#allocation7 + $0xe0] sm:$0xff]
    %v2023 = vld [vmem:[#allocation7 + $0xe8] sm:$0xff]
    %v2024 = vld [vmem:[#allocation7 + $0xf0] sm:$0xff]
    %v2025 = vld [vmem:[#allocation7 + $0xf8] sm:$0xff]
    %v2026 = vld [vmem:[#allocation7 + $0x100] sm:$0xff]
    %v2027 = vld [vmem:[#allocation7 + $0x108] sm:$0xff]
    %v2028 = vld [vmem:[#allocation7 + $0x110] sm:$0xff]
    %v2029 = vld [vmem:[#allocation7 + $0x118] sm:$0xff]
    %v2030 = vld [vmem:[#allocation7 + $0x120] sm:$0xff]
    %v2031 = vld [vmem:[#allocation7 + $0x128] sm:$0xff]
    %v2032 = vld [vmem:[#allocation7 + $0x130] sm:$0xff]
    %v2033 = vld [vmem:[#allocation7 + $0x138] sm:$0xff]
    %v2034 = vld [vmem:[#allocation7 + $0x140] sm:$0xff]
    %v2035 = vld [vmem:[#allocation7 + $0x148] sm:$0xff]
    %v2036 = vld [vmem:[#allocation7 + $0x150] sm:$0xff]
    %v2037 = vld [vmem:[#allocation7 + $0x158] sm:$0xff]
    %v2038 = vld [vmem:[#allocation7 + $0x160] sm:$0xff]
    %v2039 = vld [vmem:[#allocation7 + $0x168] sm:$0xff]
    %v2040 = vld [vmem:[#allocation7 + $0x170] sm:$0xff]
    %v2041 = vld [vmem:[#allocation7 + $0x178] sm:$0xff]
    %v2042 = vld [vmem:[#allocation7 + $0x180] sm:$0xff]
    %v2043 = vld [vmem:[#allocation7 + $0x188] sm:$0xff]
    %v2044 = vld [vmem:[#allocation7 + $0x190] sm:$0xff]
    %v2045 = vld [vmem:[#allocation7 + $0x198] sm:$0xff]
    %v2046 = vld [vmem:[#allocation7 + $0x1a0] sm:$0xff]
    %v2047 = vld [vmem:[#allocation7 + $0x1a8] sm:$0xff]
    %v2048 = vld [vmem:[#allocation7 + $0x1b0] sm:$0xff]
    %v2049 = vld [vmem:[#allocation7 + $0x1b8] sm:$0xff]
    %v2050 = vld [vmem:[#allocation7 + $0x1c0] sm:$0xff]
    %v2051 = vld [vmem:[#allocation7 + $0x1c8] sm:$0xff]
    %v2052 = vld [vmem:[#allocation7 + $0x1d0] sm:$0xff]
    %v2053 = vld [vmem:[#allocation7 + $0x1d8] sm:$0xff]
    %v2054 = vld [vmem:[#allocation7 + $0x1e0] sm:$0xff]
    %v2055 = vld [vmem:[#allocation7 + $0x1e8] sm:$0xff]
    %v2056 = vld [vmem:[#allocation7 + $0x1f0] sm:$0xff]
    %v2057 = vld [vmem:[#allocation7 + $0x1f8] sm:$0xff]
    %2058 = vmatprep.subr.mxu0 %v1995
    %2059 = vmatpush1.msra.mxu0 %v1994
    %2060 = vmatprep.subr.mxu0 %v1999
    %2061 = vmatpush1.msra.mxu0 %v1998
    %2062 = vmatprep.subr.mxu0 %v2003
    %2063 = vmatpush1.msra.mxu0 %v2002
    %2064 = vmatprep.subr.mxu0 %v2007
    %2065 = vmatpush1.msra.mxu0 %v2006
    %2066 = vmatprep.subr.mxu0 %v2011
    %2067 = vmatpush1.msra.mxu0 %v2010
    %2068 = vmatprep.subr.mxu0 %v2015
    %2069 = vmatpush1.msra.mxu0 %v2014
    %2070 = vmatprep.subr.mxu0 %v2019
    %2071 = vmatpush1.msra.mxu0 %v2018
    %2072 = vmatprep.subr.mxu0 %v2023
    %2073 = vmatpush1.msra.mxu0 %v2022
    %2074 = vmatprep.subr.mxu0 %v2027
    %2075 = vmatpush1.msra.mxu0 %v2026
    %2076 = vmatprep.subr.mxu0 %v2031
    %2077 = vmatpush1.msra.mxu0 %v2030
    %2078 = vmatprep.subr.mxu0 %v2035
    %2079 = vmatpush1.msra.mxu0 %v2034
    %2080 = vmatprep.subr.mxu0 %v2039
    %2081 = vmatpush1.msra.mxu0 %v2038
    %2082 = vmatprep.subr.mxu0 %v2043
    %2083 = vmatpush1.msra.mxu0 %v2042
    %2084 = vmatprep.subr.mxu0 %v2047
    %2085 = vmatpush1.msra.mxu0 %v2046
    %2086 = vmatprep.subr.mxu0 %v2051
    %2087 = vmatpush1.msra.mxu0 %v2050
    %2088 = vmatprep.subr.mxu0 %v2055
    %2089 = vmatpush1.msra.mxu0 %v2054
    %2090 = vmatprep.subr.mxu0 0.0
    %2091 = vmatpush1.msra.mxu0 0.0
    %2092 = vmatprep.subr.mxu0 0.0
    %2093 = vmatpush1.msra.mxu0 0.0
    %2094 = vmatprep.subr.mxu0 0.0
    %2095 = vmatpush1.msra.mxu0 0.0
    %2096 = vmatprep.subr.mxu0 0.0
    %2097 = vmatpush1.msra.mxu0 0.0
    %2098 = vmatprep.subr.mxu0 0.0
    %2099 = vmatpush1.msra.mxu0 0.0
    %2100 = vmatprep.subr.mxu0 0.0
    %2101 = vmatpush1.msra.mxu0 0.0
    %2102 = vmatprep.subr.mxu0 0.0
    %2103 = vmatpush1.msra.mxu0 0.0
    %2104 = vmatprep.subr.mxu0 0.0
    %2105 = vmatpush1.msra.mxu0 0.0
    %2106 = vmatprep.subr.mxu0 0.0
    %2107 = vmatpush1.msra.mxu0 0.0
    %2108 = vmatprep.subr.mxu0 0.0
    %2109 = vmatpush1.msra.mxu0 0.0
    %2110 = vmatprep.subr.mxu0 0.0
    %2111 = vmatpush1.msra.mxu0 0.0
    %2112 = vmatprep.subr.mxu0 0.0
    %2113 = vmatpush1.msra.mxu0 0.0
    %2114 = vmatprep.subr.mxu0 0.0
    %2115 = vmatpush1.msra.mxu0 0.0
    %2116 = vmatprep.subr.mxu0 0.0
    %2117 = vmatpush1.msra.mxu0 0.0
    %2118 = vmatprep.subr.mxu0 0.0
    %2119 = vmatpush1.msra.mxu0 0.0
    %2120 = vmatprep.subr.mxu0 0.0
    %2121 = vmatpush1.msra.mxu0 0.0
    %2122 = vmatprep.mubr.f32.mxu0 0.0
    %2123 = vmatmul.mubr.f32.gmra.mrb[0].mxu0 %v1979
    %v2124 = vpop.f32.mrb[0].mxu0
    %v2125 = vadd.f32 0.0, %v2124
    %v2126 = vpop.f32.mrb[0].mxu0
    %v2127 = vadd.f32 0.0, %v2126
    %2128 = vdwg.mxu0
    %2129 = vmatprep.subr.mxu0 %v1997
    %2130 = vmatpush1.msra.mxu0 %v1996
    %2131 = vmatprep.subr.mxu0 %v2001
    %2132 = vmatpush1.msra.mxu0 %v2000
    %2133 = vmatprep.subr.mxu0 %v2005
    %2134 = vmatpush1.msra.mxu0 %v2004
    %2135 = vmatprep.subr.mxu0 %v2009
    %2136 = vmatpush1.msra.mxu0 %v2008
    %2137 = vmatprep.subr.mxu0 %v2013
    %2138 = vmatpush1.msra.mxu0 %v2012
    %2139 = vmatprep.subr.mxu0 %v2017
    %2140 = vmatpush1.msra.mxu0 %v2016
    %2141 = vmatprep.subr.mxu0 %v2021
    %2142 = vmatpush1.msra.mxu0 %v2020
    %2143 = vmatprep.subr.mxu0 %v2025
    %2144 = vmatpush1.msra.mxu0 %v2024
    %2145 = vmatprep.subr.mxu0 %v2029
    %2146 = vmatpush1.msra.mxu0 %v2028
    %2147 = vmatprep.subr.mxu0 %v2033
    %2148 = vmatpush1.msra.mxu0 %v2032
    %2149 = vmatprep.subr.mxu0 %v2037
    %2150 = vmatpush1.msra.mxu0 %v2036
    %2151 = vmatprep.subr.mxu0 %v2041
    %2152 = vmatpush1.msra.mxu0 %v2040
    %2153 = vmatprep.subr.mxu0 %v2045
    %2154 = vmatpush1.msra.mxu0 %v2044
    %2155 = vmatprep.subr.mxu0 %v2049
    %2156 = vmatpush1.msra.mxu0 %v2048
    %2157 = vmatprep.subr.mxu0 %v2053
    %2158 = vmatpush1.msra.mxu0 %v2052
    %2159 = vmatprep.subr.mxu0 %v2057
    %2160 = vmatpush1.msra.mxu0 %v2056
    %2161 = vmatprep.subr.mxu0 0.0
    %2162 = vmatpush1.msra.mxu0 0.0
    %2163 = vmatprep.subr.mxu0 0.0
    %2164 = vmatpush1.msra.mxu0 0.0
    %2165 = vmatprep.subr.mxu0 0.0
    %2166 = vmatpush1.msra.mxu0 0.0
    %2167 = vmatprep.subr.mxu0 0.0
    %2168 = vmatpush1.msra.mxu0 0.0
    %2169 = vmatprep.subr.mxu0 0.0
    %2170 = vmatpush1.msra.mxu0 0.0
    %2171 = vmatprep.subr.mxu0 0.0
    %2172 = vmatpush1.msra.mxu0 0.0
    %2173 = vmatprep.subr.mxu0 0.0
    %2174 = vmatpush1.msra.mxu0 0.0
    %2175 = vmatprep.subr.mxu0 0.0
    %2176 = vmatpush1.msra.mxu0 0.0
    %2177 = vmatprep.subr.mxu0 0.0
    %2178 = vmatpush1.msra.mxu0 0.0
    %2179 = vmatprep.subr.mxu0 0.0
    %2180 = vmatpush1.msra.mxu0 0.0
    %2181 = vmatprep.subr.mxu0 0.0
    %2182 = vmatpush1.msra.mxu0 0.0
    %2183 = vmatprep.subr.mxu0 0.0
    %2184 = vmatpush1.msra.mxu0 0.0
    %2185 = vmatprep.subr.mxu0 0.0
    %2186 = vmatpush1.msra.mxu0 0.0
    %2187 = vmatprep.subr.mxu0 0.0
    %2188 = vmatpush1.msra.mxu0 0.0
    %2189 = vmatprep.subr.mxu0 0.0
    %2190 = vmatpush1.msra.mxu0 0.0
    %2191 = vmatprep.subr.mxu0 0.0
    %2192 = vmatpush1.msra.mxu0 0.0
    %2193 = vmatprep.mubr.f32.mxu0 0.0
    %2194 = vmatmul.mubr.f32.gmra.mrb[0].mxu0 %v1979
    %v2195 = vpop.f32.mrb[0].mxu0
    %v2196 = vadd.f32 0.0, %v2195
    %v2197 = vpop.f32.mrb[0].mxu0
    %v2198 = vadd.f32 0.0, %v2197
    %2199 = vdwg.mxu0
    %v2200 = vadd.f32 %v1990, %v2125
    %v2201 = vadd.f32 %v1991, %v2127
    %v2202 = vadd.f32 %v1992, %v2196
    %v2203 = vadd.f32 %v1993, %v2198
    %v2204 = vxor.u32 %v2200, 2147483648
    %v2205 = vmul.f32 %v2204, 1.442695
    %v2206 = vpow.pop %v2205
    %v2207 = vadd.f32 %v2206, 1.0
    %v2208 = vrcp.pop %v2207
    %v2209 = vmul.f32 1.0, %v2208
    %v2210 = vxor.u32 %v2201, 2147483648
    %v2211 = vmul.f32 %v2210, 1.442695
    %v2212 = vpow.pop %v2211
    %v2213 = vadd.f32 %v2212, 1.0
    %v2214 = vrcp.pop %v2213
    %v2215 = vmul.f32 1.0, %v2214
    %v2216 = vtanh.pop %v2202
    %v2217 = vxor.u32 %v2203, 2147483648
    %v2218 = vmul.f32 %v2217, 1.442695
    %v2219 = vpow.pop %v2218
    %v2220 = vadd.f32 %v2219, 1.0
    %v2221 = vrcp.pop %v2220
    %v2222 = vmul.f32 1.0, %v2221
    %v2223 = vmul.f32 %v2215, %v1977
    %v2224 = vmul.f32 %v2209, %v2216
    %v2225 = vadd.f32 %v2223, %v2224
    %v2226 = vtanh.pop %v2225
    %v2227 = vmul.f32 %v2222, %v2226
    %2228 = vst [vmem:[#allocation3 + $0x60] sm:$0xff] %v2227
    %2229 = vst [vmem:[#allocation3 + $0x18] sm:$0xff] %v2227
    %v2230 = vld [vmem:[#allocation2 + $0xe0] sm:$0xff]
    %v2231 = vld [vmem:[#allocation2 + $0xe8] sm:$0xff]
    %v2232 = vld [vmem:[#allocation2 + $0xf0] sm:$0xff]
    %v2233 = vld [vmem:[#allocation2 + $0xf8] sm:$0xff]
    %v2234 = vld [vmem:[#allocation2] sm:$0xff]
    %v2235 = vld [vmem:[#allocation2 + $0x8] sm:$0xff]
    %v2236 = vld [vmem:[#allocation2 + $0x10] sm:$0xff]
    %v2237 = vld [vmem:[#allocation2 + $0x18] sm:$0xff]
    %v2238 = vsel %vm490, %v2230, %v2234
    %v2239 = vsel %vm491, %v2231, %v2235
    %v2240 = vsel %vm492, %v2232, %v2236
    %v2241 = vsel %vm493, %v2233, %v2237
    %v2242 = vld [vmem:[#allocation7] sm:$0xff]
    %v2243 = vld [vmem:[#allocation7 + $0x8] sm:$0xff]
    %v2244 = vld [vmem:[#allocation7 + $0x10] sm:$0xff]
    %v2245 = vld [vmem:[#allocation7 + $0x18] sm:$0xff]
    %v2246 = vld [vmem:[#allocation7 + $0x20] sm:$0xff]
    %v2247 = vld [vmem:[#allocation7 + $0x28] sm:$0xff]
    %v2248 = vld [vmem:[#allocation7 + $0x30] sm:$0xff]
    %v2249 = vld [vmem:[#allocation7 + $0x38] sm:$0xff]
    %v2250 = vld [vmem:[#allocation7 + $0x40] sm:$0xff]
    %v2251 = vld [vmem:[#allocation7 + $0x48] sm:$0xff]
    %v2252 = vld [vmem:[#allocation7 + $0x50] sm:$0xff]
    %v2253 = vld [vmem:[#allocation7 + $0x58] sm:$0xff]
    %v2254 = vld [vmem:[#allocation7 + $0x60] sm:$0xff]
    %v2255 = vld [vmem:[#allocation7 + $0x68] sm:$0xff]
    %v2256 = vld [vmem:[#allocation7 + $0x70] sm:$0xff]
    %v2257 = vld [vmem:[#allocation7 + $0x78] sm:$0xff]
    %v2258 = vld [vmem:[#allocation7 + $0x80] sm:$0xff]
    %v2259 = vld [vmem:[#allocation7 + $0x88] sm:$0xff]
    %v2260 = vld [vmem:[#allocation7 + $0x90] sm:$0xff]
    %v2261 = vld [vmem:[#allocation7 + $0x98] sm:$0xff]
    %v2262 = vld [vmem:[#allocation7 + $0xa0] sm:$0xff]
    %v2263 = vld [vmem:[#allocation7 + $0xa8] sm:$0xff]
    %v2264 = vld [vmem:[#allocation7 + $0xb0] sm:$0xff]
    %v2265 = vld [vmem:[#allocation7 + $0xb8] sm:$0xff]
    %v2266 = vld [vmem:[#allocation7 + $0xc0] sm:$0xff]
    %v2267 = vld [vmem:[#allocation7 + $0xc8] sm:$0xff]
    %v2268 = vld [vmem:[#allocation7 + $0xd0] sm:$0xff]
    %v2269 = vld [vmem:[#allocation7 + $0xd8] sm:$0xff]
    %v2270 = vld [vmem:[#allocation7 + $0xe0] sm:$0xff]
    %v2271 = vld [vmem:[#allocation7 + $0xe8] sm:$0xff]
    %v2272 = vld [vmem:[#allocation7 + $0xf0] sm:$0xff]
    %v2273 = vld [vmem:[#allocation7 + $0xf8] sm:$0xff]
    %v2274 = vld [vmem:[#allocation7 + $0x100] sm:$0xff]
    %v2275 = vld [vmem:[#allocation7 + $0x108] sm:$0xff]
    %v2276 = vld [vmem:[#allocation7 + $0x110] sm:$0xff]
    %v2277 = vld [vmem:[#allocation7 + $0x118] sm:$0xff]
    %v2278 = vld [vmem:[#allocation7 + $0x120] sm:$0xff]
    %v2279 = vld [vmem:[#allocation7 + $0x128] sm:$0xff]
    %v2280 = vld [vmem:[#allocation7 + $0x130] sm:$0xff]
    %v2281 = vld [vmem:[#allocation7 + $0x138] sm:$0xff]
    %v2282 = vld [vmem:[#allocation7 + $0x140] sm:$0xff]
    %v2283 = vld [vmem:[#allocation7 + $0x148] sm:$0xff]
    %v2284 = vld [vmem:[#allocation7 + $0x150] sm:$0xff]
    %v2285 = vld [vmem:[#allocation7 + $0x158] sm:$0xff]
    %v2286 = vld [vmem:[#allocation7 + $0x160] sm:$0xff]
    %v2287 = vld [vmem:[#allocation7 + $0x168] sm:$0xff]
    %v2288 = vld [vmem:[#allocation7 + $0x170] sm:$0xff]
    %v2289 = vld [vmem:[#allocation7 + $0x178] sm:$0xff]
    %v2290 = vld [vmem:[#allocation7 + $0x180] sm:$0xff]
    %v2291 = vld [vmem:[#allocation7 + $0x188] sm:$0xff]
    %v2292 = vld [vmem:[#allocation7 + $0x190] sm:$0xff]
    %v2293 = vld [vmem:[#allocation7 + $0x198] sm:$0xff]
    %v2294 = vld [vmem:[#allocation7 + $0x1a0] sm:$0xff]
    %v2295 = vld [vmem:[#allocation7 + $0x1a8] sm:$0xff]
    %v2296 = vld [vmem:[#allocation7 + $0x1b0] sm:$0xff]
    %v2297 = vld [vmem:[#allocation7 + $0x1b8] sm:$0xff]
    %v2298 = vld [vmem:[#allocation7 + $0x1c0] sm:$0xff]
    %v2299 = vld [vmem:[#allocation7 + $0x1c8] sm:$0xff]
    %v2300 = vld [vmem:[#allocation7 + $0x1d0] sm:$0xff]
    %v2301 = vld [vmem:[#allocation7 + $0x1d8] sm:$0xff]
    %v2302 = vld [vmem:[#allocation7 + $0x1e0] sm:$0xff]
    %v2303 = vld [vmem:[#allocation7 + $0x1e8] sm:$0xff]
    %v2304 = vld [vmem:[#allocation7 + $0x1f0] sm:$0xff]
    %v2305 = vld [vmem:[#allocation7 + $0x1f8] sm:$0xff]
    %2306 = vmatprep.subr.mxu0 %v2243
    %2307 = vmatpush1.msra.mxu0 %v2242
    %2308 = vmatprep.subr.mxu0 %v2247
    %2309 = vmatpush1.msra.mxu0 %v2246
    %2310 = vmatprep.subr.mxu0 %v2251
    %2311 = vmatpush1.msra.mxu0 %v2250
    %2312 = vmatprep.subr.mxu0 %v2255
    %2313 = vmatpush1.msra.mxu0 %v2254
    %2314 = vmatprep.subr.mxu0 %v2259
    %2315 = vmatpush1.msra.mxu0 %v2258
    %2316 = vmatprep.subr.mxu0 %v2263
    %2317 = vmatpush1.msra.mxu0 %v2262
    %2318 = vmatprep.subr.mxu0 %v2267
    %2319 = vmatpush1.msra.mxu0 %v2266
    %2320 = vmatprep.subr.mxu0 %v2271
    %2321 = vmatpush1.msra.mxu0 %v2270
    %2322 = vmatprep.subr.mxu0 %v2275
    %2323 = vmatpush1.msra.mxu0 %v2274
    %2324 = vmatprep.subr.mxu0 %v2279
    %2325 = vmatpush1.msra.mxu0 %v2278
    %2326 = vmatprep.subr.mxu0 %v2283
    %2327 = vmatpush1.msra.mxu0 %v2282
    %2328 = vmatprep.subr.mxu0 %v2287
    %2329 = vmatpush1.msra.mxu0 %v2286
    %2330 = vmatprep.subr.mxu0 %v2291
    %2331 = vmatpush1.msra.mxu0 %v2290
    %2332 = vmatprep.subr.mxu0 %v2295
    %2333 = vmatpush1.msra.mxu0 %v2294
    %2334 = vmatprep.subr.mxu0 %v2299
    %2335 = vmatpush1.msra.mxu0 %v2298
    %2336 = vmatprep.subr.mxu0 %v2303
    %2337 = vmatpush1.msra.mxu0 %v2302
    %2338 = vmatprep.subr.mxu0 0.0
    %2339 = vmatpush1.msra.mxu0 0.0
    %2340 = vmatprep.subr.mxu0 0.0
    %2341 = vmatpush1.msra.mxu0 0.0
    %2342 = vmatprep.subr.mxu0 0.0
    %2343 = vmatpush1.msra.mxu0 0.0
    %2344 = vmatprep.subr.mxu0 0.0
    %2345 = vmatpush1.msra.mxu0 0.0
    %2346 = vmatprep.subr.mxu0 0.0
    %2347 = vmatpush1.msra.mxu0 0.0
    %2348 = vmatprep.subr.mxu0 0.0
    %2349 = vmatpush1.msra.mxu0 0.0
    %2350 = vmatprep.subr.mxu0 0.0
    %2351 = vmatpush1.msra.mxu0 0.0
    %2352 = vmatprep.subr.mxu0 0.0
    %2353 = vmatpush1.msra.mxu0 0.0
    %2354 = vmatprep.subr.mxu0 0.0
    %2355 = vmatpush1.msra.mxu0 0.0
    %2356 = vmatprep.subr.mxu0 0.0
    %2357 = vmatpush1.msra.mxu0 0.0
    %2358 = vmatprep.subr.mxu0 0.0
    %2359 = vmatpush1.msra.mxu0 0.0
    %2360 = vmatprep.subr.mxu0 0.0
    %2361 = vmatpush1.msra.mxu0 0.0
    %2362 = vmatprep.subr.mxu0 0.0
    %2363 = vmatpush1.msra.mxu0 0.0
    %2364 = vmatprep.subr.mxu0 0.0
    %2365 = vmatpush1.msra.mxu0 0.0
    %2366 = vmatprep.subr.mxu0 0.0
    %2367 = vmatpush1.msra.mxu0 0.0
    %2368 = vmatprep.subr.mxu0 0.0
    %2369 = vmatpush1.msra.mxu0 0.0
    %2370 = vmatprep.mubr.f32.mxu0 0.0
    %2371 = vmatmul.mubr.f32.gmra.mrb[0].mxu0 %v2227
    %v2372 = vpop.f32.mrb[0].mxu0
    %v2373 = vadd.f32 0.0, %v2372
    %v2374 = vpop.f32.mrb[0].mxu0
    %v2375 = vadd.f32 0.0, %v2374
    %2376 = vdwg.mxu0
    %2377 = vmatprep.subr.mxu0 %v2245
    %2378 = vmatpush1.msra.mxu0 %v2244
    %2379 = vmatprep.subr.mxu0 %v2249
    %2380 = vmatpush1.msra.mxu0 %v2248
    %2381 = vmatprep.subr.mxu0 %v2253
    %2382 = vmatpush1.msra.mxu0 %v2252
    %2383 = vmatprep.subr.mxu0 %v2257
    %2384 = vmatpush1.msra.mxu0 %v2256
    %2385 = vmatprep.subr.mxu0 %v2261
    %2386 = vmatpush1.msra.mxu0 %v2260
    %2387 = vmatprep.subr.mxu0 %v2265
    %2388 = vmatpush1.msra.mxu0 %v2264
    %2389 = vmatprep.subr.mxu0 %v2269
    %2390 = vmatpush1.msra.mxu0 %v2268
    %2391 = vmatprep.subr.mxu0 %v2273
    %2392 = vmatpush1.msra.mxu0 %v2272
    %2393 = vmatprep.subr.mxu0 %v2277
    %2394 = vmatpush1.msra.mxu0 %v2276
    %2395 = vmatprep.subr.mxu0 %v2281
    %2396 = vmatpush1.msra.mxu0 %v2280
    %2397 = vmatprep.subr.mxu0 %v2285
    %2398 = vmatpush1.msra.mxu0 %v2284
    %2399 = vmatprep.subr.mxu0 %v2289
    %2400 = vmatpush1.msra.mxu0 %v2288
    %2401 = vmatprep.subr.mxu0 %v2293
    %2402 = vmatpush1.msra.mxu0 %v2292
    %2403 = vmatprep.subr.mxu0 %v2297
    %2404 = vmatpush1.msra.mxu0 %v2296
    %2405 = vmatprep.subr.mxu0 %v2301
    %2406 = vmatpush1.msra.mxu0 %v2300
    %2407 = vmatprep.subr.mxu0 %v2305
    %2408 = vmatpush1.msra.mxu0 %v2304
    %2409 = vmatprep.subr.mxu0 0.0
    %2410 = vmatpush1.msra.mxu0 0.0
    %2411 = vmatprep.subr.mxu0 0.0
    %2412 = vmatpush1.msra.mxu0 0.0
    %2413 = vmatprep.subr.mxu0 0.0
    %2414 = vmatpush1.msra.mxu0 0.0
    %2415 = vmatprep.subr.mxu0 0.0
    %2416 = vmatpush1.msra.mxu0 0.0
    %2417 = vmatprep.subr.mxu0 0.0
    %2418 = vmatpush1.msra.mxu0 0.0
    %2419 = vmatprep.subr.mxu0 0.0
    %2420 = vmatpush1.msra.mxu0 0.0
    %2421 = vmatprep.subr.mxu0 0.0
    %2422 = vmatpush1.msra.mxu0 0.0
    %2423 = vmatprep.subr.mxu0 0.0
    %2424 = vmatpush1.msra.mxu0 0.0
    %2425 = vmatprep.subr.mxu0 0.0
    %2426 = vmatpush1.msra.mxu0 0.0
    %2427 = vmatprep.subr.mxu0 0.0
    %2428 = vmatpush1.msra.mxu0 0.0
    %2429 = vmatprep.subr.mxu0 0.0
    %2430 = vmatpush1.msra.mxu0 0.0
    %2431 = vmatprep.subr.mxu0 0.0
    %2432 = vmatpush1.msra.mxu0 0.0
    %2433 = vmatprep.subr.mxu0 0.0
    %2434 = vmatpush1.msra.mxu0 0.0
    %2435 = vmatprep.subr.mxu0 0.0
    %2436 = vmatpush1.msra.mxu0 0.0
    %2437 = vmatprep.subr.mxu0 0.0
    %2438 = vmatpush1.msra.mxu0 0.0
    %2439 = vmatprep.subr.mxu0 0.0
    %2440 = vmatpush1.msra.mxu0 0.0
    %2441 = vmatprep.mubr.f32.mxu0 0.0
    %2442 = vmatmul.mubr.f32.gmra.mrb[0].mxu0 %v2227
    %v2443 = vpop.f32.mrb[0].mxu0
    %v2444 = vadd.f32 0.0, %v2443
    %v2445 = vpop.f32.mrb[0].mxu0
    %v2446 = vadd.f32 0.0, %v2445
    %2447 = vdwg.mxu0
    %v2448 = vadd.f32 %v2238, %v2373
    %v2449 = vadd.f32 %v2239, %v2375
    %v2450 = vadd.f32 %v2240, %v2444
    %v2451 = vadd.f32 %v2241, %v2446
    %v2452 = vxor.u32 %v2448, 2147483648
    %v2453 = vmul.f32 %v2452, 1.442695
    %v2454 = vpow.pop %v2453
    %v2455 = vadd.f32 %v2454, 1.0
    %v2456 = vrcp.pop %v2455
    %v2457 = vmul.f32 1.0, %v2456
    %v2458 = vxor.u32 %v2449, 2147483648
    %v2459 = vmul.f32 %v2458, 1.442695
    %v2460 = vpow.pop %v2459
    %v2461 = vadd.f32 %v2460, 1.0
    %v2462 = vrcp.pop %v2461
    %v2463 = vmul.f32 1.0, %v2462
    %v2464 = vtanh.pop %v2450
    %v2465 = vxor.u32 %v2451, 2147483648
    %v2466 = vmul.f32 %v2465, 1.442695
    %v2467 = vpow.pop %v2466
    %v2468 = vadd.f32 %v2467, 1.0
    %v2469 = vrcp.pop %v2468
    %v2470 = vmul.f32 1.0, %v2469
    %v2471 = vmul.f32 %v2463, %v2225
    %v2472 = vmul.f32 %v2457, %v2464
    %v2473 = vadd.f32 %v2471, %v2472
    %v2474 = vtanh.pop %v2473
    %v2475 = vmul.f32 %v2470, %v2474
    %2476 = vst [vmem:[#allocation3 + $0x70] sm:$0xff] %v2475
    %2477 = vst [vmem:[#allocation3 + $0x8] sm:$0xff] %v2475
    %v2478 = vld [vmem:[#allocation3] sm:$0xff]
    %v2479 = vld [vmem:[#allocation3 + $0x8] sm:$0xff]
    %v2480 = vld [vmem:[#allocation3 + $0x10] sm:$0xff]
    %v2481 = vld [vmem:[#allocation3 + $0x18] sm:$0xff]
    %v2482 = vld [vmem:[#allocation3 + $0x20] sm:$0xff]
    %v2483 = vld [vmem:[#allocation3 + $0x28] sm:$0xff]
    %v2484 = vld [vmem:[#allocation3 + $0x30] sm:$0xff]
    %v2485 = vld [vmem:[#allocation3 + $0x38] sm:$0xff]
    %v2486 = vld [vmem:[#allocation3 + $0x40] sm:$0xff]
    %v2487 = vld [vmem:[#allocation3 + $0x48] sm:$0xff]
    %v2488 = vld [vmem:[#allocation3 + $0x50] sm:$0xff]
    %v2489 = vld [vmem:[#allocation3 + $0x58] sm:$0xff]
    %v2490 = vld [vmem:[#allocation3 + $0x60] sm:$0xff]
    %v2491 = vld [vmem:[#allocation3 + $0x68] sm:$0xff]
    %v2492 = vld [vmem:[#allocation3 + $0x70] sm:$0xff]
    %v2493 = vld [vmem:[#allocation3 + $0x78] sm:$0xff]
    %v2494 = vld [vmem:[#allocation9] sm:$0xff]
    %v2495 = vld [vmem:[#allocation9 + $0x8] sm:$0xff]
    %v2496 = vld [vmem:[#allocation9 + $0x10] sm:$0xff]
    %v2497 = vld [vmem:[#allocation9 + $0x18] sm:$0xff]
    %v2498 = vld [vmem:[#allocation9 + $0x20] sm:$0xff]
    %v2499 = vld [vmem:[#allocation9 + $0x28] sm:$0xff]
    %v2500 = vld [vmem:[#allocation9 + $0x30] sm:$0xff]
    %v2501 = vld [vmem:[#allocation9 + $0x38] sm:$0xff]
    %v2502 = vld [vmem:[#allocation9 + $0x40] sm:$0xff]
    %v2503 = vld [vmem:[#allocation9 + $0x48] sm:$0xff]
    %v2504 = vld [vmem:[#allocation9 + $0x50] sm:$0xff]
    %v2505 = vld [vmem:[#allocation9 + $0x58] sm:$0xff]
    %v2506 = vld [vmem:[#allocation9 + $0x60] sm:$0xff]
    %v2507 = vld [vmem:[#allocation9 + $0x68] sm:$0xff]
    %v2508 = vld [vmem:[#allocation9 + $0x70] sm:$0xff]
    %v2509 = vld [vmem:[#allocation9 + $0x78] sm:$0xff]
    %v2510 = vld [vmem:[#allocation9 + $0x80] sm:$0xff]
    %v2511 = vld [vmem:[#allocation9 + $0x88] sm:$0xff]
    %v2512 = vld [vmem:[#allocation9 + $0x90] sm:$0xff]
    %v2513 = vld [vmem:[#allocation9 + $0x98] sm:$0xff]
    %v2514 = vld [vmem:[#allocation9 + $0xa0] sm:$0xff]
    %v2515 = vld [vmem:[#allocation9 + $0xa8] sm:$0xff]
    %v2516 = vld [vmem:[#allocation9 + $0xb0] sm:$0xff]
    %v2517 = vld [vmem:[#allocation9 + $0xb8] sm:$0xff]
    %v2518 = vld [vmem:[#allocation9 + $0xc0] sm:$0xff]
    %v2519 = vld [vmem:[#allocation9 + $0xc8] sm:$0xff]
    %v2520 = vld [vmem:[#allocation9 + $0xd0] sm:$0xff]
    %v2521 = vld [vmem:[#allocation9 + $0xd8] sm:$0xff]
    %v2522 = vld [vmem:[#allocation9 + $0xe0] sm:$0xff]
    %v2523 = vld [vmem:[#allocation9 + $0xe8] sm:$0xff]
    %v2524 = vld [vmem:[#allocation9 + $0xf0] sm:$0xff]
    %v2525 = vld [vmem:[#allocation9 + $0xf8] sm:$0xff]
    %v2526 = vld [vmem:[#allocation9 + $0x100] sm:$0xff]
    %v2527 = vld [vmem:[#allocation9 + $0x108] sm:$0xff]
    %v2528 = vld [vmem:[#allocation9 + $0x110] sm:$0xff]
    %v2529 = vld [vmem:[#allocation9 + $0x118] sm:$0xff]
    %v2530 = vld [vmem:[#allocation9 + $0x120] sm:$0xff]
    %v2531 = vld [vmem:[#allocation9 + $0x128] sm:$0xff]
    %v2532 = vld [vmem:[#allocation9 + $0x130] sm:$0xff]
    %v2533 = vld [vmem:[#allocation9 + $0x138] sm:$0xff]
    %v2534 = vld [vmem:[#allocation9 + $0x140] sm:$0xff]
    %v2535 = vld [vmem:[#allocation9 + $0x148] sm:$0xff]
    %v2536 = vld [vmem:[#allocation9 + $0x150] sm:$0xff]
    %v2537 = vld [vmem:[#allocation9 + $0x158] sm:$0xff]
    %v2538 = vld [vmem:[#allocation9 + $0x160] sm:$0xff]
    %v2539 = vld [vmem:[#allocation9 + $0x168] sm:$0xff]
    %v2540 = vld [vmem:[#allocation9 + $0x170] sm:$0xff]
    %v2541 = vld [vmem:[#allocation9 + $0x178] sm:$0xff]
    %v2542 = vld [vmem:[#allocation9 + $0x180] sm:$0xff]
    %v2543 = vld [vmem:[#allocation9 + $0x188] sm:$0xff]
    %v2544 = vld [vmem:[#allocation9 + $0x190] sm:$0xff]
    %v2545 = vld [vmem:[#allocation9 + $0x198] sm:$0xff]
    %v2546 = vld [vmem:[#allocation9 + $0x1a0] sm:$0xff]
    %v2547 = vld [vmem:[#allocation9 + $0x1a8] sm:$0xff]
    %v2548 = vld [vmem:[#allocation9 + $0x1b0] sm:$0xff]
    %v2549 = vld [vmem:[#allocation9 + $0x1b8] sm:$0xff]
    %v2550 = vld [vmem:[#allocation9 + $0x1c0] sm:$0xff]
    %v2551 = vld [vmem:[#allocation9 + $0x1c8] sm:$0xff]
    %v2552 = vld [vmem:[#allocation9 + $0x1d0] sm:$0xff]
    %v2553 = vld [vmem:[#allocation9 + $0x1d8] sm:$0xff]
    %v2554 = vld [vmem:[#allocation9 + $0x1e0] sm:$0xff]
    %v2555 = vld [vmem:[#allocation9 + $0x1e8] sm:$0xff]
    %v2556 = vld [vmem:[#allocation9 + $0x1f0] sm:$0xff]
    %v2557 = vld [vmem:[#allocation9 + $0x1f8] sm:$0xff]
    %v2558 = vld [vmem:[#allocation9 + $0x200] sm:$0xff]
    %v2559 = vld [vmem:[#allocation9 + $0x208] sm:$0xff]
    %v2560 = vld [vmem:[#allocation9 + $0x210] sm:$0xff]
    %v2561 = vld [vmem:[#allocation9 + $0x218] sm:$0xff]
    %v2562 = vld [vmem:[#allocation9 + $0x220] sm:$0xff]
    %v2563 = vld [vmem:[#allocation9 + $0x228] sm:$0xff]
    %v2564 = vld [vmem:[#allocation9 + $0x230] sm:$0xff]
    %v2565 = vld [vmem:[#allocation9 + $0x238] sm:$0xff]
    %v2566 = vld [vmem:[#allocation9 + $0x240] sm:$0xff]
    %v2567 = vld [vmem:[#allocation9 + $0x248] sm:$0xff]
    %v2568 = vld [vmem:[#allocation9 + $0x250] sm:$0xff]
    %v2569 = vld [vmem:[#allocation9 + $0x258] sm:$0xff]
    %v2570 = vld [vmem:[#allocation9 + $0x260] sm:$0xff]
    %v2571 = vld [vmem:[#allocation9 + $0x268] sm:$0xff]
    %v2572 = vld [vmem:[#allocation9 + $0x270] sm:$0xff]
    %v2573 = vld [vmem:[#allocation9 + $0x278] sm:$0xff]
    %v2574 = vld [vmem:[#allocation9 + $0x280] sm:$0xff]
    %v2575 = vld [vmem:[#allocation9 + $0x288] sm:$0xff]
    %v2576 = vld [vmem:[#allocation9 + $0x290] sm:$0xff]
    %v2577 = vld [vmem:[#allocation9 + $0x298] sm:$0xff]
    %v2578 = vld [vmem:[#allocation9 + $0x2a0] sm:$0xff]
    %v2579 = vld [vmem:[#allocation9 + $0x2a8] sm:$0xff]
    %v2580 = vld [vmem:[#allocation9 + $0x2b0] sm:$0xff]
    %v2581 = vld [vmem:[#allocation9 + $0x2b8] sm:$0xff]
    %v2582 = vld [vmem:[#allocation9 + $0x2c0] sm:$0xff]
    %v2583 = vld [vmem:[#allocation9 + $0x2c8] sm:$0xff]
    %v2584 = vld [vmem:[#allocation9 + $0x2d0] sm:$0xff]
    %v2585 = vld [vmem:[#allocation9 + $0x2d8] sm:$0xff]
    %v2586 = vld [vmem:[#allocation9 + $0x2e0] sm:$0xff]
    %v2587 = vld [vmem:[#allocation9 + $0x2e8] sm:$0xff]
    %v2588 = vld [vmem:[#allocation9 + $0x2f0] sm:$0xff]
    %v2589 = vld [vmem:[#allocation9 + $0x2f8] sm:$0xff]
    %v2590 = vld [vmem:[#allocation9 + $0x300] sm:$0xff]
    %v2591 = vld [vmem:[#allocation9 + $0x308] sm:$0xff]
    %v2592 = vld [vmem:[#allocation9 + $0x310] sm:$0xff]
    %v2593 = vld [vmem:[#allocation9 + $0x318] sm:$0xff]
    %v2594 = vld [vmem:[#allocation9 + $0x320] sm:$0xff]
    %v2595 = vld [vmem:[#allocation9 + $0x328] sm:$0xff]
    %v2596 = vld [vmem:[#allocation9 + $0x330] sm:$0xff]
    %v2597 = vld [vmem:[#allocation9 + $0x338] sm:$0xff]
    %v2598 = vld [vmem:[#allocation9 + $0x340] sm:$0xff]
    %v2599 = vld [vmem:[#allocation9 + $0x348] sm:$0xff]
    %v2600 = vld [vmem:[#allocation9 + $0x350] sm:$0xff]
    %v2601 = vld [vmem:[#allocation9 + $0x358] sm:$0xff]
    %v2602 = vld [vmem:[#allocation9 + $0x360] sm:$0xff]
    %v2603 = vld [vmem:[#allocation9 + $0x368] sm:$0xff]
    %v2604 = vld [vmem:[#allocation9 + $0x370] sm:$0xff]
    %v2605 = vld [vmem:[#allocation9 + $0x378] sm:$0xff]
    %v2606 = vld [vmem:[#allocation9 + $0x380] sm:$0xff]
    %v2607 = vld [vmem:[#allocation9 + $0x388] sm:$0xff]
    %v2608 = vld [vmem:[#allocation9 + $0x390] sm:$0xff]
    %v2609 = vld [vmem:[#allocation9 + $0x398] sm:$0xff]
    %v2610 = vld [vmem:[#allocation9 + $0x3a0] sm:$0xff]
    %v2611 = vld [vmem:[#allocation9 + $0x3a8] sm:$0xff]
    %v2612 = vld [vmem:[#allocation9 + $0x3b0] sm:$0xff]
    %v2613 = vld [vmem:[#allocation9 + $0x3b8] sm:$0xff]
    %v2614 = vld [vmem:[#allocation9 + $0x3c0] sm:$0xff]
    %v2615 = vld [vmem:[#allocation9 + $0x3c8] sm:$0xff]
    %v2616 = vld [vmem:[#allocation9 + $0x3d0] sm:$0xff]
    %v2617 = vld [vmem:[#allocation9 + $0x3d8] sm:$0xff]
    %v2618 = vld [vmem:[#allocation9 + $0x3e0] sm:$0xff]
    %v2619 = vld [vmem:[#allocation9 + $0x3e8] sm:$0xff]
    %v2620 = vld [vmem:[#allocation9 + $0x3f0] sm:$0xff]
    %v2621 = vld [vmem:[#allocation9 + $0x3f8] sm:$0xff]
    %v2622 = vld [vmem:[%s6] sm:$0xf]
    %v2624 = vlaneseq
    %v2625 = vshrl.u32 %v2624, 7
    %v2626 = vsub.s32 0, %v2625
    %v2627 = vrot.slane %v2622, %v2626
    %v2628 = vlaneseq
    %v2629 = vshrl.u32 %v2628, 7
    %v2630 = vsub.s32 1, %v2629
    %v2631 = vrot.slane %v2622, %v2630
    %v2632 = vlaneseq
    %v2633 = vshrl.u32 %v2632, 7
    %v2634 = vsub.s32 2, %v2633
    %v2635 = vrot.slane %v2622, %v2634
    %v2636 = vlaneseq
    %v2637 = vshrl.u32 %v2636, 7
    %v2638 = vsub.s32 3, %v2637
    %v2639 = vrot.slane %v2622, %v2638
    %2644 = vmatprep.subr.mxu0 %v2495
    %2645 = vmatpush1.msra.mxu0 %v2494
    %2646 = vmatprep.subr.mxu0 %v2499
    %2647 = vmatpush1.msra.mxu0 %v2498
    %2648 = vmatprep.subr.mxu0 %v2503
    %2649 = vmatpush1.msra.mxu0 %v2502
    %2650 = vmatprep.subr.mxu0 %v2507
    %2651 = vmatpush1.msra.mxu0 %v2506
    %2652 = vmatprep.subr.mxu0 %v2511
    %2653 = vmatpush1.msra.mxu0 %v2510
    %2654 = vmatprep.subr.mxu0 %v2515
    %2655 = vmatpush1.msra.mxu0 %v2514
    %2656 = vmatprep.subr.mxu0 %v2519
    %2657 = vmatpush1.msra.mxu0 %v2518
    %2658 = vmatprep.subr.mxu0 %v2523
    %2659 = vmatpush1.msra.mxu0 %v2522
    %2660 = vmatprep.subr.mxu0 %v2527
    %2661 = vmatpush1.msra.mxu0 %v2526
    %2662 = vmatprep.subr.mxu0 %v2531
    %2663 = vmatpush1.msra.mxu0 %v2530
    %2664 = vmatprep.subr.mxu0 %v2535
    %2665 = vmatpush1.msra.mxu0 %v2534
    %2666 = vmatprep.subr.mxu0 %v2539
    %2667 = vmatpush1.msra.mxu0 %v2538
    %2668 = vmatprep.subr.mxu0 %v2543
    %2669 = vmatpush1.msra.mxu0 %v2542
    %2670 = vmatprep.subr.mxu0 %v2547
    %2671 = vmatpush1.msra.mxu0 %v2546
    %2672 = vmatprep.subr.mxu0 %v2551
    %2673 = vmatpush1.msra.mxu0 %v2550
    %2674 = vmatprep.subr.mxu0 %v2555
    %2675 = vmatpush1.msra.mxu0 %v2554
    %2676 = vmatprep.subr.mxu0 %v2559
    %2677 = vmatpush1.msra.mxu0 %v2558
    %2678 = vmatprep.subr.mxu0 %v2563
    %2679 = vmatpush1.msra.mxu0 %v2562
    %2680 = vmatprep.subr.mxu0 %v2567
    %2681 = vmatpush1.msra.mxu0 %v2566
    %2682 = vmatprep.subr.mxu0 %v2571
    %2683 = vmatpush1.msra.mxu0 %v2570
    %2684 = vmatprep.subr.mxu0 %v2575
    %2685 = vmatpush1.msra.mxu0 %v2574
    %2686 = vmatprep.subr.mxu0 %v2579
    %2687 = vmatpush1.msra.mxu0 %v2578
    %2688 = vmatprep.subr.mxu0 %v2583
    %2689 = vmatpush1.msra.mxu0 %v2582
    %2690 = vmatprep.subr.mxu0 %v2587
    %2691 = vmatpush1.msra.mxu0 %v2586
    %2692 = vmatprep.subr.mxu0 %v2591
    %2693 = vmatpush1.msra.mxu0 %v2590
    %2694 = vmatprep.subr.mxu0 %v2595
    %2695 = vmatpush1.msra.mxu0 %v2594
    %2696 = vmatprep.subr.mxu0 %v2599
    %2697 = vmatpush1.msra.mxu0 %v2598
    %2698 = vmatprep.subr.mxu0 %v2603
    %2699 = vmatpush1.msra.mxu0 %v2602
    %2700 = vmatprep.subr.mxu0 %v2607
    %2701 = vmatpush1.msra.mxu0 %v2606
    %2702 = vmatprep.subr.mxu0 %v2611
    %2703 = vmatpush1.msra.mxu0 %v2610
    %2704 = vmatprep.subr.mxu0 %v2615
    %2705 = vmatpush1.msra.mxu0 %v2614
    %2706 = vmatprep.subr.mxu0 %v2619
    %2707 = vmatpush1.msra.mxu0 %v2618
    %2708 = vmatprep.mubr.f32.mxu0 %v2479
    %2709 = vmatmul.mubr.f32.gmra.mrb[0].mxu0 %v2478
    %v2710 = vpop.f32.mrb[0].mxu0
    %v2711 = vadd.f32 %v2627, %v2710
    %v2712 = vpop.f32.mrb[0].mxu0
    %v2713 = vadd.f32 %v2631, %v2712
    %2714 = vmatprep.mubr.f32.mxu0 %v2481
    %2715 = vmatmul.mubr.f32.gmra.mrb[0].mxu0 %v2480
    %v2716 = vpop.f32.mrb[0].mxu0
    %v2717 = vadd.f32 %v2627, %v2716
    %v2718 = vpop.f32.mrb[0].mxu0
    %v2719 = vadd.f32 %v2631, %v2718
    %2720 = vmatprep.mubr.f32.mxu0 %v2483
    %2721 = vmatmul.mubr.f32.gmra.mrb[0].mxu0 %v2482
    %v2722 = vpop.f32.mrb[0].mxu0
    %v2723 = vadd.f32 %v2627, %v2722
    %v2724 = vpop.f32.mrb[0].mxu0
    %v2725 = vadd.f32 %v2631, %v2724
    %2726 = vmatprep.mubr.f32.mxu0 %v2485
    %2727 = vmatmul.mubr.f32.gmra.mrb[0].mxu0 %v2484
    %v2728 = vpop.f32.mrb[0].mxu0
    %v2729 = vadd.f32 %v2627, %v2728
    %v2730 = vpop.f32.mrb[0].mxu0
    %v2731 = vadd.f32 %v2631, %v2730
    %2732 = vmatprep.mubr.f32.mxu0 %v2487
    %2733 = vmatmul.mubr.f32.gmra.mrb[0].mxu0 %v2486
    %v2734 = vpop.f32.mrb[0].mxu0
    %v2735 = vadd.f32 %v2627, %v2734
    %v2736 = vpop.f32.mrb[0].mxu0
    %v2737 = vadd.f32 %v2631, %v2736
    %2738 = vmatprep.mubr.f32.mxu0 %v2489
    %2739 = vmatmul.mubr.f32.gmra.mrb[0].mxu0 %v2488
    %v2740 = vpop.f32.mrb[0].mxu0
    %v2741 = vadd.f32 %v2627, %v2740
    %v2742 = vpop.f32.mrb[0].mxu0
    %v2743 = vadd.f32 %v2631, %v2742
    %2744 = vmatprep.mubr.f32.mxu0 %v2491
    %2745 = vmatmul.mubr.f32.gmra.mrb[0].mxu0 %v2490
    %v2746 = vpop.f32.mrb[0].mxu0
    %v2747 = vadd.f32 %v2627, %v2746
    %v2748 = vpop.f32.mrb[0].mxu0
    %v2749 = vadd.f32 %v2631, %v2748
    %2750 = vmatprep.mubr.f32.mxu0 %v2493
    %2751 = vmatmul.mubr.f32.gmra.mrb[0].mxu0 %v2492
    %v2752 = vpop.f32.mrb[0].mxu0
    %v2753 = vadd.f32 %v2627, %v2752
    %v2754 = vpop.f32.mrb[0].mxu0
    %v2755 = vadd.f32 %v2631, %v2754
    %2756 = vdwg.mxu0
    %2757 = vmatprep.subr.mxu0 %v2497
    %2758 = vmatpush1.msra.mxu0 %v2496
    %2759 = vmatprep.subr.mxu0 %v2501
    %2760 = vmatpush1.msra.mxu0 %v2500
    %2761 = vmatprep.subr.mxu0 %v2505
    %2762 = vmatpush1.msra.mxu0 %v2504
    %2763 = vmatprep.subr.mxu0 %v2509
    %2764 = vmatpush1.msra.mxu0 %v2508
    %2765 = vmatprep.subr.mxu0 %v2513
    %2766 = vmatpush1.msra.mxu0 %v2512
    %2767 = vmatprep.subr.mxu0 %v2517
    %2768 = vmatpush1.msra.mxu0 %v2516
    %2769 = vmatprep.subr.mxu0 %v2521
    %2770 = vmatpush1.msra.mxu0 %v2520
    %2771 = vmatprep.subr.mxu0 %v2525
    %2772 = vmatpush1.msra.mxu0 %v2524
    %2773 = vmatprep.subr.mxu0 %v2529
    %2774 = vmatpush1.msra.mxu0 %v2528
    %2775 = vmatprep.subr.mxu0 %v2533
    %2776 = vmatpush1.msra.mxu0 %v2532
    %2777 = vmatprep.subr.mxu0 %v2537
    %2778 = vmatpush1.msra.mxu0 %v2536
    %2779 = vmatprep.subr.mxu0 %v2541
    %2780 = vmatpush1.msra.mxu0 %v2540
    %2781 = vmatprep.subr.mxu0 %v2545
    %2782 = vmatpush1.msra.mxu0 %v2544
    %2783 = vmatprep.subr.mxu0 %v2549
    %2784 = vmatpush1.msra.mxu0 %v2548
    %2785 = vmatprep.subr.mxu0 %v2553
    %2786 = vmatpush1.msra.mxu0 %v2552
    %2787 = vmatprep.subr.mxu0 %v2557
    %2788 = vmatpush1.msra.mxu0 %v2556
    %2789 = vmatprep.subr.mxu0 %v2561
    %2790 = vmatpush1.msra.mxu0 %v2560
    %2791 = vmatprep.subr.mxu0 %v2565
    %2792 = vmatpush1.msra.mxu0 %v2564
    %2793 = vmatprep.subr.mxu0 %v2569
    %2794 = vmatpush1.msra.mxu0 %v2568
    %2795 = vmatprep.subr.mxu0 %v2573
    %2796 = vmatpush1.msra.mxu0 %v2572
    %2797 = vmatprep.subr.mxu0 %v2577
    %2798 = vmatpush1.msra.mxu0 %v2576
    %2799 = vmatprep.subr.mxu0 %v2581
    %2800 = vmatpush1.msra.mxu0 %v2580
    %2801 = vmatprep.subr.mxu0 %v2585
    %2802 = vmatpush1.msra.mxu0 %v2584
    %2803 = vmatprep.subr.mxu0 %v2589
    %2804 = vmatpush1.msra.mxu0 %v2588
    %2805 = vmatprep.subr.mxu0 %v2593
    %2806 = vmatpush1.msra.mxu0 %v2592
    %2807 = vmatprep.subr.mxu0 %v2597
    %2808 = vmatpush1.msra.mxu0 %v2596
    %2809 = vmatprep.subr.mxu0 %v2601
    %2810 = vmatpush1.msra.mxu0 %v2600
    %2811 = vmatprep.subr.mxu0 %v2605
    %2812 = vmatpush1.msra.mxu0 %v2604
    %2813 = vmatprep.subr.mxu0 %v2609
    %2814 = vmatpush1.msra.mxu0 %v2608
    %2815 = vmatprep.subr.mxu0 %v2613
    %2816 = vmatpush1.msra.mxu0 %v2612
    %2817 = vmatprep.subr.mxu0 %v2617
    %2818 = vmatpush1.msra.mxu0 %v2616
    %2819 = vmatprep.subr.mxu0 %v2621
    %2820 = vmatpush1.msra.mxu0 %v2620
    %2821 = vmatprep.mubr.f32.mxu0 %v2479
    %2822 = vmatmul.mubr.f32.gmra.mrb[0].mxu0 %v2478
    %v2823 = vpop.f32.mrb[0].mxu0
    %v2824 = vadd.f32 %v2635, %v2823
    %v2825 = vpop.f32.mrb[0].mxu0
    %v2826 = vadd.f32 %v2639, %v2825
    %2827 = vmatprep.mubr.f32.mxu0 %v2481
    %2828 = vmatmul.mubr.f32.gmra.mrb[0].mxu0 %v2480
    %v2829 = vpop.f32.mrb[0].mxu0
    %v2830 = vadd.f32 %v2635, %v2829
    %v2831 = vpop.f32.mrb[0].mxu0
    %v2832 = vadd.f32 %v2639, %v2831
    %2833 = vmatprep.mubr.f32.mxu0 %v2483
    %2834 = vmatmul.mubr.f32.gmra.mrb[0].mxu0 %v2482
    %v2835 = vpop.f32.mrb[0].mxu0
    %v2836 = vadd.f32 %v2635, %v2835
    %v2837 = vpop.f32.mrb[0].mxu0
    %v2838 = vadd.f32 %v2639, %v2837
    %2839 = vmatprep.mubr.f32.mxu0 %v2485
    %2840 = vmatmul.mubr.f32.gmra.mrb[0].mxu0 %v2484
    %v2841 = vpop.f32.mrb[0].mxu0
    %v2842 = vadd.f32 %v2635, %v2841
    %v2843 = vpop.f32.mrb[0].mxu0
    %v2844 = vadd.f32 %v2639, %v2843
    %2845 = vmatprep.mubr.f32.mxu0 %v2487
    %2846 = vmatmul.mubr.f32.gmra.mrb[0].mxu0 %v2486
    %v2847 = vpop.f32.mrb[0].mxu0
    %v2848 = vadd.f32 %v2635, %v2847
    %v2849 = vpop.f32.mrb[0].mxu0
    %v2850 = vadd.f32 %v2639, %v2849
    %2851 = vmatprep.mubr.f32.mxu0 %v2489
    %2852 = vmatmul.mubr.f32.gmra.mrb[0].mxu0 %v2488
    %v2853 = vpop.f32.mrb[0].mxu0
    %v2854 = vadd.f32 %v2635, %v2853
    %v2855 = vpop.f32.mrb[0].mxu0
    %v2856 = vadd.f32 %v2639, %v2855
    %2857 = vmatprep.mubr.f32.mxu0 %v2491
    %2858 = vmatmul.mubr.f32.gmra.mrb[0].mxu0 %v2490
    %v2859 = vpop.f32.mrb[0].mxu0
    %v2860 = vadd.f32 %v2635, %v2859
    %v2861 = vpop.f32.mrb[0].mxu0
    %v2862 = vadd.f32 %v2639, %v2861
    %2863 = vmatprep.mubr.f32.mxu0 %v2493
    %2864 = vmatmul.mubr.f32.gmra.mrb[0].mxu0 %v2492
    %v2865 = vpop.f32.mrb[0].mxu0
    %v2866 = vadd.f32 %v2635, %v2865
    %v2867 = vpop.f32.mrb[0].mxu0
    %v2868 = vadd.f32 %v2639, %v2867
    %2869 = vdwg.mxu0
    %2870 = vst [vmem:[#allocation2] sm:$0xff] %v2711
    %2871 = vst [vmem:[#allocation2 + $0x8] sm:$0xff] %v2713
    %2872 = vst [vmem:[#allocation2 + $0x10] sm:$0xff] %v2824
    %2873 = vst [vmem:[#allocation2 + $0x18] sm:$0xff] %v2826
    %2874 = vst [vmem:[#allocation2 + $0x20] sm:$0xff] %v2717
    %2875 = vst [vmem:[#allocation2 + $0x28] sm:$0xff] %v2719
    %2876 = vst [vmem:[#allocation2 + $0x30] sm:$0xff] %v2830
    %2877 = vst [vmem:[#allocation2 + $0x38] sm:$0xff] %v2832
    %2878 = vst [vmem:[#allocation2 + $0x40] sm:$0xff] %v2723
    %2879 = vst [vmem:[#allocation2 + $0x48] sm:$0xff] %v2725
    %2880 = vst [vmem:[#allocation2 + $0x50] sm:$0xff] %v2836
    %2881 = vst [vmem:[#allocation2 + $0x58] sm:$0xff] %v2838
    %2882 = vst [vmem:[#allocation2 + $0x60] sm:$0xff] %v2729
    %2883 = vst [vmem:[#allocation2 + $0x68] sm:$0xff] %v2731
    %2884 = vst [vmem:[#allocation2 + $0x70] sm:$0xff] %v2842
    %2885 = vst [vmem:[#allocation2 + $0x78] sm:$0xff] %v2844
    %2886 = vst [vmem:[#allocation2 + $0x80] sm:$0xff] %v2735
    %2887 = vst [vmem:[#allocation2 + $0x88] sm:$0xff] %v2737
    %2888 = vst [vmem:[#allocation2 + $0x90] sm:$0xff] %v2848
    %2889 = vst [vmem:[#allocation2 + $0x98] sm:$0xff] %v2850
    %2890 = vst [vmem:[#allocation2 + $0xa0] sm:$0xff] %v2741
    %2891 = vst [vmem:[#allocation2 + $0xa8] sm:$0xff] %v2743
    %2892 = vst [vmem:[#allocation2 + $0xb0] sm:$0xff] %v2854
    %2893 = vst [vmem:[#allocation2 + $0xb8] sm:$0xff] %v2856
    %2894 = vst [vmem:[#allocation2 + $0xc0] sm:$0xff] %v2747
    %2895 = vst [vmem:[#allocation2 + $0xc8] sm:$0xff] %v2749
    %2896 = vst [vmem:[#allocation2 + $0xd0] sm:$0xff] %v2860
    %2897 = vst [vmem:[#allocation2 + $0xd8] sm:$0xff] %v2862
    %2898 = vst [vmem:[#allocation2 + $0xe0] sm:$0xff] %v2753
    %2899 = vst [vmem:[#allocation2 + $0xe8] sm:$0xff] %v2755
    %2900 = vst [vmem:[#allocation2 + $0xf0] sm:$0xff] %v2866
    %2901 = vst [vmem:[#allocation2 + $0xf8] sm:$0xff] %v2868
    %v2902 = vld [vmem:[#allocation2] sm:$0xff]
    %v2903 = vld [vmem:[#allocation2 + $0x8] sm:$0xff]
    %v2904 = vld [vmem:[#allocation2 + $0x10] sm:$0xff]
    %v2905 = vld [vmem:[#allocation2 + $0x18] sm:$0xff]
    %v2906 = vld [vmem:[#allocation10] sm:$0xff]
    %v2907 = vld [vmem:[#allocation10 + $0x8] sm:$0xff]
    %v2908 = vld [vmem:[#allocation10 + $0x10] sm:$0xff]
    %v2909 = vld [vmem:[#allocation10 + $0x18] sm:$0xff]
    %v2910 = vld [vmem:[#allocation10 + $0x20] sm:$0xff]
    %v2911 = vld [vmem:[#allocation10 + $0x28] sm:$0xff]
    %v2912 = vld [vmem:[#allocation10 + $0x30] sm:$0xff]
    %v2913 = vld [vmem:[#allocation10 + $0x38] sm:$0xff]
    %v2914 = vld [vmem:[#allocation10 + $0x40] sm:$0xff]
    %v2915 = vld [vmem:[#allocation10 + $0x48] sm:$0xff]
    %v2916 = vld [vmem:[#allocation10 + $0x50] sm:$0xff]
    %v2917 = vld [vmem:[#allocation10 + $0x58] sm:$0xff]
    %v2918 = vld [vmem:[#allocation10 + $0x60] sm:$0xff]
    %v2919 = vld [vmem:[#allocation10 + $0x68] sm:$0xff]
    %v2920 = vld [vmem:[#allocation10 + $0x70] sm:$0xff]
    %v2921 = vld [vmem:[#allocation10 + $0x78] sm:$0xff]
    %v2922 = vld [vmem:[#allocation10 + $0x80] sm:$0xff]
    %v2923 = vld [vmem:[#allocation10 + $0x88] sm:$0xff]
    %v2924 = vld [vmem:[#allocation10 + $0x90] sm:$0xff]
    %v2925 = vld [vmem:[#allocation10 + $0x98] sm:$0xff]
    %v2926 = vld [vmem:[#allocation10 + $0xa0] sm:$0xff]
    %v2927 = vld [vmem:[#allocation10 + $0xa8] sm:$0xff]
    %v2928 = vld [vmem:[#allocation10 + $0xb0] sm:$0xff]
    %v2929 = vld [vmem:[#allocation10 + $0xb8] sm:$0xff]
    %v2930 = vld [vmem:[#allocation10 + $0xc0] sm:$0xff]
    %v2931 = vld [vmem:[#allocation10 + $0xc8] sm:$0xff]
    %v2932 = vld [vmem:[#allocation10 + $0xd0] sm:$0xff]
    %v2933 = vld [vmem:[#allocation10 + $0xd8] sm:$0xff]
    %v2934 = vld [vmem:[#allocation10 + $0xe0] sm:$0xff]
    %v2935 = vld [vmem:[#allocation10 + $0xe8] sm:$0xff]
    %v2936 = vld [vmem:[#allocation10 + $0xf0] sm:$0xff]
    %v2937 = vld [vmem:[#allocation10 + $0xf8] sm:$0xff]
    %v2938 = vld [vmem:[#allocation10 + $0x100] sm:$0xff]
    %v2939 = vld [vmem:[#allocation10 + $0x108] sm:$0xff]
    %v2940 = vld [vmem:[#allocation10 + $0x110] sm:$0xff]
    %v2941 = vld [vmem:[#allocation10 + $0x118] sm:$0xff]
    %v2942 = vld [vmem:[#allocation10 + $0x120] sm:$0xff]
    %v2943 = vld [vmem:[#allocation10 + $0x128] sm:$0xff]
    %v2944 = vld [vmem:[#allocation10 + $0x130] sm:$0xff]
    %v2945 = vld [vmem:[#allocation10 + $0x138] sm:$0xff]
    %v2946 = vld [vmem:[#allocation10 + $0x140] sm:$0xff]
    %v2947 = vld [vmem:[#allocation10 + $0x148] sm:$0xff]
    %v2948 = vld [vmem:[#allocation10 + $0x150] sm:$0xff]
    %v2949 = vld [vmem:[#allocation10 + $0x158] sm:$0xff]
    %v2950 = vld [vmem:[#allocation10 + $0x160] sm:$0xff]
    %v2951 = vld [vmem:[#allocation10 + $0x168] sm:$0xff]
    %v2952 = vld [vmem:[#allocation10 + $0x170] sm:$0xff]
    %v2953 = vld [vmem:[#allocation10 + $0x178] sm:$0xff]
    %v2954 = vld [vmem:[#allocation10 + $0x180] sm:$0xff]
    %v2955 = vld [vmem:[#allocation10 + $0x188] sm:$0xff]
    %v2956 = vld [vmem:[#allocation10 + $0x190] sm:$0xff]
    %v2957 = vld [vmem:[#allocation10 + $0x198] sm:$0xff]
    %v2958 = vld [vmem:[#allocation10 + $0x1a0] sm:$0xff]
    %v2959 = vld [vmem:[#allocation10 + $0x1a8] sm:$0xff]
    %v2960 = vld [vmem:[#allocation10 + $0x1b0] sm:$0xff]
    %v2961 = vld [vmem:[#allocation10 + $0x1b8] sm:$0xff]
    %v2962 = vld [vmem:[#allocation10 + $0x1c0] sm:$0xff]
    %v2963 = vld [vmem:[#allocation10 + $0x1c8] sm:$0xff]
    %v2964 = vld [vmem:[#allocation10 + $0x1d0] sm:$0xff]
    %v2965 = vld [vmem:[#allocation10 + $0x1d8] sm:$0xff]
    %v2966 = vld [vmem:[#allocation10 + $0x1e0] sm:$0xff]
    %v2967 = vld [vmem:[#allocation10 + $0x1e8] sm:$0xff]
    %v2968 = vld [vmem:[#allocation10 + $0x1f0] sm:$0xff]
    %v2969 = vld [vmem:[#allocation10 + $0x1f8] sm:$0xff]
    %2970 = vmatprep.subr.mxu0 %v2907
    %2971 = vmatpush1.msra.mxu0 %v2906
    %2972 = vmatprep.subr.mxu0 %v2911
    %2973 = vmatpush1.msra.mxu0 %v2910
    %2974 = vmatprep.subr.mxu0 %v2915
    %2975 = vmatpush1.msra.mxu0 %v2914
    %2976 = vmatprep.subr.mxu0 %v2919
    %2977 = vmatpush1.msra.mxu0 %v2918
    %2978 = vmatprep.subr.mxu0 %v2923
    %2979 = vmatpush1.msra.mxu0 %v2922
    %2980 = vmatprep.subr.mxu0 %v2927
    %2981 = vmatpush1.msra.mxu0 %v2926
    %2982 = vmatprep.subr.mxu0 %v2931
    %2983 = vmatpush1.msra.mxu0 %v2930
    %2984 = vmatprep.subr.mxu0 %v2935
    %2985 = vmatpush1.msra.mxu0 %v2934
    %2986 = vmatprep.subr.mxu0 %v2939
    %2987 = vmatpush1.msra.mxu0 %v2938
    %2988 = vmatprep.subr.mxu0 %v2943
    %2989 = vmatpush1.msra.mxu0 %v2942
    %2990 = vmatprep.subr.mxu0 %v2947
    %2991 = vmatpush1.msra.mxu0 %v2946
    %2992 = vmatprep.subr.mxu0 %v2951
    %2993 = vmatpush1.msra.mxu0 %v2950
    %2994 = vmatprep.subr.mxu0 %v2955
    %2995 = vmatpush1.msra.mxu0 %v2954
    %2996 = vmatprep.subr.mxu0 %v2959
    %2997 = vmatpush1.msra.mxu0 %v2958
    %2998 = vmatprep.subr.mxu0 %v2963
    %2999 = vmatpush1.msra.mxu0 %v2962
    %3000 = vmatprep.subr.mxu0 %v2967
    %3001 = vmatpush1.msra.mxu0 %v2966
    %3002 = vmatprep.subr.mxu0 0.0
    %3003 = vmatpush1.msra.mxu0 0.0
    %3004 = vmatprep.subr.mxu0 0.0
    %3005 = vmatpush1.msra.mxu0 0.0
    %3006 = vmatprep.subr.mxu0 0.0
    %3007 = vmatpush1.msra.mxu0 0.0
    %3008 = vmatprep.subr.mxu0 0.0
    %3009 = vmatpush1.msra.mxu0 0.0
    %3010 = vmatprep.subr.mxu0 0.0
    %3011 = vmatpush1.msra.mxu0 0.0
    %3012 = vmatprep.subr.mxu0 0.0
    %3013 = vmatpush1.msra.mxu0 0.0
    %3014 = vmatprep.subr.mxu0 0.0
    %3015 = vmatpush1.msra.mxu0 0.0
    %3016 = vmatprep.subr.mxu0 0.0
    %3017 = vmatpush1.msra.mxu0 0.0
    %3018 = vmatprep.subr.mxu0 0.0
    %3019 = vmatpush1.msra.mxu0 0.0
    %3020 = vmatprep.subr.mxu0 0.0
    %3021 = vmatpush1.msra.mxu0 0.0
    %3022 = vmatprep.subr.mxu0 0.0
    %3023 = vmatpush1.msra.mxu0 0.0
    %3024 = vmatprep.subr.mxu0 0.0
    %3025 = vmatpush1.msra.mxu0 0.0
    %3026 = vmatprep.subr.mxu0 0.0
    %3027 = vmatpush1.msra.mxu0 0.0
    %3028 = vmatprep.subr.mxu0 0.0
    %3029 = vmatpush1.msra.mxu0 0.0
    %3030 = vmatprep.subr.mxu0 0.0
    %3031 = vmatpush1.msra.mxu0 0.0
    %3032 = vmatprep.subr.mxu0 0.0
    %3033 = vmatpush1.msra.mxu0 0.0
    %3034 = vmatprep.mubr.f32.mxu0 0.0
    %3035 = vmatmul.mubr.f32.gmra.mrb[0].mxu0 0.0
    %v3036 = vpop.f32.mrb[0].mxu0
    %v3037 = vadd.f32 0.0, %v3036
    %v3038 = vpop.f32.mrb[0].mxu0
    %v3039 = vadd.f32 0.0, %v3038
    %3040 = vdwg.mxu0
    %3041 = vmatprep.subr.mxu0 %v2909
    %3042 = vmatpush1.msra.mxu0 %v2908
    %3043 = vmatprep.subr.mxu0 %v2913
    %3044 = vmatpush1.msra.mxu0 %v2912
    %3045 = vmatprep.subr.mxu0 %v2917
    %3046 = vmatpush1.msra.mxu0 %v2916
    %3047 = vmatprep.subr.mxu0 %v2921
    %3048 = vmatpush1.msra.mxu0 %v2920
    %3049 = vmatprep.subr.mxu0 %v2925
    %3050 = vmatpush1.msra.mxu0 %v2924
    %3051 = vmatprep.subr.mxu0 %v2929
    %3052 = vmatpush1.msra.mxu0 %v2928
    %3053 = vmatprep.subr.mxu0 %v2933
    %3054 = vmatpush1.msra.mxu0 %v2932
    %3055 = vmatprep.subr.mxu0 %v2937
    %3056 = vmatpush1.msra.mxu0 %v2936
    %3057 = vmatprep.subr.mxu0 %v2941
    %3058 = vmatpush1.msra.mxu0 %v2940
    %3059 = vmatprep.subr.mxu0 %v2945
    %3060 = vmatpush1.msra.mxu0 %v2944
    %3061 = vmatprep.subr.mxu0 %v2949
    %3062 = vmatpush1.msra.mxu0 %v2948
    %3063 = vmatprep.subr.mxu0 %v2953
    %3064 = vmatpush1.msra.mxu0 %v2952
    %3065 = vmatprep.subr.mxu0 %v2957
    %3066 = vmatpush1.msra.mxu0 %v2956
    %3067 = vmatprep.subr.mxu0 %v2961
    %3068 = vmatpush1.msra.mxu0 %v2960
    %3069 = vmatprep.subr.mxu0 %v2965
    %3070 = vmatpush1.msra.mxu0 %v2964
    %3071 = vmatprep.subr.mxu0 %v2969
    %3072 = vmatpush1.msra.mxu0 %v2968
    %3073 = vmatprep.subr.mxu0 0.0
    %3074 = vmatpush1.msra.mxu0 0.0
    %3075 = vmatprep.subr.mxu0 0.0
    %3076 = vmatpush1.msra.mxu0 0.0
    %3077 = vmatprep.subr.mxu0 0.0
    %3078 = vmatpush1.msra.mxu0 0.0
    %3079 = vmatprep.subr.mxu0 0.0
    %3080 = vmatpush1.msra.mxu0 0.0
    %3081 = vmatprep.subr.mxu0 0.0
    %3082 = vmatpush1.msra.mxu0 0.0
    %3083 = vmatprep.subr.mxu0 0.0
    %3084 = vmatpush1.msra.mxu0 0.0
    %3085 = vmatprep.subr.mxu0 0.0
    %3086 = vmatpush1.msra.mxu0 0.0
    %3087 = vmatprep.subr.mxu0 0.0
    %3088 = vmatpush1.msra.mxu0 0.0
    %3089 = vmatprep.subr.mxu0 0.0
    %3090 = vmatpush1.msra.mxu0 0.0
    %3091 = vmatprep.subr.mxu0 0.0
    %3092 = vmatpush1.msra.mxu0 0.0
    %3093 = vmatprep.subr.mxu0 0.0
    %3094 = vmatpush1.msra.mxu0 0.0
    %3095 = vmatprep.subr.mxu0 0.0
    %3096 = vmatpush1.msra.mxu0 0.0
    %3097 = vmatprep.subr.mxu0 0.0
    %3098 = vmatpush1.msra.mxu0 0.0
    %3099 = vmatprep.subr.mxu0 0.0
    %3100 = vmatpush1.msra.mxu0 0.0
    %3101 = vmatprep.subr.mxu0 0.0
    %3102 = vmatpush1.msra.mxu0 0.0
    %3103 = vmatprep.subr.mxu0 0.0
    %3104 = vmatpush1.msra.mxu0 0.0
    %3105 = vmatprep.mubr.f32.mxu0 0.0
    %3106 = vmatmul.mubr.f32.gmra.mrb[0].mxu0 0.0
    %v3107 = vpop.f32.mrb[0].mxu0
    %v3108 = vadd.f32 0.0, %v3107
    %v3109 = vpop.f32.mrb[0].mxu0
    %v3110 = vadd.f32 0.0, %v3109
    %3111 = vdwg.mxu0
    %v3112 = vadd.f32 %v2902, %v3037
    %v3113 = vadd.f32 %v2903, %v3039
    %v3114 = vadd.f32 %v2904, %v3108
    %v3115 = vadd.f32 %v2905, %v3110
    %v3116 = vxor.u32 %v3112, 2147483648
    %v3117 = vmul.f32 %v3116, 1.442695
    %v3118 = vpow.pop %v3117
    %v3119 = vadd.f32 %v3118, 1.0
    %v3120 = vrcp.pop %v3119
    %v3121 = vmul.f32 1.0, %v3120
    %v3122 = vxor.u32 %v3113, 2147483648
    %v3123 = vmul.f32 %v3122, 1.442695
    %v3124 = vpow.pop %v3123
    %v3125 = vadd.f32 %v3124, 1.0
    %v3126 = vrcp.pop %v3125
    %v3127 = vmul.f32 1.0, %v3126
    %v3128 = vtanh.pop %v3114
    %v3129 = vxor.u32 %v3115, 2147483648
    %v3130 = vmul.f32 %v3129, 1.442695
    %v3131 = vpow.pop %v3130
    %v3132 = vadd.f32 %v3131, 1.0
    %v3133 = vrcp.pop %v3132
    %v3134 = vmul.f32 1.0, %v3133
    %v3135 = vmul.f32 %v3127, 0.0
    %v3136 = vmul.f32 %v3121, %v3128
    %v3137 = vadd.f32 %v3135, %v3136
    %v3138 = vtanh.pop %v3137
    %v3139 = vmul.f32 %v3134, %v3138
    %3140 = vst [vmem:[#allocation4] sm:$0xff] %v3139
    %v3141 = vld [vmem:[#allocation2 + $0x20] sm:$0xff]
    %v3142 = vld [vmem:[#allocation2 + $0x28] sm:$0xff]
    %v3143 = vld [vmem:[#allocation2 + $0x30] sm:$0xff]
    %v3144 = vld [vmem:[#allocation2 + $0x38] sm:$0xff]
    %v3145 = vld [vmem:[#allocation10] sm:$0xff]
    %v3146 = vld [vmem:[#allocation10 + $0x8] sm:$0xff]
    %v3147 = vld [vmem:[#allocation10 + $0x10] sm:$0xff]
    %v3148 = vld [vmem:[#allocation10 + $0x18] sm:$0xff]
    %v3149 = vld [vmem:[#allocation10 + $0x20] sm:$0xff]
    %v3150 = vld [vmem:[#allocation10 + $0x28] sm:$0xff]
    %v3151 = vld [vmem:[#allocation10 + $0x30] sm:$0xff]
    %v3152 = vld [vmem:[#allocation10 + $0x38] sm:$0xff]
    %v3153 = vld [vmem:[#allocation10 + $0x40] sm:$0xff]
    %v3154 = vld [vmem:[#allocation10 + $0x48] sm:$0xff]
    %v3155 = vld [vmem:[#allocation10 + $0x50] sm:$0xff]
    %v3156 = vld [vmem:[#allocation10 + $0x58] sm:$0xff]
    %v3157 = vld [vmem:[#allocation10 + $0x60] sm:$0xff]
    %v3158 = vld [vmem:[#allocation10 + $0x68] sm:$0xff]
    %v3159 = vld [vmem:[#allocation10 + $0x70] sm:$0xff]
    %v3160 = vld [vmem:[#allocation10 + $0x78] sm:$0xff]
    %v3161 = vld [vmem:[#allocation10 + $0x80] sm:$0xff]
    %v3162 = vld [vmem:[#allocation10 + $0x88] sm:$0xff]
    %v3163 = vld [vmem:[#allocation10 + $0x90] sm:$0xff]
    %v3164 = vld [vmem:[#allocation10 + $0x98] sm:$0xff]
    %v3165 = vld [vmem:[#allocation10 + $0xa0] sm:$0xff]
    %v3166 = vld [vmem:[#allocation10 + $0xa8] sm:$0xff]
    %v3167 = vld [vmem:[#allocation10 + $0xb0] sm:$0xff]
    %v3168 = vld [vmem:[#allocation10 + $0xb8] sm:$0xff]
    %v3169 = vld [vmem:[#allocation10 + $0xc0] sm:$0xff]
    %v3170 = vld [vmem:[#allocation10 + $0xc8] sm:$0xff]
    %v3171 = vld [vmem:[#allocation10 + $0xd0] sm:$0xff]
    %v3172 = vld [vmem:[#allocation10 + $0xd8] sm:$0xff]
    %v3173 = vld [vmem:[#allocation10 + $0xe0] sm:$0xff]
    %v3174 = vld [vmem:[#allocation10 + $0xe8] sm:$0xff]
    %v3175 = vld [vmem:[#allocation10 + $0xf0] sm:$0xff]
    %v3176 = vld [vmem:[#allocation10 + $0xf8] sm:$0xff]
    %v3177 = vld [vmem:[#allocation10 + $0x100] sm:$0xff]
    %v3178 = vld [vmem:[#allocation10 + $0x108] sm:$0xff]
    %v3179 = vld [vmem:[#allocation10 + $0x110] sm:$0xff]
    %v3180 = vld [vmem:[#allocation10 + $0x118] sm:$0xff]
    %v3181 = vld [vmem:[#allocation10 + $0x120] sm:$0xff]
    %v3182 = vld [vmem:[#allocation10 + $0x128] sm:$0xff]
    %v3183 = vld [vmem:[#allocation10 + $0x130] sm:$0xff]
    %v3184 = vld [vmem:[#allocation10 + $0x138] sm:$0xff]
    %v3185 = vld [vmem:[#allocation10 + $0x140] sm:$0xff]
    %v3186 = vld [vmem:[#allocation10 + $0x148] sm:$0xff]
    %v3187 = vld [vmem:[#allocation10 + $0x150] sm:$0xff]
    %v3188 = vld [vmem:[#allocation10 + $0x158] sm:$0xff]
    %v3189 = vld [vmem:[#allocation10 + $0x160] sm:$0xff]
    %v3190 = vld [vmem:[#allocation10 + $0x168] sm:$0xff]
    %v3191 = vld [vmem:[#allocation10 + $0x170] sm:$0xff]
    %v3192 = vld [vmem:[#allocation10 + $0x178] sm:$0xff]
    %v3193 = vld [vmem:[#allocation10 + $0x180] sm:$0xff]
    %v3194 = vld [vmem:[#allocation10 + $0x188] sm:$0xff]
    %v3195 = vld [vmem:[#allocation10 + $0x190] sm:$0xff]
    %v3196 = vld [vmem:[#allocation10 + $0x198] sm:$0xff]
    %v3197 = vld [vmem:[#allocation10 + $0x1a0] sm:$0xff]
    %v3198 = vld [vmem:[#allocation10 + $0x1a8] sm:$0xff]
    %v3199 = vld [vmem:[#allocation10 + $0x1b0] sm:$0xff]
    %v3200 = vld [vmem:[#allocation10 + $0x1b8] sm:$0xff]
    %v3201 = vld [vmem:[#allocation10 + $0x1c0] sm:$0xff]
    %v3202 = vld [vmem:[#allocation10 + $0x1c8] sm:$0xff]
    %v3203 = vld [vmem:[#allocation10 + $0x1d0] sm:$0xff]
    %v3204 = vld [vmem:[#allocation10 + $0x1d8] sm:$0xff]
    %v3205 = vld [vmem:[#allocation10 + $0x1e0] sm:$0xff]
    %v3206 = vld [vmem:[#allocation10 + $0x1e8] sm:$0xff]
    %v3207 = vld [vmem:[#allocation10 + $0x1f0] sm:$0xff]
    %v3208 = vld [vmem:[#allocation10 + $0x1f8] sm:$0xff]
    %3209 = vmatprep.subr.mxu0 %v3146
    %3210 = vmatpush1.msra.mxu0 %v3145
    %3211 = vmatprep.subr.mxu0 %v3150
    %3212 = vmatpush1.msra.mxu0 %v3149
    %3213 = vmatprep.subr.mxu0 %v3154
    %3214 = vmatpush1.msra.mxu0 %v3153
    %3215 = vmatprep.subr.mxu0 %v3158
    %3216 = vmatpush1.msra.mxu0 %v3157
    %3217 = vmatprep.subr.mxu0 %v3162
    %3218 = vmatpush1.msra.mxu0 %v3161
    %3219 = vmatprep.subr.mxu0 %v3166
    %3220 = vmatpush1.msra.mxu0 %v3165
    %3221 = vmatprep.subr.mxu0 %v3170
    %3222 = vmatpush1.msra.mxu0 %v3169
    %3223 = vmatprep.subr.mxu0 %v3174
    %3224 = vmatpush1.msra.mxu0 %v3173
    %3225 = vmatprep.subr.mxu0 %v3178
    %3226 = vmatpush1.msra.mxu0 %v3177
    %3227 = vmatprep.subr.mxu0 %v3182
    %3228 = vmatpush1.msra.mxu0 %v3181
    %3229 = vmatprep.subr.mxu0 %v3186
    %3230 = vmatpush1.msra.mxu0 %v3185
    %3231 = vmatprep.subr.mxu0 %v3190
    %3232 = vmatpush1.msra.mxu0 %v3189
    %3233 = vmatprep.subr.mxu0 %v3194
    %3234 = vmatpush1.msra.mxu0 %v3193
    %3235 = vmatprep.subr.mxu0 %v3198
    %3236 = vmatpush1.msra.mxu0 %v3197
    %3237 = vmatprep.subr.mxu0 %v3202
    %3238 = vmatpush1.msra.mxu0 %v3201
    %3239 = vmatprep.subr.mxu0 %v3206
    %3240 = vmatpush1.msra.mxu0 %v3205
    %3241 = vmatprep.subr.mxu0 0.0
    %3242 = vmatpush1.msra.mxu0 0.0
    %3243 = vmatprep.subr.mxu0 0.0
    %3244 = vmatpush1.msra.mxu0 0.0
    %3245 = vmatprep.subr.mxu0 0.0
    %3246 = vmatpush1.msra.mxu0 0.0
    %3247 = vmatprep.subr.mxu0 0.0
    %3248 = vmatpush1.msra.mxu0 0.0
    %3249 = vmatprep.subr.mxu0 0.0
    %3250 = vmatpush1.msra.mxu0 0.0
    %3251 = vmatprep.subr.mxu0 0.0
    %3252 = vmatpush1.msra.mxu0 0.0
    %3253 = vmatprep.subr.mxu0 0.0
    %3254 = vmatpush1.msra.mxu0 0.0
    %3255 = vmatprep.subr.mxu0 0.0
    %3256 = vmatpush1.msra.mxu0 0.0
    %3257 = vmatprep.subr.mxu0 0.0
    %3258 = vmatpush1.msra.mxu0 0.0
    %3259 = vmatprep.subr.mxu0 0.0
    %3260 = vmatpush1.msra.mxu0 0.0
    %3261 = vmatprep.subr.mxu0 0.0
    %3262 = vmatpush1.msra.mxu0 0.0
    %3263 = vmatprep.subr.mxu0 0.0
    %3264 = vmatpush1.msra.mxu0 0.0
    %3265 = vmatprep.subr.mxu0 0.0
    %3266 = vmatpush1.msra.mxu0 0.0
    %3267 = vmatprep.subr.mxu0 0.0
    %3268 = vmatpush1.msra.mxu0 0.0
    %3269 = vmatprep.subr.mxu0 0.0
    %3270 = vmatpush1.msra.mxu0 0.0
    %3271 = vmatprep.subr.mxu0 0.0
    %3272 = vmatpush1.msra.mxu0 0.0
    %3273 = vmatprep.mubr.f32.mxu0 0.0
    %3274 = vmatmul.mubr.f32.gmra.mrb[0].mxu0 %v3139
    %v3275 = vpop.f32.mrb[0].mxu0
    %v3276 = vadd.f32 0.0, %v3275
    %v3277 = vpop.f32.mrb[0].mxu0
    %v3278 = vadd.f32 0.0, %v3277
    %3279 = vdwg.mxu0
    %3280 = vmatprep.subr.mxu0 %v3148
    %3281 = vmatpush1.msra.mxu0 %v3147
    %3282 = vmatprep.subr.mxu0 %v3152
    %3283 = vmatpush1.msra.mxu0 %v3151
    %3284 = vmatprep.subr.mxu0 %v3156
    %3285 = vmatpush1.msra.mxu0 %v3155
    %3286 = vmatprep.subr.mxu0 %v3160
    %3287 = vmatpush1.msra.mxu0 %v3159
    %3288 = vmatprep.subr.mxu0 %v3164
    %3289 = vmatpush1.msra.mxu0 %v3163
    %3290 = vmatprep.subr.mxu0 %v3168
    %3291 = vmatpush1.msra.mxu0 %v3167
    %3292 = vmatprep.subr.mxu0 %v3172
    %3293 = vmatpush1.msra.mxu0 %v3171
    %3294 = vmatprep.subr.mxu0 %v3176
    %3295 = vmatpush1.msra.mxu0 %v3175
    %3296 = vmatprep.subr.mxu0 %v3180
    %3297 = vmatpush1.msra.mxu0 %v3179
    %3298 = vmatprep.subr.mxu0 %v3184
    %3299 = vmatpush1.msra.mxu0 %v3183
    %3300 = vmatprep.subr.mxu0 %v3188
    %3301 = vmatpush1.msra.mxu0 %v3187
    %3302 = vmatprep.subr.mxu0 %v3192
    %3303 = vmatpush1.msra.mxu0 %v3191
    %3304 = vmatprep.subr.mxu0 %v3196
    %3305 = vmatpush1.msra.mxu0 %v3195
    %3306 = vmatprep.subr.mxu0 %v3200
    %3307 = vmatpush1.msra.mxu0 %v3199
    %3308 = vmatprep.subr.mxu0 %v3204
    %3309 = vmatpush1.msra.mxu0 %v3203
    %3310 = vmatprep.subr.mxu0 %v3208
    %3311 = vmatpush1.msra.mxu0 %v3207
    %3312 = vmatprep.subr.mxu0 0.0
    %3313 = vmatpush1.msra.mxu0 0.0
    %3314 = vmatprep.subr.mxu0 0.0
    %3315 = vmatpush1.msra.mxu0 0.0
    %3316 = vmatprep.subr.mxu0 0.0
    %3317 = vmatpush1.msra.mxu0 0.0
    %3318 = vmatprep.subr.mxu0 0.0
    %3319 = vmatpush1.msra.mxu0 0.0
    %3320 = vmatprep.subr.mxu0 0.0
    %3321 = vmatpush1.msra.mxu0 0.0
    %3322 = vmatprep.subr.mxu0 0.0
    %3323 = vmatpush1.msra.mxu0 0.0
    %3324 = vmatprep.subr.mxu0 0.0
    %3325 = vmatpush1.msra.mxu0 0.0
    %3326 = vmatprep.subr.mxu0 0.0
    %3327 = vmatpush1.msra.mxu0 0.0
    %3328 = vmatprep.subr.mxu0 0.0
    %3329 = vmatpush1.msra.mxu0 0.0
    %3330 = vmatprep.subr.mxu0 0.0
    %3331 = vmatpush1.msra.mxu0 0.0
    %3332 = vmatprep.subr.mxu0 0.0
    %3333 = vmatpush1.msra.mxu0 0.0
    %3334 = vmatprep.subr.mxu0 0.0
    %3335 = vmatpush1.msra.mxu0 0.0
    %3336 = vmatprep.subr.mxu0 0.0
    %3337 = vmatpush1.msra.mxu0 0.0
    %3338 = vmatprep.subr.mxu0 0.0
    %3339 = vmatpush1.msra.mxu0 0.0
    %3340 = vmatprep.subr.mxu0 0.0
    %3341 = vmatpush1.msra.mxu0 0.0
    %3342 = vmatprep.subr.mxu0 0.0
    %3343 = vmatpush1.msra.mxu0 0.0
    %3344 = vmatprep.mubr.f32.mxu0 0.0
    %3345 = vmatmul.mubr.f32.gmra.mrb[0].mxu0 %v3139
    %v3346 = vpop.f32.mrb[0].mxu0
    %v3347 = vadd.f32 0.0, %v3346
    %v3348 = vpop.f32.mrb[0].mxu0
    %v3349 = vadd.f32 0.0, %v3348
    %3350 = vdwg.mxu0
    %v3351 = vadd.f32 %v3141, %v3276
    %v3352 = vadd.f32 %v3142, %v3278
    %v3353 = vadd.f32 %v3143, %v3347
    %v3354 = vadd.f32 %v3144, %v3349
    %v3355 = vxor.u32 %v3351, 2147483648
    %v3356 = vmul.f32 %v3355, 1.442695
    %v3357 = vpow.pop %v3356
    %v3358 = vadd.f32 %v3357, 1.0
    %v3359 = vrcp.pop %v3358
    %v3360 = vmul.f32 1.0, %v3359
    %v3361 = vxor.u32 %v3352, 2147483648
    %v3362 = vmul.f32 %v3361, 1.442695
    %v3363 = vpow.pop %v3362
    %v3364 = vadd.f32 %v3363, 1.0
    %v3365 = vrcp.pop %v3364
    %v3366 = vmul.f32 1.0, %v3365
    %v3367 = vtanh.pop %v3353
    %v3368 = vxor.u32 %v3354, 2147483648
    %v3369 = vmul.f32 %v3368, 1.442695
    %v3370 = vpow.pop %v3369
    %v3371 = vadd.f32 %v3370, 1.0
    %v3372 = vrcp.pop %v3371
    %v3373 = vmul.f32 1.0, %v3372
    %v3374 = vmul.f32 %v3366, %v3137
    %v3375 = vmul.f32 %v3360, %v3367
    %v3376 = vadd.f32 %v3374, %v3375
    %v3377 = vtanh.pop %v3376
    %v3378 = vmul.f32 %v3373, %v3377
    %3379 = vst [vmem:[#allocation4 + $0x8] sm:$0xff] %v3378
    %v3380 = vld [vmem:[#allocation2 + $0x40] sm:$0xff]
    %v3381 = vld [vmem:[#allocation2 + $0x48] sm:$0xff]
    %v3382 = vld [vmem:[#allocation2 + $0x50] sm:$0xff]
    %v3383 = vld [vmem:[#allocation2 + $0x58] sm:$0xff]
    %v3384 = vld [vmem:[#allocation10] sm:$0xff]
    %v3385 = vld [vmem:[#allocation10 + $0x8] sm:$0xff]
    %v3386 = vld [vmem:[#allocation10 + $0x10] sm:$0xff]
    %v3387 = vld [vmem:[#allocation10 + $0x18] sm:$0xff]
    %v3388 = vld [vmem:[#allocation10 + $0x20] sm:$0xff]
    %v3389 = vld [vmem:[#allocation10 + $0x28] sm:$0xff]
    %v3390 = vld [vmem:[#allocation10 + $0x30] sm:$0xff]
    %v3391 = vld [vmem:[#allocation10 + $0x38] sm:$0xff]
    %v3392 = vld [vmem:[#allocation10 + $0x40] sm:$0xff]
    %v3393 = vld [vmem:[#allocation10 + $0x48] sm:$0xff]
    %v3394 = vld [vmem:[#allocation10 + $0x50] sm:$0xff]
    %v3395 = vld [vmem:[#allocation10 + $0x58] sm:$0xff]
    %v3396 = vld [vmem:[#allocation10 + $0x60] sm:$0xff]
    %v3397 = vld [vmem:[#allocation10 + $0x68] sm:$0xff]
    %v3398 = vld [vmem:[#allocation10 + $0x70] sm:$0xff]
    %v3399 = vld [vmem:[#allocation10 + $0x78] sm:$0xff]
    %v3400 = vld [vmem:[#allocation10 + $0x80] sm:$0xff]
    %v3401 = vld [vmem:[#allocation10 + $0x88] sm:$0xff]
    %v3402 = vld [vmem:[#allocation10 + $0x90] sm:$0xff]
    %v3403 = vld [vmem:[#allocation10 + $0x98] sm:$0xff]
    %v3404 = vld [vmem:[#allocation10 + $0xa0] sm:$0xff]
    %v3405 = vld [vmem:[#allocation10 + $0xa8] sm:$0xff]
    %v3406 = vld [vmem:[#allocation10 + $0xb0] sm:$0xff]
    %v3407 = vld [vmem:[#allocation10 + $0xb8] sm:$0xff]
    %v3408 = vld [vmem:[#allocation10 + $0xc0] sm:$0xff]
    %v3409 = vld [vmem:[#allocation10 + $0xc8] sm:$0xff]
    %v3410 = vld [vmem:[#allocation10 + $0xd0] sm:$0xff]
    %v3411 = vld [vmem:[#allocation10 + $0xd8] sm:$0xff]
    %v3412 = vld [vmem:[#allocation10 + $0xe0] sm:$0xff]
    %v3413 = vld [vmem:[#allocation10 + $0xe8] sm:$0xff]
    %v3414 = vld [vmem:[#allocation10 + $0xf0] sm:$0xff]
    %v3415 = vld [vmem:[#allocation10 + $0xf8] sm:$0xff]
    %v3416 = vld [vmem:[#allocation10 + $0x100] sm:$0xff]
    %v3417 = vld [vmem:[#allocation10 + $0x108] sm:$0xff]
    %v3418 = vld [vmem:[#allocation10 + $0x110] sm:$0xff]
    %v3419 = vld [vmem:[#allocation10 + $0x118] sm:$0xff]
    %v3420 = vld [vmem:[#allocation10 + $0x120] sm:$0xff]
    %v3421 = vld [vmem:[#allocation10 + $0x128] sm:$0xff]
    %v3422 = vld [vmem:[#allocation10 + $0x130] sm:$0xff]
    %v3423 = vld [vmem:[#allocation10 + $0x138] sm:$0xff]
    %v3424 = vld [vmem:[#allocation10 + $0x140] sm:$0xff]
    %v3425 = vld [vmem:[#allocation10 + $0x148] sm:$0xff]
    %v3426 = vld [vmem:[#allocation10 + $0x150] sm:$0xff]
    %v3427 = vld [vmem:[#allocation10 + $0x158] sm:$0xff]
    %v3428 = vld [vmem:[#allocation10 + $0x160] sm:$0xff]
    %v3429 = vld [vmem:[#allocation10 + $0x168] sm:$0xff]
    %v3430 = vld [vmem:[#allocation10 + $0x170] sm:$0xff]
    %v3431 = vld [vmem:[#allocation10 + $0x178] sm:$0xff]
    %v3432 = vld [vmem:[#allocation10 + $0x180] sm:$0xff]
    %v3433 = vld [vmem:[#allocation10 + $0x188] sm:$0xff]
    %v3434 = vld [vmem:[#allocation10 + $0x190] sm:$0xff]
    %v3435 = vld [vmem:[#allocation10 + $0x198] sm:$0xff]
    %v3436 = vld [vmem:[#allocation10 + $0x1a0] sm:$0xff]
    %v3437 = vld [vmem:[#allocation10 + $0x1a8] sm:$0xff]
    %v3438 = vld [vmem:[#allocation10 + $0x1b0] sm:$0xff]
    %v3439 = vld [vmem:[#allocation10 + $0x1b8] sm:$0xff]
    %v3440 = vld [vmem:[#allocation10 + $0x1c0] sm:$0xff]
    %v3441 = vld [vmem:[#allocation10 + $0x1c8] sm:$0xff]
    %v3442 = vld [vmem:[#allocation10 + $0x1d0] sm:$0xff]
    %v3443 = vld [vmem:[#allocation10 + $0x1d8] sm:$0xff]
    %v3444 = vld [vmem:[#allocation10 + $0x1e0] sm:$0xff]
    %v3445 = vld [vmem:[#allocation10 + $0x1e8] sm:$0xff]
    %v3446 = vld [vmem:[#allocation10 + $0x1f0] sm:$0xff]
    %v3447 = vld [vmem:[#allocation10 + $0x1f8] sm:$0xff]
    %3448 = vmatprep.subr.mxu0 %v3385
    %3449 = vmatpush1.msra.mxu0 %v3384
    %3450 = vmatprep.subr.mxu0 %v3389
    %3451 = vmatpush1.msra.mxu0 %v3388
    %3452 = vmatprep.subr.mxu0 %v3393
    %3453 = vmatpush1.msra.mxu0 %v3392
    %3454 = vmatprep.subr.mxu0 %v3397
    %3455 = vmatpush1.msra.mxu0 %v3396
    %3456 = vmatprep.subr.mxu0 %v3401
    %3457 = vmatpush1.msra.mxu0 %v3400
    %3458 = vmatprep.subr.mxu0 %v3405
    %3459 = vmatpush1.msra.mxu0 %v3404
    %3460 = vmatprep.subr.mxu0 %v3409
    %3461 = vmatpush1.msra.mxu0 %v3408
    %3462 = vmatprep.subr.mxu0 %v3413
    %3463 = vmatpush1.msra.mxu0 %v3412
    %3464 = vmatprep.subr.mxu0 %v3417
    %3465 = vmatpush1.msra.mxu0 %v3416
    %3466 = vmatprep.subr.mxu0 %v3421
    %3467 = vmatpush1.msra.mxu0 %v3420
    %3468 = vmatprep.subr.mxu0 %v3425
    %3469 = vmatpush1.msra.mxu0 %v3424
    %3470 = vmatprep.subr.mxu0 %v3429
    %3471 = vmatpush1.msra.mxu0 %v3428
    %3472 = vmatprep.subr.mxu0 %v3433
    %3473 = vmatpush1.msra.mxu0 %v3432
    %3474 = vmatprep.subr.mxu0 %v3437
    %3475 = vmatpush1.msra.mxu0 %v3436
    %3476 = vmatprep.subr.mxu0 %v3441
    %3477 = vmatpush1.msra.mxu0 %v3440
    %3478 = vmatprep.subr.mxu0 %v3445
    %3479 = vmatpush1.msra.mxu0 %v3444
    %3480 = vmatprep.subr.mxu0 0.0
    %3481 = vmatpush1.msra.mxu0 0.0
    %3482 = vmatprep.subr.mxu0 0.0
    %3483 = vmatpush1.msra.mxu0 0.0
    %3484 = vmatprep.subr.mxu0 0.0
    %3485 = vmatpush1.msra.mxu0 0.0
    %3486 = vmatprep.subr.mxu0 0.0
    %3487 = vmatpush1.msra.mxu0 0.0
    %3488 = vmatprep.subr.mxu0 0.0
    %3489 = vmatpush1.msra.mxu0 0.0
    %3490 = vmatprep.subr.mxu0 0.0
    %3491 = vmatpush1.msra.mxu0 0.0
    %3492 = vmatprep.subr.mxu0 0.0
    %3493 = vmatpush1.msra.mxu0 0.0
    %3494 = vmatprep.subr.mxu0 0.0
    %3495 = vmatpush1.msra.mxu0 0.0
    %3496 = vmatprep.subr.mxu0 0.0
    %3497 = vmatpush1.msra.mxu0 0.0
    %3498 = vmatprep.subr.mxu0 0.0
    %3499 = vmatpush1.msra.mxu0 0.0
    %3500 = vmatprep.subr.mxu0 0.0
    %3501 = vmatpush1.msra.mxu0 0.0
    %3502 = vmatprep.subr.mxu0 0.0
    %3503 = vmatpush1.msra.mxu0 0.0
    %3504 = vmatprep.subr.mxu0 0.0
    %3505 = vmatpush1.msra.mxu0 0.0
    %3506 = vmatprep.subr.mxu0 0.0
    %3507 = vmatpush1.msra.mxu0 0.0
    %3508 = vmatprep.subr.mxu0 0.0
    %3509 = vmatpush1.msra.mxu0 0.0
    %3510 = vmatprep.subr.mxu0 0.0
    %3511 = vmatpush1.msra.mxu0 0.0
    %3512 = vmatprep.mubr.f32.mxu0 0.0
    %3513 = vmatmul.mubr.f32.gmra.mrb[0].mxu0 %v3378
    %v3514 = vpop.f32.mrb[0].mxu0
    %v3515 = vadd.f32 0.0, %v3514
    %v3516 = vpop.f32.mrb[0].mxu0
    %v3517 = vadd.f32 0.0, %v3516
    %3518 = vdwg.mxu0
    %3519 = vmatprep.subr.mxu0 %v3387
    %3520 = vmatpush1.msra.mxu0 %v3386
    %3521 = vmatprep.subr.mxu0 %v3391
    %3522 = vmatpush1.msra.mxu0 %v3390
    %3523 = vmatprep.subr.mxu0 %v3395
    %3524 = vmatpush1.msra.mxu0 %v3394
    %3525 = vmatprep.subr.mxu0 %v3399
    %3526 = vmatpush1.msra.mxu0 %v3398
    %3527 = vmatprep.subr.mxu0 %v3403
    %3528 = vmatpush1.msra.mxu0 %v3402
    %3529 = vmatprep.subr.mxu0 %v3407
    %3530 = vmatpush1.msra.mxu0 %v3406
    %3531 = vmatprep.subr.mxu0 %v3411
    %3532 = vmatpush1.msra.mxu0 %v3410
    %3533 = vmatprep.subr.mxu0 %v3415
    %3534 = vmatpush1.msra.mxu0 %v3414
    %3535 = vmatprep.subr.mxu0 %v3419
    %3536 = vmatpush1.msra.mxu0 %v3418
    %3537 = vmatprep.subr.mxu0 %v3423
    %3538 = vmatpush1.msra.mxu0 %v3422
    %3539 = vmatprep.subr.mxu0 %v3427
    %3540 = vmatpush1.msra.mxu0 %v3426
    %3541 = vmatprep.subr.mxu0 %v3431
    %3542 = vmatpush1.msra.mxu0 %v3430
    %3543 = vmatprep.subr.mxu0 %v3435
    %3544 = vmatpush1.msra.mxu0 %v3434
    %3545 = vmatprep.subr.mxu0 %v3439
    %3546 = vmatpush1.msra.mxu0 %v3438
    %3547 = vmatprep.subr.mxu0 %v3443
    %3548 = vmatpush1.msra.mxu0 %v3442
    %3549 = vmatprep.subr.mxu0 %v3447
    %3550 = vmatpush1.msra.mxu0 %v3446
    %3551 = vmatprep.subr.mxu0 0.0
    %3552 = vmatpush1.msra.mxu0 0.0
    %3553 = vmatprep.subr.mxu0 0.0
    %3554 = vmatpush1.msra.mxu0 0.0
    %3555 = vmatprep.subr.mxu0 0.0
    %3556 = vmatpush1.msra.mxu0 0.0
    %3557 = vmatprep.subr.mxu0 0.0
    %3558 = vmatpush1.msra.mxu0 0.0
    %3559 = vmatprep.subr.mxu0 0.0
    %3560 = vmatpush1.msra.mxu0 0.0
    %3561 = vmatprep.subr.mxu0 0.0
    %3562 = vmatpush1.msra.mxu0 0.0
    %3563 = vmatprep.subr.mxu0 0.0
    %3564 = vmatpush1.msra.mxu0 0.0
    %3565 = vmatprep.subr.mxu0 0.0
    %3566 = vmatpush1.msra.mxu0 0.0
    %3567 = vmatprep.subr.mxu0 0.0
    %3568 = vmatpush1.msra.mxu0 0.0
    %3569 = vmatprep.subr.mxu0 0.0
    %3570 = vmatpush1.msra.mxu0 0.0
    %3571 = vmatprep.subr.mxu0 0.0
    %3572 = vmatpush1.msra.mxu0 0.0
    %3573 = vmatprep.subr.mxu0 0.0
    %3574 = vmatpush1.msra.mxu0 0.0
    %3575 = vmatprep.subr.mxu0 0.0
    %3576 = vmatpush1.msra.mxu0 0.0
    %3577 = vmatprep.subr.mxu0 0.0
    %3578 = vmatpush1.msra.mxu0 0.0
    %3579 = vmatprep.subr.mxu0 0.0
    %3580 = vmatpush1.msra.mxu0 0.0
    %3581 = vmatprep.subr.mxu0 0.0
    %3582 = vmatpush1.msra.mxu0 0.0
    %3583 = vmatprep.mubr.f32.mxu0 0.0
    %3584 = vmatmul.mubr.f32.gmra.mrb[0].mxu0 %v3378
    %v3585 = vpop.f32.mrb[0].mxu0
    %v3586 = vadd.f32 0.0, %v3585
    %v3587 = vpop.f32.mrb[0].mxu0
    %v3588 = vadd.f32 0.0, %v3587
    %3589 = vdwg.mxu0
    %v3590 = vadd.f32 %v3380, %v3515
    %v3591 = vadd.f32 %v3381, %v3517
    %v3592 = vadd.f32 %v3382, %v3586
    %v3593 = vadd.f32 %v3383, %v3588
    %v3594 = vxor.u32 %v3590, 2147483648
    %v3595 = vmul.f32 %v3594, 1.442695
    %v3596 = vpow.pop %v3595
    %v3597 = vadd.f32 %v3596, 1.0
    %v3598 = vrcp.pop %v3597
    %v3599 = vmul.f32 1.0, %v3598
    %v3600 = vxor.u32 %v3591, 2147483648
    %v3601 = vmul.f32 %v3600, 1.442695
    %v3602 = vpow.pop %v3601
    %v3603 = vadd.f32 %v3602, 1.0
    %v3604 = vrcp.pop %v3603
    %v3605 = vmul.f32 1.0, %v3604
    %v3606 = vtanh.pop %v3592
    %v3607 = vxor.u32 %v3593, 2147483648
    %v3608 = vmul.f32 %v3607, 1.442695
    %v3609 = vpow.pop %v3608
    %v3610 = vadd.f32 %v3609, 1.0
    %v3611 = vrcp.pop %v3610
    %v3612 = vmul.f32 1.0, %v3611
    %v3613 = vmul.f32 %v3605, %v3376
    %v3614 = vmul.f32 %v3599, %v3606
    %v3615 = vadd.f32 %v3613, %v3614
    %v3616 = vtanh.pop %v3615
    %v3617 = vmul.f32 %v3612, %v3616
    %3618 = vst [vmem:[#allocation4 + $0x10] sm:$0xff] %v3617
    %v3619 = vld [vmem:[#allocation2 + $0x60] sm:$0xff]
    %v3620 = vld [vmem:[#allocation2 + $0x68] sm:$0xff]
    %v3621 = vld [vmem:[#allocation2 + $0x70] sm:$0xff]
    %v3622 = vld [vmem:[#allocation2 + $0x78] sm:$0xff]
    %v3623 = vld [vmem:[#allocation10] sm:$0xff]
    %v3624 = vld [vmem:[#allocation10 + $0x8] sm:$0xff]
    %v3625 = vld [vmem:[#allocation10 + $0x10] sm:$0xff]
    %v3626 = vld [vmem:[#allocation10 + $0x18] sm:$0xff]
    %v3627 = vld [vmem:[#allocation10 + $0x20] sm:$0xff]
    %v3628 = vld [vmem:[#allocation10 + $0x28] sm:$0xff]
    %v3629 = vld [vmem:[#allocation10 + $0x30] sm:$0xff]
    %v3630 = vld [vmem:[#allocation10 + $0x38] sm:$0xff]
    %v3631 = vld [vmem:[#allocation10 + $0x40] sm:$0xff]
    %v3632 = vld [vmem:[#allocation10 + $0x48] sm:$0xff]
    %v3633 = vld [vmem:[#allocation10 + $0x50] sm:$0xff]
    %v3634 = vld [vmem:[#allocation10 + $0x58] sm:$0xff]
    %v3635 = vld [vmem:[#allocation10 + $0x60] sm:$0xff]
    %v3636 = vld [vmem:[#allocation10 + $0x68] sm:$0xff]
    %v3637 = vld [vmem:[#allocation10 + $0x70] sm:$0xff]
    %v3638 = vld [vmem:[#allocation10 + $0x78] sm:$0xff]
    %v3639 = vld [vmem:[#allocation10 + $0x80] sm:$0xff]
    %v3640 = vld [vmem:[#allocation10 + $0x88] sm:$0xff]
    %v3641 = vld [vmem:[#allocation10 + $0x90] sm:$0xff]
    %v3642 = vld [vmem:[#allocation10 + $0x98] sm:$0xff]
    %v3643 = vld [vmem:[#allocation10 + $0xa0] sm:$0xff]
    %v3644 = vld [vmem:[#allocation10 + $0xa8] sm:$0xff]
    %v3645 = vld [vmem:[#allocation10 + $0xb0] sm:$0xff]
    %v3646 = vld [vmem:[#allocation10 + $0xb8] sm:$0xff]
    %v3647 = vld [vmem:[#allocation10 + $0xc0] sm:$0xff]
    %v3648 = vld [vmem:[#allocation10 + $0xc8] sm:$0xff]
    %v3649 = vld [vmem:[#allocation10 + $0xd0] sm:$0xff]
    %v3650 = vld [vmem:[#allocation10 + $0xd8] sm:$0xff]
    %v3651 = vld [vmem:[#allocation10 + $0xe0] sm:$0xff]
    %v3652 = vld [vmem:[#allocation10 + $0xe8] sm:$0xff]
    %v3653 = vld [vmem:[#allocation10 + $0xf0] sm:$0xff]
    %v3654 = vld [vmem:[#allocation10 + $0xf8] sm:$0xff]
    %v3655 = vld [vmem:[#allocation10 + $0x100] sm:$0xff]
    %v3656 = vld [vmem:[#allocation10 + $0x108] sm:$0xff]
    %v3657 = vld [vmem:[#allocation10 + $0x110] sm:$0xff]
    %v3658 = vld [vmem:[#allocation10 + $0x118] sm:$0xff]
    %v3659 = vld [vmem:[#allocation10 + $0x120] sm:$0xff]
    %v3660 = vld [vmem:[#allocation10 + $0x128] sm:$0xff]
    %v3661 = vld [vmem:[#allocation10 + $0x130] sm:$0xff]
    %v3662 = vld [vmem:[#allocation10 + $0x138] sm:$0xff]
    %v3663 = vld [vmem:[#allocation10 + $0x140] sm:$0xff]
    %v3664 = vld [vmem:[#allocation10 + $0x148] sm:$0xff]
    %v3665 = vld [vmem:[#allocation10 + $0x150] sm:$0xff]
    %v3666 = vld [vmem:[#allocation10 + $0x158] sm:$0xff]
    %v3667 = vld [vmem:[#allocation10 + $0x160] sm:$0xff]
    %v3668 = vld [vmem:[#allocation10 + $0x168] sm:$0xff]
    %v3669 = vld [vmem:[#allocation10 + $0x170] sm:$0xff]
    %v3670 = vld [vmem:[#allocation10 + $0x178] sm:$0xff]
    %v3671 = vld [vmem:[#allocation10 + $0x180] sm:$0xff]
    %v3672 = vld [vmem:[#allocation10 + $0x188] sm:$0xff]
    %v3673 = vld [vmem:[#allocation10 + $0x190] sm:$0xff]
    %v3674 = vld [vmem:[#allocation10 + $0x198] sm:$0xff]
    %v3675 = vld [vmem:[#allocation10 + $0x1a0] sm:$0xff]
    %v3676 = vld [vmem:[#allocation10 + $0x1a8] sm:$0xff]
    %v3677 = vld [vmem:[#allocation10 + $0x1b0] sm:$0xff]
    %v3678 = vld [vmem:[#allocation10 + $0x1b8] sm:$0xff]
    %v3679 = vld [vmem:[#allocation10 + $0x1c0] sm:$0xff]
    %v3680 = vld [vmem:[#allocation10 + $0x1c8] sm:$0xff]
    %v3681 = vld [vmem:[#allocation10 + $0x1d0] sm:$0xff]
    %v3682 = vld [vmem:[#allocation10 + $0x1d8] sm:$0xff]
    %v3683 = vld [vmem:[#allocation10 + $0x1e0] sm:$0xff]
    %v3684 = vld [vmem:[#allocation10 + $0x1e8] sm:$0xff]
    %v3685 = vld [vmem:[#allocation10 + $0x1f0] sm:$0xff]
    %v3686 = vld [vmem:[#allocation10 + $0x1f8] sm:$0xff]
    %3687 = vmatprep.subr.mxu0 %v3624
    %3688 = vmatpush1.msra.mxu0 %v3623
    %3689 = vmatprep.subr.mxu0 %v3628
    %3690 = vmatpush1.msra.mxu0 %v3627
    %3691 = vmatprep.subr.mxu0 %v3632
    %3692 = vmatpush1.msra.mxu0 %v3631
    %3693 = vmatprep.subr.mxu0 %v3636
    %3694 = vmatpush1.msra.mxu0 %v3635
    %3695 = vmatprep.subr.mxu0 %v3640
    %3696 = vmatpush1.msra.mxu0 %v3639
    %3697 = vmatprep.subr.mxu0 %v3644
    %3698 = vmatpush1.msra.mxu0 %v3643
    %3699 = vmatprep.subr.mxu0 %v3648
    %3700 = vmatpush1.msra.mxu0 %v3647
    %3701 = vmatprep.subr.mxu0 %v3652
    %3702 = vmatpush1.msra.mxu0 %v3651
    %3703 = vmatprep.subr.mxu0 %v3656
    %3704 = vmatpush1.msra.mxu0 %v3655
    %3705 = vmatprep.subr.mxu0 %v3660
    %3706 = vmatpush1.msra.mxu0 %v3659
    %3707 = vmatprep.subr.mxu0 %v3664
    %3708 = vmatpush1.msra.mxu0 %v3663
    %3709 = vmatprep.subr.mxu0 %v3668
    %3710 = vmatpush1.msra.mxu0 %v3667
    %3711 = vmatprep.subr.mxu0 %v3672
    %3712 = vmatpush1.msra.mxu0 %v3671
    %3713 = vmatprep.subr.mxu0 %v3676
    %3714 = vmatpush1.msra.mxu0 %v3675
    %3715 = vmatprep.subr.mxu0 %v3680
    %3716 = vmatpush1.msra.mxu0 %v3679
    %3717 = vmatprep.subr.mxu0 %v3684
    %3718 = vmatpush1.msra.mxu0 %v3683
    %3719 = vmatprep.subr.mxu0 0.0
    %3720 = vmatpush1.msra.mxu0 0.0
    %3721 = vmatprep.subr.mxu0 0.0
    %3722 = vmatpush1.msra.mxu0 0.0
    %3723 = vmatprep.subr.mxu0 0.0
    %3724 = vmatpush1.msra.mxu0 0.0
    %3725 = vmatprep.subr.mxu0 0.0
    %3726 = vmatpush1.msra.mxu0 0.0
    %3727 = vmatprep.subr.mxu0 0.0
    %3728 = vmatpush1.msra.mxu0 0.0
    %3729 = vmatprep.subr.mxu0 0.0
    %3730 = vmatpush1.msra.mxu0 0.0
    %3731 = vmatprep.subr.mxu0 0.0
    %3732 = vmatpush1.msra.mxu0 0.0
    %3733 = vmatprep.subr.mxu0 0.0
    %3734 = vmatpush1.msra.mxu0 0.0
    %3735 = vmatprep.subr.mxu0 0.0
    %3736 = vmatpush1.msra.mxu0 0.0
    %3737 = vmatprep.subr.mxu0 0.0
    %3738 = vmatpush1.msra.mxu0 0.0
    %3739 = vmatprep.subr.mxu0 0.0
    %3740 = vmatpush1.msra.mxu0 0.0
    %3741 = vmatprep.subr.mxu0 0.0
    %3742 = vmatpush1.msra.mxu0 0.0
    %3743 = vmatprep.subr.mxu0 0.0
    %3744 = vmatpush1.msra.mxu0 0.0
    %3745 = vmatprep.subr.mxu0 0.0
    %3746 = vmatpush1.msra.mxu0 0.0
    %3747 = vmatprep.subr.mxu0 0.0
    %3748 = vmatpush1.msra.mxu0 0.0
    %3749 = vmatprep.subr.mxu0 0.0
    %3750 = vmatpush1.msra.mxu0 0.0
    %3751 = vmatprep.mubr.f32.mxu0 0.0
    %3752 = vmatmul.mubr.f32.gmra.mrb[0].mxu0 %v3617
    %v3753 = vpop.f32.mrb[0].mxu0
    %v3754 = vadd.f32 0.0, %v3753
    %v3755 = vpop.f32.mrb[0].mxu0
    %v3756 = vadd.f32 0.0, %v3755
    %3757 = vdwg.mxu0
    %3758 = vmatprep.subr.mxu0 %v3626
    %3759 = vmatpush1.msra.mxu0 %v3625
    %3760 = vmatprep.subr.mxu0 %v3630
    %3761 = vmatpush1.msra.mxu0 %v3629
    %3762 = vmatprep.subr.mxu0 %v3634
    %3763 = vmatpush1.msra.mxu0 %v3633
    %3764 = vmatprep.subr.mxu0 %v3638
    %3765 = vmatpush1.msra.mxu0 %v3637
    %3766 = vmatprep.subr.mxu0 %v3642
    %3767 = vmatpush1.msra.mxu0 %v3641
    %3768 = vmatprep.subr.mxu0 %v3646
    %3769 = vmatpush1.msra.mxu0 %v3645
    %3770 = vmatprep.subr.mxu0 %v3650
    %3771 = vmatpush1.msra.mxu0 %v3649
    %3772 = vmatprep.subr.mxu0 %v3654
    %3773 = vmatpush1.msra.mxu0 %v3653
    %3774 = vmatprep.subr.mxu0 %v3658
    %3775 = vmatpush1.msra.mxu0 %v3657
    %3776 = vmatprep.subr.mxu0 %v3662
    %3777 = vmatpush1.msra.mxu0 %v3661
    %3778 = vmatprep.subr.mxu0 %v3666
    %3779 = vmatpush1.msra.mxu0 %v3665
    %3780 = vmatprep.subr.mxu0 %v3670
    %3781 = vmatpush1.msra.mxu0 %v3669
    %3782 = vmatprep.subr.mxu0 %v3674
    %3783 = vmatpush1.msra.mxu0 %v3673
    %3784 = vmatprep.subr.mxu0 %v3678
    %3785 = vmatpush1.msra.mxu0 %v3677
    %3786 = vmatprep.subr.mxu0 %v3682
    %3787 = vmatpush1.msra.mxu0 %v3681
    %3788 = vmatprep.subr.mxu0 %v3686
    %3789 = vmatpush1.msra.mxu0 %v3685
    %3790 = vmatprep.subr.mxu0 0.0
    %3791 = vmatpush1.msra.mxu0 0.0
    %3792 = vmatprep.subr.mxu0 0.0
    %3793 = vmatpush1.msra.mxu0 0.0
    %3794 = vmatprep.subr.mxu0 0.0
    %3795 = vmatpush1.msra.mxu0 0.0
    %3796 = vmatprep.subr.mxu0 0.0
    %3797 = vmatpush1.msra.mxu0 0.0
    %3798 = vmatprep.subr.mxu0 0.0
    %3799 = vmatpush1.msra.mxu0 0.0
    %3800 = vmatprep.subr.mxu0 0.0
    %3801 = vmatpush1.msra.mxu0 0.0
    %3802 = vmatprep.subr.mxu0 0.0
    %3803 = vmatpush1.msra.mxu0 0.0
    %3804 = vmatprep.subr.mxu0 0.0
    %3805 = vmatpush1.msra.mxu0 0.0
    %3806 = vmatprep.subr.mxu0 0.0
    %3807 = vmatpush1.msra.mxu0 0.0
    %3808 = vmatprep.subr.mxu0 0.0
    %3809 = vmatpush1.msra.mxu0 0.0
    %3810 = vmatprep.subr.mxu0 0.0
    %3811 = vmatpush1.msra.mxu0 0.0
    %3812 = vmatprep.subr.mxu0 0.0
    %3813 = vmatpush1.msra.mxu0 0.0
    %3814 = vmatprep.subr.mxu0 0.0
    %3815 = vmatpush1.msra.mxu0 0.0
    %3816 = vmatprep.subr.mxu0 0.0
    %3817 = vmatpush1.msra.mxu0 0.0
    %3818 = vmatprep.subr.mxu0 0.0
    %3819 = vmatpush1.msra.mxu0 0.0
    %3820 = vmatprep.subr.mxu0 0.0
    %3821 = vmatpush1.msra.mxu0 0.0
    %3822 = vmatprep.mubr.f32.mxu0 0.0
    %3823 = vmatmul.mubr.f32.gmra.mrb[0].mxu0 %v3617
    %v3824 = vpop.f32.mrb[0].mxu0
    %v3825 = vadd.f32 0.0, %v3824
    %v3826 = vpop.f32.mrb[0].mxu0
    %v3827 = vadd.f32 0.0, %v3826
    %3828 = vdwg.mxu0
    %v3829 = vadd.f32 %v3619, %v3754
    %v3830 = vadd.f32 %v3620, %v3756
    %v3831 = vadd.f32 %v3621, %v3825
    %v3832 = vadd.f32 %v3622, %v3827
    %v3833 = vxor.u32 %v3829, 2147483648
    %v3834 = vmul.f32 %v3833, 1.442695
    %v3835 = vpow.pop %v3834
    %v3836 = vadd.f32 %v3835, 1.0
    %v3837 = vrcp.pop %v3836
    %v3838 = vmul.f32 1.0, %v3837
    %v3839 = vxor.u32 %v3830, 2147483648
    %v3840 = vmul.f32 %v3839, 1.442695
    %v3841 = vpow.pop %v3840
    %v3842 = vadd.f32 %v3841, 1.0
    %v3843 = vrcp.pop %v3842
    %v3844 = vmul.f32 1.0, %v3843
    %v3845 = vtanh.pop %v3831
    %v3846 = vxor.u32 %v3832, 2147483648
    %v3847 = vmul.f32 %v3846, 1.442695
    %v3848 = vpow.pop %v3847
    %v3849 = vadd.f32 %v3848, 1.0
    %v3850 = vrcp.pop %v3849
    %v3851 = vmul.f32 1.0, %v3850
    %v3852 = vmul.f32 %v3844, %v3615
    %v3853 = vmul.f32 %v3838, %v3845
    %v3854 = vadd.f32 %v3852, %v3853
    %v3855 = vtanh.pop %v3854
    %v3856 = vmul.f32 %v3851, %v3855
    %3857 = vst [vmem:[#allocation4 + $0x18] sm:$0xff] %v3856
    %v3858 = vld [vmem:[#allocation2 + $0x80] sm:$0xff]
    %v3859 = vld [vmem:[#allocation2 + $0x88] sm:$0xff]
    %v3860 = vld [vmem:[#allocation2 + $0x90] sm:$0xff]
    %v3861 = vld [vmem:[#allocation2 + $0x98] sm:$0xff]
    %v3862 = vld [vmem:[#allocation10] sm:$0xff]
    %v3863 = vld [vmem:[#allocation10 + $0x8] sm:$0xff]
    %v3864 = vld [vmem:[#allocation10 + $0x10] sm:$0xff]
    %v3865 = vld [vmem:[#allocation10 + $0x18] sm:$0xff]
    %v3866 = vld [vmem:[#allocation10 + $0x20] sm:$0xff]
    %v3867 = vld [vmem:[#allocation10 + $0x28] sm:$0xff]
    %v3868 = vld [vmem:[#allocation10 + $0x30] sm:$0xff]
    %v3869 = vld [vmem:[#allocation10 + $0x38] sm:$0xff]
    %v3870 = vld [vmem:[#allocation10 + $0x40] sm:$0xff]
    %v3871 = vld [vmem:[#allocation10 + $0x48] sm:$0xff]
    %v3872 = vld [vmem:[#allocation10 + $0x50] sm:$0xff]
    %v3873 = vld [vmem:[#allocation10 + $0x58] sm:$0xff]
    %v3874 = vld [vmem:[#allocation10 + $0x60] sm:$0xff]
    %v3875 = vld [vmem:[#allocation10 + $0x68] sm:$0xff]
    %v3876 = vld [vmem:[#allocation10 + $0x70] sm:$0xff]
    %v3877 = vld [vmem:[#allocation10 + $0x78] sm:$0xff]
    %v3878 = vld [vmem:[#allocation10 + $0x80] sm:$0xff]
    %v3879 = vld [vmem:[#allocation10 + $0x88] sm:$0xff]
    %v3880 = vld [vmem:[#allocation10 + $0x90] sm:$0xff]
    %v3881 = vld [vmem:[#allocation10 + $0x98] sm:$0xff]
    %v3882 = vld [vmem:[#allocation10 + $0xa0] sm:$0xff]
    %v3883 = vld [vmem:[#allocation10 + $0xa8] sm:$0xff]
    %v3884 = vld [vmem:[#allocation10 + $0xb0] sm:$0xff]
    %v3885 = vld [vmem:[#allocation10 + $0xb8] sm:$0xff]
    %v3886 = vld [vmem:[#allocation10 + $0xc0] sm:$0xff]
    %v3887 = vld [vmem:[#allocation10 + $0xc8] sm:$0xff]
    %v3888 = vld [vmem:[#allocation10 + $0xd0] sm:$0xff]
    %v3889 = vld [vmem:[#allocation10 + $0xd8] sm:$0xff]
    %v3890 = vld [vmem:[#allocation10 + $0xe0] sm:$0xff]
    %v3891 = vld [vmem:[#allocation10 + $0xe8] sm:$0xff]
    %v3892 = vld [vmem:[#allocation10 + $0xf0] sm:$0xff]
    %v3893 = vld [vmem:[#allocation10 + $0xf8] sm:$0xff]
    %v3894 = vld [vmem:[#allocation10 + $0x100] sm:$0xff]
    %v3895 = vld [vmem:[#allocation10 + $0x108] sm:$0xff]
    %v3896 = vld [vmem:[#allocation10 + $0x110] sm:$0xff]
    %v3897 = vld [vmem:[#allocation10 + $0x118] sm:$0xff]
    %v3898 = vld [vmem:[#allocation10 + $0x120] sm:$0xff]
    %v3899 = vld [vmem:[#allocation10 + $0x128] sm:$0xff]
    %v3900 = vld [vmem:[#allocation10 + $0x130] sm:$0xff]
    %v3901 = vld [vmem:[#allocation10 + $0x138] sm:$0xff]
    %v3902 = vld [vmem:[#allocation10 + $0x140] sm:$0xff]
    %v3903 = vld [vmem:[#allocation10 + $0x148] sm:$0xff]
    %v3904 = vld [vmem:[#allocation10 + $0x150] sm:$0xff]
    %v3905 = vld [vmem:[#allocation10 + $0x158] sm:$0xff]
    %v3906 = vld [vmem:[#allocation10 + $0x160] sm:$0xff]
    %v3907 = vld [vmem:[#allocation10 + $0x168] sm:$0xff]
    %v3908 = vld [vmem:[#allocation10 + $0x170] sm:$0xff]
    %v3909 = vld [vmem:[#allocation10 + $0x178] sm:$0xff]
    %v3910 = vld [vmem:[#allocation10 + $0x180] sm:$0xff]
    %v3911 = vld [vmem:[#allocation10 + $0x188] sm:$0xff]
    %v3912 = vld [vmem:[#allocation10 + $0x190] sm:$0xff]
    %v3913 = vld [vmem:[#allocation10 + $0x198] sm:$0xff]
    %v3914 = vld [vmem:[#allocation10 + $0x1a0] sm:$0xff]
    %v3915 = vld [vmem:[#allocation10 + $0x1a8] sm:$0xff]
    %v3916 = vld [vmem:[#allocation10 + $0x1b0] sm:$0xff]
    %v3917 = vld [vmem:[#allocation10 + $0x1b8] sm:$0xff]
    %v3918 = vld [vmem:[#allocation10 + $0x1c0] sm:$0xff]
    %v3919 = vld [vmem:[#allocation10 + $0x1c8] sm:$0xff]
    %v3920 = vld [vmem:[#allocation10 + $0x1d0] sm:$0xff]
    %v3921 = vld [vmem:[#allocation10 + $0x1d8] sm:$0xff]
    %v3922 = vld [vmem:[#allocation10 + $0x1e0] sm:$0xff]
    %v3923 = vld [vmem:[#allocation10 + $0x1e8] sm:$0xff]
    %v3924 = vld [vmem:[#allocation10 + $0x1f0] sm:$0xff]
    %v3925 = vld [vmem:[#allocation10 + $0x1f8] sm:$0xff]
    %3926 = vmatprep.subr.mxu0 %v3863
    %3927 = vmatpush1.msra.mxu0 %v3862
    %3928 = vmatprep.subr.mxu0 %v3867
    %3929 = vmatpush1.msra.mxu0 %v3866
    %3930 = vmatprep.subr.mxu0 %v3871
    %3931 = vmatpush1.msra.mxu0 %v3870
    %3932 = vmatprep.subr.mxu0 %v3875
    %3933 = vmatpush1.msra.mxu0 %v3874
    %3934 = vmatprep.subr.mxu0 %v3879
    %3935 = vmatpush1.msra.mxu0 %v3878
    %3936 = vmatprep.subr.mxu0 %v3883
    %3937 = vmatpush1.msra.mxu0 %v3882
    %3938 = vmatprep.subr.mxu0 %v3887
    %3939 = vmatpush1.msra.mxu0 %v3886
    %3940 = vmatprep.subr.mxu0 %v3891
    %3941 = vmatpush1.msra.mxu0 %v3890
    %3942 = vmatprep.subr.mxu0 %v3895
    %3943 = vmatpush1.msra.mxu0 %v3894
    %3944 = vmatprep.subr.mxu0 %v3899
    %3945 = vmatpush1.msra.mxu0 %v3898
    %3946 = vmatprep.subr.mxu0 %v3903
    %3947 = vmatpush1.msra.mxu0 %v3902
    %3948 = vmatprep.subr.mxu0 %v3907
    %3949 = vmatpush1.msra.mxu0 %v3906
    %3950 = vmatprep.subr.mxu0 %v3911
    %3951 = vmatpush1.msra.mxu0 %v3910
    %3952 = vmatprep.subr.mxu0 %v3915
    %3953 = vmatpush1.msra.mxu0 %v3914
    %3954 = vmatprep.subr.mxu0 %v3919
    %3955 = vmatpush1.msra.mxu0 %v3918
    %3956 = vmatprep.subr.mxu0 %v3923
    %3957 = vmatpush1.msra.mxu0 %v3922
    %3958 = vmatprep.subr.mxu0 0.0
    %3959 = vmatpush1.msra.mxu0 0.0
    %3960 = vmatprep.subr.mxu0 0.0
    %3961 = vmatpush1.msra.mxu0 0.0
    %3962 = vmatprep.subr.mxu0 0.0
    %3963 = vmatpush1.msra.mxu0 0.0
    %3964 = vmatprep.subr.mxu0 0.0
    %3965 = vmatpush1.msra.mxu0 0.0
    %3966 = vmatprep.subr.mxu0 0.0
    %3967 = vmatpush1.msra.mxu0 0.0
    %3968 = vmatprep.subr.mxu0 0.0
    %3969 = vmatpush1.msra.mxu0 0.0
    %3970 = vmatprep.subr.mxu0 0.0
    %3971 = vmatpush1.msra.mxu0 0.0
    %3972 = vmatprep.subr.mxu0 0.0
    %3973 = vmatpush1.msra.mxu0 0.0
    %3974 = vmatprep.subr.mxu0 0.0
    %3975 = vmatpush1.msra.mxu0 0.0
    %3976 = vmatprep.subr.mxu0 0.0
    %3977 = vmatpush1.msra.mxu0 0.0
    %3978 = vmatprep.subr.mxu0 0.0
    %3979 = vmatpush1.msra.mxu0 0.0
    %3980 = vmatprep.subr.mxu0 0.0
    %3981 = vmatpush1.msra.mxu0 0.0
    %3982 = vmatprep.subr.mxu0 0.0
    %3983 = vmatpush1.msra.mxu0 0.0
    %3984 = vmatprep.subr.mxu0 0.0
    %3985 = vmatpush1.msra.mxu0 0.0
    %3986 = vmatprep.subr.mxu0 0.0
    %3987 = vmatpush1.msra.mxu0 0.0
    %3988 = vmatprep.subr.mxu0 0.0
    %3989 = vmatpush1.msra.mxu0 0.0
    %3990 = vmatprep.mubr.f32.mxu0 0.0
    %3991 = vmatmul.mubr.f32.gmra.mrb[0].mxu0 %v3856
    %v3992 = vpop.f32.mrb[0].mxu0
    %v3993 = vadd.f32 0.0, %v3992
    %v3994 = vpop.f32.mrb[0].mxu0
    %v3995 = vadd.f32 0.0, %v3994
    %3996 = vdwg.mxu0
    %3997 = vmatprep.subr.mxu0 %v3865
    %3998 = vmatpush1.msra.mxu0 %v3864
    %3999 = vmatprep.subr.mxu0 %v3869
    %4000 = vmatpush1.msra.mxu0 %v3868
    %4001 = vmatprep.subr.mxu0 %v3873
    %4002 = vmatpush1.msra.mxu0 %v3872
    %4003 = vmatprep.subr.mxu0 %v3877
    %4004 = vmatpush1.msra.mxu0 %v3876
    %4005 = vmatprep.subr.mxu0 %v3881
    %4006 = vmatpush1.msra.mxu0 %v3880
    %4007 = vmatprep.subr.mxu0 %v3885
    %4008 = vmatpush1.msra.mxu0 %v3884
    %4009 = vmatprep.subr.mxu0 %v3889
    %4010 = vmatpush1.msra.mxu0 %v3888
    %4011 = vmatprep.subr.mxu0 %v3893
    %4012 = vmatpush1.msra.mxu0 %v3892
    %4013 = vmatprep.subr.mxu0 %v3897
    %4014 = vmatpush1.msra.mxu0 %v3896
    %4015 = vmatprep.subr.mxu0 %v3901
    %4016 = vmatpush1.msra.mxu0 %v3900
    %4017 = vmatprep.subr.mxu0 %v3905
    %4018 = vmatpush1.msra.mxu0 %v3904
    %4019 = vmatprep.subr.mxu0 %v3909
    %4020 = vmatpush1.msra.mxu0 %v3908
    %4021 = vmatprep.subr.mxu0 %v3913
    %4022 = vmatpush1.msra.mxu0 %v3912
    %4023 = vmatprep.subr.mxu0 %v3917
    %4024 = vmatpush1.msra.mxu0 %v3916
    %4025 = vmatprep.subr.mxu0 %v3921
    %4026 = vmatpush1.msra.mxu0 %v3920
    %4027 = vmatprep.subr.mxu0 %v3925
    %4028 = vmatpush1.msra.mxu0 %v3924
    %4029 = vmatprep.subr.mxu0 0.0
    %4030 = vmatpush1.msra.mxu0 0.0
    %4031 = vmatprep.subr.mxu0 0.0
    %4032 = vmatpush1.msra.mxu0 0.0
    %4033 = vmatprep.subr.mxu0 0.0
    %4034 = vmatpush1.msra.mxu0 0.0
    %4035 = vmatprep.subr.mxu0 0.0
    %4036 = vmatpush1.msra.mxu0 0.0
    %4037 = vmatprep.subr.mxu0 0.0
    %4038 = vmatpush1.msra.mxu0 0.0
    %4039 = vmatprep.subr.mxu0 0.0
    %4040 = vmatpush1.msra.mxu0 0.0
    %4041 = vmatprep.subr.mxu0 0.0
    %4042 = vmatpush1.msra.mxu0 0.0
    %4043 = vmatprep.subr.mxu0 0.0
    %4044 = vmatpush1.msra.mxu0 0.0
    %4045 = vmatprep.subr.mxu0 0.0
    %4046 = vmatpush1.msra.mxu0 0.0
    %4047 = vmatprep.subr.mxu0 0.0
    %4048 = vmatpush1.msra.mxu0 0.0
    %4049 = vmatprep.subr.mxu0 0.0
    %4050 = vmatpush1.msra.mxu0 0.0
    %4051 = vmatprep.subr.mxu0 0.0
    %4052 = vmatpush1.msra.mxu0 0.0
    %4053 = vmatprep.subr.mxu0 0.0
    %4054 = vmatpush1.msra.mxu0 0.0
    %4055 = vmatprep.subr.mxu0 0.0
    %4056 = vmatpush1.msra.mxu0 0.0
    %4057 = vmatprep.subr.mxu0 0.0
    %4058 = vmatpush1.msra.mxu0 0.0
    %4059 = vmatprep.subr.mxu0 0.0
    %4060 = vmatpush1.msra.mxu0 0.0
    %4061 = vmatprep.mubr.f32.mxu0 0.0
    %4062 = vmatmul.mubr.f32.gmra.mrb[0].mxu0 %v3856
    %v4063 = vpop.f32.mrb[0].mxu0
    %v4064 = vadd.f32 0.0, %v4063
    %v4065 = vpop.f32.mrb[0].mxu0
    %v4066 = vadd.f32 0.0, %v4065
    %4067 = vdwg.mxu0
    %v4068 = vadd.f32 %v3858, %v3993
    %v4069 = vadd.f32 %v3859, %v3995
    %v4070 = vadd.f32 %v3860, %v4064
    %v4071 = vadd.f32 %v3861, %v4066
    %v4072 = vxor.u32 %v4068, 2147483648
    %v4073 = vmul.f32 %v4072, 1.442695
    %v4074 = vpow.pop %v4073
    %v4075 = vadd.f32 %v4074, 1.0
    %v4076 = vrcp.pop %v4075
    %v4077 = vmul.f32 1.0, %v4076
    %v4078 = vxor.u32 %v4069, 2147483648
    %v4079 = vmul.f32 %v4078, 1.442695
    %v4080 = vpow.pop %v4079
    %v4081 = vadd.f32 %v4080, 1.0
    %v4082 = vrcp.pop %v4081
    %v4083 = vmul.f32 1.0, %v4082
    %v4084 = vtanh.pop %v4070
    %v4085 = vxor.u32 %v4071, 2147483648
    %v4086 = vmul.f32 %v4085, 1.442695
    %v4087 = vpow.pop %v4086
    %v4088 = vadd.f32 %v4087, 1.0
    %v4089 = vrcp.pop %v4088
    %v4090 = vmul.f32 1.0, %v4089
    %v4091 = vmul.f32 %v4083, %v3854
    %v4092 = vmul.f32 %v4077, %v4084
    %v4093 = vadd.f32 %v4091, %v4092
    %v4094 = vtanh.pop %v4093
    %v4095 = vmul.f32 %v4090, %v4094
    %4096 = vst [vmem:[#allocation4 + $0x20] sm:$0xff] %v4095
    %v4097 = vld [vmem:[#allocation2 + $0xa0] sm:$0xff]
    %v4098 = vld [vmem:[#allocation2 + $0xa8] sm:$0xff]
    %v4099 = vld [vmem:[#allocation2 + $0xb0] sm:$0xff]
    %v4100 = vld [vmem:[#allocation2 + $0xb8] sm:$0xff]
    %v4101 = vld [vmem:[#allocation10] sm:$0xff]
    %v4102 = vld [vmem:[#allocation10 + $0x8] sm:$0xff]
    %v4103 = vld [vmem:[#allocation10 + $0x10] sm:$0xff]
    %v4104 = vld [vmem:[#allocation10 + $0x18] sm:$0xff]
    %v4105 = vld [vmem:[#allocation10 + $0x20] sm:$0xff]
    %v4106 = vld [vmem:[#allocation10 + $0x28] sm:$0xff]
    %v4107 = vld [vmem:[#allocation10 + $0x30] sm:$0xff]
    %v4108 = vld [vmem:[#allocation10 + $0x38] sm:$0xff]
    %v4109 = vld [vmem:[#allocation10 + $0x40] sm:$0xff]
    %v4110 = vld [vmem:[#allocation10 + $0x48] sm:$0xff]
    %v4111 = vld [vmem:[#allocation10 + $0x50] sm:$0xff]
    %v4112 = vld [vmem:[#allocation10 + $0x58] sm:$0xff]
    %v4113 = vld [vmem:[#allocation10 + $0x60] sm:$0xff]
    %v4114 = vld [vmem:[#allocation10 + $0x68] sm:$0xff]
    %v4115 = vld [vmem:[#allocation10 + $0x70] sm:$0xff]
    %v4116 = vld [vmem:[#allocation10 + $0x78] sm:$0xff]
    %v4117 = vld [vmem:[#allocation10 + $0x80] sm:$0xff]
    %v4118 = vld [vmem:[#allocation10 + $0x88] sm:$0xff]
    %v4119 = vld [vmem:[#allocation10 + $0x90] sm:$0xff]
    %v4120 = vld [vmem:[#allocation10 + $0x98] sm:$0xff]
    %v4121 = vld [vmem:[#allocation10 + $0xa0] sm:$0xff]
    %v4122 = vld [vmem:[#allocation10 + $0xa8] sm:$0xff]
    %v4123 = vld [vmem:[#allocation10 + $0xb0] sm:$0xff]
    %v4124 = vld [vmem:[#allocation10 + $0xb8] sm:$0xff]
    %v4125 = vld [vmem:[#allocation10 + $0xc0] sm:$0xff]
    %v4126 = vld [vmem:[#allocation10 + $0xc8] sm:$0xff]
    %v4127 = vld [vmem:[#allocation10 + $0xd0] sm:$0xff]
    %v4128 = vld [vmem:[#allocation10 + $0xd8] sm:$0xff]
    %v4129 = vld [vmem:[#allocation10 + $0xe0] sm:$0xff]
    %v4130 = vld [vmem:[#allocation10 + $0xe8] sm:$0xff]
    %v4131 = vld [vmem:[#allocation10 + $0xf0] sm:$0xff]
    %v4132 = vld [vmem:[#allocation10 + $0xf8] sm:$0xff]
    %v4133 = vld [vmem:[#allocation10 + $0x100] sm:$0xff]
    %v4134 = vld [vmem:[#allocation10 + $0x108] sm:$0xff]
    %v4135 = vld [vmem:[#allocation10 + $0x110] sm:$0xff]
    %v4136 = vld [vmem:[#allocation10 + $0x118] sm:$0xff]
    %v4137 = vld [vmem:[#allocation10 + $0x120] sm:$0xff]
    %v4138 = vld [vmem:[#allocation10 + $0x128] sm:$0xff]
    %v4139 = vld [vmem:[#allocation10 + $0x130] sm:$0xff]
    %v4140 = vld [vmem:[#allocation10 + $0x138] sm:$0xff]
    %v4141 = vld [vmem:[#allocation10 + $0x140] sm:$0xff]
    %v4142 = vld [vmem:[#allocation10 + $0x148] sm:$0xff]
    %v4143 = vld [vmem:[#allocation10 + $0x150] sm:$0xff]
    %v4144 = vld [vmem:[#allocation10 + $0x158] sm:$0xff]
    %v4145 = vld [vmem:[#allocation10 + $0x160] sm:$0xff]
    %v4146 = vld [vmem:[#allocation10 + $0x168] sm:$0xff]
    %v4147 = vld [vmem:[#allocation10 + $0x170] sm:$0xff]
    %v4148 = vld [vmem:[#allocation10 + $0x178] sm:$0xff]
    %v4149 = vld [vmem:[#allocation10 + $0x180] sm:$0xff]
    %v4150 = vld [vmem:[#allocation10 + $0x188] sm:$0xff]
    %v4151 = vld [vmem:[#allocation10 + $0x190] sm:$0xff]
    %v4152 = vld [vmem:[#allocation10 + $0x198] sm:$0xff]
    %v4153 = vld [vmem:[#allocation10 + $0x1a0] sm:$0xff]
    %v4154 = vld [vmem:[#allocation10 + $0x1a8] sm:$0xff]
    %v4155 = vld [vmem:[#allocation10 + $0x1b0] sm:$0xff]
    %v4156 = vld [vmem:[#allocation10 + $0x1b8] sm:$0xff]
    %v4157 = vld [vmem:[#allocation10 + $0x1c0] sm:$0xff]
    %v4158 = vld [vmem:[#allocation10 + $0x1c8] sm:$0xff]
    %v4159 = vld [vmem:[#allocation10 + $0x1d0] sm:$0xff]
    %v4160 = vld [vmem:[#allocation10 + $0x1d8] sm:$0xff]
    %v4161 = vld [vmem:[#allocation10 + $0x1e0] sm:$0xff]
    %v4162 = vld [vmem:[#allocation10 + $0x1e8] sm:$0xff]
    %v4163 = vld [vmem:[#allocation10 + $0x1f0] sm:$0xff]
    %v4164 = vld [vmem:[#allocation10 + $0x1f8] sm:$0xff]
    %4165 = vmatprep.subr.mxu0 %v4102
    %4166 = vmatpush1.msra.mxu0 %v4101
    %4167 = vmatprep.subr.mxu0 %v4106
    %4168 = vmatpush1.msra.mxu0 %v4105
    %4169 = vmatprep.subr.mxu0 %v4110
    %4170 = vmatpush1.msra.mxu0 %v4109
    %4171 = vmatprep.subr.mxu0 %v4114
    %4172 = vmatpush1.msra.mxu0 %v4113
    %4173 = vmatprep.subr.mxu0 %v4118
    %4174 = vmatpush1.msra.mxu0 %v4117
    %4175 = vmatprep.subr.mxu0 %v4122
    %4176 = vmatpush1.msra.mxu0 %v4121
    %4177 = vmatprep.subr.mxu0 %v4126
    %4178 = vmatpush1.msra.mxu0 %v4125
    %4179 = vmatprep.subr.mxu0 %v4130
    %4180 = vmatpush1.msra.mxu0 %v4129
    %4181 = vmatprep.subr.mxu0 %v4134
    %4182 = vmatpush1.msra.mxu0 %v4133
    %4183 = vmatprep.subr.mxu0 %v4138
    %4184 = vmatpush1.msra.mxu0 %v4137
    %4185 = vmatprep.subr.mxu0 %v4142
    %4186 = vmatpush1.msra.mxu0 %v4141
    %4187 = vmatprep.subr.mxu0 %v4146
    %4188 = vmatpush1.msra.mxu0 %v4145
    %4189 = vmatprep.subr.mxu0 %v4150
    %4190 = vmatpush1.msra.mxu0 %v4149
    %4191 = vmatprep.subr.mxu0 %v4154
    %4192 = vmatpush1.msra.mxu0 %v4153
    %4193 = vmatprep.subr.mxu0 %v4158
    %4194 = vmatpush1.msra.mxu0 %v4157
    %4195 = vmatprep.subr.mxu0 %v4162
    %4196 = vmatpush1.msra.mxu0 %v4161
    %4197 = vmatprep.subr.mxu0 0.0
    %4198 = vmatpush1.msra.mxu0 0.0
    %4199 = vmatprep.subr.mxu0 0.0
    %4200 = vmatpush1.msra.mxu0 0.0
    %4201 = vmatprep.subr.mxu0 0.0
    %4202 = vmatpush1.msra.mxu0 0.0
    %4203 = vmatprep.subr.mxu0 0.0
    %4204 = vmatpush1.msra.mxu0 0.0
    %4205 = vmatprep.subr.mxu0 0.0
    %4206 = vmatpush1.msra.mxu0 0.0
    %4207 = vmatprep.subr.mxu0 0.0
    %4208 = vmatpush1.msra.mxu0 0.0
    %4209 = vmatprep.subr.mxu0 0.0
    %4210 = vmatpush1.msra.mxu0 0.0
    %4211 = vmatprep.subr.mxu0 0.0
    %4212 = vmatpush1.msra.mxu0 0.0
    %4213 = vmatprep.subr.mxu0 0.0
    %4214 = vmatpush1.msra.mxu0 0.0
    %4215 = vmatprep.subr.mxu0 0.0
    %4216 = vmatpush1.msra.mxu0 0.0
    %4217 = vmatprep.subr.mxu0 0.0
    %4218 = vmatpush1.msra.mxu0 0.0
    %4219 = vmatprep.subr.mxu0 0.0
    %4220 = vmatpush1.msra.mxu0 0.0
    %4221 = vmatprep.subr.mxu0 0.0
    %4222 = vmatpush1.msra.mxu0 0.0
    %4223 = vmatprep.subr.mxu0 0.0
    %4224 = vmatpush1.msra.mxu0 0.0
    %4225 = vmatprep.subr.mxu0 0.0
    %4226 = vmatpush1.msra.mxu0 0.0
    %4227 = vmatprep.subr.mxu0 0.0
    %4228 = vmatpush1.msra.mxu0 0.0
    %4229 = vmatprep.mubr.f32.mxu0 0.0
    %4230 = vmatmul.mubr.f32.gmra.mrb[0].mxu0 %v4095
    %v4231 = vpop.f32.mrb[0].mxu0
    %v4232 = vadd.f32 0.0, %v4231
    %v4233 = vpop.f32.mrb[0].mxu0
    %v4234 = vadd.f32 0.0, %v4233
    %4235 = vdwg.mxu0
    %4236 = vmatprep.subr.mxu0 %v4104
    %4237 = vmatpush1.msra.mxu0 %v4103
    %4238 = vmatprep.subr.mxu0 %v4108
    %4239 = vmatpush1.msra.mxu0 %v4107
    %4240 = vmatprep.subr.mxu0 %v4112
    %4241 = vmatpush1.msra.mxu0 %v4111
    %4242 = vmatprep.subr.mxu0 %v4116
    %4243 = vmatpush1.msra.mxu0 %v4115
    %4244 = vmatprep.subr.mxu0 %v4120
    %4245 = vmatpush1.msra.mxu0 %v4119
    %4246 = vmatprep.subr.mxu0 %v4124
    %4247 = vmatpush1.msra.mxu0 %v4123
    %4248 = vmatprep.subr.mxu0 %v4128
    %4249 = vmatpush1.msra.mxu0 %v4127
    %4250 = vmatprep.subr.mxu0 %v4132
    %4251 = vmatpush1.msra.mxu0 %v4131
    %4252 = vmatprep.subr.mxu0 %v4136
    %4253 = vmatpush1.msra.mxu0 %v4135
    %4254 = vmatprep.subr.mxu0 %v4140
    %4255 = vmatpush1.msra.mxu0 %v4139
    %4256 = vmatprep.subr.mxu0 %v4144
    %4257 = vmatpush1.msra.mxu0 %v4143
    %4258 = vmatprep.subr.mxu0 %v4148
    %4259 = vmatpush1.msra.mxu0 %v4147
    %4260 = vmatprep.subr.mxu0 %v4152
    %4261 = vmatpush1.msra.mxu0 %v4151
    %4262 = vmatprep.subr.mxu0 %v4156
    %4263 = vmatpush1.msra.mxu0 %v4155
    %4264 = vmatprep.subr.mxu0 %v4160
    %4265 = vmatpush1.msra.mxu0 %v4159
    %4266 = vmatprep.subr.mxu0 %v4164
    %4267 = vmatpush1.msra.mxu0 %v4163
    %4268 = vmatprep.subr.mxu0 0.0
    %4269 = vmatpush1.msra.mxu0 0.0
    %4270 = vmatprep.subr.mxu0 0.0
    %4271 = vmatpush1.msra.mxu0 0.0
    %4272 = vmatprep.subr.mxu0 0.0
    %4273 = vmatpush1.msra.mxu0 0.0
    %4274 = vmatprep.subr.mxu0 0.0
    %4275 = vmatpush1.msra.mxu0 0.0
    %4276 = vmatprep.subr.mxu0 0.0
    %4277 = vmatpush1.msra.mxu0 0.0
    %4278 = vmatprep.subr.mxu0 0.0
    %4279 = vmatpush1.msra.mxu0 0.0
    %4280 = vmatprep.subr.mxu0 0.0
    %4281 = vmatpush1.msra.mxu0 0.0
    %4282 = vmatprep.subr.mxu0 0.0
    %4283 = vmatpush1.msra.mxu0 0.0
    %4284 = vmatprep.subr.mxu0 0.0
    %4285 = vmatpush1.msra.mxu0 0.0
    %4286 = vmatprep.subr.mxu0 0.0
    %4287 = vmatpush1.msra.mxu0 0.0
    %4288 = vmatprep.subr.mxu0 0.0
    %4289 = vmatpush1.msra.mxu0 0.0
    %4290 = vmatprep.subr.mxu0 0.0
    %4291 = vmatpush1.msra.mxu0 0.0
    %4292 = vmatprep.subr.mxu0 0.0
    %4293 = vmatpush1.msra.mxu0 0.0
    %4294 = vmatprep.subr.mxu0 0.0
    %4295 = vmatpush1.msra.mxu0 0.0
    %4296 = vmatprep.subr.mxu0 0.0
    %4297 = vmatpush1.msra.mxu0 0.0
    %4298 = vmatprep.subr.mxu0 0.0
    %4299 = vmatpush1.msra.mxu0 0.0
    %4300 = vmatprep.mubr.f32.mxu0 0.0
    %4301 = vmatmul.mubr.f32.gmra.mrb[0].mxu0 %v4095
    %v4302 = vpop.f32.mrb[0].mxu0
    %v4303 = vadd.f32 0.0, %v4302
    %v4304 = vpop.f32.mrb[0].mxu0
    %v4305 = vadd.f32 0.0, %v4304
    %4306 = vdwg.mxu0
    %v4307 = vadd.f32 %v4097, %v4232
    %v4308 = vadd.f32 %v4098, %v4234
    %v4309 = vadd.f32 %v4099, %v4303
    %v4310 = vadd.f32 %v4100, %v4305
    %v4311 = vxor.u32 %v4307, 2147483648
    %v4312 = vmul.f32 %v4311, 1.442695
    %v4313 = vpow.pop %v4312
    %v4314 = vadd.f32 %v4313, 1.0
    %v4315 = vrcp.pop %v4314
    %v4316 = vmul.f32 1.0, %v4315
    %v4317 = vxor.u32 %v4308, 2147483648
    %v4318 = vmul.f32 %v4317, 1.442695
    %v4319 = vpow.pop %v4318
    %v4320 = vadd.f32 %v4319, 1.0
    %v4321 = vrcp.pop %v4320
    %v4322 = vmul.f32 1.0, %v4321
    %v4323 = vtanh.pop %v4309
    %v4324 = vxor.u32 %v4310, 2147483648
    %v4325 = vmul.f32 %v4324, 1.442695
    %v4326 = vpow.pop %v4325
    %v4327 = vadd.f32 %v4326, 1.0
    %v4328 = vrcp.pop %v4327
    %v4329 = vmul.f32 1.0, %v4328
    %v4330 = vmul.f32 %v4322, %v4093
    %v4331 = vmul.f32 %v4316, %v4323
    %v4332 = vadd.f32 %v4330, %v4331
    %v4333 = vtanh.pop %v4332
    %v4334 = vmul.f32 %v4329, %v4333
    %4335 = vst [vmem:[#allocation4 + $0x28] sm:$0xff] %v4334
    %v4336 = vld [vmem:[#allocation2 + $0xc0] sm:$0xff]
    %v4337 = vld [vmem:[#allocation2 + $0xc8] sm:$0xff]
    %v4338 = vld [vmem:[#allocation2 + $0xd0] sm:$0xff]
    %v4339 = vld [vmem:[#allocation2 + $0xd8] sm:$0xff]
    %v4340 = vld [vmem:[#allocation10] sm:$0xff]
    %v4341 = vld [vmem:[#allocation10 + $0x8] sm:$0xff]
    %v4342 = vld [vmem:[#allocation10 + $0x10] sm:$0xff]
    %v4343 = vld [vmem:[#allocation10 + $0x18] sm:$0xff]
    %v4344 = vld [vmem:[#allocation10 + $0x20] sm:$0xff]
    %v4345 = vld [vmem:[#allocation10 + $0x28] sm:$0xff]
    %v4346 = vld [vmem:[#allocation10 + $0x30] sm:$0xff]
    %v4347 = vld [vmem:[#allocation10 + $0x38] sm:$0xff]
    %v4348 = vld [vmem:[#allocation10 + $0x40] sm:$0xff]
    %v4349 = vld [vmem:[#allocation10 + $0x48] sm:$0xff]
    %v4350 = vld [vmem:[#allocation10 + $0x50] sm:$0xff]
    %v4351 = vld [vmem:[#allocation10 + $0x58] sm:$0xff]
    %v4352 = vld [vmem:[#allocation10 + $0x60] sm:$0xff]
    %v4353 = vld [vmem:[#allocation10 + $0x68] sm:$0xff]
    %v4354 = vld [vmem:[#allocation10 + $0x70] sm:$0xff]
    %v4355 = vld [vmem:[#allocation10 + $0x78] sm:$0xff]
    %v4356 = vld [vmem:[#allocation10 + $0x80] sm:$0xff]
    %v4357 = vld [vmem:[#allocation10 + $0x88] sm:$0xff]
    %v4358 = vld [vmem:[#allocation10 + $0x90] sm:$0xff]
    %v4359 = vld [vmem:[#allocation10 + $0x98] sm:$0xff]
    %v4360 = vld [vmem:[#allocation10 + $0xa0] sm:$0xff]
    %v4361 = vld [vmem:[#allocation10 + $0xa8] sm:$0xff]
    %v4362 = vld [vmem:[#allocation10 + $0xb0] sm:$0xff]
    %v4363 = vld [vmem:[#allocation10 + $0xb8] sm:$0xff]
    %v4364 = vld [vmem:[#allocation10 + $0xc0] sm:$0xff]
    %v4365 = vld [vmem:[#allocation10 + $0xc8] sm:$0xff]
    %v4366 = vld [vmem:[#allocation10 + $0xd0] sm:$0xff]
    %v4367 = vld [vmem:[#allocation10 + $0xd8] sm:$0xff]
    %v4368 = vld [vmem:[#allocation10 + $0xe0] sm:$0xff]
    %v4369 = vld [vmem:[#allocation10 + $0xe8] sm:$0xff]
    %v4370 = vld [vmem:[#allocation10 + $0xf0] sm:$0xff]
    %v4371 = vld [vmem:[#allocation10 + $0xf8] sm:$0xff]
    %v4372 = vld [vmem:[#allocation10 + $0x100] sm:$0xff]
    %v4373 = vld [vmem:[#allocation10 + $0x108] sm:$0xff]
    %v4374 = vld [vmem:[#allocation10 + $0x110] sm:$0xff]
    %v4375 = vld [vmem:[#allocation10 + $0x118] sm:$0xff]
    %v4376 = vld [vmem:[#allocation10 + $0x120] sm:$0xff]
    %v4377 = vld [vmem:[#allocation10 + $0x128] sm:$0xff]
    %v4378 = vld [vmem:[#allocation10 + $0x130] sm:$0xff]
    %v4379 = vld [vmem:[#allocation10 + $0x138] sm:$0xff]
    %v4380 = vld [vmem:[#allocation10 + $0x140] sm:$0xff]
    %v4381 = vld [vmem:[#allocation10 + $0x148] sm:$0xff]
    %v4382 = vld [vmem:[#allocation10 + $0x150] sm:$0xff]
    %v4383 = vld [vmem:[#allocation10 + $0x158] sm:$0xff]
    %v4384 = vld [vmem:[#allocation10 + $0x160] sm:$0xff]
    %v4385 = vld [vmem:[#allocation10 + $0x168] sm:$0xff]
    %v4386 = vld [vmem:[#allocation10 + $0x170] sm:$0xff]
    %v4387 = vld [vmem:[#allocation10 + $0x178] sm:$0xff]
    %v4388 = vld [vmem:[#allocation10 + $0x180] sm:$0xff]
    %v4389 = vld [vmem:[#allocation10 + $0x188] sm:$0xff]
    %v4390 = vld [vmem:[#allocation10 + $0x190] sm:$0xff]
    %v4391 = vld [vmem:[#allocation10 + $0x198] sm:$0xff]
    %v4392 = vld [vmem:[#allocation10 + $0x1a0] sm:$0xff]
    %v4393 = vld [vmem:[#allocation10 + $0x1a8] sm:$0xff]
    %v4394 = vld [vmem:[#allocation10 + $0x1b0] sm:$0xff]
    %v4395 = vld [vmem:[#allocation10 + $0x1b8] sm:$0xff]
    %v4396 = vld [vmem:[#allocation10 + $0x1c0] sm:$0xff]
    %v4397 = vld [vmem:[#allocation10 + $0x1c8] sm:$0xff]
    %v4398 = vld [vmem:[#allocation10 + $0x1d0] sm:$0xff]
    %v4399 = vld [vmem:[#allocation10 + $0x1d8] sm:$0xff]
    %v4400 = vld [vmem:[#allocation10 + $0x1e0] sm:$0xff]
    %v4401 = vld [vmem:[#allocation10 + $0x1e8] sm:$0xff]
    %v4402 = vld [vmem:[#allocation10 + $0x1f0] sm:$0xff]
    %v4403 = vld [vmem:[#allocation10 + $0x1f8] sm:$0xff]
    %4404 = vmatprep.subr.mxu0 %v4341
    %4405 = vmatpush1.msra.mxu0 %v4340
    %4406 = vmatprep.subr.mxu0 %v4345
    %4407 = vmatpush1.msra.mxu0 %v4344
    %4408 = vmatprep.subr.mxu0 %v4349
    %4409 = vmatpush1.msra.mxu0 %v4348
    %4410 = vmatprep.subr.mxu0 %v4353
    %4411 = vmatpush1.msra.mxu0 %v4352
    %4412 = vmatprep.subr.mxu0 %v4357
    %4413 = vmatpush1.msra.mxu0 %v4356
    %4414 = vmatprep.subr.mxu0 %v4361
    %4415 = vmatpush1.msra.mxu0 %v4360
    %4416 = vmatprep.subr.mxu0 %v4365
    %4417 = vmatpush1.msra.mxu0 %v4364
    %4418 = vmatprep.subr.mxu0 %v4369
    %4419 = vmatpush1.msra.mxu0 %v4368
    %4420 = vmatprep.subr.mxu0 %v4373
    %4421 = vmatpush1.msra.mxu0 %v4372
    %4422 = vmatprep.subr.mxu0 %v4377
    %4423 = vmatpush1.msra.mxu0 %v4376
    %4424 = vmatprep.subr.mxu0 %v4381
    %4425 = vmatpush1.msra.mxu0 %v4380
    %4426 = vmatprep.subr.mxu0 %v4385
    %4427 = vmatpush1.msra.mxu0 %v4384
    %4428 = vmatprep.subr.mxu0 %v4389
    %4429 = vmatpush1.msra.mxu0 %v4388
    %4430 = vmatprep.subr.mxu0 %v4393
    %4431 = vmatpush1.msra.mxu0 %v4392
    %4432 = vmatprep.subr.mxu0 %v4397
    %4433 = vmatpush1.msra.mxu0 %v4396
    %4434 = vmatprep.subr.mxu0 %v4401
    %4435 = vmatpush1.msra.mxu0 %v4400
    %4436 = vmatprep.subr.mxu0 0.0
    %4437 = vmatpush1.msra.mxu0 0.0
    %4438 = vmatprep.subr.mxu0 0.0
    %4439 = vmatpush1.msra.mxu0 0.0
    %4440 = vmatprep.subr.mxu0 0.0
    %4441 = vmatpush1.msra.mxu0 0.0
    %4442 = vmatprep.subr.mxu0 0.0
    %4443 = vmatpush1.msra.mxu0 0.0
    %4444 = vmatprep.subr.mxu0 0.0
    %4445 = vmatpush1.msra.mxu0 0.0
    %4446 = vmatprep.subr.mxu0 0.0
    %4447 = vmatpush1.msra.mxu0 0.0
    %4448 = vmatprep.subr.mxu0 0.0
    %4449 = vmatpush1.msra.mxu0 0.0
    %4450 = vmatprep.subr.mxu0 0.0
    %4451 = vmatpush1.msra.mxu0 0.0
    %4452 = vmatprep.subr.mxu0 0.0
    %4453 = vmatpush1.msra.mxu0 0.0
    %4454 = vmatprep.subr.mxu0 0.0
    %4455 = vmatpush1.msra.mxu0 0.0
    %4456 = vmatprep.subr.mxu0 0.0
    %4457 = vmatpush1.msra.mxu0 0.0
    %4458 = vmatprep.subr.mxu0 0.0
    %4459 = vmatpush1.msra.mxu0 0.0
    %4460 = vmatprep.subr.mxu0 0.0
    %4461 = vmatpush1.msra.mxu0 0.0
    %4462 = vmatprep.subr.mxu0 0.0
    %4463 = vmatpush1.msra.mxu0 0.0
    %4464 = vmatprep.subr.mxu0 0.0
    %4465 = vmatpush1.msra.mxu0 0.0
    %4466 = vmatprep.subr.mxu0 0.0
    %4467 = vmatpush1.msra.mxu0 0.0
    %4468 = vmatprep.mubr.f32.mxu0 0.0
    %4469 = vmatmul.mubr.f32.gmra.mrb[0].mxu0 %v4334
    %v4470 = vpop.f32.mrb[0].mxu0
    %v4471 = vadd.f32 0.0, %v4470
    %v4472 = vpop.f32.mrb[0].mxu0
    %v4473 = vadd.f32 0.0, %v4472
    %4474 = vdwg.mxu0
    %4475 = vmatprep.subr.mxu0 %v4343
    %4476 = vmatpush1.msra.mxu0 %v4342
    %4477 = vmatprep.subr.mxu0 %v4347
    %4478 = vmatpush1.msra.mxu0 %v4346
    %4479 = vmatprep.subr.mxu0 %v4351
    %4480 = vmatpush1.msra.mxu0 %v4350
    %4481 = vmatprep.subr.mxu0 %v4355
    %4482 = vmatpush1.msra.mxu0 %v4354
    %4483 = vmatprep.subr.mxu0 %v4359
    %4484 = vmatpush1.msra.mxu0 %v4358
    %4485 = vmatprep.subr.mxu0 %v4363
    %4486 = vmatpush1.msra.mxu0 %v4362
    %4487 = vmatprep.subr.mxu0 %v4367
    %4488 = vmatpush1.msra.mxu0 %v4366
    %4489 = vmatprep.subr.mxu0 %v4371
    %4490 = vmatpush1.msra.mxu0 %v4370
    %4491 = vmatprep.subr.mxu0 %v4375
    %4492 = vmatpush1.msra.mxu0 %v4374
    %4493 = vmatprep.subr.mxu0 %v4379
    %4494 = vmatpush1.msra.mxu0 %v4378
    %4495 = vmatprep.subr.mxu0 %v4383
    %4496 = vmatpush1.msra.mxu0 %v4382
    %4497 = vmatprep.subr.mxu0 %v4387
    %4498 = vmatpush1.msra.mxu0 %v4386
    %4499 = vmatprep.subr.mxu0 %v4391
    %4500 = vmatpush1.msra.mxu0 %v4390
    %4501 = vmatprep.subr.mxu0 %v4395
    %4502 = vmatpush1.msra.mxu0 %v4394
    %4503 = vmatprep.subr.mxu0 %v4399
    %4504 = vmatpush1.msra.mxu0 %v4398
    %4505 = vmatprep.subr.mxu0 %v4403
    %4506 = vmatpush1.msra.mxu0 %v4402
    %4507 = vmatprep.subr.mxu0 0.0
    %4508 = vmatpush1.msra.mxu0 0.0
    %4509 = vmatprep.subr.mxu0 0.0
    %4510 = vmatpush1.msra.mxu0 0.0
    %4511 = vmatprep.subr.mxu0 0.0
    %4512 = vmatpush1.msra.mxu0 0.0
    %4513 = vmatprep.subr.mxu0 0.0
    %4514 = vmatpush1.msra.mxu0 0.0
    %4515 = vmatprep.subr.mxu0 0.0
    %4516 = vmatpush1.msra.mxu0 0.0
    %4517 = vmatprep.subr.mxu0 0.0
    %4518 = vmatpush1.msra.mxu0 0.0
    %4519 = vmatprep.subr.mxu0 0.0
    %4520 = vmatpush1.msra.mxu0 0.0
    %4521 = vmatprep.subr.mxu0 0.0
    %4522 = vmatpush1.msra.mxu0 0.0
    %4523 = vmatprep.subr.mxu0 0.0
    %4524 = vmatpush1.msra.mxu0 0.0
    %4525 = vmatprep.subr.mxu0 0.0
    %4526 = vmatpush1.msra.mxu0 0.0
    %4527 = vmatprep.subr.mxu0 0.0
    %4528 = vmatpush1.msra.mxu0 0.0
    %4529 = vmatprep.subr.mxu0 0.0
    %4530 = vmatpush1.msra.mxu0 0.0
    %4531 = vmatprep.subr.mxu0 0.0
    %4532 = vmatpush1.msra.mxu0 0.0
    %4533 = vmatprep.subr.mxu0 0.0
    %4534 = vmatpush1.msra.mxu0 0.0
    %4535 = vmatprep.subr.mxu0 0.0
    %4536 = vmatpush1.msra.mxu0 0.0
    %4537 = vmatprep.subr.mxu0 0.0
    %4538 = vmatpush1.msra.mxu0 0.0
    %4539 = vmatprep.mubr.f32.mxu0 0.0
    %4540 = vmatmul.mubr.f32.gmra.mrb[0].mxu0 %v4334
    %v4541 = vpop.f32.mrb[0].mxu0
    %v4542 = vadd.f32 0.0, %v4541
    %v4543 = vpop.f32.mrb[0].mxu0
    %v4544 = vadd.f32 0.0, %v4543
    %4545 = vdwg.mxu0
    %v4546 = vadd.f32 %v4336, %v4471
    %v4547 = vadd.f32 %v4337, %v4473
    %v4548 = vadd.f32 %v4338, %v4542
    %v4549 = vadd.f32 %v4339, %v4544
    %v4550 = vxor.u32 %v4546, 2147483648
    %v4551 = vmul.f32 %v4550, 1.442695
    %v4552 = vpow.pop %v4551
    %v4553 = vadd.f32 %v4552, 1.0
    %v4554 = vrcp.pop %v4553
    %v4555 = vmul.f32 1.0, %v4554
    %v4556 = vxor.u32 %v4547, 2147483648
    %v4557 = vmul.f32 %v4556, 1.442695
    %v4558 = vpow.pop %v4557
    %v4559 = vadd.f32 %v4558, 1.0
    %v4560 = vrcp.pop %v4559
    %v4561 = vmul.f32 1.0, %v4560
    %v4562 = vtanh.pop %v4548
    %v4563 = vxor.u32 %v4549, 2147483648
    %v4564 = vmul.f32 %v4563, 1.442695
    %v4565 = vpow.pop %v4564
    %v4566 = vadd.f32 %v4565, 1.0
    %v4567 = vrcp.pop %v4566
    %v4568 = vmul.f32 1.0, %v4567
    %v4569 = vmul.f32 %v4561, %v4332
    %v4570 = vmul.f32 %v4555, %v4562
    %v4571 = vadd.f32 %v4569, %v4570
    %v4572 = vtanh.pop %v4571
    %v4573 = vmul.f32 %v4568, %v4572
    %4574 = vst [vmem:[#allocation4 + $0x30] sm:$0xff] %v4573
    %v4575 = vld [vmem:[#allocation2 + $0xe0] sm:$0xff]
    %v4576 = vld [vmem:[#allocation2 + $0xe8] sm:$0xff]
    %v4577 = vld [vmem:[#allocation2 + $0xf0] sm:$0xff]
    %v4578 = vld [vmem:[#allocation2 + $0xf8] sm:$0xff]
    %v4579 = vld [vmem:[#allocation10] sm:$0xff]
    %v4580 = vld [vmem:[#allocation10 + $0x8] sm:$0xff]
    %v4581 = vld [vmem:[#allocation10 + $0x10] sm:$0xff]
    %v4582 = vld [vmem:[#allocation10 + $0x18] sm:$0xff]
    %v4583 = vld [vmem:[#allocation10 + $0x20] sm:$0xff]
    %v4584 = vld [vmem:[#allocation10 + $0x28] sm:$0xff]
    %v4585 = vld [vmem:[#allocation10 + $0x30] sm:$0xff]
    %v4586 = vld [vmem:[#allocation10 + $0x38] sm:$0xff]
    %v4587 = vld [vmem:[#allocation10 + $0x40] sm:$0xff]
    %v4588 = vld [vmem:[#allocation10 + $0x48] sm:$0xff]
    %v4589 = vld [vmem:[#allocation10 + $0x50] sm:$0xff]
    %v4590 = vld [vmem:[#allocation10 + $0x58] sm:$0xff]
    %v4591 = vld [vmem:[#allocation10 + $0x60] sm:$0xff]
    %v4592 = vld [vmem:[#allocation10 + $0x68] sm:$0xff]
    %v4593 = vld [vmem:[#allocation10 + $0x70] sm:$0xff]
    %v4594 = vld [vmem:[#allocation10 + $0x78] sm:$0xff]
    %v4595 = vld [vmem:[#allocation10 + $0x80] sm:$0xff]
    %v4596 = vld [vmem:[#allocation10 + $0x88] sm:$0xff]
    %v4597 = vld [vmem:[#allocation10 + $0x90] sm:$0xff]
    %v4598 = vld [vmem:[#allocation10 + $0x98] sm:$0xff]
    %v4599 = vld [vmem:[#allocation10 + $0xa0] sm:$0xff]
    %v4600 = vld [vmem:[#allocation10 + $0xa8] sm:$0xff]
    %v4601 = vld [vmem:[#allocation10 + $0xb0] sm:$0xff]
    %v4602 = vld [vmem:[#allocation10 + $0xb8] sm:$0xff]
    %v4603 = vld [vmem:[#allocation10 + $0xc0] sm:$0xff]
    %v4604 = vld [vmem:[#allocation10 + $0xc8] sm:$0xff]
    %v4605 = vld [vmem:[#allocation10 + $0xd0] sm:$0xff]
    %v4606 = vld [vmem:[#allocation10 + $0xd8] sm:$0xff]
    %v4607 = vld [vmem:[#allocation10 + $0xe0] sm:$0xff]
    %v4608 = vld [vmem:[#allocation10 + $0xe8] sm:$0xff]
    %v4609 = vld [vmem:[#allocation10 + $0xf0] sm:$0xff]
    %v4610 = vld [vmem:[#allocation10 + $0xf8] sm:$0xff]
    %v4611 = vld [vmem:[#allocation10 + $0x100] sm:$0xff]
    %v4612 = vld [vmem:[#allocation10 + $0x108] sm:$0xff]
    %v4613 = vld [vmem:[#allocation10 + $0x110] sm:$0xff]
    %v4614 = vld [vmem:[#allocation10 + $0x118] sm:$0xff]
    %v4615 = vld [vmem:[#allocation10 + $0x120] sm:$0xff]
    %v4616 = vld [vmem:[#allocation10 + $0x128] sm:$0xff]
    %v4617 = vld [vmem:[#allocation10 + $0x130] sm:$0xff]
    %v4618 = vld [vmem:[#allocation10 + $0x138] sm:$0xff]
    %v4619 = vld [vmem:[#allocation10 + $0x140] sm:$0xff]
    %v4620 = vld [vmem:[#allocation10 + $0x148] sm:$0xff]
    %v4621 = vld [vmem:[#allocation10 + $0x150] sm:$0xff]
    %v4622 = vld [vmem:[#allocation10 + $0x158] sm:$0xff]
    %v4623 = vld [vmem:[#allocation10 + $0x160] sm:$0xff]
    %v4624 = vld [vmem:[#allocation10 + $0x168] sm:$0xff]
    %v4625 = vld [vmem:[#allocation10 + $0x170] sm:$0xff]
    %v4626 = vld [vmem:[#allocation10 + $0x178] sm:$0xff]
    %v4627 = vld [vmem:[#allocation10 + $0x180] sm:$0xff]
    %v4628 = vld [vmem:[#allocation10 + $0x188] sm:$0xff]
    %v4629 = vld [vmem:[#allocation10 + $0x190] sm:$0xff]
    %v4630 = vld [vmem:[#allocation10 + $0x198] sm:$0xff]
    %v4631 = vld [vmem:[#allocation10 + $0x1a0] sm:$0xff]
    %v4632 = vld [vmem:[#allocation10 + $0x1a8] sm:$0xff]
    %v4633 = vld [vmem:[#allocation10 + $0x1b0] sm:$0xff]
    %v4634 = vld [vmem:[#allocation10 + $0x1b8] sm:$0xff]
    %v4635 = vld [vmem:[#allocation10 + $0x1c0] sm:$0xff]
    %v4636 = vld [vmem:[#allocation10 + $0x1c8] sm:$0xff]
    %v4637 = vld [vmem:[#allocation10 + $0x1d0] sm:$0xff]
    %v4638 = vld [vmem:[#allocation10 + $0x1d8] sm:$0xff]
    %v4639 = vld [vmem:[#allocation10 + $0x1e0] sm:$0xff]
    %v4640 = vld [vmem:[#allocation10 + $0x1e8] sm:$0xff]
    %v4641 = vld [vmem:[#allocation10 + $0x1f0] sm:$0xff]
    %v4642 = vld [vmem:[#allocation10 + $0x1f8] sm:$0xff]
    %4643 = vmatprep.subr.mxu0 %v4580
    %4644 = vmatpush1.msra.mxu0 %v4579
    %4645 = vmatprep.subr.mxu0 %v4584
    %4646 = vmatpush1.msra.mxu0 %v4583
    %4647 = vmatprep.subr.mxu0 %v4588
    %4648 = vmatpush1.msra.mxu0 %v4587
    %4649 = vmatprep.subr.mxu0 %v4592
    %4650 = vmatpush1.msra.mxu0 %v4591
    %4651 = vmatprep.subr.mxu0 %v4596
    %4652 = vmatpush1.msra.mxu0 %v4595
    %4653 = vmatprep.subr.mxu0 %v4600
    %4654 = vmatpush1.msra.mxu0 %v4599
    %4655 = vmatprep.subr.mxu0 %v4604
    %4656 = vmatpush1.msra.mxu0 %v4603
    %4657 = vmatprep.subr.mxu0 %v4608
    %4658 = vmatpush1.msra.mxu0 %v4607
    %4659 = vmatprep.subr.mxu0 %v4612
    %4660 = vmatpush1.msra.mxu0 %v4611
    %4661 = vmatprep.subr.mxu0 %v4616
    %4662 = vmatpush1.msra.mxu0 %v4615
    %4663 = vmatprep.subr.mxu0 %v4620
    %4664 = vmatpush1.msra.mxu0 %v4619
    %4665 = vmatprep.subr.mxu0 %v4624
    %4666 = vmatpush1.msra.mxu0 %v4623
    %4667 = vmatprep.subr.mxu0 %v4628
    %4668 = vmatpush1.msra.mxu0 %v4627
    %4669 = vmatprep.subr.mxu0 %v4632
    %4670 = vmatpush1.msra.mxu0 %v4631
    %4671 = vmatprep.subr.mxu0 %v4636
    %4672 = vmatpush1.msra.mxu0 %v4635
    %4673 = vmatprep.subr.mxu0 %v4640
    %4674 = vmatpush1.msra.mxu0 %v4639
    %4675 = vmatprep.subr.mxu0 0.0
    %4676 = vmatpush1.msra.mxu0 0.0
    %4677 = vmatprep.subr.mxu0 0.0
    %4678 = vmatpush1.msra.mxu0 0.0
    %4679 = vmatprep.subr.mxu0 0.0
    %4680 = vmatpush1.msra.mxu0 0.0
    %4681 = vmatprep.subr.mxu0 0.0
    %4682 = vmatpush1.msra.mxu0 0.0
    %4683 = vmatprep.subr.mxu0 0.0
    %4684 = vmatpush1.msra.mxu0 0.0
    %4685 = vmatprep.subr.mxu0 0.0
    %4686 = vmatpush1.msra.mxu0 0.0
    %4687 = vmatprep.subr.mxu0 0.0
    %4688 = vmatpush1.msra.mxu0 0.0
    %4689 = vmatprep.subr.mxu0 0.0
    %4690 = vmatpush1.msra.mxu0 0.0
    %4691 = vmatprep.subr.mxu0 0.0
    %4692 = vmatpush1.msra.mxu0 0.0
    %4693 = vmatprep.subr.mxu0 0.0
    %4694 = vmatpush1.msra.mxu0 0.0
    %4695 = vmatprep.subr.mxu0 0.0
    %4696 = vmatpush1.msra.mxu0 0.0
    %4697 = vmatprep.subr.mxu0 0.0
    %4698 = vmatpush1.msra.mxu0 0.0
    %4699 = vmatprep.subr.mxu0 0.0
    %4700 = vmatpush1.msra.mxu0 0.0
    %4701 = vmatprep.subr.mxu0 0.0
    %4702 = vmatpush1.msra.mxu0 0.0
    %4703 = vmatprep.subr.mxu0 0.0
    %4704 = vmatpush1.msra.mxu0 0.0
    %4705 = vmatprep.subr.mxu0 0.0
    %4706 = vmatpush1.msra.mxu0 0.0
    %4707 = vmatprep.mubr.f32.mxu0 0.0
    %4708 = vmatmul.mubr.f32.gmra.mrb[0].mxu0 %v4573
    %v4709 = vpop.f32.mrb[0].mxu0
    %v4710 = vadd.f32 0.0, %v4709
    %v4711 = vpop.f32.mrb[0].mxu0
    %v4712 = vadd.f32 0.0, %v4711
    %4713 = vdwg.mxu0
    %4714 = vmatprep.subr.mxu0 %v4582
    %4715 = vmatpush1.msra.mxu0 %v4581
    %4716 = vmatprep.subr.mxu0 %v4586
    %4717 = vmatpush1.msra.mxu0 %v4585
    %4718 = vmatprep.subr.mxu0 %v4590
    %4719 = vmatpush1.msra.mxu0 %v4589
    %4720 = vmatprep.subr.mxu0 %v4594
    %4721 = vmatpush1.msra.mxu0 %v4593
    %4722 = vmatprep.subr.mxu0 %v4598
    %4723 = vmatpush1.msra.mxu0 %v4597
    %4724 = vmatprep.subr.mxu0 %v4602
    %4725 = vmatpush1.msra.mxu0 %v4601
    %4726 = vmatprep.subr.mxu0 %v4606
    %4727 = vmatpush1.msra.mxu0 %v4605
    %4728 = vmatprep.subr.mxu0 %v4610
    %4729 = vmatpush1.msra.mxu0 %v4609
    %4730 = vmatprep.subr.mxu0 %v4614
    %4731 = vmatpush1.msra.mxu0 %v4613
    %4732 = vmatprep.subr.mxu0 %v4618
    %4733 = vmatpush1.msra.mxu0 %v4617
    %4734 = vmatprep.subr.mxu0 %v4622
    %4735 = vmatpush1.msra.mxu0 %v4621
    %4736 = vmatprep.subr.mxu0 %v4626
    %4737 = vmatpush1.msra.mxu0 %v4625
    %4738 = vmatprep.subr.mxu0 %v4630
    %4739 = vmatpush1.msra.mxu0 %v4629
    %4740 = vmatprep.subr.mxu0 %v4634
    %4741 = vmatpush1.msra.mxu0 %v4633
    %4742 = vmatprep.subr.mxu0 %v4638
    %4743 = vmatpush1.msra.mxu0 %v4637
    %4744 = vmatprep.subr.mxu0 %v4642
    %4745 = vmatpush1.msra.mxu0 %v4641
    %4746 = vmatprep.subr.mxu0 0.0
    %4747 = vmatpush1.msra.mxu0 0.0
    %4748 = vmatprep.subr.mxu0 0.0
    %4749 = vmatpush1.msra.mxu0 0.0
    %4750 = vmatprep.subr.mxu0 0.0
    %4751 = vmatpush1.msra.mxu0 0.0
    %4752 = vmatprep.subr.mxu0 0.0
    %4753 = vmatpush1.msra.mxu0 0.0
    %4754 = vmatprep.subr.mxu0 0.0
    %4755 = vmatpush1.msra.mxu0 0.0
    %4756 = vmatprep.subr.mxu0 0.0
    %4757 = vmatpush1.msra.mxu0 0.0
    %4758 = vmatprep.subr.mxu0 0.0
    %4759 = vmatpush1.msra.mxu0 0.0
    %4760 = vmatprep.subr.mxu0 0.0
    %4761 = vmatpush1.msra.mxu0 0.0
    %4762 = vmatprep.subr.mxu0 0.0
    %4763 = vmatpush1.msra.mxu0 0.0
    %4764 = vmatprep.subr.mxu0 0.0
    %4765 = vmatpush1.msra.mxu0 0.0
    %4766 = vmatprep.subr.mxu0 0.0
    %4767 = vmatpush1.msra.mxu0 0.0
    %4768 = vmatprep.subr.mxu0 0.0
    %4769 = vmatpush1.msra.mxu0 0.0
    %4770 = vmatprep.subr.mxu0 0.0
    %4771 = vmatpush1.msra.mxu0 0.0
    %4772 = vmatprep.subr.mxu0 0.0
    %4773 = vmatpush1.msra.mxu0 0.0
    %4774 = vmatprep.subr.mxu0 0.0
    %4775 = vmatpush1.msra.mxu0 0.0
    %4776 = vmatprep.subr.mxu0 0.0
    %4777 = vmatpush1.msra.mxu0 0.0
    %4778 = vmatprep.mubr.f32.mxu0 0.0
    %4779 = vmatmul.mubr.f32.gmra.mrb[0].mxu0 %v4573
    %v4780 = vpop.f32.mrb[0].mxu0
    %v4781 = vadd.f32 0.0, %v4780
    %v4782 = vpop.f32.mrb[0].mxu0
    %v4783 = vadd.f32 0.0, %v4782
    %4784 = vdwg.mxu0
    %v4785 = vadd.f32 %v4575, %v4710
    %v4786 = vadd.f32 %v4576, %v4712
    %v4787 = vadd.f32 %v4577, %v4781
    %v4788 = vadd.f32 %v4578, %v4783
    %v4789 = vxor.u32 %v4785, 2147483648
    %v4790 = vmul.f32 %v4789, 1.442695
    %v4791 = vpow.pop %v4790
    %v4792 = vadd.f32 %v4791, 1.0
    %v4793 = vrcp.pop %v4792
    %v4794 = vmul.f32 1.0, %v4793
    %v4795 = vxor.u32 %v4786, 2147483648
    %v4796 = vmul.f32 %v4795, 1.442695
    %v4797 = vpow.pop %v4796
    %v4798 = vadd.f32 %v4797, 1.0
    %v4799 = vrcp.pop %v4798
    %v4800 = vmul.f32 1.0, %v4799
    %v4801 = vtanh.pop %v4787
    %v4802 = vxor.u32 %v4788, 2147483648
    %v4803 = vmul.f32 %v4802, 1.442695
    %v4804 = vpow.pop %v4803
    %v4805 = vadd.f32 %v4804, 1.0
    %v4806 = vrcp.pop %v4805
    %v4807 = vmul.f32 1.0, %v4806
    %v4808 = vmul.f32 %v4800, %v4571
    %v4809 = vmul.f32 %v4794, %v4801
    %v4810 = vadd.f32 %v4808, %v4809
    %v4811 = vtanh.pop %v4810
    %v4812 = vmul.f32 %v4807, %v4811
    %4813 = vst [vmem:[#allocation4 + $0x38] sm:$0xff] %v4812
    %v4814 = vld [vmem:[#allocation4] sm:$0xff]
    %v4815 = vld [vmem:[#allocation4 + $0x8] sm:$0xff]
    %v4816 = vld [vmem:[#allocation4 + $0x10] sm:$0xff]
    %v4817 = vld [vmem:[#allocation4 + $0x18] sm:$0xff]
    %v4818 = vld [vmem:[#allocation4 + $0x20] sm:$0xff]
    %v4819 = vld [vmem:[#allocation4 + $0x28] sm:$0xff]
    %v4820 = vld [vmem:[#allocation4 + $0x30] sm:$0xff]
    %v4821 = vld [vmem:[#allocation4 + $0x38] sm:$0xff]
    %v4822 = vld [vmem:[#allocation12] sm:$0xff]
    %v4823 = vld [vmem:[#allocation12 + $0x8] sm:$0xff]
    %v4824 = vld [vmem:[#allocation12 + $0x10] sm:$0xff]
    %v4825 = vld [vmem:[#allocation12 + $0x18] sm:$0xff]
    %v4826 = vld [vmem:[#allocation12 + $0x20] sm:$0xff]
    %v4827 = vld [vmem:[#allocation12 + $0x28] sm:$0xff]
    %v4828 = vld [vmem:[#allocation12 + $0x30] sm:$0xff]
    %v4829 = vld [vmem:[#allocation12 + $0x38] sm:$0xff]
    %v4830 = vld [vmem:[#allocation12 + $0x40] sm:$0xff]
    %v4831 = vld [vmem:[#allocation12 + $0x48] sm:$0xff]
    %v4832 = vld [vmem:[#allocation12 + $0x50] sm:$0xff]
    %v4833 = vld [vmem:[#allocation12 + $0x58] sm:$0xff]
    %v4834 = vld [vmem:[#allocation12 + $0x60] sm:$0xff]
    %v4835 = vld [vmem:[#allocation12 + $0x68] sm:$0xff]
    %v4836 = vld [vmem:[#allocation12 + $0x70] sm:$0xff]
    %v4837 = vld [vmem:[#allocation12 + $0x78] sm:$0xff]
    %v4838 = vld [vmem:[#allocation12 + $0x80] sm:$0xff]
    %v4839 = vld [vmem:[#allocation12 + $0x88] sm:$0xff]
    %v4840 = vld [vmem:[#allocation12 + $0x90] sm:$0xff]
    %v4841 = vld [vmem:[#allocation12 + $0x98] sm:$0xff]
    %v4842 = vld [vmem:[#allocation12 + $0xa0] sm:$0xff]
    %v4843 = vld [vmem:[#allocation12 + $0xa8] sm:$0xff]
    %v4844 = vld [vmem:[#allocation12 + $0xb0] sm:$0xff]
    %v4845 = vld [vmem:[#allocation12 + $0xb8] sm:$0xff]
    %v4846 = vld [vmem:[#allocation12 + $0xc0] sm:$0xff]
    %v4847 = vld [vmem:[#allocation12 + $0xc8] sm:$0xff]
    %v4848 = vld [vmem:[#allocation12 + $0xd0] sm:$0xff]
    %v4849 = vld [vmem:[#allocation12 + $0xd8] sm:$0xff]
    %v4850 = vld [vmem:[#allocation12 + $0xe0] sm:$0xff]
    %v4851 = vld [vmem:[#allocation12 + $0xe8] sm:$0xff]
    %v4852 = vld [vmem:[#allocation12 + $0xf0] sm:$0xff]
    %v4853 = vld [vmem:[#allocation12 + $0xf8] sm:$0xff]
    %v4854 = vld [vmem:[#allocation12 + $0x100] sm:$0xff]
    %v4855 = vld [vmem:[#allocation12 + $0x108] sm:$0xff]
    %v4856 = vld [vmem:[#allocation12 + $0x110] sm:$0xff]
    %v4857 = vld [vmem:[#allocation12 + $0x118] sm:$0xff]
    %v4858 = vld [vmem:[#allocation12 + $0x120] sm:$0xff]
    %v4859 = vld [vmem:[#allocation12 + $0x128] sm:$0xff]
    %v4860 = vld [vmem:[#allocation12 + $0x130] sm:$0xff]
    %v4861 = vld [vmem:[#allocation12 + $0x138] sm:$0xff]
    %v4862 = vld [vmem:[#allocation12 + $0x140] sm:$0xff]
    %v4863 = vld [vmem:[#allocation12 + $0x148] sm:$0xff]
    %v4864 = vld [vmem:[#allocation12 + $0x150] sm:$0xff]
    %v4865 = vld [vmem:[#allocation12 + $0x158] sm:$0xff]
    %v4866 = vld [vmem:[#allocation12 + $0x160] sm:$0xff]
    %v4867 = vld [vmem:[#allocation12 + $0x168] sm:$0xff]
    %v4868 = vld [vmem:[#allocation12 + $0x170] sm:$0xff]
    %v4869 = vld [vmem:[#allocation12 + $0x178] sm:$0xff]
    %v4870 = vld [vmem:[#allocation12 + $0x180] sm:$0xff]
    %v4871 = vld [vmem:[#allocation12 + $0x188] sm:$0xff]
    %v4872 = vld [vmem:[#allocation12 + $0x190] sm:$0xff]
    %v4873 = vld [vmem:[#allocation12 + $0x198] sm:$0xff]
    %v4874 = vld [vmem:[#allocation12 + $0x1a0] sm:$0xff]
    %v4875 = vld [vmem:[#allocation12 + $0x1a8] sm:$0xff]
    %v4876 = vld [vmem:[#allocation12 + $0x1b0] sm:$0xff]
    %v4877 = vld [vmem:[#allocation12 + $0x1b8] sm:$0xff]
    %v4878 = vld [vmem:[#allocation12 + $0x1c0] sm:$0xff]
    %v4879 = vld [vmem:[#allocation12 + $0x1c8] sm:$0xff]
    %v4880 = vld [vmem:[#allocation12 + $0x1d0] sm:$0xff]
    %v4881 = vld [vmem:[#allocation12 + $0x1d8] sm:$0xff]
    %v4882 = vld [vmem:[#allocation12 + $0x1e0] sm:$0xff]
    %v4883 = vld [vmem:[#allocation12 + $0x1e8] sm:$0xff]
    %v4884 = vld [vmem:[#allocation12 + $0x1f0] sm:$0xff]
    %v4885 = vld [vmem:[#allocation12 + $0x1f8] sm:$0xff]
    %v4886 = vld [vmem:[%s9] sm:$0xf]
    %v4888 = vlaneseq
    %v4889 = vshrl.u32 %v4888, 7
    %v4890 = vsub.s32 0, %v4889
    %v4891 = vrot.slane %v4886, %v4890
    %v4892 = vlaneseq
    %v4893 = vshrl.u32 %v4892, 7
    %v4894 = vsub.s32 1, %v4893
    %v4895 = vrot.slane %v4886, %v4894
    %v4896 = vlaneseq
    %v4897 = vshrl.u32 %v4896, 7
    %v4898 = vsub.s32 2, %v4897
    %v4899 = vrot.slane %v4886, %v4898
    %v4900 = vlaneseq
    %v4901 = vshrl.u32 %v4900, 7
    %v4902 = vsub.s32 3, %v4901
    %v4903 = vrot.slane %v4886, %v4902
    %4908 = vmatprep.subr.mxu0 %v4823
    %4909 = vmatpush1.msra.mxu0 %v4822
    %4910 = vmatprep.subr.mxu0 %v4827
    %4911 = vmatpush1.msra.mxu0 %v4826
    %4912 = vmatprep.subr.mxu0 %v4831
    %4913 = vmatpush1.msra.mxu0 %v4830
    %4914 = vmatprep.subr.mxu0 %v4835
    %4915 = vmatpush1.msra.mxu0 %v4834
    %4916 = vmatprep.subr.mxu0 %v4839
    %4917 = vmatpush1.msra.mxu0 %v4838
    %4918 = vmatprep.subr.mxu0 %v4843
    %4919 = vmatpush1.msra.mxu0 %v4842
    %4920 = vmatprep.subr.mxu0 %v4847
    %4921 = vmatpush1.msra.mxu0 %v4846
    %4922 = vmatprep.subr.mxu0 %v4851
    %4923 = vmatpush1.msra.mxu0 %v4850
    %4924 = vmatprep.subr.mxu0 %v4855
    %4925 = vmatpush1.msra.mxu0 %v4854
    %4926 = vmatprep.subr.mxu0 %v4859
    %4927 = vmatpush1.msra.mxu0 %v4858
    %4928 = vmatprep.subr.mxu0 %v4863
    %4929 = vmatpush1.msra.mxu0 %v4862
    %4930 = vmatprep.subr.mxu0 %v4867
    %4931 = vmatpush1.msra.mxu0 %v4866
    %4932 = vmatprep.subr.mxu0 %v4871
    %4933 = vmatpush1.msra.mxu0 %v4870
    %4934 = vmatprep.subr.mxu0 %v4875
    %4935 = vmatpush1.msra.mxu0 %v4874
    %4936 = vmatprep.subr.mxu0 %v4879
    %4937 = vmatpush1.msra.mxu0 %v4878
    %4938 = vmatprep.subr.mxu0 %v4883
    %4939 = vmatpush1.msra.mxu0 %v4882
    %4940 = vmatprep.subr.mxu0 0.0
    %4941 = vmatpush1.msra.mxu0 0.0
    %4942 = vmatprep.subr.mxu0 0.0
    %4943 = vmatpush1.msra.mxu0 0.0
    %4944 = vmatprep.subr.mxu0 0.0
    %4945 = vmatpush1.msra.mxu0 0.0
    %4946 = vmatprep.subr.mxu0 0.0
    %4947 = vmatpush1.msra.mxu0 0.0
    %4948 = vmatprep.subr.mxu0 0.0
    %4949 = vmatpush1.msra.mxu0 0.0
    %4950 = vmatprep.subr.mxu0 0.0
    %4951 = vmatpush1.msra.mxu0 0.0
    %4952 = vmatprep.subr.mxu0 0.0
    %4953 = vmatpush1.msra.mxu0 0.0
    %4954 = vmatprep.subr.mxu0 0.0
    %4955 = vmatpush1.msra.mxu0 0.0
    %4956 = vmatprep.subr.mxu0 0.0
    %4957 = vmatpush1.msra.mxu0 0.0
    %4958 = vmatprep.subr.mxu0 0.0
    %4959 = vmatpush1.msra.mxu0 0.0
    %4960 = vmatprep.subr.mxu0 0.0
    %4961 = vmatpush1.msra.mxu0 0.0
    %4962 = vmatprep.subr.mxu0 0.0
    %4963 = vmatpush1.msra.mxu0 0.0
    %4964 = vmatprep.subr.mxu0 0.0
    %4965 = vmatpush1.msra.mxu0 0.0
    %4966 = vmatprep.subr.mxu0 0.0
    %4967 = vmatpush1.msra.mxu0 0.0
    %4968 = vmatprep.subr.mxu0 0.0
    %4969 = vmatpush1.msra.mxu0 0.0
    %4970 = vmatprep.subr.mxu0 0.0
    %4971 = vmatpush1.msra.mxu0 0.0
    %4972 = vmatprep.mubr.f32.mxu0 0.0
    %4973 = vmatmul.mubr.f32.gmra.mrb[0].mxu0 %v4814
    %v4974 = vpop.f32.mrb[0].mxu0
    %v4975 = vadd.f32 %v4891, %v4974
    %v4976 = vpop.f32.mrb[0].mxu0
    %v4977 = vadd.f32 %v4895, %v4976
    %4978 = vmatprep.mubr.f32.mxu0 0.0
    %4979 = vmatmul.mubr.f32.gmra.mrb[0].mxu0 %v4815
    %v4980 = vpop.f32.mrb[0].mxu0
    %v4981 = vadd.f32 %v4891, %v4980
    %v4982 = vpop.f32.mrb[0].mxu0
    %v4983 = vadd.f32 %v4895, %v4982
    %4984 = vmatprep.mubr.f32.mxu0 0.0
    %4985 = vmatmul.mubr.f32.gmra.mrb[0].mxu0 %v4816
    %v4986 = vpop.f32.mrb[0].mxu0
    %v4987 = vadd.f32 %v4891, %v4986
    %v4988 = vpop.f32.mrb[0].mxu0
    %v4989 = vadd.f32 %v4895, %v4988
    %4990 = vmatprep.mubr.f32.mxu0 0.0
    %4991 = vmatmul.mubr.f32.gmra.mrb[0].mxu0 %v4817
    %v4992 = vpop.f32.mrb[0].mxu0
    %v4993 = vadd.f32 %v4891, %v4992
    %v4994 = vpop.f32.mrb[0].mxu0
    %v4995 = vadd.f32 %v4895, %v4994
    %4996 = vmatprep.mubr.f32.mxu0 0.0
    %4997 = vmatmul.mubr.f32.gmra.mrb[0].mxu0 %v4818
    %v4998 = vpop.f32.mrb[0].mxu0
    %v4999 = vadd.f32 %v4891, %v4998
    %v5000 = vpop.f32.mrb[0].mxu0
    %v5001 = vadd.f32 %v4895, %v5000
    %5002 = vmatprep.mubr.f32.mxu0 0.0
    %5003 = vmatmul.mubr.f32.gmra.mrb[0].mxu0 %v4819
    %v5004 = vpop.f32.mrb[0].mxu0
    %v5005 = vadd.f32 %v4891, %v5004
    %v5006 = vpop.f32.mrb[0].mxu0
    %v5007 = vadd.f32 %v4895, %v5006
    %5008 = vmatprep.mubr.f32.mxu0 0.0
    %5009 = vmatmul.mubr.f32.gmra.mrb[0].mxu0 %v4820
    %v5010 = vpop.f32.mrb[0].mxu0
    %v5011 = vadd.f32 %v4891, %v5010
    %v5012 = vpop.f32.mrb[0].mxu0
    %v5013 = vadd.f32 %v4895, %v5012
    %5014 = vmatprep.mubr.f32.mxu0 0.0
    %5015 = vmatmul.mubr.f32.gmra.mrb[0].mxu0 %v4821
    %v5016 = vpop.f32.mrb[0].mxu0
    %v5017 = vadd.f32 %v4891, %v5016
    %v5018 = vpop.f32.mrb[0].mxu0
    %v5019 = vadd.f32 %v4895, %v5018
    %5020 = vdwg.mxu0
    %5021 = vmatprep.subr.mxu0 %v4825
    %5022 = vmatpush1.msra.mxu0 %v4824
    %5023 = vmatprep.subr.mxu0 %v4829
    %5024 = vmatpush1.msra.mxu0 %v4828
    %5025 = vmatprep.subr.mxu0 %v4833
    %5026 = vmatpush1.msra.mxu0 %v4832
    %5027 = vmatprep.subr.mxu0 %v4837
    %5028 = vmatpush1.msra.mxu0 %v4836
    %5029 = vmatprep.subr.mxu0 %v4841
    %5030 = vmatpush1.msra.mxu0 %v4840
    %5031 = vmatprep.subr.mxu0 %v4845
    %5032 = vmatpush1.msra.mxu0 %v4844
    %5033 = vmatprep.subr.mxu0 %v4849
    %5034 = vmatpush1.msra.mxu0 %v4848
    %5035 = vmatprep.subr.mxu0 %v4853
    %5036 = vmatpush1.msra.mxu0 %v4852
    %5037 = vmatprep.subr.mxu0 %v4857
    %5038 = vmatpush1.msra.mxu0 %v4856
    %5039 = vmatprep.subr.mxu0 %v4861
    %5040 = vmatpush1.msra.mxu0 %v4860
    %5041 = vmatprep.subr.mxu0 %v4865
    %5042 = vmatpush1.msra.mxu0 %v4864
    %5043 = vmatprep.subr.mxu0 %v4869
    %5044 = vmatpush1.msra.mxu0 %v4868
    %5045 = vmatprep.subr.mxu0 %v4873
    %5046 = vmatpush1.msra.mxu0 %v4872
    %5047 = vmatprep.subr.mxu0 %v4877
    %5048 = vmatpush1.msra.mxu0 %v4876
    %5049 = vmatprep.subr.mxu0 %v4881
    %5050 = vmatpush1.msra.mxu0 %v4880
    %5051 = vmatprep.subr.mxu0 %v4885
    %5052 = vmatpush1.msra.mxu0 %v4884
    %5053 = vmatprep.subr.mxu0 0.0
    %5054 = vmatpush1.msra.mxu0 0.0
    %5055 = vmatprep.subr.mxu0 0.0
    %5056 = vmatpush1.msra.mxu0 0.0
    %5057 = vmatprep.subr.mxu0 0.0
    %5058 = vmatpush1.msra.mxu0 0.0
    %5059 = vmatprep.subr.mxu0 0.0
    %5060 = vmatpush1.msra.mxu0 0.0
    %5061 = vmatprep.subr.mxu0 0.0
    %5062 = vmatpush1.msra.mxu0 0.0
    %5063 = vmatprep.subr.mxu0 0.0
    %5064 = vmatpush1.msra.mxu0 0.0
    %5065 = vmatprep.subr.mxu0 0.0
    %5066 = vmatpush1.msra.mxu0 0.0
    %5067 = vmatprep.subr.mxu0 0.0
    %5068 = vmatpush1.msra.mxu0 0.0
    %5069 = vmatprep.subr.mxu0 0.0
    %5070 = vmatpush1.msra.mxu0 0.0
    %5071 = vmatprep.subr.mxu0 0.0
    %5072 = vmatpush1.msra.mxu0 0.0
    %5073 = vmatprep.subr.mxu0 0.0
    %5074 = vmatpush1.msra.mxu0 0.0
    %5075 = vmatprep.subr.mxu0 0.0
    %5076 = vmatpush1.msra.mxu0 0.0
    %5077 = vmatprep.subr.mxu0 0.0
    %5078 = vmatpush1.msra.mxu0 0.0
    %5079 = vmatprep.subr.mxu0 0.0
    %5080 = vmatpush1.msra.mxu0 0.0
    %5081 = vmatprep.subr.mxu0 0.0
    %5082 = vmatpush1.msra.mxu0 0.0
    %5083 = vmatprep.subr.mxu0 0.0
    %5084 = vmatpush1.msra.mxu0 0.0
    %5085 = vmatprep.mubr.f32.mxu0 0.0
    %5086 = vmatmul.mubr.f32.gmra.mrb[0].mxu0 %v4814
    %v5087 = vpop.f32.mrb[0].mxu0
    %v5088 = vadd.f32 %v4899, %v5087
    %v5089 = vpop.f32.mrb[0].mxu0
    %v5090 = vadd.f32 %v4903, %v5089
    %5091 = vmatprep.mubr.f32.mxu0 0.0
    %5092 = vmatmul.mubr.f32.gmra.mrb[0].mxu0 %v4815
    %v5093 = vpop.f32.mrb[0].mxu0
    %v5094 = vadd.f32 %v4899, %v5093
    %v5095 = vpop.f32.mrb[0].mxu0
    %v5096 = vadd.f32 %v4903, %v5095
    %5097 = vmatprep.mubr.f32.mxu0 0.0
    %5098 = vmatmul.mubr.f32.gmra.mrb[0].mxu0 %v4816
    %v5099 = vpop.f32.mrb[0].mxu0
    %v5100 = vadd.f32 %v4899, %v5099
    %v5101 = vpop.f32.mrb[0].mxu0
    %v5102 = vadd.f32 %v4903, %v5101
    %5103 = vmatprep.mubr.f32.mxu0 0.0
    %5104 = vmatmul.mubr.f32.gmra.mrb[0].mxu0 %v4817
    %v5105 = vpop.f32.mrb[0].mxu0
    %v5106 = vadd.f32 %v4899, %v5105
    %v5107 = vpop.f32.mrb[0].mxu0
    %v5108 = vadd.f32 %v4903, %v5107
    %5109 = vmatprep.mubr.f32.mxu0 0.0
    %5110 = vmatmul.mubr.f32.gmra.mrb[0].mxu0 %v4818
    %v5111 = vpop.f32.mrb[0].mxu0
    %v5112 = vadd.f32 %v4899, %v5111
    %v5113 = vpop.f32.mrb[0].mxu0
    %v5114 = vadd.f32 %v4903, %v5113
    %5115 = vmatprep.mubr.f32.mxu0 0.0
    %5116 = vmatmul.mubr.f32.gmra.mrb[0].mxu0 %v4819
    %v5117 = vpop.f32.mrb[0].mxu0
    %v5118 = vadd.f32 %v4899, %v5117
    %v5119 = vpop.f32.mrb[0].mxu0
    %v5120 = vadd.f32 %v4903, %v5119
    %5121 = vmatprep.mubr.f32.mxu0 0.0
    %5122 = vmatmul.mubr.f32.gmra.mrb[0].mxu0 %v4820
    %v5123 = vpop.f32.mrb[0].mxu0
    %v5124 = vadd.f32 %v4899, %v5123
    %v5125 = vpop.f32.mrb[0].mxu0
    %v5126 = vadd.f32 %v4903, %v5125
    %5127 = vmatprep.mubr.f32.mxu0 0.0
    %5128 = vmatmul.mubr.f32.gmra.mrb[0].mxu0 %v4821
    %v5129 = vpop.f32.mrb[0].mxu0
    %v5130 = vadd.f32 %v4899, %v5129
    %v5131 = vpop.f32.mrb[0].mxu0
    %v5132 = vadd.f32 %v4903, %v5131
    %5133 = vdwg.mxu0
    %5134 = vst [vmem:[#allocation2] sm:$0xff] %v4975
    %5135 = vst [vmem:[#allocation2 + $0x8] sm:$0xff] %v4977
    %5136 = vst [vmem:[#allocation2 + $0x10] sm:$0xff] %v5088
    %5137 = vst [vmem:[#allocation2 + $0x18] sm:$0xff] %v5090
    %5138 = vst [vmem:[#allocation2 + $0x20] sm:$0xff] %v4981
    %5139 = vst [vmem:[#allocation2 + $0x28] sm:$0xff] %v4983
    %5140 = vst [vmem:[#allocation2 + $0x30] sm:$0xff] %v5094
    %5141 = vst [vmem:[#allocation2 + $0x38] sm:$0xff] %v5096
    %5142 = vst [vmem:[#allocation2 + $0x40] sm:$0xff] %v4987
    %5143 = vst [vmem:[#allocation2 + $0x48] sm:$0xff] %v4989
    %5144 = vst [vmem:[#allocation2 + $0x50] sm:$0xff] %v5100
    %5145 = vst [vmem:[#allocation2 + $0x58] sm:$0xff] %v5102
    %5146 = vst [vmem:[#allocation2 + $0x60] sm:$0xff] %v4993
    %5147 = vst [vmem:[#allocation2 + $0x68] sm:$0xff] %v4995
    %5148 = vst [vmem:[#allocation2 + $0x70] sm:$0xff] %v5106
    %5149 = vst [vmem:[#allocation2 + $0x78] sm:$0xff] %v5108
    %5150 = vst [vmem:[#allocation2 + $0x80] sm:$0xff] %v4999
    %5151 = vst [vmem:[#allocation2 + $0x88] sm:$0xff] %v5001
    %5152 = vst [vmem:[#allocation2 + $0x90] sm:$0xff] %v5112
    %5153 = vst [vmem:[#allocation2 + $0x98] sm:$0xff] %v5114
    %5154 = vst [vmem:[#allocation2 + $0xa0] sm:$0xff] %v5005
    %5155 = vst [vmem:[#allocation2 + $0xa8] sm:$0xff] %v5007
    %5156 = vst [vmem:[#allocation2 + $0xb0] sm:$0xff] %v5118
    %5157 = vst [vmem:[#allocation2 + $0xb8] sm:$0xff] %v5120
    %5158 = vst [vmem:[#allocation2 + $0xc0] sm:$0xff] %v5011
    %5159 = vst [vmem:[#allocation2 + $0xc8] sm:$0xff] %v5013
    %5160 = vst [vmem:[#allocation2 + $0xd0] sm:$0xff] %v5124
    %5161 = vst [vmem:[#allocation2 + $0xd8] sm:$0xff] %v5126
    %5162 = vst [vmem:[#allocation2 + $0xe0] sm:$0xff] %v5017
    %5163 = vst [vmem:[#allocation2 + $0xe8] sm:$0xff] %v5019
    %5164 = vst [vmem:[#allocation2 + $0xf0] sm:$0xff] %v5130
    %5165 = vst [vmem:[#allocation2 + $0xf8] sm:$0xff] %v5132
    %v5166 = vld [vmem:[#allocation2] sm:$0xff]
    %v5167 = vld [vmem:[#allocation2 + $0x8] sm:$0xff]
    %v5168 = vld [vmem:[#allocation2 + $0x10] sm:$0xff]
    %v5169 = vld [vmem:[#allocation2 + $0x18] sm:$0xff]
    %v5170 = vld [vmem:[#allocation13] sm:$0xff]
    %v5171 = vld [vmem:[#allocation13 + $0x8] sm:$0xff]
    %v5172 = vld [vmem:[#allocation13 + $0x10] sm:$0xff]
    %v5173 = vld [vmem:[#allocation13 + $0x18] sm:$0xff]
    %v5174 = vld [vmem:[#allocation13 + $0x20] sm:$0xff]
    %v5175 = vld [vmem:[#allocation13 + $0x28] sm:$0xff]
    %v5176 = vld [vmem:[#allocation13 + $0x30] sm:$0xff]
    %v5177 = vld [vmem:[#allocation13 + $0x38] sm:$0xff]
    %v5178 = vld [vmem:[#allocation13 + $0x40] sm:$0xff]
    %v5179 = vld [vmem:[#allocation13 + $0x48] sm:$0xff]
    %v5180 = vld [vmem:[#allocation13 + $0x50] sm:$0xff]
    %v5181 = vld [vmem:[#allocation13 + $0x58] sm:$0xff]
    %v5182 = vld [vmem:[#allocation13 + $0x60] sm:$0xff]
    %v5183 = vld [vmem:[#allocation13 + $0x68] sm:$0xff]
    %v5184 = vld [vmem:[#allocation13 + $0x70] sm:$0xff]
    %v5185 = vld [vmem:[#allocation13 + $0x78] sm:$0xff]
    %v5186 = vld [vmem:[#allocation13 + $0x80] sm:$0xff]
    %v5187 = vld [vmem:[#allocation13 + $0x88] sm:$0xff]
    %v5188 = vld [vmem:[#allocation13 + $0x90] sm:$0xff]
    %v5189 = vld [vmem:[#allocation13 + $0x98] sm:$0xff]
    %v5190 = vld [vmem:[#allocation13 + $0xa0] sm:$0xff]
    %v5191 = vld [vmem:[#allocation13 + $0xa8] sm:$0xff]
    %v5192 = vld [vmem:[#allocation13 + $0xb0] sm:$0xff]
    %v5193 = vld [vmem:[#allocation13 + $0xb8] sm:$0xff]
    %v5194 = vld [vmem:[#allocation13 + $0xc0] sm:$0xff]
    %v5195 = vld [vmem:[#allocation13 + $0xc8] sm:$0xff]
    %v5196 = vld [vmem:[#allocation13 + $0xd0] sm:$0xff]
    %v5197 = vld [vmem:[#allocation13 + $0xd8] sm:$0xff]
    %v5198 = vld [vmem:[#allocation13 + $0xe0] sm:$0xff]
    %v5199 = vld [vmem:[#allocation13 + $0xe8] sm:$0xff]
    %v5200 = vld [vmem:[#allocation13 + $0xf0] sm:$0xff]
    %v5201 = vld [vmem:[#allocation13 + $0xf8] sm:$0xff]
    %v5202 = vld [vmem:[#allocation13 + $0x100] sm:$0xff]
    %v5203 = vld [vmem:[#allocation13 + $0x108] sm:$0xff]
    %v5204 = vld [vmem:[#allocation13 + $0x110] sm:$0xff]
    %v5205 = vld [vmem:[#allocation13 + $0x118] sm:$0xff]
    %v5206 = vld [vmem:[#allocation13 + $0x120] sm:$0xff]
    %v5207 = vld [vmem:[#allocation13 + $0x128] sm:$0xff]
    %v5208 = vld [vmem:[#allocation13 + $0x130] sm:$0xff]
    %v5209 = vld [vmem:[#allocation13 + $0x138] sm:$0xff]
    %v5210 = vld [vmem:[#allocation13 + $0x140] sm:$0xff]
    %v5211 = vld [vmem:[#allocation13 + $0x148] sm:$0xff]
    %v5212 = vld [vmem:[#allocation13 + $0x150] sm:$0xff]
    %v5213 = vld [vmem:[#allocation13 + $0x158] sm:$0xff]
    %v5214 = vld [vmem:[#allocation13 + $0x160] sm:$0xff]
    %v5215 = vld [vmem:[#allocation13 + $0x168] sm:$0xff]
    %v5216 = vld [vmem:[#allocation13 + $0x170] sm:$0xff]
    %v5217 = vld [vmem:[#allocation13 + $0x178] sm:$0xff]
    %v5218 = vld [vmem:[#allocation13 + $0x180] sm:$0xff]
    %v5219 = vld [vmem:[#allocation13 + $0x188] sm:$0xff]
    %v5220 = vld [vmem:[#allocation13 + $0x190] sm:$0xff]
    %v5221 = vld [vmem:[#allocation13 + $0x198] sm:$0xff]
    %v5222 = vld [vmem:[#allocation13 + $0x1a0] sm:$0xff]
    %v5223 = vld [vmem:[#allocation13 + $0x1a8] sm:$0xff]
    %v5224 = vld [vmem:[#allocation13 + $0x1b0] sm:$0xff]
    %v5225 = vld [vmem:[#allocation13 + $0x1b8] sm:$0xff]
    %v5226 = vld [vmem:[#allocation13 + $0x1c0] sm:$0xff]
    %v5227 = vld [vmem:[#allocation13 + $0x1c8] sm:$0xff]
    %v5228 = vld [vmem:[#allocation13 + $0x1d0] sm:$0xff]
    %v5229 = vld [vmem:[#allocation13 + $0x1d8] sm:$0xff]
    %v5230 = vld [vmem:[#allocation13 + $0x1e0] sm:$0xff]
    %v5231 = vld [vmem:[#allocation13 + $0x1e8] sm:$0xff]
    %v5232 = vld [vmem:[#allocation13 + $0x1f0] sm:$0xff]
    %v5233 = vld [vmem:[#allocation13 + $0x1f8] sm:$0xff]
    %5234 = vmatprep.subr.mxu0 %v5171
    %5235 = vmatpush1.msra.mxu0 %v5170
    %5236 = vmatprep.subr.mxu0 %v5175
    %5237 = vmatpush1.msra.mxu0 %v5174
    %5238 = vmatprep.subr.mxu0 %v5179
    %5239 = vmatpush1.msra.mxu0 %v5178
    %5240 = vmatprep.subr.mxu0 %v5183
    %5241 = vmatpush1.msra.mxu0 %v5182
    %5242 = vmatprep.subr.mxu0 %v5187
    %5243 = vmatpush1.msra.mxu0 %v5186
    %5244 = vmatprep.subr.mxu0 %v5191
    %5245 = vmatpush1.msra.mxu0 %v5190
    %5246 = vmatprep.subr.mxu0 %v5195
    %5247 = vmatpush1.msra.mxu0 %v5194
    %5248 = vmatprep.subr.mxu0 %v5199
    %5249 = vmatpush1.msra.mxu0 %v5198
    %5250 = vmatprep.subr.mxu0 %v5203
    %5251 = vmatpush1.msra.mxu0 %v5202
    %5252 = vmatprep.subr.mxu0 %v5207
    %5253 = vmatpush1.msra.mxu0 %v5206
    %5254 = vmatprep.subr.mxu0 %v5211
    %5255 = vmatpush1.msra.mxu0 %v5210
    %5256 = vmatprep.subr.mxu0 %v5215
    %5257 = vmatpush1.msra.mxu0 %v5214
    %5258 = vmatprep.subr.mxu0 %v5219
    %5259 = vmatpush1.msra.mxu0 %v5218
    %5260 = vmatprep.subr.mxu0 %v5223
    %5261 = vmatpush1.msra.mxu0 %v5222
    %5262 = vmatprep.subr.mxu0 %v5227
    %5263 = vmatpush1.msra.mxu0 %v5226
    %5264 = vmatprep.subr.mxu0 %v5231
    %5265 = vmatpush1.msra.mxu0 %v5230
    %5266 = vmatprep.subr.mxu0 0.0
    %5267 = vmatpush1.msra.mxu0 0.0
    %5268 = vmatprep.subr.mxu0 0.0
    %5269 = vmatpush1.msra.mxu0 0.0
    %5270 = vmatprep.subr.mxu0 0.0
    %5271 = vmatpush1.msra.mxu0 0.0
    %5272 = vmatprep.subr.mxu0 0.0
    %5273 = vmatpush1.msra.mxu0 0.0
    %5274 = vmatprep.subr.mxu0 0.0
    %5275 = vmatpush1.msra.mxu0 0.0
    %5276 = vmatprep.subr.mxu0 0.0
    %5277 = vmatpush1.msra.mxu0 0.0
    %5278 = vmatprep.subr.mxu0 0.0
    %5279 = vmatpush1.msra.mxu0 0.0
    %5280 = vmatprep.subr.mxu0 0.0
    %5281 = vmatpush1.msra.mxu0 0.0
    %5282 = vmatprep.subr.mxu0 0.0
    %5283 = vmatpush1.msra.mxu0 0.0
    %5284 = vmatprep.subr.mxu0 0.0
    %5285 = vmatpush1.msra.mxu0 0.0
    %5286 = vmatprep.subr.mxu0 0.0
    %5287 = vmatpush1.msra.mxu0 0.0
    %5288 = vmatprep.subr.mxu0 0.0
    %5289 = vmatpush1.msra.mxu0 0.0
    %5290 = vmatprep.subr.mxu0 0.0
    %5291 = vmatpush1.msra.mxu0 0.0
    %5292 = vmatprep.subr.mxu0 0.0
    %5293 = vmatpush1.msra.mxu0 0.0
    %5294 = vmatprep.subr.mxu0 0.0
    %5295 = vmatpush1.msra.mxu0 0.0
    %5296 = vmatprep.subr.mxu0 0.0
    %5297 = vmatpush1.msra.mxu0 0.0
    %5298 = vmatprep.mubr.f32.mxu0 0.0
    %5299 = vmatmul.mubr.f32.gmra.mrb[0].mxu0 0.0
    %v5300 = vpop.f32.mrb[0].mxu0
    %v5301 = vadd.f32 0.0, %v5300
    %v5302 = vpop.f32.mrb[0].mxu0
    %v5303 = vadd.f32 0.0, %v5302
    %5304 = vdwg.mxu0
    %5305 = vmatprep.subr.mxu0 %v5173
    %5306 = vmatpush1.msra.mxu0 %v5172
    %5307 = vmatprep.subr.mxu0 %v5177
    %5308 = vmatpush1.msra.mxu0 %v5176
    %5309 = vmatprep.subr.mxu0 %v5181
    %5310 = vmatpush1.msra.mxu0 %v5180
    %5311 = vmatprep.subr.mxu0 %v5185
    %5312 = vmatpush1.msra.mxu0 %v5184
    %5313 = vmatprep.subr.mxu0 %v5189
    %5314 = vmatpush1.msra.mxu0 %v5188
    %5315 = vmatprep.subr.mxu0 %v5193
    %5316 = vmatpush1.msra.mxu0 %v5192
    %5317 = vmatprep.subr.mxu0 %v5197
    %5318 = vmatpush1.msra.mxu0 %v5196
    %5319 = vmatprep.subr.mxu0 %v5201
    %5320 = vmatpush1.msra.mxu0 %v5200
    %5321 = vmatprep.subr.mxu0 %v5205
    %5322 = vmatpush1.msra.mxu0 %v5204
    %5323 = vmatprep.subr.mxu0 %v5209
    %5324 = vmatpush1.msra.mxu0 %v5208
    %5325 = vmatprep.subr.mxu0 %v5213
    %5326 = vmatpush1.msra.mxu0 %v5212
    %5327 = vmatprep.subr.mxu0 %v5217
    %5328 = vmatpush1.msra.mxu0 %v5216
    %5329 = vmatprep.subr.mxu0 %v5221
    %5330 = vmatpush1.msra.mxu0 %v5220
    %5331 = vmatprep.subr.mxu0 %v5225
    %5332 = vmatpush1.msra.mxu0 %v5224
    %5333 = vmatprep.subr.mxu0 %v5229
    %5334 = vmatpush1.msra.mxu0 %v5228
    %5335 = vmatprep.subr.mxu0 %v5233
    %5336 = vmatpush1.msra.mxu0 %v5232
    %5337 = vmatprep.subr.mxu0 0.0
    %5338 = vmatpush1.msra.mxu0 0.0
    %5339 = vmatprep.subr.mxu0 0.0
    %5340 = vmatpush1.msra.mxu0 0.0
    %5341 = vmatprep.subr.mxu0 0.0
    %5342 = vmatpush1.msra.mxu0 0.0
    %5343 = vmatprep.subr.mxu0 0.0
    %5344 = vmatpush1.msra.mxu0 0.0
    %5345 = vmatprep.subr.mxu0 0.0
    %5346 = vmatpush1.msra.mxu0 0.0
    %5347 = vmatprep.subr.mxu0 0.0
    %5348 = vmatpush1.msra.mxu0 0.0
    %5349 = vmatprep.subr.mxu0 0.0
    %5350 = vmatpush1.msra.mxu0 0.0
    %5351 = vmatprep.subr.mxu0 0.0
    %5352 = vmatpush1.msra.mxu0 0.0
    %5353 = vmatprep.subr.mxu0 0.0
    %5354 = vmatpush1.msra.mxu0 0.0
    %5355 = vmatprep.subr.mxu0 0.0
    %5356 = vmatpush1.msra.mxu0 0.0
    %5357 = vmatprep.subr.mxu0 0.0
    %5358 = vmatpush1.msra.mxu0 0.0
    %5359 = vmatprep.subr.mxu0 0.0
    %5360 = vmatpush1.msra.mxu0 0.0
    %5361 = vmatprep.subr.mxu0 0.0
    %5362 = vmatpush1.msra.mxu0 0.0
    %5363 = vmatprep.subr.mxu0 0.0
    %5364 = vmatpush1.msra.mxu0 0.0
    %5365 = vmatprep.subr.mxu0 0.0
    %5366 = vmatpush1.msra.mxu0 0.0
    %5367 = vmatprep.subr.mxu0 0.0
    %5368 = vmatpush1.msra.mxu0 0.0
    %5369 = vmatprep.mubr.f32.mxu0 0.0
    %5370 = vmatmul.mubr.f32.gmra.mrb[0].mxu0 0.0
    %v5371 = vpop.f32.mrb[0].mxu0
    %v5372 = vadd.f32 0.0, %v5371
    %v5373 = vpop.f32.mrb[0].mxu0
    %v5374 = vadd.f32 0.0, %v5373
    %5375 = vdwg.mxu0
    %v5376 = vadd.f32 %v5166, %v5301
    %v5377 = vadd.f32 %v5167, %v5303
    %v5378 = vadd.f32 %v5168, %v5372
    %v5379 = vadd.f32 %v5169, %v5374
    %v5380 = vxor.u32 %v5376, 2147483648
    %v5381 = vmul.f32 %v5380, 1.442695
    %v5382 = vpow.pop %v5381
    %v5383 = vadd.f32 %v5382, 1.0
    %v5384 = vrcp.pop %v5383
    %v5385 = vmul.f32 1.0, %v5384
    %v5386 = vxor.u32 %v5377, 2147483648
    %v5387 = vmul.f32 %v5386, 1.442695
    %v5388 = vpow.pop %v5387
    %v5389 = vadd.f32 %v5388, 1.0
    %v5390 = vrcp.pop %v5389
    %v5391 = vmul.f32 1.0, %v5390
    %v5392 = vtanh.pop %v5378
    %v5393 = vxor.u32 %v5379, 2147483648
    %v5394 = vmul.f32 %v5393, 1.442695
    %v5395 = vpow.pop %v5394
    %v5396 = vadd.f32 %v5395, 1.0
    %v5397 = vrcp.pop %v5396
    %v5398 = vmul.f32 1.0, %v5397
    %v5399 = vmul.f32 %v5391, 0.0
    %v5400 = vmul.f32 %v5385, %v5392
    %v5401 = vadd.f32 %v5399, %v5400
    %v5402 = vtanh.pop %v5401
    %v5403 = vmul.f32 %v5398, %v5402
    %v5404 = vld [vmem:[#allocation2 + $0x20] sm:$0xff]
    %v5405 = vld [vmem:[#allocation2 + $0x28] sm:$0xff]
    %v5406 = vld [vmem:[#allocation2 + $0x30] sm:$0xff]
    %v5407 = vld [vmem:[#allocation2 + $0x38] sm:$0xff]
    %5408 = vmatprep.subr.mxu0 %v5171
    %5409 = vmatpush1.msra.mxu0 %v5170
    %5410 = vmatprep.subr.mxu0 %v5175
    %5411 = vmatpush1.msra.mxu0 %v5174
    %5412 = vmatprep.subr.mxu0 %v5179
    %5413 = vmatpush1.msra.mxu0 %v5178
    %5414 = vmatprep.subr.mxu0 %v5183
    %5415 = vmatpush1.msra.mxu0 %v5182
    %5416 = vmatprep.subr.mxu0 %v5187
    %5417 = vmatpush1.msra.mxu0 %v5186
    %5418 = vmatprep.subr.mxu0 %v5191
    %5419 = vmatpush1.msra.mxu0 %v5190
    %5420 = vmatprep.subr.mxu0 %v5195
    %5421 = vmatpush1.msra.mxu0 %v5194
    %5422 = vmatprep.subr.mxu0 %v5199
    %5423 = vmatpush1.msra.mxu0 %v5198
    %5424 = vmatprep.subr.mxu0 %v5203
    %5425 = vmatpush1.msra.mxu0 %v5202
    %5426 = vmatprep.subr.mxu0 %v5207
    %5427 = vmatpush1.msra.mxu0 %v5206
    %5428 = vmatprep.subr.mxu0 %v5211
    %5429 = vmatpush1.msra.mxu0 %v5210
    %5430 = vmatprep.subr.mxu0 %v5215
    %5431 = vmatpush1.msra.mxu0 %v5214
    %5432 = vmatprep.subr.mxu0 %v5219
    %5433 = vmatpush1.msra.mxu0 %v5218
    %5434 = vmatprep.subr.mxu0 %v5223
    %5435 = vmatpush1.msra.mxu0 %v5222
    %5436 = vmatprep.subr.mxu0 %v5227
    %5437 = vmatpush1.msra.mxu0 %v5226
    %5438 = vmatprep.subr.mxu0 %v5231
    %5439 = vmatpush1.msra.mxu0 %v5230
    %5440 = vmatprep.subr.mxu0 0.0
    %5441 = vmatpush1.msra.mxu0 0.0
    %5442 = vmatprep.subr.mxu0 0.0
    %5443 = vmatpush1.msra.mxu0 0.0
    %5444 = vmatprep.subr.mxu0 0.0
    %5445 = vmatpush1.msra.mxu0 0.0
    %5446 = vmatprep.subr.mxu0 0.0
    %5447 = vmatpush1.msra.mxu0 0.0
    %5448 = vmatprep.subr.mxu0 0.0
    %5449 = vmatpush1.msra.mxu0 0.0
    %5450 = vmatprep.subr.mxu0 0.0
    %5451 = vmatpush1.msra.mxu0 0.0
    %5452 = vmatprep.subr.mxu0 0.0
    %5453 = vmatpush1.msra.mxu0 0.0
    %5454 = vmatprep.subr.mxu0 0.0
    %5455 = vmatpush1.msra.mxu0 0.0
    %5456 = vmatprep.subr.mxu0 0.0
    %5457 = vmatpush1.msra.mxu0 0.0
    %5458 = vmatprep.subr.mxu0 0.0
    %5459 = vmatpush1.msra.mxu0 0.0
    %5460 = vmatprep.subr.mxu0 0.0
    %5461 = vmatpush1.msra.mxu0 0.0
    %5462 = vmatprep.subr.mxu0 0.0
    %5463 = vmatpush1.msra.mxu0 0.0
    %5464 = vmatprep.subr.mxu0 0.0
    %5465 = vmatpush1.msra.mxu0 0.0
    %5466 = vmatprep.subr.mxu0 0.0
    %5467 = vmatpush1.msra.mxu0 0.0
    %5468 = vmatprep.subr.mxu0 0.0
    %5469 = vmatpush1.msra.mxu0 0.0
    %5470 = vmatprep.subr.mxu0 0.0
    %5471 = vmatpush1.msra.mxu0 0.0
    %5472 = vmatprep.mubr.f32.mxu0 0.0
    %5473 = vmatmul.mubr.f32.gmra.mrb[0].mxu0 %v5403
    %v5474 = vpop.f32.mrb[0].mxu0
    %v5475 = vadd.f32 0.0, %v5474
    %v5476 = vpop.f32.mrb[0].mxu0
    %v5477 = vadd.f32 0.0, %v5476
    %5478 = vdwg.mxu0
    %5479 = vmatprep.subr.mxu0 %v5173
    %5480 = vmatpush1.msra.mxu0 %v5172
    %5481 = vmatprep.subr.mxu0 %v5177
    %5482 = vmatpush1.msra.mxu0 %v5176
    %5483 = vmatprep.subr.mxu0 %v5181
    %5484 = vmatpush1.msra.mxu0 %v5180
    %5485 = vmatprep.subr.mxu0 %v5185
    %5486 = vmatpush1.msra.mxu0 %v5184
    %5487 = vmatprep.subr.mxu0 %v5189
    %5488 = vmatpush1.msra.mxu0 %v5188
    %5489 = vmatprep.subr.mxu0 %v5193
    %5490 = vmatpush1.msra.mxu0 %v5192
    %5491 = vmatprep.subr.mxu0 %v5197
    %5492 = vmatpush1.msra.mxu0 %v5196
    %5493 = vmatprep.subr.mxu0 %v5201
    %5494 = vmatpush1.msra.mxu0 %v5200
    %5495 = vmatprep.subr.mxu0 %v5205
    %5496 = vmatpush1.msra.mxu0 %v5204
    %5497 = vmatprep.subr.mxu0 %v5209
    %5498 = vmatpush1.msra.mxu0 %v5208
    %5499 = vmatprep.subr.mxu0 %v5213
    %5500 = vmatpush1.msra.mxu0 %v5212
    %5501 = vmatprep.subr.mxu0 %v5217
    %5502 = vmatpush1.msra.mxu0 %v5216
    %5503 = vmatprep.subr.mxu0 %v5221
    %5504 = vmatpush1.msra.mxu0 %v5220
    %5505 = vmatprep.subr.mxu0 %v5225
    %5506 = vmatpush1.msra.mxu0 %v5224
    %5507 = vmatprep.subr.mxu0 %v5229
    %5508 = vmatpush1.msra.mxu0 %v5228
    %5509 = vmatprep.subr.mxu0 %v5233
    %5510 = vmatpush1.msra.mxu0 %v5232
    %5511 = vmatprep.subr.mxu0 0.0
    %5512 = vmatpush1.msra.mxu0 0.0
    %5513 = vmatprep.subr.mxu0 0.0
    %5514 = vmatpush1.msra.mxu0 0.0
    %5515 = vmatprep.subr.mxu0 0.0
    %5516 = vmatpush1.msra.mxu0 0.0
    %5517 = vmatprep.subr.mxu0 0.0
    %5518 = vmatpush1.msra.mxu0 0.0
    %5519 = vmatprep.subr.mxu0 0.0
    %5520 = vmatpush1.msra.mxu0 0.0
    %5521 = vmatprep.subr.mxu0 0.0
    %5522 = vmatpush1.msra.mxu0 0.0
    %5523 = vmatprep.subr.mxu0 0.0
    %5524 = vmatpush1.msra.mxu0 0.0
    %5525 = vmatprep.subr.mxu0 0.0
    %5526 = vmatpush1.msra.mxu0 0.0
    %5527 = vmatprep.subr.mxu0 0.0
    %5528 = vmatpush1.msra.mxu0 0.0
    %5529 = vmatprep.subr.mxu0 0.0
    %5530 = vmatpush1.msra.mxu0 0.0
    %5531 = vmatprep.subr.mxu0 0.0
    %5532 = vmatpush1.msra.mxu0 0.0
    %5533 = vmatprep.subr.mxu0 0.0
    %5534 = vmatpush1.msra.mxu0 0.0
    %5535 = vmatprep.subr.mxu0 0.0
    %5536 = vmatpush1.msra.mxu0 0.0
    %5537 = vmatprep.subr.mxu0 0.0
    %5538 = vmatpush1.msra.mxu0 0.0
    %5539 = vmatprep.subr.mxu0 0.0
    %5540 = vmatpush1.msra.mxu0 0.0
    %5541 = vmatprep.subr.mxu0 0.0
    %5542 = vmatpush1.msra.mxu0 0.0
    %5543 = vmatprep.mubr.f32.mxu0 0.0
    %5544 = vmatmul.mubr.f32.gmra.mrb[0].mxu0 %v5403
    %v5545 = vpop.f32.mrb[0].mxu0
    %v5546 = vadd.f32 0.0, %v5545
    %v5547 = vpop.f32.mrb[0].mxu0
    %v5548 = vadd.f32 0.0, %v5547
    %5549 = vdwg.mxu0
    %v5550 = vadd.f32 %v5404, %v5475
    %v5551 = vadd.f32 %v5405, %v5477
    %v5552 = vadd.f32 %v5406, %v5546
    %v5553 = vadd.f32 %v5407, %v5548
    %v5554 = vxor.u32 %v5550, 2147483648
    %v5555 = vmul.f32 %v5554, 1.442695
    %v5556 = vpow.pop %v5555
    %v5557 = vadd.f32 %v5556, 1.0
    %v5558 = vrcp.pop %v5557
    %v5559 = vmul.f32 1.0, %v5558
    %v5560 = vxor.u32 %v5551, 2147483648
    %v5561 = vmul.f32 %v5560, 1.442695
    %v5562 = vpow.pop %v5561
    %v5563 = vadd.f32 %v5562, 1.0
    %v5564 = vrcp.pop %v5563
    %v5565 = vmul.f32 1.0, %v5564
    %v5566 = vtanh.pop %v5552
    %v5567 = vxor.u32 %v5553, 2147483648
    %v5568 = vmul.f32 %v5567, 1.442695
    %v5569 = vpow.pop %v5568
    %v5570 = vadd.f32 %v5569, 1.0
    %v5571 = vrcp.pop %v5570
    %v5572 = vmul.f32 1.0, %v5571
    %v5573 = vmul.f32 %v5565, %v5401
    %v5574 = vmul.f32 %v5559, %v5566
    %v5575 = vadd.f32 %v5573, %v5574
    %v5576 = vtanh.pop %v5575
    %v5577 = vmul.f32 %v5572, %v5576
    %v5578 = vld [vmem:[#allocation2 + $0x40] sm:$0xff]
    %v5579 = vld [vmem:[#allocation2 + $0x48] sm:$0xff]
    %v5580 = vld [vmem:[#allocation2 + $0x50] sm:$0xff]
    %v5581 = vld [vmem:[#allocation2 + $0x58] sm:$0xff]
    %5582 = vmatprep.subr.mxu0 %v5171
    %5583 = vmatpush1.msra.mxu0 %v5170
    %5584 = vmatprep.subr.mxu0 %v5175
    %5585 = vmatpush1.msra.mxu0 %v5174
    %5586 = vmatprep.subr.mxu0 %v5179
    %5587 = vmatpush1.msra.mxu0 %v5178
    %5588 = vmatprep.subr.mxu0 %v5183
    %5589 = vmatpush1.msra.mxu0 %v5182
    %5590 = vmatprep.subr.mxu0 %v5187
    %5591 = vmatpush1.msra.mxu0 %v5186
    %5592 = vmatprep.subr.mxu0 %v5191
    %5593 = vmatpush1.msra.mxu0 %v5190
    %5594 = vmatprep.subr.mxu0 %v5195
    %5595 = vmatpush1.msra.mxu0 %v5194
    %5596 = vmatprep.subr.mxu0 %v5199
    %5597 = vmatpush1.msra.mxu0 %v5198
    %5598 = vmatprep.subr.mxu0 %v5203
    %5599 = vmatpush1.msra.mxu0 %v5202
    %5600 = vmatprep.subr.mxu0 %v5207
    %5601 = vmatpush1.msra.mxu0 %v5206
    %5602 = vmatprep.subr.mxu0 %v5211
    %5603 = vmatpush1.msra.mxu0 %v5210
    %5604 = vmatprep.subr.mxu0 %v5215
    %5605 = vmatpush1.msra.mxu0 %v5214
    %5606 = vmatprep.subr.mxu0 %v5219
    %5607 = vmatpush1.msra.mxu0 %v5218
    %5608 = vmatprep.subr.mxu0 %v5223
    %5609 = vmatpush1.msra.mxu0 %v5222
    %5610 = vmatprep.subr.mxu0 %v5227
    %5611 = vmatpush1.msra.mxu0 %v5226
    %5612 = vmatprep.subr.mxu0 %v5231
    %5613 = vmatpush1.msra.mxu0 %v5230
    %5614 = vmatprep.subr.mxu0 0.0
    %5615 = vmatpush1.msra.mxu0 0.0
    %5616 = vmatprep.subr.mxu0 0.0
    %5617 = vmatpush1.msra.mxu0 0.0
    %5618 = vmatprep.subr.mxu0 0.0
    %5619 = vmatpush1.msra.mxu0 0.0
    %5620 = vmatprep.subr.mxu0 0.0
    %5621 = vmatpush1.msra.mxu0 0.0
    %5622 = vmatprep.subr.mxu0 0.0
    %5623 = vmatpush1.msra.mxu0 0.0
    %5624 = vmatprep.subr.mxu0 0.0
    %5625 = vmatpush1.msra.mxu0 0.0
    %5626 = vmatprep.subr.mxu0 0.0
    %5627 = vmatpush1.msra.mxu0 0.0
    %5628 = vmatprep.subr.mxu0 0.0
    %5629 = vmatpush1.msra.mxu0 0.0
    %5630 = vmatprep.subr.mxu0 0.0
    %5631 = vmatpush1.msra.mxu0 0.0
    %5632 = vmatprep.subr.mxu0 0.0
    %5633 = vmatpush1.msra.mxu0 0.0
    %5634 = vmatprep.subr.mxu0 0.0
    %5635 = vmatpush1.msra.mxu0 0.0
    %5636 = vmatprep.subr.mxu0 0.0
    %5637 = vmatpush1.msra.mxu0 0.0
    %5638 = vmatprep.subr.mxu0 0.0
    %5639 = vmatpush1.msra.mxu0 0.0
    %5640 = vmatprep.subr.mxu0 0.0
    %5641 = vmatpush1.msra.mxu0 0.0
    %5642 = vmatprep.subr.mxu0 0.0
    %5643 = vmatpush1.msra.mxu0 0.0
    %5644 = vmatprep.subr.mxu0 0.0
    %5645 = vmatpush1.msra.mxu0 0.0
    %5646 = vmatprep.mubr.f32.mxu0 0.0
    %5647 = vmatmul.mubr.f32.gmra.mrb[0].mxu0 %v5577
    %v5648 = vpop.f32.mrb[0].mxu0
    %v5649 = vadd.f32 0.0, %v5648
    %v5650 = vpop.f32.mrb[0].mxu0
    %v5651 = vadd.f32 0.0, %v5650
    %5652 = vdwg.mxu0
    %5653 = vmatprep.subr.mxu0 %v5173
    %5654 = vmatpush1.msra.mxu0 %v5172
    %5655 = vmatprep.subr.mxu0 %v5177
    %5656 = vmatpush1.msra.mxu0 %v5176
    %5657 = vmatprep.subr.mxu0 %v5181
    %5658 = vmatpush1.msra.mxu0 %v5180
    %5659 = vmatprep.subr.mxu0 %v5185
    %5660 = vmatpush1.msra.mxu0 %v5184
    %5661 = vmatprep.subr.mxu0 %v5189
    %5662 = vmatpush1.msra.mxu0 %v5188
    %5663 = vmatprep.subr.mxu0 %v5193
    %5664 = vmatpush1.msra.mxu0 %v5192
    %5665 = vmatprep.subr.mxu0 %v5197
    %5666 = vmatpush1.msra.mxu0 %v5196
    %5667 = vmatprep.subr.mxu0 %v5201
    %5668 = vmatpush1.msra.mxu0 %v5200
    %5669 = vmatprep.subr.mxu0 %v5205
    %5670 = vmatpush1.msra.mxu0 %v5204
    %5671 = vmatprep.subr.mxu0 %v5209
    %5672 = vmatpush1.msra.mxu0 %v5208
    %5673 = vmatprep.subr.mxu0 %v5213
    %5674 = vmatpush1.msra.mxu0 %v5212
    %5675 = vmatprep.subr.mxu0 %v5217
    %5676 = vmatpush1.msra.mxu0 %v5216
    %5677 = vmatprep.subr.mxu0 %v5221
    %5678 = vmatpush1.msra.mxu0 %v5220
    %5679 = vmatprep.subr.mxu0 %v5225
    %5680 = vmatpush1.msra.mxu0 %v5224
    %5681 = vmatprep.subr.mxu0 %v5229
    %5682 = vmatpush1.msra.mxu0 %v5228
    %5683 = vmatprep.subr.mxu0 %v5233
    %5684 = vmatpush1.msra.mxu0 %v5232
    %5685 = vmatprep.subr.mxu0 0.0
    %5686 = vmatpush1.msra.mxu0 0.0
    %5687 = vmatprep.subr.mxu0 0.0
    %5688 = vmatpush1.msra.mxu0 0.0
    %5689 = vmatprep.subr.mxu0 0.0
    %5690 = vmatpush1.msra.mxu0 0.0
    %5691 = vmatprep.subr.mxu0 0.0
    %5692 = vmatpush1.msra.mxu0 0.0
    %5693 = vmatprep.subr.mxu0 0.0
    %5694 = vmatpush1.msra.mxu0 0.0
    %5695 = vmatprep.subr.mxu0 0.0
    %5696 = vmatpush1.msra.mxu0 0.0
    %5697 = vmatprep.subr.mxu0 0.0
    %5698 = vmatpush1.msra.mxu0 0.0
    %5699 = vmatprep.subr.mxu0 0.0
    %5700 = vmatpush1.msra.mxu0 0.0
    %5701 = vmatprep.subr.mxu0 0.0
    %5702 = vmatpush1.msra.mxu0 0.0
    %5703 = vmatprep.subr.mxu0 0.0
    %5704 = vmatpush1.msra.mxu0 0.0
    %5705 = vmatprep.subr.mxu0 0.0
    %5706 = vmatpush1.msra.mxu0 0.0
    %5707 = vmatprep.subr.mxu0 0.0
    %5708 = vmatpush1.msra.mxu0 0.0
    %5709 = vmatprep.subr.mxu0 0.0
    %5710 = vmatpush1.msra.mxu0 0.0
    %5711 = vmatprep.subr.mxu0 0.0
    %5712 = vmatpush1.msra.mxu0 0.0
    %5713 = vmatprep.subr.mxu0 0.0
    %5714 = vmatpush1.msra.mxu0 0.0
    %5715 = vmatprep.subr.mxu0 0.0
    %5716 = vmatpush1.msra.mxu0 0.0
    %5717 = vmatprep.mubr.f32.mxu0 0.0
    %5718 = vmatmul.mubr.f32.gmra.mrb[0].mxu0 %v5577
    %v5719 = vpop.f32.mrb[0].mxu0
    %v5720 = vadd.f32 0.0, %v5719
    %v5721 = vpop.f32.mrb[0].mxu0
    %v5722 = vadd.f32 0.0, %v5721
    %5723 = vdwg.mxu0
    %v5724 = vadd.f32 %v5578, %v5649
    %v5725 = vadd.f32 %v5579, %v5651
    %v5726 = vadd.f32 %v5580, %v5720
    %v5727 = vadd.f32 %v5581, %v5722
    %v5728 = vxor.u32 %v5724, 2147483648
    %v5729 = vmul.f32 %v5728, 1.442695
    %v5730 = vpow.pop %v5729
    %v5731 = vadd.f32 %v5730, 1.0
    %v5732 = vrcp.pop %v5731
    %v5733 = vmul.f32 1.0, %v5732
    %v5734 = vxor.u32 %v5725, 2147483648
    %v5735 = vmul.f32 %v5734, 1.442695
    %v5736 = vpow.pop %v5735
    %v5737 = vadd.f32 %v5736, 1.0
    %v5738 = vrcp.pop %v5737
    %v5739 = vmul.f32 1.0, %v5738
    %v5740 = vtanh.pop %v5726
    %v5741 = vxor.u32 %v5727, 2147483648
    %v5742 = vmul.f32 %v5741, 1.442695
    %v5743 = vpow.pop %v5742
    %v5744 = vadd.f32 %v5743, 1.0
    %v5745 = vrcp.pop %v5744
    %v5746 = vmul.f32 1.0, %v5745
    %v5747 = vmul.f32 %v5739, %v5575
    %v5748 = vmul.f32 %v5733, %v5740
    %v5749 = vadd.f32 %v5747, %v5748
    %v5750 = vtanh.pop %v5749
    %v5751 = vmul.f32 %v5746, %v5750
    %v5752 = vld [vmem:[#allocation2 + $0x60] sm:$0xff]
    %v5753 = vld [vmem:[#allocation2 + $0x68] sm:$0xff]
    %v5754 = vld [vmem:[#allocation2 + $0x70] sm:$0xff]
    %v5755 = vld [vmem:[#allocation2 + $0x78] sm:$0xff]
    %5756 = vmatprep.subr.mxu0 %v5171
    %5757 = vmatpush1.msra.mxu0 %v5170
    %5758 = vmatprep.subr.mxu0 %v5175
    %5759 = vmatpush1.msra.mxu0 %v5174
    %5760 = vmatprep.subr.mxu0 %v5179
    %5761 = vmatpush1.msra.mxu0 %v5178
    %5762 = vmatprep.subr.mxu0 %v5183
    %5763 = vmatpush1.msra.mxu0 %v5182
    %5764 = vmatprep.subr.mxu0 %v5187
    %5765 = vmatpush1.msra.mxu0 %v5186
    %5766 = vmatprep.subr.mxu0 %v5191
    %5767 = vmatpush1.msra.mxu0 %v5190
    %5768 = vmatprep.subr.mxu0 %v5195
    %5769 = vmatpush1.msra.mxu0 %v5194
    %5770 = vmatprep.subr.mxu0 %v5199
    %5771 = vmatpush1.msra.mxu0 %v5198
    %5772 = vmatprep.subr.mxu0 %v5203
    %5773 = vmatpush1.msra.mxu0 %v5202
    %5774 = vmatprep.subr.mxu0 %v5207
    %5775 = vmatpush1.msra.mxu0 %v5206
    %5776 = vmatprep.subr.mxu0 %v5211
    %5777 = vmatpush1.msra.mxu0 %v5210
    %5778 = vmatprep.subr.mxu0 %v5215
    %5779 = vmatpush1.msra.mxu0 %v5214
    %5780 = vmatprep.subr.mxu0 %v5219
    %5781 = vmatpush1.msra.mxu0 %v5218
    %5782 = vmatprep.subr.mxu0 %v5223
    %5783 = vmatpush1.msra.mxu0 %v5222
    %5784 = vmatprep.subr.mxu0 %v5227
    %5785 = vmatpush1.msra.mxu0 %v5226
    %5786 = vmatprep.subr.mxu0 %v5231
    %5787 = vmatpush1.msra.mxu0 %v5230
    %5788 = vmatprep.subr.mxu0 0.0
    %5789 = vmatpush1.msra.mxu0 0.0
    %5790 = vmatprep.subr.mxu0 0.0
    %5791 = vmatpush1.msra.mxu0 0.0
    %5792 = vmatprep.subr.mxu0 0.0
    %5793 = vmatpush1.msra.mxu0 0.0
    %5794 = vmatprep.subr.mxu0 0.0
    %5795 = vmatpush1.msra.mxu0 0.0
    %5796 = vmatprep.subr.mxu0 0.0
    %5797 = vmatpush1.msra.mxu0 0.0
    %5798 = vmatprep.subr.mxu0 0.0
    %5799 = vmatpush1.msra.mxu0 0.0
    %5800 = vmatprep.subr.mxu0 0.0
    %5801 = vmatpush1.msra.mxu0 0.0
    %5802 = vmatprep.subr.mxu0 0.0
    %5803 = vmatpush1.msra.mxu0 0.0
    %5804 = vmatprep.subr.mxu0 0.0
    %5805 = vmatpush1.msra.mxu0 0.0
    %5806 = vmatprep.subr.mxu0 0.0
    %5807 = vmatpush1.msra.mxu0 0.0
    %5808 = vmatprep.subr.mxu0 0.0
    %5809 = vmatpush1.msra.mxu0 0.0
    %5810 = vmatprep.subr.mxu0 0.0
    %5811 = vmatpush1.msra.mxu0 0.0
    %5812 = vmatprep.subr.mxu0 0.0
    %5813 = vmatpush1.msra.mxu0 0.0
    %5814 = vmatprep.subr.mxu0 0.0
    %5815 = vmatpush1.msra.mxu0 0.0
    %5816 = vmatprep.subr.mxu0 0.0
    %5817 = vmatpush1.msra.mxu0 0.0
    %5818 = vmatprep.subr.mxu0 0.0
    %5819 = vmatpush1.msra.mxu0 0.0
    %5820 = vmatprep.mubr.f32.mxu0 0.0
    %5821 = vmatmul.mubr.f32.gmra.mrb[0].mxu0 %v5751
    %v5822 = vpop.f32.mrb[0].mxu0
    %v5823 = vadd.f32 0.0, %v5822
    %v5824 = vpop.f32.mrb[0].mxu0
    %v5825 = vadd.f32 0.0, %v5824
    %5826 = vdwg.mxu0
    %5827 = vmatprep.subr.mxu0 %v5173
    %5828 = vmatpush1.msra.mxu0 %v5172
    %5829 = vmatprep.subr.mxu0 %v5177
    %5830 = vmatpush1.msra.mxu0 %v5176
    %5831 = vmatprep.subr.mxu0 %v5181
    %5832 = vmatpush1.msra.mxu0 %v5180
    %5833 = vmatprep.subr.mxu0 %v5185
    %5834 = vmatpush1.msra.mxu0 %v5184
    %5835 = vmatprep.subr.mxu0 %v5189
    %5836 = vmatpush1.msra.mxu0 %v5188
    %5837 = vmatprep.subr.mxu0 %v5193
    %5838 = vmatpush1.msra.mxu0 %v5192
    %5839 = vmatprep.subr.mxu0 %v5197
    %5840 = vmatpush1.msra.mxu0 %v5196
    %5841 = vmatprep.subr.mxu0 %v5201
    %5842 = vmatpush1.msra.mxu0 %v5200
    %5843 = vmatprep.subr.mxu0 %v5205
    %5844 = vmatpush1.msra.mxu0 %v5204
    %5845 = vmatprep.subr.mxu0 %v5209
    %5846 = vmatpush1.msra.mxu0 %v5208
    %5847 = vmatprep.subr.mxu0 %v5213
    %5848 = vmatpush1.msra.mxu0 %v5212
    %5849 = vmatprep.subr.mxu0 %v5217
    %5850 = vmatpush1.msra.mxu0 %v5216
    %5851 = vmatprep.subr.mxu0 %v5221
    %5852 = vmatpush1.msra.mxu0 %v5220
    %5853 = vmatprep.subr.mxu0 %v5225
    %5854 = vmatpush1.msra.mxu0 %v5224
    %5855 = vmatprep.subr.mxu0 %v5229
    %5856 = vmatpush1.msra.mxu0 %v5228
    %5857 = vmatprep.subr.mxu0 %v5233
    %5858 = vmatpush1.msra.mxu0 %v5232
    %5859 = vmatprep.subr.mxu0 0.0
    %5860 = vmatpush1.msra.mxu0 0.0
    %5861 = vmatprep.subr.mxu0 0.0
    %5862 = vmatpush1.msra.mxu0 0.0
    %5863 = vmatprep.subr.mxu0 0.0
    %5864 = vmatpush1.msra.mxu0 0.0
    %5865 = vmatprep.subr.mxu0 0.0
    %5866 = vmatpush1.msra.mxu0 0.0
    %5867 = vmatprep.subr.mxu0 0.0
    %5868 = vmatpush1.msra.mxu0 0.0
    %5869 = vmatprep.subr.mxu0 0.0
    %5870 = vmatpush1.msra.mxu0 0.0
    %5871 = vmatprep.subr.mxu0 0.0
    %5872 = vmatpush1.msra.mxu0 0.0
    %5873 = vmatprep.subr.mxu0 0.0
    %5874 = vmatpush1.msra.mxu0 0.0
    %5875 = vmatprep.subr.mxu0 0.0
    %5876 = vmatpush1.msra.mxu0 0.0
    %5877 = vmatprep.subr.mxu0 0.0
    %5878 = vmatpush1.msra.mxu0 0.0
    %5879 = vmatprep.subr.mxu0 0.0
    %5880 = vmatpush1.msra.mxu0 0.0
    %5881 = vmatprep.subr.mxu0 0.0
    %5882 = vmatpush1.msra.mxu0 0.0
    %5883 = vmatprep.subr.mxu0 0.0
    %5884 = vmatpush1.msra.mxu0 0.0
    %5885 = vmatprep.subr.mxu0 0.0
    %5886 = vmatpush1.msra.mxu0 0.0
    %5887 = vmatprep.subr.mxu0 0.0
    %5888 = vmatpush1.msra.mxu0 0.0
    %5889 = vmatprep.subr.mxu0 0.0
    %5890 = vmatpush1.msra.mxu0 0.0
    %5891 = vmatprep.mubr.f32.mxu0 0.0
    %5892 = vmatmul.mubr.f32.gmra.mrb[0].mxu0 %v5751
    %v5893 = vpop.f32.mrb[0].mxu0
    %v5894 = vadd.f32 0.0, %v5893
    %v5895 = vpop.f32.mrb[0].mxu0
    %v5896 = vadd.f32 0.0, %v5895
    %5897 = vdwg.mxu0
    %v5898 = vadd.f32 %v5752, %v5823
    %v5899 = vadd.f32 %v5753, %v5825
    %v5900 = vadd.f32 %v5754, %v5894
    %v5901 = vadd.f32 %v5755, %v5896
    %v5902 = vxor.u32 %v5898, 2147483648
    %v5903 = vmul.f32 %v5902, 1.442695
    %v5904 = vpow.pop %v5903
    %v5905 = vadd.f32 %v5904, 1.0
    %v5906 = vrcp.pop %v5905
    %v5907 = vmul.f32 1.0, %v5906
    %v5908 = vxor.u32 %v5899, 2147483648
    %v5909 = vmul.f32 %v5908, 1.442695
    %v5910 = vpow.pop %v5909
    %v5911 = vadd.f32 %v5910, 1.0
    %v5912 = vrcp.pop %v5911
    %v5913 = vmul.f32 1.0, %v5912
    %v5914 = vtanh.pop %v5900
    %v5915 = vxor.u32 %v5901, 2147483648
    %v5916 = vmul.f32 %v5915, 1.442695
    %v5917 = vpow.pop %v5916
    %v5918 = vadd.f32 %v5917, 1.0
    %v5919 = vrcp.pop %v5918
    %v5920 = vmul.f32 1.0, %v5919
    %v5921 = vmul.f32 %v5913, %v5749
    %v5922 = vmul.f32 %v5907, %v5914
    %v5923 = vadd.f32 %v5921, %v5922
    %v5924 = vtanh.pop %v5923
    %v5925 = vmul.f32 %v5920, %v5924
    %v5926 = vld [vmem:[#allocation2 + $0x80] sm:$0xff]
    %v5927 = vld [vmem:[#allocation2 + $0x88] sm:$0xff]
    %v5928 = vld [vmem:[#allocation2 + $0x90] sm:$0xff]
    %v5929 = vld [vmem:[#allocation2 + $0x98] sm:$0xff]
    %5930 = vmatprep.subr.mxu0 %v5171
    %5931 = vmatpush1.msra.mxu0 %v5170
    %5932 = vmatprep.subr.mxu0 %v5175
    %5933 = vmatpush1.msra.mxu0 %v5174
    %5934 = vmatprep.subr.mxu0 %v5179
    %5935 = vmatpush1.msra.mxu0 %v5178
    %5936 = vmatprep.subr.mxu0 %v5183
    %5937 = vmatpush1.msra.mxu0 %v5182
    %5938 = vmatprep.subr.mxu0 %v5187
    %5939 = vmatpush1.msra.mxu0 %v5186
    %5940 = vmatprep.subr.mxu0 %v5191
    %5941 = vmatpush1.msra.mxu0 %v5190
    %5942 = vmatprep.subr.mxu0 %v5195
    %5943 = vmatpush1.msra.mxu0 %v5194
    %5944 = vmatprep.subr.mxu0 %v5199
    %5945 = vmatpush1.msra.mxu0 %v5198
    %5946 = vmatprep.subr.mxu0 %v5203
    %5947 = vmatpush1.msra.mxu0 %v5202
    %5948 = vmatprep.subr.mxu0 %v5207
    %5949 = vmatpush1.msra.mxu0 %v5206
    %5950 = vmatprep.subr.mxu0 %v5211
    %5951 = vmatpush1.msra.mxu0 %v5210
    %5952 = vmatprep.subr.mxu0 %v5215
    %5953 = vmatpush1.msra.mxu0 %v5214
    %5954 = vmatprep.subr.mxu0 %v5219
    %5955 = vmatpush1.msra.mxu0 %v5218
    %5956 = vmatprep.subr.mxu0 %v5223
    %5957 = vmatpush1.msra.mxu0 %v5222
    %5958 = vmatprep.subr.mxu0 %v5227
    %5959 = vmatpush1.msra.mxu0 %v5226
    %5960 = vmatprep.subr.mxu0 %v5231
    %5961 = vmatpush1.msra.mxu0 %v5230
    %5962 = vmatprep.subr.mxu0 0.0
    %5963 = vmatpush1.msra.mxu0 0.0
    %5964 = vmatprep.subr.mxu0 0.0
    %5965 = vmatpush1.msra.mxu0 0.0
    %5966 = vmatprep.subr.mxu0 0.0
    %5967 = vmatpush1.msra.mxu0 0.0
    %5968 = vmatprep.subr.mxu0 0.0
    %5969 = vmatpush1.msra.mxu0 0.0
    %5970 = vmatprep.subr.mxu0 0.0
    %5971 = vmatpush1.msra.mxu0 0.0
    %5972 = vmatprep.subr.mxu0 0.0
    %5973 = vmatpush1.msra.mxu0 0.0
    %5974 = vmatprep.subr.mxu0 0.0
    %5975 = vmatpush1.msra.mxu0 0.0
    %5976 = vmatprep.subr.mxu0 0.0
    %5977 = vmatpush1.msra.mxu0 0.0
    %5978 = vmatprep.subr.mxu0 0.0
    %5979 = vmatpush1.msra.mxu0 0.0
    %5980 = vmatprep.subr.mxu0 0.0
    %5981 = vmatpush1.msra.mxu0 0.0
    %5982 = vmatprep.subr.mxu0 0.0
    %5983 = vmatpush1.msra.mxu0 0.0
    %5984 = vmatprep.subr.mxu0 0.0
    %5985 = vmatpush1.msra.mxu0 0.0
    %5986 = vmatprep.subr.mxu0 0.0
    %5987 = vmatpush1.msra.mxu0 0.0
    %5988 = vmatprep.subr.mxu0 0.0
    %5989 = vmatpush1.msra.mxu0 0.0
    %5990 = vmatprep.subr.mxu0 0.0
    %5991 = vmatpush1.msra.mxu0 0.0
    %5992 = vmatprep.subr.mxu0 0.0
    %5993 = vmatpush1.msra.mxu0 0.0
    %5994 = vmatprep.mubr.f32.mxu0 0.0
    %5995 = vmatmul.mubr.f32.gmra.mrb[0].mxu0 %v5925
    %v5996 = vpop.f32.mrb[0].mxu0
    %v5997 = vadd.f32 0.0, %v5996
    %v5998 = vpop.f32.mrb[0].mxu0
    %v5999 = vadd.f32 0.0, %v5998
    %6000 = vdwg.mxu0
    %6001 = vmatprep.subr.mxu0 %v5173
    %6002 = vmatpush1.msra.mxu0 %v5172
    %6003 = vmatprep.subr.mxu0 %v5177
    %6004 = vmatpush1.msra.mxu0 %v5176
    %6005 = vmatprep.subr.mxu0 %v5181
    %6006 = vmatpush1.msra.mxu0 %v5180
    %6007 = vmatprep.subr.mxu0 %v5185
    %6008 = vmatpush1.msra.mxu0 %v5184
    %6009 = vmatprep.subr.mxu0 %v5189
    %6010 = vmatpush1.msra.mxu0 %v5188
    %6011 = vmatprep.subr.mxu0 %v5193
    %6012 = vmatpush1.msra.mxu0 %v5192
    %6013 = vmatprep.subr.mxu0 %v5197
    %6014 = vmatpush1.msra.mxu0 %v5196
    %6015 = vmatprep.subr.mxu0 %v5201
    %6016 = vmatpush1.msra.mxu0 %v5200
    %6017 = vmatprep.subr.mxu0 %v5205
    %6018 = vmatpush1.msra.mxu0 %v5204
    %6019 = vmatprep.subr.mxu0 %v5209
    %6020 = vmatpush1.msra.mxu0 %v5208
    %6021 = vmatprep.subr.mxu0 %v5213
    %6022 = vmatpush1.msra.mxu0 %v5212
    %6023 = vmatprep.subr.mxu0 %v5217
    %6024 = vmatpush1.msra.mxu0 %v5216
    %6025 = vmatprep.subr.mxu0 %v5221
    %6026 = vmatpush1.msra.mxu0 %v5220
    %6027 = vmatprep.subr.mxu0 %v5225
    %6028 = vmatpush1.msra.mxu0 %v5224
    %6029 = vmatprep.subr.mxu0 %v5229
    %6030 = vmatpush1.msra.mxu0 %v5228
    %6031 = vmatprep.subr.mxu0 %v5233
    %6032 = vmatpush1.msra.mxu0 %v5232
    %6033 = vmatprep.subr.mxu0 0.0
    %6034 = vmatpush1.msra.mxu0 0.0
    %6035 = vmatprep.subr.mxu0 0.0
    %6036 = vmatpush1.msra.mxu0 0.0
    %6037 = vmatprep.subr.mxu0 0.0
    %6038 = vmatpush1.msra.mxu0 0.0
    %6039 = vmatprep.subr.mxu0 0.0
    %6040 = vmatpush1.msra.mxu0 0.0
    %6041 = vmatprep.subr.mxu0 0.0
    %6042 = vmatpush1.msra.mxu0 0.0
    %6043 = vmatprep.subr.mxu0 0.0
    %6044 = vmatpush1.msra.mxu0 0.0
    %6045 = vmatprep.subr.mxu0 0.0
    %6046 = vmatpush1.msra.mxu0 0.0
    %6047 = vmatprep.subr.mxu0 0.0
    %6048 = vmatpush1.msra.mxu0 0.0
    %6049 = vmatprep.subr.mxu0 0.0
    %6050 = vmatpush1.msra.mxu0 0.0
    %6051 = vmatprep.subr.mxu0 0.0
    %6052 = vmatpush1.msra.mxu0 0.0
    %6053 = vmatprep.subr.mxu0 0.0
    %6054 = vmatpush1.msra.mxu0 0.0
    %6055 = vmatprep.subr.mxu0 0.0
    %6056 = vmatpush1.msra.mxu0 0.0
    %6057 = vmatprep.subr.mxu0 0.0
    %6058 = vmatpush1.msra.mxu0 0.0
    %6059 = vmatprep.subr.mxu0 0.0
    %6060 = vmatpush1.msra.mxu0 0.0
    %6061 = vmatprep.subr.mxu0 0.0
    %6062 = vmatpush1.msra.mxu0 0.0
    %6063 = vmatprep.subr.mxu0 0.0
    %6064 = vmatpush1.msra.mxu0 0.0
    %6065 = vmatprep.mubr.f32.mxu0 0.0
    %6066 = vmatmul.mubr.f32.gmra.mrb[0].mxu0 %v5925
    %v6067 = vpop.f32.mrb[0].mxu0
    %v6068 = vadd.f32 0.0, %v6067
    %v6069 = vpop.f32.mrb[0].mxu0
    %v6070 = vadd.f32 0.0, %v6069
    %6071 = vdwg.mxu0
    %v6072 = vadd.f32 %v5926, %v5997
    %v6073 = vadd.f32 %v5927, %v5999
    %v6074 = vadd.f32 %v5928, %v6068
    %v6075 = vadd.f32 %v5929, %v6070
    %v6076 = vxor.u32 %v6072, 2147483648
    %v6077 = vmul.f32 %v6076, 1.442695
    %v6078 = vpow.pop %v6077
    %v6079 = vadd.f32 %v6078, 1.0
    %v6080 = vrcp.pop %v6079
    %v6081 = vmul.f32 1.0, %v6080
    %v6082 = vxor.u32 %v6073, 2147483648
    %v6083 = vmul.f32 %v6082, 1.442695
    %v6084 = vpow.pop %v6083
    %v6085 = vadd.f32 %v6084, 1.0
    %v6086 = vrcp.pop %v6085
    %v6087 = vmul.f32 1.0, %v6086
    %v6088 = vtanh.pop %v6074
    %v6089 = vxor.u32 %v6075, 2147483648
    %v6090 = vmul.f32 %v6089, 1.442695
    %v6091 = vpow.pop %v6090
    %v6092 = vadd.f32 %v6091, 1.0
    %v6093 = vrcp.pop %v6092
    %v6094 = vmul.f32 1.0, %v6093
    %v6095 = vmul.f32 %v6087, %v5923
    %v6096 = vmul.f32 %v6081, %v6088
    %v6097 = vadd.f32 %v6095, %v6096
    %v6098 = vtanh.pop %v6097
    %v6099 = vmul.f32 %v6094, %v6098
    %v6100 = vld [vmem:[#allocation2 + $0xa0] sm:$0xff]
    %v6101 = vld [vmem:[#allocation2 + $0xa8] sm:$0xff]
    %v6102 = vld [vmem:[#allocation2 + $0xb0] sm:$0xff]
    %v6103 = vld [vmem:[#allocation2 + $0xb8] sm:$0xff]
    %6104 = vmatprep.subr.mxu0 %v5171
    %6105 = vmatpush1.msra.mxu0 %v5170
    %6106 = vmatprep.subr.mxu0 %v5175
    %6107 = vmatpush1.msra.mxu0 %v5174
    %6108 = vmatprep.subr.mxu0 %v5179
    %6109 = vmatpush1.msra.mxu0 %v5178
    %6110 = vmatprep.subr.mxu0 %v5183
    %6111 = vmatpush1.msra.mxu0 %v5182
    %6112 = vmatprep.subr.mxu0 %v5187
    %6113 = vmatpush1.msra.mxu0 %v5186
    %6114 = vmatprep.subr.mxu0 %v5191
    %6115 = vmatpush1.msra.mxu0 %v5190
    %6116 = vmatprep.subr.mxu0 %v5195
    %6117 = vmatpush1.msra.mxu0 %v5194
    %6118 = vmatprep.subr.mxu0 %v5199
    %6119 = vmatpush1.msra.mxu0 %v5198
    %6120 = vmatprep.subr.mxu0 %v5203
    %6121 = vmatpush1.msra.mxu0 %v5202
    %6122 = vmatprep.subr.mxu0 %v5207
    %6123 = vmatpush1.msra.mxu0 %v5206
    %6124 = vmatprep.subr.mxu0 %v5211
    %6125 = vmatpush1.msra.mxu0 %v5210
    %6126 = vmatprep.subr.mxu0 %v5215
    %6127 = vmatpush1.msra.mxu0 %v5214
    %6128 = vmatprep.subr.mxu0 %v5219
    %6129 = vmatpush1.msra.mxu0 %v5218
    %6130 = vmatprep.subr.mxu0 %v5223
    %6131 = vmatpush1.msra.mxu0 %v5222
    %6132 = vmatprep.subr.mxu0 %v5227
    %6133 = vmatpush1.msra.mxu0 %v5226
    %6134 = vmatprep.subr.mxu0 %v5231
    %6135 = vmatpush1.msra.mxu0 %v5230
    %6136 = vmatprep.subr.mxu0 0.0
    %6137 = vmatpush1.msra.mxu0 0.0
    %6138 = vmatprep.subr.mxu0 0.0
    %6139 = vmatpush1.msra.mxu0 0.0
    %6140 = vmatprep.subr.mxu0 0.0
    %6141 = vmatpush1.msra.mxu0 0.0
    %6142 = vmatprep.subr.mxu0 0.0
    %6143 = vmatpush1.msra.mxu0 0.0
    %6144 = vmatprep.subr.mxu0 0.0
    %6145 = vmatpush1.msra.mxu0 0.0
    %6146 = vmatprep.subr.mxu0 0.0
    %6147 = vmatpush1.msra.mxu0 0.0
    %6148 = vmatprep.subr.mxu0 0.0
    %6149 = vmatpush1.msra.mxu0 0.0
    %6150 = vmatprep.subr.mxu0 0.0
    %6151 = vmatpush1.msra.mxu0 0.0
    %6152 = vmatprep.subr.mxu0 0.0
    %6153 = vmatpush1.msra.mxu0 0.0
    %6154 = vmatprep.subr.mxu0 0.0
    %6155 = vmatpush1.msra.mxu0 0.0
    %6156 = vmatprep.subr.mxu0 0.0
    %6157 = vmatpush1.msra.mxu0 0.0
    %6158 = vmatprep.subr.mxu0 0.0
    %6159 = vmatpush1.msra.mxu0 0.0
    %6160 = vmatprep.subr.mxu0 0.0
    %6161 = vmatpush1.msra.mxu0 0.0
    %6162 = vmatprep.subr.mxu0 0.0
    %6163 = vmatpush1.msra.mxu0 0.0
    %6164 = vmatprep.subr.mxu0 0.0
    %6165 = vmatpush1.msra.mxu0 0.0
    %6166 = vmatprep.subr.mxu0 0.0
    %6167 = vmatpush1.msra.mxu0 0.0
    %6168 = vmatprep.mubr.f32.mxu0 0.0
    %6169 = vmatmul.mubr.f32.gmra.mrb[0].mxu0 %v6099
    %v6170 = vpop.f32.mrb[0].mxu0
    %v6171 = vadd.f32 0.0, %v6170
    %v6172 = vpop.f32.mrb[0].mxu0
    %v6173 = vadd.f32 0.0, %v6172
    %6174 = vdwg.mxu0
    %6175 = vmatprep.subr.mxu0 %v5173
    %6176 = vmatpush1.msra.mxu0 %v5172
    %6177 = vmatprep.subr.mxu0 %v5177
    %6178 = vmatpush1.msra.mxu0 %v5176
    %6179 = vmatprep.subr.mxu0 %v5181
    %6180 = vmatpush1.msra.mxu0 %v5180
    %6181 = vmatprep.subr.mxu0 %v5185
    %6182 = vmatpush1.msra.mxu0 %v5184
    %6183 = vmatprep.subr.mxu0 %v5189
    %6184 = vmatpush1.msra.mxu0 %v5188
    %6185 = vmatprep.subr.mxu0 %v5193
    %6186 = vmatpush1.msra.mxu0 %v5192
    %6187 = vmatprep.subr.mxu0 %v5197
    %6188 = vmatpush1.msra.mxu0 %v5196
    %6189 = vmatprep.subr.mxu0 %v5201
    %6190 = vmatpush1.msra.mxu0 %v5200
    %6191 = vmatprep.subr.mxu0 %v5205
    %6192 = vmatpush1.msra.mxu0 %v5204
    %6193 = vmatprep.subr.mxu0 %v5209
    %6194 = vmatpush1.msra.mxu0 %v5208
    %6195 = vmatprep.subr.mxu0 %v5213
    %6196 = vmatpush1.msra.mxu0 %v5212
    %6197 = vmatprep.subr.mxu0 %v5217
    %6198 = vmatpush1.msra.mxu0 %v5216
    %6199 = vmatprep.subr.mxu0 %v5221
    %6200 = vmatpush1.msra.mxu0 %v5220
    %6201 = vmatprep.subr.mxu0 %v5225
    %6202 = vmatpush1.msra.mxu0 %v5224
    %6203 = vmatprep.subr.mxu0 %v5229
    %6204 = vmatpush1.msra.mxu0 %v5228
    %6205 = vmatprep.subr.mxu0 %v5233
    %6206 = vmatpush1.msra.mxu0 %v5232
    %6207 = vmatprep.subr.mxu0 0.0
    %6208 = vmatpush1.msra.mxu0 0.0
    %6209 = vmatprep.subr.mxu0 0.0
    %6210 = vmatpush1.msra.mxu0 0.0
    %6211 = vmatprep.subr.mxu0 0.0
    %6212 = vmatpush1.msra.mxu0 0.0
    %6213 = vmatprep.subr.mxu0 0.0
    %6214 = vmatpush1.msra.mxu0 0.0
    %6215 = vmatprep.subr.mxu0 0.0
    %6216 = vmatpush1.msra.mxu0 0.0
    %6217 = vmatprep.subr.mxu0 0.0
    %6218 = vmatpush1.msra.mxu0 0.0
    %6219 = vmatprep.subr.mxu0 0.0
    %6220 = vmatpush1.msra.mxu0 0.0
    %6221 = vmatprep.subr.mxu0 0.0
    %6222 = vmatpush1.msra.mxu0 0.0
    %6223 = vmatprep.subr.mxu0 0.0
    %6224 = vmatpush1.msra.mxu0 0.0
    %6225 = vmatprep.subr.mxu0 0.0
    %6226 = vmatpush1.msra.mxu0 0.0
    %6227 = vmatprep.subr.mxu0 0.0
    %6228 = vmatpush1.msra.mxu0 0.0
    %6229 = vmatprep.subr.mxu0 0.0
    %6230 = vmatpush1.msra.mxu0 0.0
    %6231 = vmatprep.subr.mxu0 0.0
    %6232 = vmatpush1.msra.mxu0 0.0
    %6233 = vmatprep.subr.mxu0 0.0
    %6234 = vmatpush1.msra.mxu0 0.0
    %6235 = vmatprep.subr.mxu0 0.0
    %6236 = vmatpush1.msra.mxu0 0.0
    %6237 = vmatprep.subr.mxu0 0.0
    %6238 = vmatpush1.msra.mxu0 0.0
    %6239 = vmatprep.mubr.f32.mxu0 0.0
    %6240 = vmatmul.mubr.f32.gmra.mrb[0].mxu0 %v6099
    %v6241 = vpop.f32.mrb[0].mxu0
    %v6242 = vadd.f32 0.0, %v6241
    %v6243 = vpop.f32.mrb[0].mxu0
    %v6244 = vadd.f32 0.0, %v6243
    %6245 = vdwg.mxu0
    %v6246 = vadd.f32 %v6100, %v6171
    %v6247 = vadd.f32 %v6101, %v6173
    %v6248 = vadd.f32 %v6102, %v6242
    %v6249 = vadd.f32 %v6103, %v6244
    %v6250 = vxor.u32 %v6246, 2147483648
    %v6251 = vmul.f32 %v6250, 1.442695
    %v6252 = vpow.pop %v6251
    %v6253 = vadd.f32 %v6252, 1.0
    %v6254 = vrcp.pop %v6253
    %v6255 = vmul.f32 1.0, %v6254
    %v6256 = vxor.u32 %v6247, 2147483648
    %v6257 = vmul.f32 %v6256, 1.442695
    %v6258 = vpow.pop %v6257
    %v6259 = vadd.f32 %v6258, 1.0
    %v6260 = vrcp.pop %v6259
    %v6261 = vmul.f32 1.0, %v6260
    %v6262 = vtanh.pop %v6248
    %v6263 = vxor.u32 %v6249, 2147483648
    %v6264 = vmul.f32 %v6263, 1.442695
    %v6265 = vpow.pop %v6264
    %v6266 = vadd.f32 %v6265, 1.0
    %v6267 = vrcp.pop %v6266
    %v6268 = vmul.f32 1.0, %v6267
    %v6269 = vmul.f32 %v6261, %v6097
    %v6270 = vmul.f32 %v6255, %v6262
    %v6271 = vadd.f32 %v6269, %v6270
    %v6272 = vtanh.pop %v6271
    %v6273 = vmul.f32 %v6268, %v6272
    %v6274 = vld [vmem:[#allocation2 + $0xc0] sm:$0xff]
    %v6275 = vld [vmem:[#allocation2 + $0xc8] sm:$0xff]
    %v6276 = vld [vmem:[#allocation2 + $0xd0] sm:$0xff]
    %v6277 = vld [vmem:[#allocation2 + $0xd8] sm:$0xff]
    %6278 = vmatprep.subr.mxu0 %v5171
    %6279 = vmatpush1.msra.mxu0 %v5170
    %6280 = vmatprep.subr.mxu0 %v5175
    %6281 = vmatpush1.msra.mxu0 %v5174
    %6282 = vmatprep.subr.mxu0 %v5179
    %6283 = vmatpush1.msra.mxu0 %v5178
    %6284 = vmatprep.subr.mxu0 %v5183
    %6285 = vmatpush1.msra.mxu0 %v5182
    %6286 = vmatprep.subr.mxu0 %v5187
    %6287 = vmatpush1.msra.mxu0 %v5186
    %6288 = vmatprep.subr.mxu0 %v5191
    %6289 = vmatpush1.msra.mxu0 %v5190
    %6290 = vmatprep.subr.mxu0 %v5195
    %6291 = vmatpush1.msra.mxu0 %v5194
    %6292 = vmatprep.subr.mxu0 %v5199
    %6293 = vmatpush1.msra.mxu0 %v5198
    %6294 = vmatprep.subr.mxu0 %v5203
    %6295 = vmatpush1.msra.mxu0 %v5202
    %6296 = vmatprep.subr.mxu0 %v5207
    %6297 = vmatpush1.msra.mxu0 %v5206
    %6298 = vmatprep.subr.mxu0 %v5211
    %6299 = vmatpush1.msra.mxu0 %v5210
    %6300 = vmatprep.subr.mxu0 %v5215
    %6301 = vmatpush1.msra.mxu0 %v5214
    %6302 = vmatprep.subr.mxu0 %v5219
    %6303 = vmatpush1.msra.mxu0 %v5218
    %6304 = vmatprep.subr.mxu0 %v5223
    %6305 = vmatpush1.msra.mxu0 %v5222
    %6306 = vmatprep.subr.mxu0 %v5227
    %6307 = vmatpush1.msra.mxu0 %v5226
    %6308 = vmatprep.subr.mxu0 %v5231
    %6309 = vmatpush1.msra.mxu0 %v5230
    %6310 = vmatprep.subr.mxu0 0.0
    %6311 = vmatpush1.msra.mxu0 0.0
    %6312 = vmatprep.subr.mxu0 0.0
    %6313 = vmatpush1.msra.mxu0 0.0
    %6314 = vmatprep.subr.mxu0 0.0
    %6315 = vmatpush1.msra.mxu0 0.0
    %6316 = vmatprep.subr.mxu0 0.0
    %6317 = vmatpush1.msra.mxu0 0.0
    %6318 = vmatprep.subr.mxu0 0.0
    %6319 = vmatpush1.msra.mxu0 0.0
    %6320 = vmatprep.subr.mxu0 0.0
    %6321 = vmatpush1.msra.mxu0 0.0
    %6322 = vmatprep.subr.mxu0 0.0
    %6323 = vmatpush1.msra.mxu0 0.0
    %6324 = vmatprep.subr.mxu0 0.0
    %6325 = vmatpush1.msra.mxu0 0.0
    %6326 = vmatprep.subr.mxu0 0.0
    %6327 = vmatpush1.msra.mxu0 0.0
    %6328 = vmatprep.subr.mxu0 0.0
    %6329 = vmatpush1.msra.mxu0 0.0
    %6330 = vmatprep.subr.mxu0 0.0
    %6331 = vmatpush1.msra.mxu0 0.0
    %6332 = vmatprep.subr.mxu0 0.0
    %6333 = vmatpush1.msra.mxu0 0.0
    %6334 = vmatprep.subr.mxu0 0.0
    %6335 = vmatpush1.msra.mxu0 0.0
    %6336 = vmatprep.subr.mxu0 0.0
    %6337 = vmatpush1.msra.mxu0 0.0
    %6338 = vmatprep.subr.mxu0 0.0
    %6339 = vmatpush1.msra.mxu0 0.0
    %6340 = vmatprep.subr.mxu0 0.0
    %6341 = vmatpush1.msra.mxu0 0.0
    %6342 = vmatprep.mubr.f32.mxu0 0.0
    %6343 = vmatmul.mubr.f32.gmra.mrb[0].mxu0 %v6273
    %v6344 = vpop.f32.mrb[0].mxu0
    %v6345 = vadd.f32 0.0, %v6344
    %v6346 = vpop.f32.mrb[0].mxu0
    %v6347 = vadd.f32 0.0, %v6346
    %6348 = vdwg.mxu0
    %6349 = vmatprep.subr.mxu0 %v5173
    %6350 = vmatpush1.msra.mxu0 %v5172
    %6351 = vmatprep.subr.mxu0 %v5177
    %6352 = vmatpush1.msra.mxu0 %v5176
    %6353 = vmatprep.subr.mxu0 %v5181
    %6354 = vmatpush1.msra.mxu0 %v5180
    %6355 = vmatprep.subr.mxu0 %v5185
    %6356 = vmatpush1.msra.mxu0 %v5184
    %6357 = vmatprep.subr.mxu0 %v5189
    %6358 = vmatpush1.msra.mxu0 %v5188
    %6359 = vmatprep.subr.mxu0 %v5193
    %6360 = vmatpush1.msra.mxu0 %v5192
    %6361 = vmatprep.subr.mxu0 %v5197
    %6362 = vmatpush1.msra.mxu0 %v5196
    %6363 = vmatprep.subr.mxu0 %v5201
    %6364 = vmatpush1.msra.mxu0 %v5200
    %6365 = vmatprep.subr.mxu0 %v5205
    %6366 = vmatpush1.msra.mxu0 %v5204
    %6367 = vmatprep.subr.mxu0 %v5209
    %6368 = vmatpush1.msra.mxu0 %v5208
    %6369 = vmatprep.subr.mxu0 %v5213
    %6370 = vmatpush1.msra.mxu0 %v5212
    %6371 = vmatprep.subr.mxu0 %v5217
    %6372 = vmatpush1.msra.mxu0 %v5216
    %6373 = vmatprep.subr.mxu0 %v5221
    %6374 = vmatpush1.msra.mxu0 %v5220
    %6375 = vmatprep.subr.mxu0 %v5225
    %6376 = vmatpush1.msra.mxu0 %v5224
    %6377 = vmatprep.subr.mxu0 %v5229
    %6378 = vmatpush1.msra.mxu0 %v5228
    %6379 = vmatprep.subr.mxu0 %v5233
    %6380 = vmatpush1.msra.mxu0 %v5232
    %6381 = vmatprep.subr.mxu0 0.0
    %6382 = vmatpush1.msra.mxu0 0.0
    %6383 = vmatprep.subr.mxu0 0.0
    %6384 = vmatpush1.msra.mxu0 0.0
    %6385 = vmatprep.subr.mxu0 0.0
    %6386 = vmatpush1.msra.mxu0 0.0
    %6387 = vmatprep.subr.mxu0 0.0
    %6388 = vmatpush1.msra.mxu0 0.0
    %6389 = vmatprep.subr.mxu0 0.0
    %6390 = vmatpush1.msra.mxu0 0.0
    %6391 = vmatprep.subr.mxu0 0.0
    %6392 = vmatpush1.msra.mxu0 0.0
    %6393 = vmatprep.subr.mxu0 0.0
    %6394 = vmatpush1.msra.mxu0 0.0
    %6395 = vmatprep.subr.mxu0 0.0
    %6396 = vmatpush1.msra.mxu0 0.0
    %6397 = vmatprep.subr.mxu0 0.0
    %6398 = vmatpush1.msra.mxu0 0.0
    %6399 = vmatprep.subr.mxu0 0.0
    %6400 = vmatpush1.msra.mxu0 0.0
    %6401 = vmatprep.subr.mxu0 0.0
    %6402 = vmatpush1.msra.mxu0 0.0
    %6403 = vmatprep.subr.mxu0 0.0
    %6404 = vmatpush1.msra.mxu0 0.0
    %6405 = vmatprep.subr.mxu0 0.0
    %6406 = vmatpush1.msra.mxu0 0.0
    %6407 = vmatprep.subr.mxu0 0.0
    %6408 = vmatpush1.msra.mxu0 0.0
    %6409 = vmatprep.subr.mxu0 0.0
    %6410 = vmatpush1.msra.mxu0 0.0
    %6411 = vmatprep.subr.mxu0 0.0
    %6412 = vmatpush1.msra.mxu0 0.0
    %6413 = vmatprep.mubr.f32.mxu0 0.0
    %6414 = vmatmul.mubr.f32.gmra.mrb[0].mxu0 %v6273
    %v6415 = vpop.f32.mrb[0].mxu0
    %v6416 = vadd.f32 0.0, %v6415
    %v6417 = vpop.f32.mrb[0].mxu0
    %v6418 = vadd.f32 0.0, %v6417
    %6419 = vdwg.mxu0
    %v6420 = vadd.f32 %v6274, %v6345
    %v6421 = vadd.f32 %v6275, %v6347
    %v6422 = vadd.f32 %v6276, %v6416
    %v6423 = vadd.f32 %v6277, %v6418
    %v6424 = vxor.u32 %v6420, 2147483648
    %v6425 = vmul.f32 %v6424, 1.442695
    %v6426 = vpow.pop %v6425
    %v6427 = vadd.f32 %v6426, 1.0
    %v6428 = vrcp.pop %v6427
    %v6429 = vmul.f32 1.0, %v6428
    %v6430 = vxor.u32 %v6421, 2147483648
    %v6431 = vmul.f32 %v6430, 1.442695
    %v6432 = vpow.pop %v6431
    %v6433 = vadd.f32 %v6432, 1.0
    %v6434 = vrcp.pop %v6433
    %v6435 = vmul.f32 1.0, %v6434
    %v6436 = vtanh.pop %v6422
    %v6437 = vxor.u32 %v6423, 2147483648
    %v6438 = vmul.f32 %v6437, 1.442695
    %v6439 = vpow.pop %v6438
    %v6440 = vadd.f32 %v6439, 1.0
    %v6441 = vrcp.pop %v6440
    %v6442 = vmul.f32 1.0, %v6441
    %v6443 = vmul.f32 %v6435, %v6271
    %v6444 = vmul.f32 %v6429, %v6436
    %v6445 = vadd.f32 %v6443, %v6444
    %v6446 = vtanh.pop %v6445
    %v6447 = vmul.f32 %v6442, %v6446
    %v6448 = vld [vmem:[#allocation2 + $0xe0] sm:$0xff]
    %v6449 = vld [vmem:[#allocation2 + $0xe8] sm:$0xff]
    %v6450 = vld [vmem:[#allocation2 + $0xf0] sm:$0xff]
    %v6451 = vld [vmem:[#allocation2 + $0xf8] sm:$0xff]
    %6452 = vmatprep.subr.mxu0 %v5171
    %6453 = vmatpush1.msra.mxu0 %v5170
    %6454 = vmatprep.subr.mxu0 %v5175
    %6455 = vmatpush1.msra.mxu0 %v5174
    %6456 = vmatprep.subr.mxu0 %v5179
    %6457 = vmatpush1.msra.mxu0 %v5178
    %6458 = vmatprep.subr.mxu0 %v5183
    %6459 = vmatpush1.msra.mxu0 %v5182
    %6460 = vmatprep.subr.mxu0 %v5187
    %6461 = vmatpush1.msra.mxu0 %v5186
    %6462 = vmatprep.subr.mxu0 %v5191
    %6463 = vmatpush1.msra.mxu0 %v5190
    %6464 = vmatprep.subr.mxu0 %v5195
    %6465 = vmatpush1.msra.mxu0 %v5194
    %6466 = vmatprep.subr.mxu0 %v5199
    %6467 = vmatpush1.msra.mxu0 %v5198
    %6468 = vmatprep.subr.mxu0 %v5203
    %6469 = vmatpush1.msra.mxu0 %v5202
    %6470 = vmatprep.subr.mxu0 %v5207
    %6471 = vmatpush1.msra.mxu0 %v5206
    %6472 = vmatprep.subr.mxu0 %v5211
    %6473 = vmatpush1.msra.mxu0 %v5210
    %6474 = vmatprep.subr.mxu0 %v5215
    %6475 = vmatpush1.msra.mxu0 %v5214
    %6476 = vmatprep.subr.mxu0 %v5219
    %6477 = vmatpush1.msra.mxu0 %v5218
    %6478 = vmatprep.subr.mxu0 %v5223
    %6479 = vmatpush1.msra.mxu0 %v5222
    %6480 = vmatprep.subr.mxu0 %v5227
    %6481 = vmatpush1.msra.mxu0 %v5226
    %6482 = vmatprep.subr.mxu0 %v5231
    %6483 = vmatpush1.msra.mxu0 %v5230
    %6484 = vmatprep.subr.mxu0 0.0
    %6485 = vmatpush1.msra.mxu0 0.0
    %6486 = vmatprep.subr.mxu0 0.0
    %6487 = vmatpush1.msra.mxu0 0.0
    %6488 = vmatprep.subr.mxu0 0.0
    %6489 = vmatpush1.msra.mxu0 0.0
    %6490 = vmatprep.subr.mxu0 0.0
    %6491 = vmatpush1.msra.mxu0 0.0
    %6492 = vmatprep.subr.mxu0 0.0
    %6493 = vmatpush1.msra.mxu0 0.0
    %6494 = vmatprep.subr.mxu0 0.0
    %6495 = vmatpush1.msra.mxu0 0.0
    %6496 = vmatprep.subr.mxu0 0.0
    %6497 = vmatpush1.msra.mxu0 0.0
    %6498 = vmatprep.subr.mxu0 0.0
    %6499 = vmatpush1.msra.mxu0 0.0
    %6500 = vmatprep.subr.mxu0 0.0
    %6501 = vmatpush1.msra.mxu0 0.0
    %6502 = vmatprep.subr.mxu0 0.0
    %6503 = vmatpush1.msra.mxu0 0.0
    %6504 = vmatprep.subr.mxu0 0.0
    %6505 = vmatpush1.msra.mxu0 0.0
    %6506 = vmatprep.subr.mxu0 0.0
    %6507 = vmatpush1.msra.mxu0 0.0
    %6508 = vmatprep.subr.mxu0 0.0
    %6509 = vmatpush1.msra.mxu0 0.0
    %6510 = vmatprep.subr.mxu0 0.0
    %6511 = vmatpush1.msra.mxu0 0.0
    %6512 = vmatprep.subr.mxu0 0.0
    %6513 = vmatpush1.msra.mxu0 0.0
    %6514 = vmatprep.subr.mxu0 0.0
    %6515 = vmatpush1.msra.mxu0 0.0
    %6516 = vmatprep.mubr.f32.mxu0 0.0
    %6517 = vmatmul.mubr.f32.gmra.mrb[0].mxu0 %v6447
    %v6518 = vpop.f32.mrb[0].mxu0
    %v6519 = vadd.f32 0.0, %v6518
    %v6520 = vpop.f32.mrb[0].mxu0
    %v6521 = vadd.f32 0.0, %v6520
    %6522 = vdwg.mxu0
    %6523 = vmatprep.subr.mxu0 %v5173
    %6524 = vmatpush1.msra.mxu0 %v5172
    %6525 = vmatprep.subr.mxu0 %v5177
    %6526 = vmatpush1.msra.mxu0 %v5176
    %6527 = vmatprep.subr.mxu0 %v5181
    %6528 = vmatpush1.msra.mxu0 %v5180
    %6529 = vmatprep.subr.mxu0 %v5185
    %6530 = vmatpush1.msra.mxu0 %v5184
    %6531 = vmatprep.subr.mxu0 %v5189
    %6532 = vmatpush1.msra.mxu0 %v5188
    %6533 = vmatprep.subr.mxu0 %v5193
    %6534 = vmatpush1.msra.mxu0 %v5192
    %6535 = vmatprep.subr.mxu0 %v5197
    %6536 = vmatpush1.msra.mxu0 %v5196
    %6537 = vmatprep.subr.mxu0 %v5201
    %6538 = vmatpush1.msra.mxu0 %v5200
    %6539 = vmatprep.subr.mxu0 %v5205
    %6540 = vmatpush1.msra.mxu0 %v5204
    %6541 = vmatprep.subr.mxu0 %v5209
    %6542 = vmatpush1.msra.mxu0 %v5208
    %6543 = vmatprep.subr.mxu0 %v5213
    %6544 = vmatpush1.msra.mxu0 %v5212
    %6545 = vmatprep.subr.mxu0 %v5217
    %6546 = vmatpush1.msra.mxu0 %v5216
    %6547 = vmatprep.subr.mxu0 %v5221
    %6548 = vmatpush1.msra.mxu0 %v5220
    %6549 = vmatprep.subr.mxu0 %v5225
    %6550 = vmatpush1.msra.mxu0 %v5224
    %6551 = vmatprep.subr.mxu0 %v5229
    %6552 = vmatpush1.msra.mxu0 %v5228
    %6553 = vmatprep.subr.mxu0 %v5233
    %6554 = vmatpush1.msra.mxu0 %v5232
    %6555 = vmatprep.subr.mxu0 0.0
    %6556 = vmatpush1.msra.mxu0 0.0
    %6557 = vmatprep.subr.mxu0 0.0
    %6558 = vmatpush1.msra.mxu0 0.0
    %6559 = vmatprep.subr.mxu0 0.0
    %6560 = vmatpush1.msra.mxu0 0.0
    %6561 = vmatprep.subr.mxu0 0.0
    %6562 = vmatpush1.msra.mxu0 0.0
    %6563 = vmatprep.subr.mxu0 0.0
    %6564 = vmatpush1.msra.mxu0 0.0
    %6565 = vmatprep.subr.mxu0 0.0
    %6566 = vmatpush1.msra.mxu0 0.0
    %6567 = vmatprep.subr.mxu0 0.0
    %6568 = vmatpush1.msra.mxu0 0.0
    %6569 = vmatprep.subr.mxu0 0.0
    %6570 = vmatpush1.msra.mxu0 0.0
    %6571 = vmatprep.subr.mxu0 0.0
    %6572 = vmatpush1.msra.mxu0 0.0
    %6573 = vmatprep.subr.mxu0 0.0
    %6574 = vmatpush1.msra.mxu0 0.0
    %6575 = vmatprep.subr.mxu0 0.0
    %6576 = vmatpush1.msra.mxu0 0.0
    %6577 = vmatprep.subr.mxu0 0.0
    %6578 = vmatpush1.msra.mxu0 0.0
    %6579 = vmatprep.subr.mxu0 0.0
    %6580 = vmatpush1.msra.mxu0 0.0
    %6581 = vmatprep.subr.mxu0 0.0
    %6582 = vmatpush1.msra.mxu0 0.0
    %6583 = vmatprep.subr.mxu0 0.0
    %6584 = vmatpush1.msra.mxu0 0.0
    %6585 = vmatprep.subr.mxu0 0.0
    %6586 = vmatpush1.msra.mxu0 0.0
    %6587 = vmatprep.mubr.f32.mxu0 0.0
    %6588 = vmatmul.mubr.f32.gmra.mrb[0].mxu0 %v6447
    %v6589 = vpop.f32.mrb[0].mxu0
    %v6590 = vadd.f32 0.0, %v6589
    %v6591 = vpop.f32.mrb[0].mxu0
    %v6592 = vadd.f32 0.0, %v6591
    %6593 = vdwg.mxu0
    %v6594 = vadd.f32 %v6448, %v6519
    %v6595 = vadd.f32 %v6449, %v6521
    %v6596 = vadd.f32 %v6450, %v6590
    %v6597 = vadd.f32 %v6451, %v6592
    %v6598 = vxor.u32 %v6594, 2147483648
    %v6599 = vmul.f32 %v6598, 1.442695
    %v6600 = vpow.pop %v6599
    %v6601 = vadd.f32 %v6600, 1.0
    %v6602 = vrcp.pop %v6601
    %v6603 = vmul.f32 1.0, %v6602
    %v6604 = vxor.u32 %v6595, 2147483648
    %v6605 = vmul.f32 %v6604, 1.442695
    %v6606 = vpow.pop %v6605
    %v6607 = vadd.f32 %v6606, 1.0
    %v6608 = vrcp.pop %v6607
    %v6609 = vmul.f32 1.0, %v6608
    %v6610 = vtanh.pop %v6596
    %v6611 = vxor.u32 %v6597, 2147483648
    %v6612 = vmul.f32 %v6611, 1.442695
    %v6613 = vpow.pop %v6612
    %v6614 = vadd.f32 %v6613, 1.0
    %v6615 = vrcp.pop %v6614
    %v6616 = vmul.f32 1.0, %v6615
    %v6617 = vmul.f32 %v6609, %v6445
    %v6618 = vmul.f32 %v6603, %v6610
    %v6619 = vadd.f32 %v6617, %v6618
    %v6620 = vtanh.pop %v6619
    %v6621 = vmul.f32 %v6616, %v6620
    %v6622 = vld [vmem:[%s10] sm:$0xff]
    %v6623 = vld [vmem:[%s10 + $0x8] sm:$0xff]
    %v6624 = vld [vmem:[%s10 + $0x10] sm:$0xff]
    %v6625 = vld [vmem:[%s10 + $0x18] sm:$0xff]
    %v6626 = vld [vmem:[%s10 + $0x20] sm:$0xff]
    %v6627 = vld [vmem:[%s10 + $0x28] sm:$0xff]
    %v6628 = vld [vmem:[%s10 + $0x30] sm:$0xff]
    %v6629 = vld [vmem:[%s10 + $0x38] sm:$0xff]
    %v6630 = vld [vmem:[%s10 + $0x40] sm:$0xff]
    %v6631 = vld [vmem:[%s10 + $0x48] sm:$0xff]
    %v6632 = vld [vmem:[%s10 + $0x50] sm:$0xff]
    %v6633 = vld [vmem:[%s10 + $0x58] sm:$0xff]
    %v6634 = vld [vmem:[%s10 + $0x60] sm:$0xff]
    %v6635 = vld [vmem:[%s10 + $0x68] sm:$0xff]
    %v6636 = vld [vmem:[%s10 + $0x70] sm:$0xff]
    %v6637 = vld [vmem:[%s10 + $0x78] sm:$0xff]
    %v6638 = vld [vmem:[%s11] sm:$0x1]
    %v6640 = vlaneseq
    %v6641 = vshrl.u32 %v6640, 7
    %v6642 = vsub.s32 0, %v6641
    %v6643 = vrot.slane %v6638, %v6642
    %6645 = vmatprep.subr.mxu0 0.0
    %6646 = vmatpush1.msra.mxu0 %v6622
    %6647 = vmatprep.subr.mxu0 0.0
    %6648 = vmatpush1.msra.mxu0 %v6623
    %6649 = vmatprep.subr.mxu0 0.0
    %6650 = vmatpush1.msra.mxu0 %v6624
    %6651 = vmatprep.subr.mxu0 0.0
    %6652 = vmatpush1.msra.mxu0 %v6625
    %6653 = vmatprep.subr.mxu0 0.0
    %6654 = vmatpush1.msra.mxu0 %v6626
    %6655 = vmatprep.subr.mxu0 0.0
    %6656 = vmatpush1.msra.mxu0 %v6627
    %6657 = vmatprep.subr.mxu0 0.0
    %6658 = vmatpush1.msra.mxu0 %v6628
    %6659 = vmatprep.subr.mxu0 0.0
    %6660 = vmatpush1.msra.mxu0 %v6629
    %6661 = vmatprep.subr.mxu0 0.0
    %6662 = vmatpush1.msra.mxu0 %v6630
    %6663 = vmatprep.subr.mxu0 0.0
    %6664 = vmatpush1.msra.mxu0 %v6631
    %6665 = vmatprep.subr.mxu0 0.0
    %6666 = vmatpush1.msra.mxu0 %v6632
    %6667 = vmatprep.subr.mxu0 0.0
    %6668 = vmatpush1.msra.mxu0 %v6633
    %6669 = vmatprep.subr.mxu0 0.0
    %6670 = vmatpush1.msra.mxu0 %v6634
    %6671 = vmatprep.subr.mxu0 0.0
    %6672 = vmatpush1.msra.mxu0 %v6635
    %6673 = vmatprep.subr.mxu0 0.0
    %6674 = vmatpush1.msra.mxu0 %v6636
    %6675 = vmatprep.subr.mxu0 0.0
    %6676 = vmatpush1.msra.mxu0 %v6637
    %6677 = vmatprep.subr.mxu0 0.0
    %6678 = vmatpush1.msra.mxu0 0.0
    %6679 = vmatprep.subr.mxu0 0.0
    %6680 = vmatpush1.msra.mxu0 0.0
    %6681 = vmatprep.subr.mxu0 0.0
    %6682 = vmatpush1.msra.mxu0 0.0
    %6683 = vmatprep.subr.mxu0 0.0
    %6684 = vmatpush1.msra.mxu0 0.0
    %6685 = vmatprep.subr.mxu0 0.0
    %6686 = vmatpush1.msra.mxu0 0.0
    %6687 = vmatprep.subr.mxu0 0.0
    %6688 = vmatpush1.msra.mxu0 0.0
    %6689 = vmatprep.subr.mxu0 0.0
    %6690 = vmatpush1.msra.mxu0 0.0
    %6691 = vmatprep.subr.mxu0 0.0
    %6692 = vmatpush1.msra.mxu0 0.0
    %6693 = vmatprep.subr.mxu0 0.0
    %6694 = vmatpush1.msra.mxu0 0.0
    %6695 = vmatprep.subr.mxu0 0.0
    %6696 = vmatpush1.msra.mxu0 0.0
    %6697 = vmatprep.subr.mxu0 0.0
    %6698 = vmatpush1.msra.mxu0 0.0
    %6699 = vmatprep.subr.mxu0 0.0
    %6700 = vmatpush1.msra.mxu0 0.0
    %6701 = vmatprep.subr.mxu0 0.0
    %6702 = vmatpush1.msra.mxu0 0.0
    %6703 = vmatprep.subr.mxu0 0.0
    %6704 = vmatpush1.msra.mxu0 0.0
    %6705 = vmatprep.subr.mxu0 0.0
    %6706 = vmatpush1.msra.mxu0 0.0
    %6707 = vmatprep.subr.mxu0 0.0
    %6708 = vmatpush1.msra.mxu0 0.0
    %6709 = vmatprep.mubr.f32.mxu0 0.0
    %6710 = vmatmul.mubr.f32.gmra.mrb[0].mxu0 %v6621
    %v6711 = vpop.f32.mrb[0].mxu0
    %v6712 = vadd.f32 %v6643, %v6711
    %v6713 = vpop.f32.mrb[0].mxu0
    %6714 = vdwg.mxu0
    %v6715 = vld [vmem:[%s12] sm:$0xff]
    %v6716 = vld [vmem:[%s12 + $0x8] sm:$0xff]
    %v6717 = vld [vmem:[%s12 + $0x10] sm:$0xff]
    %v6718 = vld [vmem:[%s12 + $0x18] sm:$0xff]
    %v6719 = vld [vmem:[%s12 + $0x20] sm:$0xff]
    %v6720 = vld [vmem:[%s12 + $0x28] sm:$0xff]
    %v6721 = vld [vmem:[%s12 + $0x30] sm:$0xff]
    %v6722 = vld [vmem:[%s12 + $0x38] sm:$0xff]
    %v6723 = vld [vmem:[%s12 + $0x40] sm:$0xff]
    %v6724 = vld [vmem:[%s12 + $0x48] sm:$0xff]
    %v6725 = vld [vmem:[%s12 + $0x50] sm:$0xff]
    %v6726 = vld [vmem:[%s12 + $0x58] sm:$0xff]
    %v6727 = vld [vmem:[%s12 + $0x60] sm:$0xff]
    %v6728 = vld [vmem:[%s12 + $0x68] sm:$0xff]
    %v6729 = vld [vmem:[%s12 + $0x70] sm:$0xff]
    %v6730 = vld [vmem:[%s12 + $0x78] sm:$0xff]
    %v6731 = vld [vmem:[%s13] sm:$0x1]
    %v6733 = vlaneseq
    %v6734 = vshrl.u32 %v6733, 7
    %v6735 = vsub.s32 0, %v6734
    %v6736 = vrot.slane %v6731, %v6735
    %6738 = vmatprep.subr.mxu0 0.0
    %6739 = vmatpush1.msra.mxu0 %v6715
    %6740 = vmatprep.subr.mxu0 0.0
    %6741 = vmatpush1.msra.mxu0 %v6716
    %6742 = vmatprep.subr.mxu0 0.0
    %6743 = vmatpush1.msra.mxu0 %v6717
    %6744 = vmatprep.subr.mxu0 0.0
    %6745 = vmatpush1.msra.mxu0 %v6718
    %6746 = vmatprep.subr.mxu0 0.0
    %6747 = vmatpush1.msra.mxu0 %v6719
    %6748 = vmatprep.subr.mxu0 0.0
    %6749 = vmatpush1.msra.mxu0 %v6720
    %6750 = vmatprep.subr.mxu0 0.0
    %6751 = vmatpush1.msra.mxu0 %v6721
    %6752 = vmatprep.subr.mxu0 0.0
    %6753 = vmatpush1.msra.mxu0 %v6722
    %6754 = vmatprep.subr.mxu0 0.0
    %6755 = vmatpush1.msra.mxu0 %v6723
    %6756 = vmatprep.subr.mxu0 0.0
    %6757 = vmatpush1.msra.mxu0 %v6724
    %6758 = vmatprep.subr.mxu0 0.0
    %6759 = vmatpush1.msra.mxu0 %v6725
    %6760 = vmatprep.subr.mxu0 0.0
    %6761 = vmatpush1.msra.mxu0 %v6726
    %6762 = vmatprep.subr.mxu0 0.0
    %6763 = vmatpush1.msra.mxu0 %v6727
    %6764 = vmatprep.subr.mxu0 0.0
    %6765 = vmatpush1.msra.mxu0 %v6728
    %6766 = vmatprep.subr.mxu0 0.0
    %6767 = vmatpush1.msra.mxu0 %v6729
    %6768 = vmatprep.subr.mxu0 0.0
    %6769 = vmatpush1.msra.mxu0 %v6730
    %6770 = vmatprep.subr.mxu0 0.0
    %6771 = vmatpush1.msra.mxu0 0.0
    %6772 = vmatprep.subr.mxu0 0.0
    %6773 = vmatpush1.msra.mxu0 0.0
    %6774 = vmatprep.subr.mxu0 0.0
    %6775 = vmatpush1.msra.mxu0 0.0
    %6776 = vmatprep.subr.mxu0 0.0
    %6777 = vmatpush1.msra.mxu0 0.0
    %6778 = vmatprep.subr.mxu0 0.0
    %6779 = vmatpush1.msra.mxu0 0.0
    %6780 = vmatprep.subr.mxu0 0.0
    %6781 = vmatpush1.msra.mxu0 0.0
    %6782 = vmatprep.subr.mxu0 0.0
    %6783 = vmatpush1.msra.mxu0 0.0
    %6784 = vmatprep.subr.mxu0 0.0
    %6785 = vmatpush1.msra.mxu0 0.0
    %6786 = vmatprep.subr.mxu0 0.0
    %6787 = vmatpush1.msra.mxu0 0.0
    %6788 = vmatprep.subr.mxu0 0.0
    %6789 = vmatpush1.msra.mxu0 0.0
    %6790 = vmatprep.subr.mxu0 0.0
    %6791 = vmatpush1.msra.mxu0 0.0
    %6792 = vmatprep.subr.mxu0 0.0
    %6793 = vmatpush1.msra.mxu0 0.0
    %6794 = vmatprep.subr.mxu0 0.0
    %6795 = vmatpush1.msra.mxu0 0.0
    %6796 = vmatprep.subr.mxu0 0.0
    %6797 = vmatpush1.msra.mxu0 0.0
    %6798 = vmatprep.subr.mxu0 0.0
    %6799 = vmatpush1.msra.mxu0 0.0
    %6800 = vmatprep.subr.mxu0 0.0
    %6801 = vmatpush1.msra.mxu0 0.0
    %6802 = vmatprep.mubr.f32.mxu0 0.0
    %6803 = vmatmul.mubr.f32.gmra.mrb[0].mxu0 %v6712
    %v6804 = vpop.f32.mrb[0].mxu0
    %v6805 = vadd.f32 %v6736, %v6804
    %v6806 = vpop.f32.mrb[0].mxu0
    %6807 = vdwg.mxu0
    %vm6808 = vcmask 326656
    %6809 = vst.msk [vmem:[%s14] sm:$0xff] %vm6808, %v6805
    // Predicated region
    $region82: #{feature_extraction_forward.1} parent=1 // pred_check
      _
    $region83: #{feature_extraction_forward.1} parent=1 // pred_check_branch
      %6811 = sbr.rel (0) target = $region85
    $region84: #{feature_extraction_forward.1} parent=1 // pred_region
      _
    $region85: #{feature_extraction_forward.1} parent=1 // pred_fallthru
      _
    // Predicated region
    $region86: #{feature_extraction_forward.1} parent=1 // pred_check
      _
    $region87: #{feature_extraction_forward.1} parent=1 // pred_check_branch
      %6813 = sbr.rel (0) target = $region89
    $region88: #{feature_extraction_forward.1} parent=1 // pred_region
      _
    $region89: #{feature_extraction_forward.1} parent=1 // pred_fallthru
      _
    %6814 = vsyncpa [#allocation6], 1
    %6815 = vsyncpa [#allocation8], 1
    %6816 = vsyncpa [#allocation11], 1
    %6817 = vsyncpa [#allocation14], 1

</llo_original>
